<compile_context>
chip_gen: v7x
topology: tpu7x:2x2x1
jax: 0.10.0
libtpu: 0.0.40
codegen_flags: <defaults>
</compile_context>

<pallas_src>
import functools

import jax
import jax.numpy as jnp
from jax.experimental import pallas as pl
from jax.experimental.pallas import tpu as pltpu

_EPS = 1e-5  # PyTorch BatchNorm2d default eps


def _round_up(v, m):
    return ((v + m - 1) // m) * m


def _pick_row_tile(ho, target):
    """Largest even divisor of Ho that is <= target (Ho is always even)."""
    tr = min(target, ho)
    while tr > 2 and (ho % tr or tr % 2):
        tr -= 1
    return max(tr, 2)


def _conv3x3_rows(z, w_ref, rows_out):
    """3x3 conv, columns padded by 1 here, vertical halo rows already in z.

    z:     (rows_out + 2, Wc, Cin) bf16 value.
    w_ref: (3, 3*Cin, Cout) ref, im2col rows grouped by dy (dx, cin minor).
    Returns f32 (rows_out * Wc, Cout).
    """
    rz, wc, cin = z.shape
    cout = w_ref.shape[-1]
    zc = jnp.zeros((rz, 1, cin), z.dtype)
    zp = jnp.concatenate([zc, z, zc], axis=1)                 # (rows_out+2, Wc+2, Cin)
    acc = jnp.zeros((rows_out * wc, cout), jnp.float32)
    for dy in range(3):                                       # 3 accumulating MXU pushes
        patch = jnp.concatenate(
            [zp[dy:dy + rows_out, dx:dx + wc, :] for dx in range(3)], axis=-1,
        ).reshape(rows_out * wc, 3 * cin)
        acc = acc + jnp.dot(patch, w_ref[dy], preferred_element_type=jnp.float32)
    return acc


def _upsample_kernel(x_ref, skip_ref, wt_ref, w1_ref, w2_ref, bias_ref, out_ref,
                     *, Ho, Wo, TR, C2p):
    t = pl.program_id(1)
    r0 = t * TR                       # first output row owned by this grid step

    # -------- stage 1: ConvTranspose2d(3, s=2, p=1, op=1) + ReLU, 4-phase --------
    xt = x_ref[0]                                             # (TR/2 + 3, W, C1p) bf16
    rx_rows, Wx, C1p = xt.shape
    Rx = rx_rows - 1                                          # = TR/2 + 2
    xa = xt[0:Rx]                                             # x rows k
    xb = xt[1:Rx + 1]                                         # x rows k+1
    zc = jnp.zeros((Rx, 1, C1p), xt.dtype)
    xar = jnp.concatenate([xa[:, 1:, :], zc], axis=1)         # x cols j+1 (zero at j+1==W)
    xbr = jnp.concatenate([xb[:, 1:, :], zc], axis=1)
    xa2, xb2, xar2, xbr2 = (v.reshape(Rx * Wx, C1p) for v in (xa, xb, xar, xbr))

    def mm(v, tap):                                           # tap = ky*3 + kx (flipped kernel)
        return jnp.dot(v, wt_ref[tap], preferred_element_type=jnp.float32)

    # phase = (out_row % 2, out_col % 2); only the non-zero taps of the dilated conv
    e00 = mm(xa2, 4)
    e01 = mm(xa2, 3) + mm(xar2, 5)
    e10 = mm(xa2, 1) + mm(xb2, 7)
    e11 = mm(xa2, 0) + mm(xar2, 2) + mm(xb2, 6) + mm(xbr2, 8)

    bt = bias_ref[0:1, :]                                     # (1, C2p) f32

    def act(e):
        return jnp.maximum(e + bt, 0.0).reshape(Rx, Wx, C2p)

    e00, e01, e10, e11 = act(e00), act(e01), act(e10), act(e11)

    # interleave the 4 phases into (TR + 4, Wo, C2p)
    even = jnp.concatenate([e00[:, :, None, :], e01[:, :, None, :]], axis=2).reshape(Rx, Wo, C2p)
    odd = jnp.concatenate([e10[:, :, None, :], e11[:, :, None, :]], axis=2).reshape(Rx, Wo, C2p)
    up = jnp.concatenate([even[:, None], odd[:, None]], axis=1).reshape(2 * Rx, Wo, C2p)

    # `up` rows cover output rows [r0-2, r0+TR+2); zero rows outside the image
    rows = jax.lax.broadcasted_iota(jnp.int32, (2 * Rx, 1, 1), 0) + (r0 - 2)
    up = jnp.where((rows >= 0) & (rows < Ho), up, 0.0)

    # -------- concat([up, skip], channel) --------
    full = jnp.concatenate([up.astype(jnp.bfloat16), skip_ref[0]], axis=-1)   # (TR+4, Wo, Ccp)

    # -------- conv1 3x3 + folded BN + ReLU  (y1 rows [r0-1, r0+TR+1)) --------
    R1 = TR + 2
    y1 = jnp.maximum(_conv3x3_rows(full, w1_ref, R1) + bias_ref[1:2, :], 0.0)
    y1 = y1.reshape(R1, Wo, C2p)
    rows1 = jax.lax.broadcasted_iota(jnp.int32, (R1, 1, 1), 0) + (r0 - 1)
    y1 = jnp.where((rows1 >= 0) & (rows1 < Ho), y1, 0.0)      # conv2's vertical zero pad

    # -------- conv2 3x3 + folded BN + ReLU  (output rows [r0, r0+TR)) --------
    y2 = jnp.maximum(_conv3x3_rows(y1.astype(jnp.bfloat16), w2_ref, TR) + bias_ref[2:3, :], 0.0)
    out_ref[0] = y2.reshape(TR, Wo, C2p).astype(out_ref.dtype)


def up_sample(x_nchw, cat_nchw, params, *, row_tile=8):
    """Pallas implementation of UpSample.forward(inputs, cat_layer) (single-tensor cat)."""
    f32, bf16 = jnp.float32, jnp.bfloat16
    x = jnp.transpose(x_nchw, (0, 2, 3, 1)).astype(f32)       # NCHW -> NHWC
    skip = jnp.transpose(cat_nchw, (0, 2, 3, 1)).astype(f32)
    N, H, W, C1 = x.shape
    _, Ho, Wo, Cskip = skip.shape
    assert Ho == 2 * H and Wo == 2 * W, (Ho, Wo, H, W)
    C2 = params["wt"].shape[1]
    assert params["w1"].shape[1] == C2 + Cskip

    C1p, C2p, Csp = (_round_up(c, 128) for c in (C1, C2, Cskip))
    Ccp = C2p + Csp

    TR = _pick_row_tile(Ho, row_tile)     # output rows per grid step (even, divides Ho)
    TR2 = TR // 2
    n_t = Ho // TR

    # ---- activations: NHWC, channels zero-padded to lane width, bf16, halo'd row tiles ----
    xp = jnp.pad(x, ((0, 0), (1, 2), (0, 0), (0, C1p - C1))).astype(bf16)       # +1 / +2 rows
    x_tiles = jnp.stack(
        [xp[:, t * TR2: t * TR2 + TR2 + 3] for t in range(n_t)], axis=1,
    ).reshape(N * n_t, TR2 + 3, W, C1p)
    skp = jnp.pad(skip, ((0, 0), (2, 2), (0, 0), (0, Csp - Cskip))).astype(bf16)
    skip_tiles = jnp.stack(
        [skp[:, t * TR: t * TR + TR + 4] for t in range(n_t)], axis=1,
    ).reshape(N * n_t, TR + 4, Wo, Csp)

    # ---- ConvTranspose weight -> 9 flipped taps (ky*3+kx, C1p, C2p), bf16 ----
    wtf = params["wt"][:, :, ::-1, ::-1]                       # (C1, C2, 3, 3), spatially flipped
    wt_taps = jnp.transpose(wtf, (2, 3, 0, 1)).reshape(9, C1, C2)
    wt_taps = jnp.pad(wt_taps, ((0, 0), (0, C1p - C1), (0, C2p - C2))).astype(bf16)

    # ---- conv1/conv2: fold eval-mode BN scale into weights, group im2col rows by dy ----
    a1 = params["g1"] / jnp.sqrt(params["v1"] + _EPS)
    a2 = params["g2"] / jnp.sqrt(params["v2"] + _EPS)
    w1_eff = params["w1"].astype(f32) * a1[:, None, None, None]
    w2_eff = params["w2"].astype(f32) * a2[:, None, None, None]
    w1_pad = jnp.zeros((C2p, Ccp, 3, 3), f32)
    w1_pad = w1_pad.at[:C2, :C2].set(w1_eff[:, :C2])                 # up channels
    w1_pad = w1_pad.at[:C2, C2p:C2p + Cskip].set(w1_eff[:, C2:])     # skip channels
    w2_pad = jnp.zeros((C2p, C2p, 3, 3), f32).at[:C2, :C2].set(w2_eff)
    w1_g = jnp.transpose(w1_pad, (2, 3, 1, 0)).reshape(3, 3 * Ccp, C2p).astype(bf16)
    w2_g = jnp.transpose(w2_pad, (2, 3, 1, 0)).reshape(3, 3 * C2p, C2p).astype(bf16)

    # ---- biases (f32), packed into one lane-padded (8, C2p) block: [bt, bn1, bn2] ----
    b1_eff = params["beta1"] + (params["b1"] - params["m1"]) * a1
    b2_eff = params["beta2"] + (params["b2"] - params["m2"]) * a2
    bias_pack = jnp.zeros((8, C2p), f32)
    bias_pack = bias_pack.at[0, :C2].set(params["bt"].astype(f32))
    bias_pack = bias_pack.at[1, :C2].set(b1_eff.astype(f32))
    bias_pack = bias_pack.at[2, :C2].set(b2_eff.astype(f32))

    kernel = functools.partial(_upsample_kernel, Ho=Ho, Wo=Wo, TR=TR, C2p=C2p)

    # crude per-step VMEM budget: double-buffered I/O tiles + resident weights + live temps
    est = (2 * (TR2 + 3) * W * C1p * 2 + 2 * (TR + 4) * Wo * Csp * 2
           + 2 * TR * Wo * C2p * 4
           + 2 * (9 * C1p * C2p + 9 * Ccp * C2p + 9 * C2p * C2p) * 2 + 8 * C2p * 4
           + (TR + 2) * Wo * 3 * Ccp * 2 + (TR + 4) * Wo * Ccp * 2
           + (TR + 4) * Wo * C2p * 4 + 2 * (TR + 2) * Wo * C2p * 4 + 2 * TR * Wo * C2p * 4)
    vmem_limit = int(min(100 * 2 ** 20, max(32 * 2 ** 20, 2 * est)))

    out = pl.pallas_call(
        kernel,
        out_shape=jax.ShapeDtypeStruct((N, Ho, Wo, C2p), f32),
        grid_spec=pltpu.PrefetchScalarGridSpec(
            num_scalar_prefetch=0,
            grid=(N, n_t),                                   # (image, output-row tile)
            in_specs=[
                pl.BlockSpec((1, TR2 + 3, W, C1p), lambda n, t: (n * n_t + t, 0, 0, 0)),
                pl.BlockSpec((1, TR + 4, Wo, Csp), lambda n, t: (n * n_t + t, 0, 0, 0)),
                pl.BlockSpec((9, C1p, C2p), lambda n, t: (0, 0, 0)),
                pl.BlockSpec((3, 3 * Ccp, C2p), lambda n, t: (0, 0, 0)),
                pl.BlockSpec((3, 3 * C2p, C2p), lambda n, t: (0, 0, 0)),
                pl.BlockSpec((8, C2p), lambda n, t: (0, 0)),
            ],
            out_specs=pl.BlockSpec((1, TR, Wo, C2p), lambda n, t: (n, t, 0, 0)),
        ),
        compiler_params=pltpu.CompilerParams(
            dimension_semantics=("parallel", "parallel"),    # batch + row tiles (v7x dual TC)
            vmem_limit_bytes=vmem_limit),
    )(x_tiles, skip_tiles, wt_taps, w1_g, w2_g, bias_pack)

    return jnp.transpose(out[..., :C2], (0, 3, 1, 2))        # drop pad channels, NHWC -> NCHW


# --------------------------- references for the self-test ---------------------------

def _ref_forward(x, skip, p):
    """Pure-JAX f32 reference mirroring the PyTorch module (BN in eval mode)."""
    w_conv = jnp.transpose(p["wt"][:, :, ::-1, ::-1], (1, 0, 2, 3))   # (cout, cin, kh, kw)
    y = jax.lax.conv_general_dilated(
        x, w_conv, window_strides=(1, 1), padding=((1, 2), (1, 2)),
        lhs_dilation=(2, 2), dimension_numbers=("NCHW", "OIHW", "NCHW"),
        precision=jax.lax.Precision.HIGHEST)
    y = jnp.maximum(y + p["bt"][None, :, None, None], 0.0)
    y = jnp.concatenate([y, skip], axis=1)

    def conv_bn_relu(z, w, b, g, beta, m, v):
        z = jax.lax.conv_general_dilated(
            z, w, window_strides=(1, 1), padding=((1, 1), (1, 1)),
            dimension_numbers=("NCHW", "OIHW", "NCHW"),
            precision=jax.lax.Precision.HIGHEST)
        z = z + b[None, :, None, None]
        z = (g[None, :, None, None] * (z - m[None, :, None, None])
             / jnp.sqrt(v[None, :, None, None] + _EPS) + beta[None, :, None, None])
        return jnp.maximum(z, 0.0)

    y = conv_bn_relu(y, p["w1"], p["b1"], p["g1"], p["beta1"], p["m1"], p["v1"])
    y = conv_bn_relu(y, p["w2"], p["b2"], p["g2"], p["beta2"], p["m2"], p["v2"])
    return y


def _matched_ref(x, skip, p):
    """Same math as the kernel: bf16 matmul operands, f32 accumulate, BN folded."""
    f32, bf16 = jnp.float32, jnp.bfloat16
    a1 = p["g1"] / jnp.sqrt(p["v1"] + _EPS)
    a2 = p["g2"] / jnp.sqrt(p["v2"] + _EPS)
    w_t = jnp.transpose(p["wt"][:, :, ::-1, ::-1], (1, 0, 2, 3))
    y = jax.lax.conv_general_dilated(
        x.astype(bf16), w_t.astype(bf16), (1, 1), ((1, 2), (1, 2)),
        lhs_dilation=(2, 2), dimension_numbers=("NCHW", "OIHW", "NCHW"),
        preferred_element_type=f32)
    y = jnp.maximum(y + p["bt"][None, :, None, None], 0.0)
    y = jnp.concatenate([y, skip], axis=1)

    def block(z, w, a, bias):
        z = jax.lax.conv_general_dilated(
            z.astype(bf16), (w * a[:, None, None, None]).astype(bf16),
            (1, 1), ((1, 1), (1, 1)),
            dimension_numbers=("NCHW", "OIHW", "NCHW"), preferred_element_type=f32)
        return jnp.maximum(z + bias[None, :, None, None], 0.0)

    y = block(y, p["w1"], a1, p["beta1"] + (p["b1"] - p["m1"]) * a1)
    y = block(y, p["w2"], a2, p["beta2"] + (p["b2"] - p["m2"]) * a2)
    return y


if __name__ == "__main__":
    key = jax.random.PRNGKey(0)
    N, C1, C2, H = 2, 8, 4, 8            # output spatial = 16, conv input ch = C1
    Cskip = C1 - C2
    ks = jax.random.split(key, 16)
    x = jax.random.normal(ks[0], (N, C1, H, H), jnp.float32)
    skip = jax.random.normal(ks[1], (N, Cskip, 2 * H, 2 * H), jnp.float32)
    params = {
        "wt": 0.2 * jax.random.normal(ks[2], (C1, C2, 3, 3), jnp.float32),
        "bt": 0.1 * jax.random.normal(ks[3], (C2,), jnp.float32),
        "w1": 0.2 * jax.random.normal(ks[4], (C2, C1, 3, 3), jnp.float32),
        "b1": 0.1 * jax.random.normal(ks[5], (C2,), jnp.float32),
        "g1": 1.0 + 0.1 * jax.random.normal(ks[6], (C2,), jnp.float32),
        "beta1": 0.1 * jax.random.normal(ks[7], (C2,), jnp.float32),
        "m1": 0.1 * jax.random.normal(ks[8], (C2,), jnp.float32),
        "v1": jnp.abs(jax.random.normal(ks[9], (C2,), jnp.float32)) + 0.5,
        "w2": 0.2 * jax.random.normal(ks[10], (C2, C2, 3, 3), jnp.float32),
        "b2": 0.1 * jax.random.normal(ks[11], (C2,), jnp.float32),
        "g2": 1.0 + 0.1 * jax.random.normal(ks[12], (C2,), jnp.float32),
        "beta2": 0.1 * jax.random.normal(ks[13], (C2,), jnp.float32),
        "m2": 0.1 * jax.random.normal(ks[14], (C2,), jnp.float32),
        "v2": jnp.abs(jax.random.normal(ks[15], (C2,), jnp.float32)) + 0.5,
    }

    # row_tile=8 -> 2 row tiles per image: exercises the halo / tiling logic.
    out = jax.block_until_ready(up_sample(x, skip, params, row_tile=8))
    assert out.shape == (N, C2, 2 * H, 2 * H), out.shape

    matched = _matched_ref(x, skip, params)         # same bf16/folded-BN math
    ref = _ref_forward(x, skip, params)             # faithful f32 module
    err_m = float(jnp.max(jnp.abs(out - matched)))
    err_f = float(jnp.max(jnp.abs(out - ref)))
    assert jnp.allclose(out, matched, atol=1e-2, rtol=1e-2), err_m
    assert jnp.allclose(out, ref, atol=1.5e-1, rtol=5e-2), err_f   # bf16-operand tolerance
    print("KERNEL_OK")
</pallas_src>

<mosaic_0001>
module attributes {stable_mosaic.version = 11 : i64} {
  func.func @_upsample_kernel(%arg0: i32, %arg1: i32, %arg2: memref<1x7x8x128xbf16, #tpu.memory_space<vmem>>, %arg3: memref<1x12x16x128xbf16, #tpu.memory_space<vmem>>, %arg4: memref<9x128x128xbf16, #tpu.memory_space<vmem>>, %arg5: memref<3x768x128xbf16, #tpu.memory_space<vmem>>, %arg6: memref<3x384x128xbf16, #tpu.memory_space<vmem>>, %arg7: memref<8x128xf32, #tpu.memory_space<vmem>>, %arg8: memref<1x8x16x128xf32, #tpu.memory_space<vmem>>) attributes {dimension_semantics = [#tpu.dimension_semantics<parallel>, #tpu.dimension_semantics<parallel>], iteration_bounds = array<i64: 2, 2>, scalar_prefetch = 0 : i64, scratch_operands = 0 : i64, tpu.core_type = #tpu.core_type<tc>, window_params = [{transform_indices = @transform_0, window_bounds = array<i64: 1, 7, 8, 128>}, {transform_indices = @transform_1, window_bounds = array<i64: 1, 12, 16, 128>}, {pipeline_mode = #tpu.pipeline_mode<synchronous>, transform_indices = @transform_2, window_bounds = array<i64: 9, 128, 128>}, {pipeline_mode = #tpu.pipeline_mode<synchronous>, transform_indices = @transform_3, window_bounds = array<i64: 3, 768, 128>}, {pipeline_mode = #tpu.pipeline_mode<synchronous>, transform_indices = @transform_4, window_bounds = array<i64: 3, 384, 128>}, {pipeline_mode = #tpu.pipeline_mode<synchronous>, transform_indices = @transform_5, window_bounds = array<i64: 8, 128>}, {transform_indices = @transform_6, window_bounds = array<i64: 1, 8, 16, 128>}]} {
    %c8_i32 = arith.constant 8 : i32
    %0 = arith.muli %arg1, %c8_i32 : i32
    %c0 = arith.constant 0 : index
    %c0_0 = arith.constant 0 : index
    %c0_1 = arith.constant 0 : index
    %c0_2 = arith.constant 0 : index
    %1 = vector.load %arg2[%c0, %c0_0, %c0_1, %c0_2] : memref<1x7x8x128xbf16, #tpu.memory_space<vmem>>, vector<1x7x8x128xbf16>
    %2 = vector.shape_cast %1 : vector<1x7x8x128xbf16> to vector<7x8x128xbf16>
    %3 = vector.extract_strided_slice %2 {offsets = [0, 0, 0], sizes = [6, 8, 128], strides = [1, 1, 1]} : vector<7x8x128xbf16> to vector<6x8x128xbf16>
    %4 = vector.extract_strided_slice %2 {offsets = [1, 0, 0], sizes = [6, 8, 128], strides = [1, 1, 1]} : vector<7x8x128xbf16> to vector<6x8x128xbf16>
    %cst = arith.constant 0.000000e+00 : bf16
    %5 = vector.broadcast %cst : bf16 to vector<6x1x128xbf16>
    %6 = vector.extract_strided_slice %3 {offsets = [0, 1, 0], sizes = [6, 7, 128], strides = [1, 1, 1]} : vector<6x8x128xbf16> to vector<6x7x128xbf16>
    %7 = tpu.concatenate %6, %5 in 1 : vector<6x7x128xbf16>, vector<6x1x128xbf16> -> vector<6x8x128xbf16>
    %8 = vector.extract_strided_slice %4 {offsets = [0, 1, 0], sizes = [6, 7, 128], strides = [1, 1, 1]} : vector<6x8x128xbf16> to vector<6x7x128xbf16>
    %9 = tpu.concatenate %8, %5 in 1 : vector<6x7x128xbf16>, vector<6x1x128xbf16> -> vector<6x8x128xbf16>
    %10 = vector.shape_cast %3 : vector<6x8x128xbf16> to vector<48x128xbf16>
    %11 = vector.shape_cast %4 : vector<6x8x128xbf16> to vector<48x128xbf16>
    %12 = vector.shape_cast %7 : vector<6x8x128xbf16> to vector<48x128xbf16>
    %13 = vector.shape_cast %9 : vector<6x8x128xbf16> to vector<48x128xbf16>
    %c4 = arith.constant 4 : index
    %c0_3 = arith.constant 0 : index
    %c0_4 = arith.constant 0 : index
    %14 = vector.load %arg4[%c4, %c0_3, %c0_4] : memref<9x128x128xbf16, #tpu.memory_space<vmem>>, vector<1x128x128xbf16>
    %15 = vector.shape_cast %14 : vector<1x128x128xbf16> to vector<128x128xbf16>
    %cst_5 = arith.constant dense<0.000000e+00> : vector<48x128xf32>
    %16 = tpu.matmul %10, %15, %cst_5 {dimension_numbers = #tpu.dot_dimension_numbers<[1], [0], [0], [1], [0, 0, 1, 1], [], []>} : vector<48x128xbf16>, vector<128x128xbf16>, vector<48x128xf32> -> vector<48x128xf32>
    %c3 = arith.constant 3 : index
    %c0_6 = arith.constant 0 : index
    %c0_7 = arith.constant 0 : index
    %17 = vector.load %arg4[%c3, %c0_6, %c0_7] : memref<9x128x128xbf16, #tpu.memory_space<vmem>>, vector<1x128x128xbf16>
    %18 = vector.shape_cast %17 : vector<1x128x128xbf16> to vector<128x128xbf16>
    %cst_8 = arith.constant dense<0.000000e+00> : vector<48x128xf32>
    %19 = tpu.matmul %10, %18, %cst_8 {dimension_numbers = #tpu.dot_dimension_numbers<[1], [0], [0], [1], [0, 0, 1, 1], [], []>} : vector<48x128xbf16>, vector<128x128xbf16>, vector<48x128xf32> -> vector<48x128xf32>
    %c5 = arith.constant 5 : index
    %c0_9 = arith.constant 0 : index
    %c0_10 = arith.constant 0 : index
    %20 = vector.load %arg4[%c5, %c0_9, %c0_10] : memref<9x128x128xbf16, #tpu.memory_space<vmem>>, vector<1x128x128xbf16>
    %21 = vector.shape_cast %20 : vector<1x128x128xbf16> to vector<128x128xbf16>
    %cst_11 = arith.constant dense<0.000000e+00> : vector<48x128xf32>
    %22 = tpu.matmul %12, %21, %cst_11 {dimension_numbers = #tpu.dot_dimension_numbers<[1], [0], [0], [1], [0, 0, 1, 1], [], []>} : vector<48x128xbf16>, vector<128x128xbf16>, vector<48x128xf32> -> vector<48x128xf32>
    %23 = arith.addf %19, %22 : vector<48x128xf32>
    %c1 = arith.constant 1 : index
    %c0_12 = arith.constant 0 : index
    %c0_13 = arith.constant 0 : index
    %24 = vector.load %arg4[%c1, %c0_12, %c0_13] : memref<9x128x128xbf16, #tpu.memory_space<vmem>>, vector<1x128x128xbf16>
    %25 = vector.shape_cast %24 : vector<1x128x128xbf16> to vector<128x128xbf16>
    %cst_14 = arith.constant dense<0.000000e+00> : vector<48x128xf32>
    %26 = tpu.matmul %10, %25, %cst_14 {dimension_numbers = #tpu.dot_dimension_numbers<[1], [0], [0], [1], [0, 0, 1, 1], [], []>} : vector<48x128xbf16>, vector<128x128xbf16>, vector<48x128xf32> -> vector<48x128xf32>
    %c7 = arith.constant 7 : index
    %c0_15 = arith.constant 0 : index
    %c0_16 = arith.constant 0 : index
    %27 = vector.load %arg4[%c7, %c0_15, %c0_16] : memref<9x128x128xbf16, #tpu.memory_space<vmem>>, vector<1x128x128xbf16>
    %28 = vector.shape_cast %27 : vector<1x128x128xbf16> to vector<128x128xbf16>
    %cst_17 = arith.constant dense<0.000000e+00> : vector<48x128xf32>
    %29 = tpu.matmul %11, %28, %cst_17 {dimension_numbers = #tpu.dot_dimension_numbers<[1], [0], [0], [1], [0, 0, 1, 1], [], []>} : vector<48x128xbf16>, vector<128x128xbf16>, vector<48x128xf32> -> vector<48x128xf32>
    %30 = arith.addf %26, %29 : vector<48x128xf32>
    %c0_18 = arith.constant 0 : index
    %c0_19 = arith.constant 0 : index
    %c0_20 = arith.constant 0 : index
    %31 = vector.load %arg4[%c0_18, %c0_19, %c0_20] : memref<9x128x128xbf16, #tpu.memory_space<vmem>>, vector<1x128x128xbf16>
    %32 = vector.shape_cast %31 : vector<1x128x128xbf16> to vector<128x128xbf16>
    %cst_21 = arith.constant dense<0.000000e+00> : vector<48x128xf32>
    %33 = tpu.matmul %10, %32, %cst_21 {dimension_numbers = #tpu.dot_dimension_numbers<[1], [0], [0], [1], [0, 0, 1, 1], [], []>} : vector<48x128xbf16>, vector<128x128xbf16>, vector<48x128xf32> -> vector<48x128xf32>
    %c2 = arith.constant 2 : index
    %c0_22 = arith.constant 0 : index
    %c0_23 = arith.constant 0 : index
    %34 = vector.load %arg4[%c2, %c0_22, %c0_23] : memref<9x128x128xbf16, #tpu.memory_space<vmem>>, vector<1x128x128xbf16>
    %35 = vector.shape_cast %34 : vector<1x128x128xbf16> to vector<128x128xbf16>
    %cst_24 = arith.constant dense<0.000000e+00> : vector<48x128xf32>
    %36 = tpu.matmul %12, %35, %cst_24 {dimension_numbers = #tpu.dot_dimension_numbers<[1], [0], [0], [1], [0, 0, 1, 1], [], []>} : vector<48x128xbf16>, vector<128x128xbf16>, vector<48x128xf32> -> vector<48x128xf32>
    %37 = arith.addf %33, %36 : vector<48x128xf32>
    %c6 = arith.constant 6 : index
    %c0_25 = arith.constant 0 : index
    %c0_26 = arith.constant 0 : index
    %38 = vector.load %arg4[%c6, %c0_25, %c0_26] : memref<9x128x128xbf16, #tpu.memory_space<vmem>>, vector<1x128x128xbf16>
    %39 = vector.shape_cast %38 : vector<1x128x128xbf16> to vector<128x128xbf16>
    %cst_27 = arith.constant dense<0.000000e+00> : vector<48x128xf32>
    %40 = tpu.matmul %11, %39, %cst_27 {dimension_numbers = #tpu.dot_dimension_numbers<[1], [0], [0], [1], [0, 0, 1, 1], [], []>} : vector<48x128xbf16>, vector<128x128xbf16>, vector<48x128xf32> -> vector<48x128xf32>
    %41 = arith.addf %37, %40 : vector<48x128xf32>
    %c8 = arith.constant 8 : index
    %c0_28 = arith.constant 0 : index
    %c0_29 = arith.constant 0 : index
    %42 = vector.load %arg4[%c8, %c0_28, %c0_29] : memref<9x128x128xbf16, #tpu.memory_space<vmem>>, vector<1x128x128xbf16>
    %43 = vector.shape_cast %42 : vector<1x128x128xbf16> to vector<128x128xbf16>
    %cst_30 = arith.constant dense<0.000000e+00> : vector<48x128xf32>
    %44 = tpu.matmul %13, %43, %cst_30 {dimension_numbers = #tpu.dot_dimension_numbers<[1], [0], [0], [1], [0, 0, 1, 1], [], []>} : vector<48x128xbf16>, vector<128x128xbf16>, vector<48x128xf32> -> vector<48x128xf32>
    %45 = arith.addf %41, %44 : vector<48x128xf32>
    %c0_31 = arith.constant 0 : index
    %c0_32 = arith.constant 0 : index
    %46 = vector.load %arg7[%c0_31, %c0_32] : memref<8x128xf32, #tpu.memory_space<vmem>>, vector<1x128xf32>
    %47 = vector.broadcast %46 : vector<1x128xf32> to vector<48x128xf32>
    %48 = arith.addf %16, %47 : vector<48x128xf32>
    %cst_33 = arith.constant 0.000000e+00 : f32
    %49 = vector.broadcast %cst_33 : f32 to vector<48x128xf32>
    %50 = arith.maximumf %48, %49 : vector<48x128xf32>
    %51 = vector.shape_cast %50 : vector<48x128xf32> to vector<6x8x128xf32>
    %52 = vector.broadcast %46 : vector<1x128xf32> to vector<48x128xf32>
    %53 = arith.addf %23, %52 : vector<48x128xf32>
    %cst_34 = arith.constant 0.000000e+00 : f32
    %54 = vector.broadcast %cst_34 : f32 to vector<48x128xf32>
    %55 = arith.maximumf %53, %54 : vector<48x128xf32>
    %56 = vector.shape_cast %55 : vector<48x128xf32> to vector<6x8x128xf32>
    %57 = vector.broadcast %46 : vector<1x128xf32> to vector<48x128xf32>
    %58 = arith.addf %30, %57 : vector<48x128xf32>
    %cst_35 = arith.constant 0.000000e+00 : f32
    %59 = vector.broadcast %cst_35 : f32 to vector<48x128xf32>
    %60 = arith.maximumf %58, %59 : vector<48x128xf32>
    %61 = vector.shape_cast %60 : vector<48x128xf32> to vector<6x8x128xf32>
    %62 = vector.broadcast %46 : vector<1x128xf32> to vector<48x128xf32>
    %63 = arith.addf %45, %62 : vector<48x128xf32>
    %cst_36 = arith.constant 0.000000e+00 : f32
    %64 = vector.broadcast %cst_36 : f32 to vector<48x128xf32>
    %65 = arith.maximumf %63, %64 : vector<48x128xf32>
    %66 = vector.shape_cast %65 : vector<48x128xf32> to vector<6x8x128xf32>
    %67 = vector.shape_cast %51 : vector<6x8x128xf32> to vector<6x8x1x128xf32>
    %68 = vector.shape_cast %56 : vector<6x8x128xf32> to vector<6x8x1x128xf32>
    %69 = tpu.concatenate %67, %68 in 2 : vector<6x8x1x128xf32>, vector<6x8x1x128xf32> -> vector<6x8x2x128xf32>
    %70 = vector.shape_cast %69 : vector<6x8x2x128xf32> to vector<6x16x128xf32>
    %71 = vector.shape_cast %61 : vector<6x8x128xf32> to vector<6x8x1x128xf32>
    %72 = vector.shape_cast %66 : vector<6x8x128xf32> to vector<6x8x1x128xf32>
    %73 = tpu.concatenate %71, %72 in 2 : vector<6x8x1x128xf32>, vector<6x8x1x128xf32> -> vector<6x8x2x128xf32>
    %74 = vector.shape_cast %73 : vector<6x8x2x128xf32> to vector<6x16x128xf32>
    %75 = vector.shape_cast %70 : vector<6x16x128xf32> to vector<6x1x16x128xf32>
    %76 = vector.shape_cast %74 : vector<6x16x128xf32> to vector<6x1x16x128xf32>
    %77 = tpu.concatenate %75, %76 in 1 : vector<6x1x16x128xf32>, vector<6x1x16x128xf32> -> vector<6x2x16x128xf32>
    %78 = vector.shape_cast %77 : vector<6x2x16x128xf32> to vector<12x16x128xf32>
    %79 = tpu.iota {dimensions = array<i32: 0>} : vector<12x1x1xi32>
    %c2_i32 = arith.constant 2 : i32
    %80 = arith.subi %0, %c2_i32 : i32
    %81 = vector.broadcast %80 : i32 to vector<12x1x1xi32>
    %82 = arith.addi %79, %81 : vector<12x1x1xi32>
    %c0_i32 = arith.constant 0 : i32
    %83 = vector.broadcast %c0_i32 : i32 to vector<12x1x1xi32>
    %84 = arith.cmpi sge, %82, %83 : vector<12x1x1xi32>
    %c16_i32 = arith.constant 16 : i32
    %85 = vector.broadcast %c16_i32 : i32 to vector<12x1x1xi32>
    %86 = arith.cmpi slt, %82, %85 : vector<12x1x1xi32>
    %87 = arith.andi %84, %86 : vector<12x1x1xi1>
    %cst_37 = arith.constant 0.000000e+00 : f32
    %88 = vector.shape_cast %87 : vector<12x1x1xi1> to vector<12x1x1xi1>
    %89 = vector.broadcast %88 : vector<12x1x1xi1> to vector<12x16x128xi1>
    %90 = vector.broadcast %cst_37 : f32 to vector<12x16x128xf32>
    %91 = arith.select %89, %78, %90 : vector<12x16x128xi1>, vector<12x16x128xf32>
    %92 = arith.truncf %91 : vector<12x16x128xf32> to vector<12x16x128xbf16>
    %c0_38 = arith.constant 0 : index
    %c0_39 = arith.constant 0 : index
    %c0_40 = arith.constant 0 : index
    %c0_41 = arith.constant 0 : index
    %93 = vector.load %arg3[%c0_38, %c0_39, %c0_40, %c0_41] : memref<1x12x16x128xbf16, #tpu.memory_space<vmem>>, vector<1x12x16x128xbf16>
    %94 = vector.shape_cast %93 : vector<1x12x16x128xbf16> to vector<12x16x128xbf16>
    %95 = tpu.concatenate %92, %94 in 2 : vector<12x16x128xbf16>, vector<12x16x128xbf16> -> vector<12x16x256xbf16>
    %cst_42 = arith.constant 0.000000e+00 : bf16
    %96 = vector.broadcast %cst_42 : bf16 to vector<12x1x256xbf16>
    %97 = tpu.concatenate %96, %95, %96 in 1 : vector<12x1x256xbf16>, vector<12x16x256xbf16>, vector<12x1x256xbf16> -> vector<12x18x256xbf16>
    %cst_43 = arith.constant 0.000000e+00 : f32
    %98 = vector.broadcast %cst_43 : f32 to vector<160x128xf32>
    %99 = vector.extract_strided_slice %97 {offsets = [0, 0, 0], sizes = [10, 16, 256], strides = [1, 1, 1]} : vector<12x18x256xbf16> to vector<10x16x256xbf16>
    %100 = vector.extract_strided_slice %97 {offsets = [0, 1, 0], sizes = [10, 16, 256], strides = [1, 1, 1]} : vector<12x18x256xbf16> to vector<10x16x256xbf16>
    %101 = vector.extract_strided_slice %97 {offsets = [0, 2, 0], sizes = [10, 16, 256], strides = [1, 1, 1]} : vector<12x18x256xbf16> to vector<10x16x256xbf16>
    %102 = tpu.concatenate %99, %100, %101 in 2 : vector<10x16x256xbf16>, vector<10x16x256xbf16>, vector<10x16x256xbf16> -> vector<10x16x768xbf16>
    %103 = vector.shape_cast %102 : vector<10x16x768xbf16> to vector<160x768xbf16>
    %c0_44 = arith.constant 0 : index
    %c0_45 = arith.constant 0 : index
    %c0_46 = arith.constant 0 : index
    %104 = vector.load %arg5[%c0_44, %c0_45, %c0_46] : memref<3x768x128xbf16, #tpu.memory_space<vmem>>, vector<1x768x128xbf16>
    %105 = vector.shape_cast %104 : vector<1x768x128xbf16> to vector<768x128xbf16>
    %cst_47 = arith.constant dense<0.000000e+00> : vector<160x128xf32>
    %106 = tpu.matmul %103, %105, %cst_47 {dimension_numbers = #tpu.dot_dimension_numbers<[1], [0], [0], [1], [0, 0, 1, 1], [], []>} : vector<160x768xbf16>, vector<768x128xbf16>, vector<160x128xf32> -> vector<160x128xf32>
    %107 = arith.addf %98, %106 : vector<160x128xf32>
    %108 = vector.extract_strided_slice %97 {offsets = [1, 0, 0], sizes = [10, 16, 256], strides = [1, 1, 1]} : vector<12x18x256xbf16> to vector<10x16x256xbf16>
    %109 = vector.extract_strided_slice %97 {offsets = [1, 1, 0], sizes = [10, 16, 256], strides = [1, 1, 1]} : vector<12x18x256xbf16> to vector<10x16x256xbf16>
    %110 = vector.extract_strided_slice %97 {offsets = [1, 2, 0], sizes = [10, 16, 256], strides = [1, 1, 1]} : vector<12x18x256xbf16> to vector<10x16x256xbf16>
    %111 = tpu.concatenate %108, %109, %110 in 2 : vector<10x16x256xbf16>, vector<10x16x256xbf16>, vector<10x16x256xbf16> -> vector<10x16x768xbf16>
    %112 = vector.shape_cast %111 : vector<10x16x768xbf16> to vector<160x768xbf16>
    %c1_48 = arith.constant 1 : index
    %c0_49 = arith.constant 0 : index
    %c0_50 = arith.constant 0 : index
    %113 = vector.load %arg5[%c1_48, %c0_49, %c0_50] : memref<3x768x128xbf16, #tpu.memory_space<vmem>>, vector<1x768x128xbf16>
    %114 = vector.shape_cast %113 : vector<1x768x128xbf16> to vector<768x128xbf16>
    %cst_51 = arith.constant dense<0.000000e+00> : vector<160x128xf32>
    %115 = tpu.matmul %112, %114, %cst_51 {dimension_numbers = #tpu.dot_dimension_numbers<[1], [0], [0], [1], [0, 0, 1, 1], [], []>} : vector<160x768xbf16>, vector<768x128xbf16>, vector<160x128xf32> -> vector<160x128xf32>
    %116 = arith.addf %107, %115 : vector<160x128xf32>
    %117 = vector.extract_strided_slice %97 {offsets = [2, 0, 0], sizes = [10, 16, 256], strides = [1, 1, 1]} : vector<12x18x256xbf16> to vector<10x16x256xbf16>
    %118 = vector.extract_strided_slice %97 {offsets = [2, 1, 0], sizes = [10, 16, 256], strides = [1, 1, 1]} : vector<12x18x256xbf16> to vector<10x16x256xbf16>
    %119 = vector.extract_strided_slice %97 {offsets = [2, 2, 0], sizes = [10, 16, 256], strides = [1, 1, 1]} : vector<12x18x256xbf16> to vector<10x16x256xbf16>
    %120 = tpu.concatenate %117, %118, %119 in 2 : vector<10x16x256xbf16>, vector<10x16x256xbf16>, vector<10x16x256xbf16> -> vector<10x16x768xbf16>
    %121 = vector.shape_cast %120 : vector<10x16x768xbf16> to vector<160x768xbf16>
    %c2_52 = arith.constant 2 : index
    %c0_53 = arith.constant 0 : index
    %c0_54 = arith.constant 0 : index
    %122 = vector.load %arg5[%c2_52, %c0_53, %c0_54] : memref<3x768x128xbf16, #tpu.memory_space<vmem>>, vector<1x768x128xbf16>
    %123 = vector.shape_cast %122 : vector<1x768x128xbf16> to vector<768x128xbf16>
    %cst_55 = arith.constant dense<0.000000e+00> : vector<160x128xf32>
    %124 = tpu.matmul %121, %123, %cst_55 {dimension_numbers = #tpu.dot_dimension_numbers<[1], [0], [0], [1], [0, 0, 1, 1], [], []>} : vector<160x768xbf16>, vector<768x128xbf16>, vector<160x128xf32> -> vector<160x128xf32>
    %125 = arith.addf %116, %124 : vector<160x128xf32>
    %c1_56 = arith.constant 1 : index
    %c0_57 = arith.constant 0 : index
    %126 = vector.load %arg7[%c1_56, %c0_57] : memref<8x128xf32, #tpu.memory_space<vmem>>, vector<1x128xf32>
    %127 = vector.broadcast %126 : vector<1x128xf32> to vector<160x128xf32>
    %128 = arith.addf %125, %127 : vector<160x128xf32>
    %cst_58 = arith.constant 0.000000e+00 : f32
    %129 = vector.broadcast %cst_58 : f32 to vector<160x128xf32>
    %130 = arith.maximumf %128, %129 : vector<160x128xf32>
    %131 = vector.shape_cast %130 : vector<160x128xf32> to vector<10x16x128xf32>
    %132 = tpu.iota {dimensions = array<i32: 0>} : vector<10x1x1xi32>
    %c1_i32 = arith.constant 1 : i32
    %133 = arith.subi %0, %c1_i32 : i32
    %134 = vector.broadcast %133 : i32 to vector<10x1x1xi32>
    %135 = arith.addi %132, %134 : vector<10x1x1xi32>
    %c0_i32_59 = arith.constant 0 : i32
    %136 = vector.broadcast %c0_i32_59 : i32 to vector<10x1x1xi32>
    %137 = arith.cmpi sge, %135, %136 : vector<10x1x1xi32>
    %c16_i32_60 = arith.constant 16 : i32
    %138 = vector.broadcast %c16_i32_60 : i32 to vector<10x1x1xi32>
    %139 = arith.cmpi slt, %135, %138 : vector<10x1x1xi32>
    %140 = arith.andi %137, %139 : vector<10x1x1xi1>
    %cst_61 = arith.constant 0.000000e+00 : f32
    %141 = vector.shape_cast %140 : vector<10x1x1xi1> to vector<10x1x1xi1>
    %142 = vector.broadcast %141 : vector<10x1x1xi1> to vector<10x16x128xi1>
    %143 = vector.broadcast %cst_61 : f32 to vector<10x16x128xf32>
    %144 = arith.select %142, %131, %143 : vector<10x16x128xi1>, vector<10x16x128xf32>
    %145 = arith.truncf %144 : vector<10x16x128xf32> to vector<10x16x128xbf16>
    %cst_62 = arith.constant 0.000000e+00 : bf16
    %146 = vector.broadcast %cst_62 : bf16 to vector<10x1x128xbf16>
    %147 = tpu.concatenate %146, %145, %146 in 1 : vector<10x1x128xbf16>, vector<10x16x128xbf16>, vector<10x1x128xbf16> -> vector<10x18x128xbf16>
    %cst_63 = arith.constant 0.000000e+00 : f32
    %148 = vector.broadcast %cst_63 : f32 to vector<128x128xf32>
    %149 = vector.extract_strided_slice %147 {offsets = [0, 0, 0], sizes = [8, 16, 128], strides = [1, 1, 1]} : vector<10x18x128xbf16> to vector<8x16x128xbf16>
    %150 = vector.extract_strided_slice %147 {offsets = [0, 1, 0], sizes = [8, 16, 128], strides = [1, 1, 1]} : vector<10x18x128xbf16> to vector<8x16x128xbf16>
    %151 = vector.extract_strided_slice %147 {offsets = [0, 2, 0], sizes = [8, 16, 128], strides = [1, 1, 1]} : vector<10x18x128xbf16> to vector<8x16x128xbf16>
    %152 = tpu.concatenate %149, %150, %151 in 2 : vector<8x16x128xbf16>, vector<8x16x128xbf16>, vector<8x16x128xbf16> -> vector<8x16x384xbf16>
    %153 = vector.shape_cast %152 : vector<8x16x384xbf16> to vector<128x384xbf16>
    %c0_64 = arith.constant 0 : index
    %c0_65 = arith.constant 0 : index
    %c0_66 = arith.constant 0 : index
    %154 = vector.load %arg6[%c0_64, %c0_65, %c0_66] : memref<3x384x128xbf16, #tpu.memory_space<vmem>>, vector<1x384x128xbf16>
    %155 = vector.shape_cast %154 : vector<1x384x128xbf16> to vector<384x128xbf16>
    %cst_67 = arith.constant dense<0.000000e+00> : vector<128x128xf32>
    %156 = tpu.matmul %153, %155, %cst_67 {dimension_numbers = #tpu.dot_dimension_numbers<[1], [0], [0], [1], [0, 0, 1, 1], [], []>} : vector<128x384xbf16>, vector<384x128xbf16>, vector<128x128xf32> -> vector<128x128xf32>
    %157 = arith.addf %148, %156 : vector<128x128xf32>
    %158 = vector.extract_strided_slice %147 {offsets = [1, 0, 0], sizes = [8, 16, 128], strides = [1, 1, 1]} : vector<10x18x128xbf16> to vector<8x16x128xbf16>
    %159 = vector.extract_strided_slice %147 {offsets = [1, 1, 0], sizes = [8, 16, 128], strides = [1, 1, 1]} : vector<10x18x128xbf16> to vector<8x16x128xbf16>
    %160 = vector.extract_strided_slice %147 {offsets = [1, 2, 0], sizes = [8, 16, 128], strides = [1, 1, 1]} : vector<10x18x128xbf16> to vector<8x16x128xbf16>
    %161 = tpu.concatenate %158, %159, %160 in 2 : vector<8x16x128xbf16>, vector<8x16x128xbf16>, vector<8x16x128xbf16> -> vector<8x16x384xbf16>
    %162 = vector.shape_cast %161 : vector<8x16x384xbf16> to vector<128x384xbf16>
    %c1_68 = arith.constant 1 : index
    %c0_69 = arith.constant 0 : index
    %c0_70 = arith.constant 0 : index
    %163 = vector.load %arg6[%c1_68, %c0_69, %c0_70] : memref<3x384x128xbf16, #tpu.memory_space<vmem>>, vector<1x384x128xbf16>
    %164 = vector.shape_cast %163 : vector<1x384x128xbf16> to vector<384x128xbf16>
    %cst_71 = arith.constant dense<0.000000e+00> : vector<128x128xf32>
    %165 = tpu.matmul %162, %164, %cst_71 {dimension_numbers = #tpu.dot_dimension_numbers<[1], [0], [0], [1], [0, 0, 1, 1], [], []>} : vector<128x384xbf16>, vector<384x128xbf16>, vector<128x128xf32> -> vector<128x128xf32>
    %166 = arith.addf %157, %165 : vector<128x128xf32>
    %167 = vector.extract_strided_slice %147 {offsets = [2, 0, 0], sizes = [8, 16, 128], strides = [1, 1, 1]} : vector<10x18x128xbf16> to vector<8x16x128xbf16>
    %168 = vector.extract_strided_slice %147 {offsets = [2, 1, 0], sizes = [8, 16, 128], strides = [1, 1, 1]} : vector<10x18x128xbf16> to vector<8x16x128xbf16>
    %169 = vector.extract_strided_slice %147 {offsets = [2, 2, 0], sizes = [8, 16, 128], strides = [1, 1, 1]} : vector<10x18x128xbf16> to vector<8x16x128xbf16>
    %170 = tpu.concatenate %167, %168, %169 in 2 : vector<8x16x128xbf16>, vector<8x16x128xbf16>, vector<8x16x128xbf16> -> vector<8x16x384xbf16>
    %171 = vector.shape_cast %170 : vector<8x16x384xbf16> to vector<128x384xbf16>
    %c2_72 = arith.constant 2 : index
    %c0_73 = arith.constant 0 : index
    %c0_74 = arith.constant 0 : index
    %172 = vector.load %arg6[%c2_72, %c0_73, %c0_74] : memref<3x384x128xbf16, #tpu.memory_space<vmem>>, vector<1x384x128xbf16>
    %173 = vector.shape_cast %172 : vector<1x384x128xbf16> to vector<384x128xbf16>
    %cst_75 = arith.constant dense<0.000000e+00> : vector<128x128xf32>
    %174 = tpu.matmul %171, %173, %cst_75 {dimension_numbers = #tpu.dot_dimension_numbers<[1], [0], [0], [1], [0, 0, 1, 1], [], []>} : vector<128x384xbf16>, vector<384x128xbf16>, vector<128x128xf32> -> vector<128x128xf32>
    %175 = arith.addf %166, %174 : vector<128x128xf32>
    %c2_76 = arith.constant 2 : index
    %c0_77 = arith.constant 0 : index
    %176 = vector.load %arg7[%c2_76, %c0_77] : memref<8x128xf32, #tpu.memory_space<vmem>>, vector<1x128xf32>
    %177 = vector.broadcast %176 : vector<1x128xf32> to vector<128x128xf32>
    %178 = arith.addf %175, %177 : vector<128x128xf32>
    %cst_78 = arith.constant 0.000000e+00 : f32
    %179 = vector.broadcast %cst_78 : f32 to vector<128x128xf32>
    %180 = arith.maximumf %178, %179 : vector<128x128xf32>
    %181 = vector.shape_cast %180 : vector<128x128xf32> to vector<8x16x128xf32>
    %c0_79 = arith.constant 0 : index
    %c0_80 = arith.constant 0 : index
    %c0_81 = arith.constant 0 : index
    %c0_82 = arith.constant 0 : index
    %182 = vector.load %arg8[%c0_79, %c0_80, %c0_81, %c0_82] : memref<1x8x16x128xf32, #tpu.memory_space<vmem>>, vector<1x8x16x128xf32>
    %183 = vector.shape_cast %182 : vector<1x8x16x128xf32> to vector<8x16x128xf32>
    %184 = vector.shape_cast %181 : vector<8x16x128xf32> to vector<1x8x16x128xf32>
    tpu.vector_store %arg8[%c0_79, %c0_80, %c0_81, %c0_82], %184 {strides = array<i32>} : memref<1x8x16x128xf32, #tpu.memory_space<vmem>>, vector<1x8x16x128xf32>,
    return
  }
  func.func @transform_0(%arg0: i32, %arg1: i32) -> (i32, i32, i32, i32) {
    %c2_i32 = arith.constant 2 : i32
    %0 = arith.muli %arg0, %c2_i32 : i32
    %1 = arith.addi %0, %arg1 : i32
    %c0_i32 = arith.constant 0 : i32
    %c0_i32_0 = arith.constant 0 : i32
    %c0_i32_1 = arith.constant 0 : i32
    %c0_i32_2 = arith.constant 0 : i32
    return %1, %c0_i32, %c0_i32_0, %c0_i32_1 : i32, i32, i32, i32
  }
  func.func @transform_1(%arg0: i32, %arg1: i32) -> (i32, i32, i32, i32) {
    %c2_i32 = arith.constant 2 : i32
    %0 = arith.muli %arg0, %c2_i32 : i32
    %1 = arith.addi %0, %arg1 : i32
    %c0_i32 = arith.constant 0 : i32
    %c0_i32_0 = arith.constant 0 : i32
    %c0_i32_1 = arith.constant 0 : i32
    %c0_i32_2 = arith.constant 0 : i32
    return %1, %c0_i32, %c0_i32_0, %c0_i32_1 : i32, i32, i32, i32
  }
  func.func @transform_2(%arg0: i32, %arg1: i32) -> (i32, i32, i32) {
    %c0_i32 = arith.constant 0 : i32
    %c0_i32_0 = arith.constant 0 : i32
    %c0_i32_1 = arith.constant 0 : i32
    %c0_i32_2 = arith.constant 0 : i32
    return %c0_i32, %c0_i32_0, %c0_i32_1 : i32, i32, i32
  }
  func.func @transform_3(%arg0: i32, %arg1: i32) -> (i32, i32, i32) {
    %c0_i32 = arith.constant 0 : i32
    %c0_i32_0 = arith.constant 0 : i32
    %c0_i32_1 = arith.constant 0 : i32
    %c0_i32_2 = arith.constant 0 : i32
    return %c0_i32, %c0_i32_0, %c0_i32_1 : i32, i32, i32
  }
  func.func @transform_4(%arg0: i32, %arg1: i32) -> (i32, i32, i32) {
    %c0_i32 = arith.constant 0 : i32
    %c0_i32_0 = arith.constant 0 : i32
    %c0_i32_1 = arith.constant 0 : i32
    %c0_i32_2 = arith.constant 0 : i32
    return %c0_i32, %c0_i32_0, %c0_i32_1 : i32, i32, i32
  }
  func.func @transform_5(%arg0: i32, %arg1: i32) -> (i32, i32) {
    %c0_i32 = arith.constant 0 : i32
    %c0_i32_0 = arith.constant 0 : i32
    %c0_i32_1 = arith.constant 0 : i32
    return %c0_i32, %c0_i32_0 : i32, i32
  }
  func.func @transform_6(%arg0: i32, %arg1: i32) -> (i32, i32, i32, i32) {
    %c0_i32 = arith.constant 0 : i32
    %c0_i32_0 = arith.constant 0 : i32
    %c0_i32_1 = arith.constant 0 : i32
    return %arg0, %arg1, %c0_i32, %c0_i32_0 : i32, i32, i32, i32
  }
}

</mosaic_0001>

<llo_original>
// kernel: tpu_custom_call.1
$region0: #{tpu_custom_call.1}
  #allocation0 [shape = 'u32[]', space=smem, size = 0x4, offset = 0x4, fixed_abs, tag = 'smem constant byte address 0x4 - core index']
  #allocation1 [shape = 'u32[144,128]{1,0:T(1,128)}', space=vmem, size = 0x12000, scoped, tag = 'internal scratch']
  %s0 = inlined_call_operand.hbm [shape: bf16[4,7,8,128], index: 0, kind: input, shape index: {}]
  %s1 = inlined_call_operand.hbm [shape: bf16[4,12,16,128], index: 1, kind: input, shape index: {}]
  %s2 = inlined_call_operand.hbm [shape: bf16[9,128,128], index: 2, kind: input, shape index: {}]
  %s3 = inlined_call_operand.hbm [shape: bf16[3,768,128], index: 3, kind: input, shape index: {}]
  %s4 = inlined_call_operand.hbm [shape: bf16[3,384,128], index: 4, kind: input, shape index: {}]
  %s5 = inlined_call_operand.vmem [shape: f32[8,128], index: 5, kind: input, shape index: {}]
  %s6 = inlined_call_operand.hbm [shape: f32[2,16,16,128], index: 6, kind: output, shape index: {}]
  %s7 = sld [smem:[#allocation0]]
  $region77: #{tpu_custom_call.1} parent=0
    _
  %s9 = ssub.s32 1, %s7
  %s10 = scalar_select 0, %s9, %s7
  $region1: #{tpu_custom_call.1} parent=0
    #allocation2 [shape = 'u8[28672]{0}', space=vmem, size = 0x7000, scoped, tag = 'input window, operand 0']
    #allocation3 [shape = 's32[2]{0}', space=sflag, size = 0x8, scoped, tag = 'scoped memory for tpu_custom_call.1']
    #allocation4 [shape = 's32[2]{0}', space=sflag, size = 0x8, scoped, tag = 'scoped memory for tpu_custom_call.1']
    #allocation5 [shape = 'u8[98304]{0}', space=vmem, size = 0x18000, scoped, tag = 'input window, operand 1']
    #allocation6 [shape = 's32[2]{0}', space=sflag, size = 0x8, scoped, tag = 'scoped memory for tpu_custom_call.1']
    #allocation7 [shape = 'u8[294912]{0}', space=vmem, size = 0x48000, scoped, tag = 'input window, operand 2, single buffered']
    #allocation8 [shape = 'u8[589824]{0}', space=vmem, size = 0x90000, scoped, tag = 'input window, operand 3, single buffered']
    #allocation9 [shape = 's32[1]{0}', space=sflag, size = 0x4, scoped, tag = 'scoped memory for tpu_custom_call.1']
    #allocation10 [shape = 'u8[294912]{0}', space=vmem, size = 0x48000, scoped, tag = 'input window, operand 4, single buffered']
    #allocation11 [shape = 'u8[131072]{0}', space=vmem, size = 0x20000, scoped, tag = 'output window, operand 0']
    %11 = vsyncpa [#allocation3], 0
    %s12 = scalar_lea.sflag [#allocation3], 1
    %13 = vsyncpa %s12, 0
    %14 = vsyncpa [#allocation6], 0
    %s15 = scalar_lea.sflag [#allocation6], 1
    %16 = vsyncpa %s15, 0
    %17 = vsyncpa [#allocation9], 0
    %18 = vsyncpa [#allocation4], 0
    %s19 = scalar_lea.sflag [#allocation4], 1
    %20 = vsyncpa %s19, 0
    loop: start=0, step=1, limit=6
    $region2: #{tpu_custom_call.1} parent=1 // loop_pre_header
      _
    $region3: #{tpu_custom_call.1} parent=1 // loop_header
      %s22 = sphi 0, %s26
      %p23 = scmp.ge.s32.totalorder %s22, 6
      %s29 = sphi 0, %s41
      %s30 = sphi 0, %s37
      %s31 = sphi 0, %s29
      %s32 = sphi 0, %s30
      %s33 = sphi 0, %s31
      %s34 = sphi 0, %s32
      %s48 = sphi 0, %s50
      %s51 = sphi 0, %s48
      %s52 = sphi 0, %s51
      %s68 = sphi 0, %s52
      %s78 = sphi 0, %s80
      %s81 = sphi 0, %s78
      %s82 = sphi 0, %s81
      %s98 = sphi 0, %s82
      %s102 = sphi 0, %s102
      %s104 = sphi 0, %s102
      %s105 = sphi 0, %s104
      %s119 = sphi 0, %s105
      %s123 = sphi 0, %s123
      %s125 = sphi 0, %s123
      %s126 = sphi 0, %s125
      %s140 = sphi 0, %s126
      %s144 = sphi 0, %s144
      %s146 = sphi 0, %s144
      %s147 = sphi 0, %s146
      %s161 = sphi 0, %s147
      %s165 = sphi 0, %s165
      %s167 = sphi 0, %s165
      %s168 = sphi 0, %s167
      %s182 = sphi 0, %s168
      %s190 = sphi 0, %s192
      %s193 = sphi 0, %s190
      %s194 = sphi 0, %s193
      %s210 = sphi 0, %s194
    $region4: #{tpu_custom_call.1} parent=1 // loop_header_branch
      %25 = sbr.rel (%p23) target = $region8
    $region5: #{tpu_custom_call.1} parent=1 // loop_body
      %s27 = ssub.s32 %s22, 1
      %s28 = ssub.s32 %s22, 2
      %s35 = sadd.s32 1, %s30
      %p36 = scmp.ge.s32.totalorder %s35, 2
      %s37 = scalar_select %p36, 0, %s35
      %s38 = sadd.s32 1, %s29
      %s39 = scalar_select %p36, %s38, %s29
      %p40 = scmp.ge.s32.totalorder %s39, 2
      %s41 = scalar_select %p40, 0, %s39
      %s42 = smul.u32 %s29, 2
      %s43 = sadd.s32 %s42, %s30
      %s44 = smul.u32 %s41, 2
      %s45 = sadd.s32 %s44, %s37
      %s46 = ssub.s32 %s43, %s45
      %p47 = scmp.eq.s32.totalorder %s46, 0
      %s49 = sadd.s32 %s48, 1
      %s50 = scalar_select %p47, %s48, %s49
      %p53 = pneg %p47
      %p54 = scmp.eq.s32.totalorder %s22, 3
      %p55 = por %p53, %p54
      %p56 = scmp.ne.s32.totalorder %s48, %s51
      %p57 = scmp.eq.s32.totalorder %s22, 0
      %p58 = por %p56, %p57
      %p59 = scmp.ne.s32.totalorder %s48, %s51
      %p60 = scmp.eq.s32.totalorder %s27, 3
      %p61 = por %p59, %p60
      %p62 = scmp.ne.s32.totalorder %s51, %s52
      %p63 = scmp.eq.s32.totalorder %s27, 0
      %p64 = por %p62, %p63
      %p65 = scmp.ne.s32.totalorder %s51, %s52
      %p66 = scmp.eq.s32.totalorder %s28, 3
      %p67 = por %p65, %p66
      %p69 = scmp.ne.s32.totalorder %s52, %s68
      %p70 = scmp.eq.s32.totalorder %s28, 0
      %p71 = por %p69, %p70
      %s72 = smul.u32 %s29, 2
      %s73 = sadd.s32 %s72, %s30
      %s74 = smul.u32 %s41, 2
      %s75 = sadd.s32 %s74, %s37
      %s76 = ssub.s32 %s73, %s75
      %p77 = scmp.eq.s32.totalorder %s76, 0
      %s79 = sadd.s32 %s78, 1
      %s80 = scalar_select %p77, %s78, %s79
      %p83 = pneg %p77
      %p84 = scmp.eq.s32.totalorder %s22, 3
      %p85 = por %p83, %p84
      %p86 = scmp.ne.s32.totalorder %s78, %s81
      %p87 = scmp.eq.s32.totalorder %s22, 0
      %p88 = por %p86, %p87
      %p89 = scmp.ne.s32.totalorder %s78, %s81
      %p90 = scmp.eq.s32.totalorder %s27, 3
      %p91 = por %p89, %p90
      %p92 = scmp.ne.s32.totalorder %s81, %s82
      %p93 = scmp.eq.s32.totalorder %s27, 0
      %p94 = por %p92, %p93
      %p95 = scmp.ne.s32.totalorder %s81, %s82
      %p96 = scmp.eq.s32.totalorder %s28, 3
      %p97 = por %p95, %p96
      %p99 = scmp.ne.s32.totalorder %s82, %s98
      %p100 = scmp.eq.s32.totalorder %s28, 0
      %p101 = por %p99, %p100
      %s103 = sadd.s32 %s102, 1
      %p106 = scmp.eq.s32.totalorder %s22, 3
      %p107 = scmp.ne.s32.totalorder %s102, %s104
      %p108 = scmp.eq.s32.totalorder %s22, 0
      %p109 = por %p107, %p108
      %p110 = scmp.ne.s32.totalorder %s102, %s104
      %p111 = scmp.eq.s32.totalorder %s27, 3
      %p112 = por %p110, %p111
      %p113 = scmp.ne.s32.totalorder %s104, %s105
      %p114 = scmp.eq.s32.totalorder %s27, 0
      %p115 = por %p113, %p114
      %p116 = scmp.ne.s32.totalorder %s104, %s105
      %p117 = scmp.eq.s32.totalorder %s28, 3
      %p118 = por %p116, %p117
      %p120 = scmp.ne.s32.totalorder %s105, %s119
      %p121 = scmp.eq.s32.totalorder %s28, 0
      %p122 = por %p120, %p121
      %s124 = sadd.s32 %s123, 1
      %p127 = scmp.eq.s32.totalorder %s22, 3
      %p128 = scmp.ne.s32.totalorder %s123, %s125
      %p129 = scmp.eq.s32.totalorder %s22, 0
      %p130 = por %p128, %p129
      %p131 = scmp.ne.s32.totalorder %s123, %s125
      %p132 = scmp.eq.s32.totalorder %s27, 3
      %p133 = por %p131, %p132
      %p134 = scmp.ne.s32.totalorder %s125, %s126
      %p135 = scmp.eq.s32.totalorder %s27, 0
      %p136 = por %p134, %p135
      %p137 = scmp.ne.s32.totalorder %s125, %s126
      %p138 = scmp.eq.s32.totalorder %s28, 3
      %p139 = por %p137, %p138
      %p141 = scmp.ne.s32.totalorder %s126, %s140
      %p142 = scmp.eq.s32.totalorder %s28, 0
      %p143 = por %p141, %p142
      %s145 = sadd.s32 %s144, 1
      %p148 = scmp.eq.s32.totalorder %s22, 3
      %p149 = scmp.ne.s32.totalorder %s144, %s146
      %p150 = scmp.eq.s32.totalorder %s22, 0
      %p151 = por %p149, %p150
      %p152 = scmp.ne.s32.totalorder %s144, %s146
      %p153 = scmp.eq.s32.totalorder %s27, 3
      %p154 = por %p152, %p153
      %p155 = scmp.ne.s32.totalorder %s146, %s147
      %p156 = scmp.eq.s32.totalorder %s27, 0
      %p157 = por %p155, %p156
      %p158 = scmp.ne.s32.totalorder %s146, %s147
      %p159 = scmp.eq.s32.totalorder %s28, 3
      %p160 = por %p158, %p159
      %p162 = scmp.ne.s32.totalorder %s147, %s161
      %p163 = scmp.eq.s32.totalorder %s28, 0
      %p164 = por %p162, %p163
      %s166 = sadd.s32 %s165, 1
      %p169 = scmp.eq.s32.totalorder %s22, 3
      %p170 = scmp.ne.s32.totalorder %s165, %s167
      %p171 = scmp.eq.s32.totalorder %s22, 0
      %p172 = por %p170, %p171
      %p173 = scmp.ne.s32.totalorder %s165, %s167
      %p174 = scmp.eq.s32.totalorder %s27, 3
      %p175 = por %p173, %p174
      %p176 = scmp.ne.s32.totalorder %s167, %s168
      %p177 = scmp.eq.s32.totalorder %s27, 0
      %p178 = por %p176, %p177
      %p179 = scmp.ne.s32.totalorder %s167, %s168
      %p180 = scmp.eq.s32.totalorder %s28, 3
      %p181 = por %p179, %p180
      %p183 = scmp.ne.s32.totalorder %s168, %s182
      %p184 = scmp.eq.s32.totalorder %s28, 0
      %p185 = por %p183, %p184
      %s186 = ssub.s32 %s29, %s41
      %s187 = ssub.s32 %s30, %s37
      %s188 = sor.u32 %s186, %s187
      %p189 = scmp.eq.s32.totalorder %s188, 0
      %s191 = sadd.s32 %s190, 1
      %s192 = scalar_select %p189, %s190, %s191
      %p195 = pneg %p189
      %p196 = scmp.eq.s32.totalorder %s22, 3
      %p197 = por %p195, %p196
      %p198 = scmp.ne.s32.totalorder %s190, %s193
      %p199 = scmp.eq.s32.totalorder %s22, 0
      %p200 = por %p198, %p199
      %p201 = scmp.ne.s32.totalorder %s190, %s193
      %p202 = scmp.eq.s32.totalorder %s27, 3
      %p203 = por %p201, %p202
      %p204 = scmp.ne.s32.totalorder %s193, %s194
      %p205 = scmp.eq.s32.totalorder %s27, 0
      %p206 = por %p204, %p205
      %p207 = scmp.ne.s32.totalorder %s193, %s194
      %p208 = scmp.eq.s32.totalorder %s28, 3
      %p209 = por %p207, %p208
      %p211 = scmp.ne.s32.totalorder %s194, %s210
      %p212 = scmp.eq.s32.totalorder %s28, 0
      %p213 = por %p211, %p212
      %p214 = scmp.le.s32.totalorder 1, %s22
      %p215 = scmp.lt.s32.totalorder %s22, 5
      %p216 = pnand %p214, %p215
      %p217 = pneg %p216
      // Predicated region
      $region9: #{tpu_custom_call.1} parent=5 // pred_check
        _
      $region10: #{tpu_custom_call.1} parent=5 // pred_check_branch
        %219 = sbr.rel (%p216) target = $region12
      $region11: #{tpu_custom_call.1} parent=5 // pred_region
        %s220 = ssub.s32 %s22, 1
        // Predicated region
        $region13: #{tpu_custom_call.1} parent=11 // pred_check
          %p221 = pneg %p115
        $region14: #{tpu_custom_call.1} parent=11 // pred_check_branch
          %223 = sbr.rel (%p221) target = $region16
        $region15: #{tpu_custom_call.1} parent=11 // pred_region
          %s225 = ssub.s32 9216, 9216
          %226 = vsyncadd [#allocation6], %s225
          %s227 = sshll.u32 [#allocation7], 4
          %s228 = int_to_ptr.vmem [resolvable:$true] %s227
          %233 = dma.hbm_to_vmem [thread:$0]  %s2, 9216, %s228, [#allocation6], 64, 64, 4
        $region16: #{tpu_custom_call.1} parent=11 // pred_fallthru
          _
        // Predicated region
        $region17: #{tpu_custom_call.1} parent=11 // pred_check
          %p234 = pneg %p136
        $region18: #{tpu_custom_call.1} parent=11 // pred_check_branch
          %236 = sbr.rel (%p234) target = $region20
        $region19: #{tpu_custom_call.1} parent=11 // pred_region
          %s238 = ssub.s32 18432, 18432
          %239 = vsyncadd [#allocation9], %s238
          %s240 = sshll.u32 [#allocation8], 4
          %s241 = int_to_ptr.vmem [resolvable:$true] %s240
          %246 = dma.hbm_to_vmem [thread:$0]  %s3, 18432, %s241, [#allocation9], 64, 64, 4
        $region20: #{tpu_custom_call.1} parent=11 // pred_fallthru
          _
        // Predicated region
        $region21: #{tpu_custom_call.1} parent=11 // pred_check
          %p247 = pneg %p157
        $region22: #{tpu_custom_call.1} parent=11 // pred_check_branch
          %249 = sbr.rel (%p247) target = $region24
        $region23: #{tpu_custom_call.1} parent=11 // pred_region
          %s251 = ssub.s32 9216, 9216
          %252 = vsyncadd [#allocation9], %s251
          %s253 = sshll.u32 [#allocation10], 4
          %s254 = int_to_ptr.vmem [resolvable:$true] %s253
          %259 = dma.hbm_to_vmem [thread:$0]  %s4, 9216, %s254, [#allocation9], 64, 64, 4
        $region24: #{tpu_custom_call.1} parent=11 // pred_fallthru
          _
        // Predicated region
        $region25: #{tpu_custom_call.1} parent=11 // pred_check
          %p260 = pneg %p178
        $region26: #{tpu_custom_call.1} parent=11 // pred_check_branch
          %262 = sbr.rel (%p260) target = $region28
        $region27: #{tpu_custom_call.1} parent=11 // pred_region
          _
        $region28: #{tpu_custom_call.1} parent=11 // pred_fallthru
          _
      $region12: #{tpu_custom_call.1} parent=5 // pred_fallthru
        _
      %p263 = scmp.lt.s32.totalorder %s22, 4
      // Predicated region
      $region29: #{tpu_custom_call.1} parent=5 // pred_check
        %p264 = pneg %p263
      $region30: #{tpu_custom_call.1} parent=5 // pred_check_branch
        %266 = sbr.rel (%p264) target = $region32
      $region31: #{tpu_custom_call.1} parent=5 // pred_region
        // Predicated region
        $region33: #{tpu_custom_call.1} parent=31 // pred_check
          %p267 = pneg %p58
        $region34: #{tpu_custom_call.1} parent=31 // pred_check_branch
          %269 = sbr.rel (%p267) target = $region36
        $region35: #{tpu_custom_call.1} parent=31 // pred_region
          %s270 = sand.u32 %s48, 1
          %s271 = scalar_lea.sflag [#allocation3], %s270
          %s272 = sand.u32 %s48, 1
          %s273 = smul.addr %s272, 28
          %s274 = scalar_lea.vmem [#allocation2], %s273
          %s275 = smul.u32 %s29, 2
          %s276 = sadd.s32 %s275, %s30
          %s278 = ssub.s32 448, 448
          %279 = vsyncadd %s271, %s278
          %s280 = smul.addr %s276, 7
          %s281 = smul.addr %s280, 64
          %s282 = scalar_lea.hbm %s0, %s281
          %s283 = sshll.u32 %s274, 4
          %s284 = int_to_ptr.vmem [resolvable:$true] %s283
          %289 = dma.hbm_to_vmem [thread:$0]  %s282, 448, %s284, %s271, 64, 64, 4
        $region36: #{tpu_custom_call.1} parent=31 // pred_fallthru
          _
        // Predicated region
        $region37: #{tpu_custom_call.1} parent=31 // pred_check
          %p290 = pneg %p88
        $region38: #{tpu_custom_call.1} parent=31 // pred_check_branch
          %292 = sbr.rel (%p290) target = $region40
        $region39: #{tpu_custom_call.1} parent=31 // pred_region
          %s293 = sand.u32 %s22, 1
          %s294 = scalar_lea.sflag [#allocation6], %s293
          %s295 = sand.u32 %s78, 1
          %s296 = smul.addr %s295, 96
          %s297 = scalar_lea.vmem [#allocation5], %s296
          %s298 = smul.u32 %s29, 2
          %s299 = sadd.s32 %s298, %s30
          %s301 = ssub.s32 1536, 1536
          %302 = vsyncadd %s294, %s301
          %s303 = smul.addr %s299, 24
          %s304 = smul.addr %s303, 64
          %s305 = scalar_lea.hbm %s1, %s304
          %s306 = sshll.u32 %s297, 4
          %s307 = int_to_ptr.vmem [resolvable:$true] %s306
          %312 = dma.hbm_to_vmem [thread:$0]  %s305, 1536, %s307, %s294, 64, 64, 4
        $region40: #{tpu_custom_call.1} parent=31 // pred_fallthru
          _
      $region32: #{tpu_custom_call.1} parent=5 // pred_fallthru
        _
      %p313 = scmp.le.s32.totalorder 1, %s22
      %p314 = scmp.lt.s32.totalorder %s22, 5
      %p315 = pnand %p313, %p314
      %p316 = pneg %p315
      // Predicated region
      $region41: #{tpu_custom_call.1} parent=5 // pred_check
        _
      $region42: #{tpu_custom_call.1} parent=5 // pred_check_branch
        %318 = sbr.rel (%p315) target = $region44
      $region43: #{tpu_custom_call.1} parent=5 // pred_region
        %s319 = ssub.s32 %s22, 1
        %s320 = sand.u32 %s51, 1
        %s321 = scalar_lea.sflag [#allocation3], %s320
        %s322 = sand.u32 %s51, 1
        %s323 = smul.addr %s322, 28
        %s324 = scalar_lea.vmem [#allocation2], %s323
        // Predicated region
        $region45: #{tpu_custom_call.1} parent=43 // pred_check
          %p325 = pneg %p64
        $region46: #{tpu_custom_call.1} parent=43 // pred_check_branch
          %327 = sbr.rel (%p325) target = $region48
        $region47: #{tpu_custom_call.1} parent=43 // pred_region
          %328 = dma.done %s321, 448
        $region48: #{tpu_custom_call.1} parent=43 // pred_fallthru
          _
        %s329 = sand.u32 %s27, 1
        %s330 = scalar_lea.sflag [#allocation6], %s329
        %s331 = sand.u32 %s81, 1
        %s332 = smul.addr %s331, 96
        %s333 = scalar_lea.vmem [#allocation5], %s332
        // Predicated region
        $region49: #{tpu_custom_call.1} parent=43 // pred_check
          %p334 = pneg %p94
        $region50: #{tpu_custom_call.1} parent=43 // pred_check_branch
          %336 = sbr.rel (%p334) target = $region52
        $region51: #{tpu_custom_call.1} parent=43 // pred_region
          %337 = dma.done %s330, 1536
        $region52: #{tpu_custom_call.1} parent=43 // pred_fallthru
          _
        // Predicated region
        $region53: #{tpu_custom_call.1} parent=43 // pred_check
          %p338 = pneg %p115
        $region54: #{tpu_custom_call.1} parent=43 // pred_check_branch
          %340 = sbr.rel (%p338) target = $region56
        $region55: #{tpu_custom_call.1} parent=43 // pred_region
          %341 = dma.done [#allocation6], 9216
        $region56: #{tpu_custom_call.1} parent=43 // pred_fallthru
          _
        // Predicated region
        $region57: #{tpu_custom_call.1} parent=43 // pred_check
          %p342 = pneg %p136
        $region58: #{tpu_custom_call.1} parent=43 // pred_check_branch
          %344 = sbr.rel (%p342) target = $region60
        $region59: #{tpu_custom_call.1} parent=43 // pred_region
          %345 = dma.done [#allocation9], 18432
        $region60: #{tpu_custom_call.1} parent=43 // pred_fallthru
          _
        // Predicated region
        $region61: #{tpu_custom_call.1} parent=43 // pred_check
          %p346 = pneg %p157
        $region62: #{tpu_custom_call.1} parent=43 // pred_check_branch
          %348 = sbr.rel (%p346) target = $region64
        $region63: #{tpu_custom_call.1} parent=43 // pred_region
          %349 = dma.done [#allocation9], 9216
        $region64: #{tpu_custom_call.1} parent=43 // pred_fallthru
          _
        %s350 = sand.u32 %s51, 1
        %s351 = scalar_lea.sflag [#allocation3], %s350
        %s352 = sand.u32 %s51, 1
        %s353 = smul.addr %s352, 28
        %s354 = scalar_lea.vmem [#allocation2], %s353
        %p355 = pneg %p64
        %p356 = pneg %p61
        %s357 = sand.u32 %s27, 1
        %s358 = scalar_lea.sflag [#allocation6], %s357
        %s359 = sand.u32 %s81, 1
        %s360 = smul.addr %s359, 96
        %s361 = scalar_lea.vmem [#allocation5], %s360
        %p362 = pneg %p94
        %p363 = pneg %p91
        %p364 = pneg %p115
        %p365 = pneg %p112
        %p366 = pneg %p136
        %p367 = pneg %p133
        %p368 = pneg %p157
        %p369 = pneg %p154
        %p370 = pneg %p178
        %p371 = pneg %p175
        %p372 = pneg %p206
        %p373 = pneg %p203
        %s374 = sand.u32 %s193, 1
        %s375 = scalar_lea.sflag [#allocation4], %s374
        %s376 = sand.u32 %s193, 1
        %s377 = smul.addr %s376, 128
        %s378 = scalar_lea.vmem [#allocation11], %s377
        %s379 = smul.u32 %s31, 2
        %s380 = sadd.s32 %s379, %s32
        %s381 = smul.u32 %s31, 2
        %s382 = sadd.s32 %s381, %s32
        %s383 = smul.u32 8, %s32
        %s385 = smul.u32 %s32, 8
        %v386 = vld [vmem:[%s324] sm:$0xf]
        %v387 = vld [vmem:[%s324 + $0x4] sm:$0xf]
        %v388 = vld [vmem:[%s324 + $0x8] sm:$0xf]
        %v389 = vld [vmem:[%s324 + $0xc] sm:$0xf]
        %v390 = vld [vmem:[%s324 + $0x10] sm:$0xf]
        %v391 = vld [vmem:[%s324 + $0x14] sm:$0xf]
        %v392 = vld [vmem:[%s324 + $0x18] sm:$0xf]
        %v399 = vunpack.c.l.b16 %v386
        %v400 = vunpack.c.l.b16 %v387
        %v401 = vunpack.c.l.b16 %v388
        %v402 = vunpack.c.l.b16 %v389
        %v403 = vunpack.c.l.b16 %v390
        %v404 = vunpack.c.l.b16 %v391
        %v405 = vpack.c.b16 %v399, %v399
        %v406 = vpack.c.b16 %v400, %v400
        %v407 = vpack.c.b16 %v401, %v401
        %v408 = vpack.c.b16 %v402, %v402
        %v409 = vpack.c.b16 %v403, %v403
        %v410 = vpack.c.b16 %v404, %v404
        %v412 = vshrl.u32 %v405, 16
        %v414 = vshll.u32 %v405, 16
        %v416 = vrot.slane %v414, 1
        %v417 = vor.u32 %v412, %v416
        %v419 = vshrl.u32 %v406, 16
        %v421 = vshll.u32 %v406, 16
        %v423 = vrot.slane %v421, 1
        %v424 = vor.u32 %v419, %v423
        %v426 = vshrl.u32 %v407, 16
        %v428 = vshll.u32 %v407, 16
        %v430 = vrot.slane %v428, 1
        %v431 = vor.u32 %v426, %v430
        %v433 = vshrl.u32 %v408, 16
        %v435 = vshll.u32 %v408, 16
        %v437 = vrot.slane %v435, 1
        %v438 = vor.u32 %v433, %v437
        %v440 = vshrl.u32 %v409, 16
        %v442 = vshll.u32 %v409, 16
        %v444 = vrot.slane %v442, 1
        %v445 = vor.u32 %v440, %v444
        %v447 = vshrl.u32 %v410, 16
        %v449 = vshll.u32 %v410, 16
        %v451 = vrot.slane %v449, 1
        %v452 = vor.u32 %v447, %v451
        %vm459 = vcmask 1043456
        %vm460 = vsmask.f32 3328
        %vm461 = vmand %vm459, %vm460
        %v462 = vsel %vm461, %v417, 0
        %v463 = vsel %vm461, %v424, 0
        %v464 = vsel %vm461, %v431, 0
        %v465 = vsel %vm461, %v438, 0
        %v466 = vsel %vm461, %v445, 0
        %v467 = vsel %vm461, %v452, 0
        %v469 = vunpack.c.l.b16 %v392
        %v470 = vpack.c.b16 %v469, %v469
        %v472 = vshrl.u32 %v470, 16
        %v474 = vshll.u32 %v470, 16
        %v476 = vrot.slane %v474, 1
        %v477 = vor.u32 %v472, %v476
        %v479 = vsel %vm461, %v477, 0
        %s480 = scalar_lea.vmem [#allocation7], 256
        %v481 = vld [vmem:[%s480] sm:$0xf]
        %v482 = vld [vmem:[%s480 + $0x4] sm:$0xf]
        %v483 = vld [vmem:[%s480 + $0x8] sm:$0xf]
        %v484 = vld [vmem:[%s480 + $0xc] sm:$0xf]
        %v485 = vld [vmem:[%s480 + $0x10] sm:$0xf]
        %v486 = vld [vmem:[%s480 + $0x14] sm:$0xf]
        %v487 = vld [vmem:[%s480 + $0x18] sm:$0xf]
        %v488 = vld [vmem:[%s480 + $0x1c] sm:$0xf]
        %v489 = vld [vmem:[%s480 + $0x20] sm:$0xf]
        %v490 = vld [vmem:[%s480 + $0x24] sm:$0xf]
        %v491 = vld [vmem:[%s480 + $0x28] sm:$0xf]
        %v492 = vld [vmem:[%s480 + $0x2c] sm:$0xf]
        %v493 = vld [vmem:[%s480 + $0x30] sm:$0xf]
        %v494 = vld [vmem:[%s480 + $0x34] sm:$0xf]
        %v495 = vld [vmem:[%s480 + $0x38] sm:$0xf]
        %v496 = vld [vmem:[%s480 + $0x3c] sm:$0xf]
        %s497 = scalar_lea.vmem [#allocation7], 192
        %v498 = vld [vmem:[%s497] sm:$0xf]
        %v499 = vld [vmem:[%s497 + $0x4] sm:$0xf]
        %v500 = vld [vmem:[%s497 + $0x8] sm:$0xf]
        %v501 = vld [vmem:[%s497 + $0xc] sm:$0xf]
        %v502 = vld [vmem:[%s497 + $0x10] sm:$0xf]
        %v503 = vld [vmem:[%s497 + $0x14] sm:$0xf]
        %v504 = vld [vmem:[%s497 + $0x18] sm:$0xf]
        %v505 = vld [vmem:[%s497 + $0x1c] sm:$0xf]
        %v506 = vld [vmem:[%s497 + $0x20] sm:$0xf]
        %v507 = vld [vmem:[%s497 + $0x24] sm:$0xf]
        %v508 = vld [vmem:[%s497 + $0x28] sm:$0xf]
        %v509 = vld [vmem:[%s497 + $0x2c] sm:$0xf]
        %v510 = vld [vmem:[%s497 + $0x30] sm:$0xf]
        %v511 = vld [vmem:[%s497 + $0x34] sm:$0xf]
        %v512 = vld [vmem:[%s497 + $0x38] sm:$0xf]
        %v513 = vld [vmem:[%s497 + $0x3c] sm:$0xf]
        %s514 = scalar_lea.vmem [#allocation7], 320
        %v515 = vld [vmem:[%s514] sm:$0xf]
        %v516 = vld [vmem:[%s514 + $0x4] sm:$0xf]
        %v517 = vld [vmem:[%s514 + $0x8] sm:$0xf]
        %v518 = vld [vmem:[%s514 + $0xc] sm:$0xf]
        %v519 = vld [vmem:[%s514 + $0x10] sm:$0xf]
        %v520 = vld [vmem:[%s514 + $0x14] sm:$0xf]
        %v521 = vld [vmem:[%s514 + $0x18] sm:$0xf]
        %v522 = vld [vmem:[%s514 + $0x1c] sm:$0xf]
        %v523 = vld [vmem:[%s514 + $0x20] sm:$0xf]
        %v524 = vld [vmem:[%s514 + $0x24] sm:$0xf]
        %v525 = vld [vmem:[%s514 + $0x28] sm:$0xf]
        %v526 = vld [vmem:[%s514 + $0x2c] sm:$0xf]
        %v527 = vld [vmem:[%s514 + $0x30] sm:$0xf]
        %v528 = vld [vmem:[%s514 + $0x34] sm:$0xf]
        %v529 = vld [vmem:[%s514 + $0x38] sm:$0xf]
        %v530 = vld [vmem:[%s514 + $0x3c] sm:$0xf]
        %v537 = vunpack.c.l.b16 %v462
        %v538 = vunpack.c.l.b16 %v463
        %v539 = vunpack.c.l.b16 %v464
        %v540 = vunpack.c.l.b16 %v465
        %v541 = vunpack.c.l.b16 %v466
        %v542 = vunpack.c.l.b16 %v467
        %v543 = vpack.c.b16 %v538, %v537
        %v544 = vpack.c.b16 %v540, %v539
        %v545 = vpack.c.b16 %v542, %v541
        %v565 = vunpack.c.l.b16 %v515
        %v566 = vunpack.c.l.b16 %v516
        %v567 = vunpack.c.l.b16 %v517
        %v568 = vunpack.c.l.b16 %v518
        %v569 = vunpack.c.l.b16 %v519
        %v570 = vunpack.c.l.b16 %v520
        %v571 = vunpack.c.l.b16 %v521
        %v572 = vunpack.c.l.b16 %v522
        %v573 = vunpack.c.l.b16 %v523
        %v574 = vunpack.c.l.b16 %v524
        %v575 = vunpack.c.l.b16 %v525
        %v576 = vunpack.c.l.b16 %v526
        %v577 = vunpack.c.l.b16 %v527
        %v578 = vunpack.c.l.b16 %v528
        %v579 = vunpack.c.l.b16 %v529
        %v580 = vunpack.c.l.b16 %v530
        %v581 = vpack.c.b16 %v566, %v565
        %v582 = vpack.c.b16 %v568, %v567
        %v583 = vpack.c.b16 %v570, %v569
        %v584 = vpack.c.b16 %v572, %v571
        %v585 = vpack.c.b16 %v574, %v573
        %v586 = vpack.c.b16 %v576, %v575
        %v587 = vpack.c.b16 %v578, %v577
        %v588 = vpack.c.b16 %v580, %v579
        %597 = vmatprep.subr.bf16.mxu0 0
        %598 = vmatpush1.bf16.msra.mxu0 %v581
        %599 = vmatprep.subr.bf16.mxu0 0
        %600 = vmatpush1.bf16.msra.mxu0 %v582
        %601 = vmatprep.subr.bf16.mxu0 0
        %602 = vmatpush1.bf16.msra.mxu0 %v583
        %603 = vmatprep.subr.bf16.mxu0 0
        %604 = vmatpush1.bf16.msra.mxu0 %v584
        %605 = vmatprep.subr.bf16.mxu0 0
        %606 = vmatpush1.bf16.msra.mxu0 %v585
        %607 = vmatprep.subr.bf16.mxu0 0
        %608 = vmatpush1.bf16.msra.mxu0 %v586
        %609 = vmatprep.subr.bf16.mxu0 0
        %610 = vmatpush1.bf16.msra.mxu0 %v587
        %611 = vmatprep.subr.bf16.mxu0 0
        %612 = vmatpush1.bf16.msra.mxu0 %v588
        %613 = vmatprep.subr.bf16.mxu0 0
        %614 = vmatpush1.bf16.msra.mxu0 0
        %615 = vmatprep.subr.bf16.mxu0 0
        %616 = vmatpush1.bf16.msra.mxu0 0
        %617 = vmatprep.subr.bf16.mxu0 0
        %618 = vmatpush1.bf16.msra.mxu0 0
        %619 = vmatprep.subr.bf16.mxu0 0
        %620 = vmatpush1.bf16.msra.mxu0 0
        %621 = vmatprep.subr.bf16.mxu0 0
        %622 = vmatpush1.bf16.msra.mxu0 0
        %623 = vmatprep.subr.bf16.mxu0 0
        %624 = vmatpush1.bf16.msra.mxu0 0
        %625 = vmatprep.subr.bf16.mxu0 0
        %626 = vmatpush1.bf16.msra.mxu0 0
        %627 = vmatprep.subr.bf16.mxu0 0
        %628 = vmatpush1.bf16.msra.mxu0 0
        %629 = vmatprep.mubr.bf16.mxu0 0
        %630 = vmatmul.mubr.bf16.gmra.mrb[0].mxu0 %v543
        %v631 = vpop.f32.mrb[0].mxu0
        %v632 = vadd.f32 0.0, %v631
        %v633 = vpop.f32.mrb[0].mxu0
        %v634 = vpop.f32.mrb[0].mxu0
        %v635 = vadd.f32 0.0, %v634
        %v636 = vpop.f32.mrb[0].mxu0
        %637 = vmatprep.mubr.bf16.mxu0 0
        %638 = vmatmul.mubr.bf16.gmra.mrb[0].mxu0 %v544
        %v639 = vpop.f32.mrb[0].mxu0
        %v640 = vadd.f32 0.0, %v639
        %v641 = vpop.f32.mrb[0].mxu0
        %v642 = vpop.f32.mrb[0].mxu0
        %v643 = vadd.f32 0.0, %v642
        %v644 = vpop.f32.mrb[0].mxu0
        %645 = vmatprep.mubr.bf16.mxu0 0
        %646 = vmatmul.mubr.bf16.gmra.mrb[0].mxu0 %v545
        %v647 = vpop.f32.mrb[0].mxu0
        %v648 = vadd.f32 0.0, %v647
        %v649 = vpop.f32.mrb[0].mxu0
        %v650 = vpop.f32.mrb[0].mxu0
        %v651 = vadd.f32 0.0, %v650
        %v652 = vpop.f32.mrb[0].mxu0
        %653 = vdwg.mxu0
        %v654 = vpack.c.b16 %v400, %v399
        %v655 = vpack.c.b16 %v402, %v401
        %v656 = vpack.c.b16 %v404, %v403
        %v676 = vunpack.c.l.b16 %v498
        %v677 = vunpack.c.l.b16 %v499
        %v678 = vunpack.c.l.b16 %v500
        %v679 = vunpack.c.l.b16 %v501
        %v680 = vunpack.c.l.b16 %v502
        %v681 = vunpack.c.l.b16 %v503
        %v682 = vunpack.c.l.b16 %v504
        %v683 = vunpack.c.l.b16 %v505
        %v684 = vunpack.c.l.b16 %v506
        %v685 = vunpack.c.l.b16 %v507
        %v686 = vunpack.c.l.b16 %v508
        %v687 = vunpack.c.l.b16 %v509
        %v688 = vunpack.c.l.b16 %v510
        %v689 = vunpack.c.l.b16 %v511
        %v690 = vunpack.c.l.b16 %v512
        %v691 = vunpack.c.l.b16 %v513
        %v692 = vpack.c.b16 %v677, %v676
        %v693 = vpack.c.b16 %v679, %v678
        %v694 = vpack.c.b16 %v681, %v680
        %v695 = vpack.c.b16 %v683, %v682
        %v696 = vpack.c.b16 %v685, %v684
        %v697 = vpack.c.b16 %v687, %v686
        %v698 = vpack.c.b16 %v689, %v688
        %v699 = vpack.c.b16 %v691, %v690
        %708 = vmatprep.subr.bf16.mxu0 0
        %709 = vmatpush1.bf16.msra.mxu0 %v692
        %710 = vmatprep.subr.bf16.mxu0 0
        %711 = vmatpush1.bf16.msra.mxu0 %v693
        %712 = vmatprep.subr.bf16.mxu0 0
        %713 = vmatpush1.bf16.msra.mxu0 %v694
        %714 = vmatprep.subr.bf16.mxu0 0
        %715 = vmatpush1.bf16.msra.mxu0 %v695
        %716 = vmatprep.subr.bf16.mxu0 0
        %717 = vmatpush1.bf16.msra.mxu0 %v696
        %718 = vmatprep.subr.bf16.mxu0 0
        %719 = vmatpush1.bf16.msra.mxu0 %v697
        %720 = vmatprep.subr.bf16.mxu0 0
        %721 = vmatpush1.bf16.msra.mxu0 %v698
        %722 = vmatprep.subr.bf16.mxu0 0
        %723 = vmatpush1.bf16.msra.mxu0 %v699
        %724 = vmatprep.subr.bf16.mxu0 0
        %725 = vmatpush1.bf16.msra.mxu0 0
        %726 = vmatprep.subr.bf16.mxu0 0
        %727 = vmatpush1.bf16.msra.mxu0 0
        %728 = vmatprep.subr.bf16.mxu0 0
        %729 = vmatpush1.bf16.msra.mxu0 0
        %730 = vmatprep.subr.bf16.mxu0 0
        %731 = vmatpush1.bf16.msra.mxu0 0
        %732 = vmatprep.subr.bf16.mxu0 0
        %733 = vmatpush1.bf16.msra.mxu0 0
        %734 = vmatprep.subr.bf16.mxu0 0
        %735 = vmatpush1.bf16.msra.mxu0 0
        %736 = vmatprep.subr.bf16.mxu0 0
        %737 = vmatpush1.bf16.msra.mxu0 0
        %738 = vmatprep.subr.bf16.mxu0 0
        %739 = vmatpush1.bf16.msra.mxu0 0
        %740 = vmatprep.mubr.bf16.mxu0 0
        %741 = vmatmul.mubr.bf16.gmra.mrb[0].mxu0 %v654
        %v742 = vpop.f32.mrb[0].mxu0
        %v743 = vadd.f32 %v632, %v742
        %v744 = vpop.f32.mrb[0].mxu0
        %v745 = vpop.f32.mrb[0].mxu0
        %v746 = vadd.f32 %v635, %v745
        %v747 = vpop.f32.mrb[0].mxu0
        %748 = vmatprep.mubr.bf16.mxu0 0
        %749 = vmatmul.mubr.bf16.gmra.mrb[0].mxu0 %v655
        %v750 = vpop.f32.mrb[0].mxu0
        %v751 = vadd.f32 %v640, %v750
        %v752 = vpop.f32.mrb[0].mxu0
        %v753 = vpop.f32.mrb[0].mxu0
        %v754 = vadd.f32 %v643, %v753
        %v755 = vpop.f32.mrb[0].mxu0
        %756 = vmatprep.mubr.bf16.mxu0 0
        %757 = vmatmul.mubr.bf16.gmra.mrb[0].mxu0 %v656
        %v758 = vpop.f32.mrb[0].mxu0
        %v759 = vadd.f32 %v648, %v758
        %v760 = vpop.f32.mrb[0].mxu0
        %v761 = vpop.f32.mrb[0].mxu0
        %v762 = vadd.f32 %v651, %v761
        %v763 = vpop.f32.mrb[0].mxu0
        %764 = vdwg.mxu0
        %s765 = scalar_lea.vmem [#allocation7], 64
        %v766 = vld [vmem:[%s765] sm:$0xf]
        %v767 = vld [vmem:[%s765 + $0x4] sm:$0xf]
        %v768 = vld [vmem:[%s765 + $0x8] sm:$0xf]
        %v769 = vld [vmem:[%s765 + $0xc] sm:$0xf]
        %v770 = vld [vmem:[%s765 + $0x10] sm:$0xf]
        %v771 = vld [vmem:[%s765 + $0x14] sm:$0xf]
        %v772 = vld [vmem:[%s765 + $0x18] sm:$0xf]
        %v773 = vld [vmem:[%s765 + $0x1c] sm:$0xf]
        %v774 = vld [vmem:[%s765 + $0x20] sm:$0xf]
        %v775 = vld [vmem:[%s765 + $0x24] sm:$0xf]
        %v776 = vld [vmem:[%s765 + $0x28] sm:$0xf]
        %v777 = vld [vmem:[%s765 + $0x2c] sm:$0xf]
        %v778 = vld [vmem:[%s765 + $0x30] sm:$0xf]
        %v779 = vld [vmem:[%s765 + $0x34] sm:$0xf]
        %v780 = vld [vmem:[%s765 + $0x38] sm:$0xf]
        %v781 = vld [vmem:[%s765 + $0x3c] sm:$0xf]
        %s782 = scalar_lea.vmem [#allocation7], 448
        %v783 = vld [vmem:[%s782] sm:$0xf]
        %v784 = vld [vmem:[%s782 + $0x4] sm:$0xf]
        %v785 = vld [vmem:[%s782 + $0x8] sm:$0xf]
        %v786 = vld [vmem:[%s782 + $0xc] sm:$0xf]
        %v787 = vld [vmem:[%s782 + $0x10] sm:$0xf]
        %v788 = vld [vmem:[%s782 + $0x14] sm:$0xf]
        %v789 = vld [vmem:[%s782 + $0x18] sm:$0xf]
        %v790 = vld [vmem:[%s782 + $0x1c] sm:$0xf]
        %v791 = vld [vmem:[%s782 + $0x20] sm:$0xf]
        %v792 = vld [vmem:[%s782 + $0x24] sm:$0xf]
        %v793 = vld [vmem:[%s782 + $0x28] sm:$0xf]
        %v794 = vld [vmem:[%s782 + $0x2c] sm:$0xf]
        %v795 = vld [vmem:[%s782 + $0x30] sm:$0xf]
        %v796 = vld [vmem:[%s782 + $0x34] sm:$0xf]
        %v797 = vld [vmem:[%s782 + $0x38] sm:$0xf]
        %v798 = vld [vmem:[%s782 + $0x3c] sm:$0xf]
        %v799 = vpack.c.b16 %v401, %v400
        %v800 = vpack.c.b16 %v403, %v402
        %v801 = vpack.c.b16 %v469, %v404
        %v821 = vunpack.c.l.b16 %v783
        %v822 = vunpack.c.l.b16 %v784
        %v823 = vunpack.c.l.b16 %v785
        %v824 = vunpack.c.l.b16 %v786
        %v825 = vunpack.c.l.b16 %v787
        %v826 = vunpack.c.l.b16 %v788
        %v827 = vunpack.c.l.b16 %v789
        %v828 = vunpack.c.l.b16 %v790
        %v829 = vunpack.c.l.b16 %v791
        %v830 = vunpack.c.l.b16 %v792
        %v831 = vunpack.c.l.b16 %v793
        %v832 = vunpack.c.l.b16 %v794
        %v833 = vunpack.c.l.b16 %v795
        %v834 = vunpack.c.l.b16 %v796
        %v835 = vunpack.c.l.b16 %v797
        %v836 = vunpack.c.l.b16 %v798
        %v837 = vpack.c.b16 %v822, %v821
        %v838 = vpack.c.b16 %v824, %v823
        %v839 = vpack.c.b16 %v826, %v825
        %v840 = vpack.c.b16 %v828, %v827
        %v841 = vpack.c.b16 %v830, %v829
        %v842 = vpack.c.b16 %v832, %v831
        %v843 = vpack.c.b16 %v834, %v833
        %v844 = vpack.c.b16 %v836, %v835
        %853 = vmatprep.subr.bf16.mxu0 0
        %854 = vmatpush1.bf16.msra.mxu0 %v837
        %855 = vmatprep.subr.bf16.mxu0 0
        %856 = vmatpush1.bf16.msra.mxu0 %v838
        %857 = vmatprep.subr.bf16.mxu0 0
        %858 = vmatpush1.bf16.msra.mxu0 %v839
        %859 = vmatprep.subr.bf16.mxu0 0
        %860 = vmatpush1.bf16.msra.mxu0 %v840
        %861 = vmatprep.subr.bf16.mxu0 0
        %862 = vmatpush1.bf16.msra.mxu0 %v841
        %863 = vmatprep.subr.bf16.mxu0 0
        %864 = vmatpush1.bf16.msra.mxu0 %v842
        %865 = vmatprep.subr.bf16.mxu0 0
        %866 = vmatpush1.bf16.msra.mxu0 %v843
        %867 = vmatprep.subr.bf16.mxu0 0
        %868 = vmatpush1.bf16.msra.mxu0 %v844
        %869 = vmatprep.subr.bf16.mxu0 0
        %870 = vmatpush1.bf16.msra.mxu0 0
        %871 = vmatprep.subr.bf16.mxu0 0
        %872 = vmatpush1.bf16.msra.mxu0 0
        %873 = vmatprep.subr.bf16.mxu0 0
        %874 = vmatpush1.bf16.msra.mxu0 0
        %875 = vmatprep.subr.bf16.mxu0 0
        %876 = vmatpush1.bf16.msra.mxu0 0
        %877 = vmatprep.subr.bf16.mxu0 0
        %878 = vmatpush1.bf16.msra.mxu0 0
        %879 = vmatprep.subr.bf16.mxu0 0
        %880 = vmatpush1.bf16.msra.mxu0 0
        %881 = vmatprep.subr.bf16.mxu0 0
        %882 = vmatpush1.bf16.msra.mxu0 0
        %883 = vmatprep.subr.bf16.mxu0 0
        %884 = vmatpush1.bf16.msra.mxu0 0
        %885 = vmatprep.mubr.bf16.mxu0 0
        %886 = vmatmul.mubr.bf16.gmra.mrb[0].mxu0 %v799
        %v887 = vpop.f32.mrb[0].mxu0
        %v888 = vadd.f32 0.0, %v887
        %v889 = vpop.f32.mrb[0].mxu0
        %v890 = vpop.f32.mrb[0].mxu0
        %v891 = vadd.f32 0.0, %v890
        %v892 = vpop.f32.mrb[0].mxu0
        %893 = vmatprep.mubr.bf16.mxu0 0
        %894 = vmatmul.mubr.bf16.gmra.mrb[0].mxu0 %v800
        %v895 = vpop.f32.mrb[0].mxu0
        %v896 = vadd.f32 0.0, %v895
        %v897 = vpop.f32.mrb[0].mxu0
        %v898 = vpop.f32.mrb[0].mxu0
        %v899 = vadd.f32 0.0, %v898
        %v900 = vpop.f32.mrb[0].mxu0
        %901 = vmatprep.mubr.bf16.mxu0 0
        %902 = vmatmul.mubr.bf16.gmra.mrb[0].mxu0 %v801
        %v903 = vpop.f32.mrb[0].mxu0
        %v904 = vadd.f32 0.0, %v903
        %v905 = vpop.f32.mrb[0].mxu0
        %v906 = vpop.f32.mrb[0].mxu0
        %v907 = vadd.f32 0.0, %v906
        %v908 = vpop.f32.mrb[0].mxu0
        %909 = vdwg.mxu0
        %v926 = vunpack.c.l.b16 %v766
        %v927 = vunpack.c.l.b16 %v767
        %v928 = vunpack.c.l.b16 %v768
        %v929 = vunpack.c.l.b16 %v769
        %v930 = vunpack.c.l.b16 %v770
        %v931 = vunpack.c.l.b16 %v771
        %v932 = vunpack.c.l.b16 %v772
        %v933 = vunpack.c.l.b16 %v773
        %v934 = vunpack.c.l.b16 %v774
        %v935 = vunpack.c.l.b16 %v775
        %v936 = vunpack.c.l.b16 %v776
        %v937 = vunpack.c.l.b16 %v777
        %v938 = vunpack.c.l.b16 %v778
        %v939 = vunpack.c.l.b16 %v779
        %v940 = vunpack.c.l.b16 %v780
        %v941 = vunpack.c.l.b16 %v781
        %v942 = vpack.c.b16 %v927, %v926
        %v943 = vpack.c.b16 %v929, %v928
        %v944 = vpack.c.b16 %v931, %v930
        %v945 = vpack.c.b16 %v933, %v932
        %v946 = vpack.c.b16 %v935, %v934
        %v947 = vpack.c.b16 %v937, %v936
        %v948 = vpack.c.b16 %v939, %v938
        %v949 = vpack.c.b16 %v941, %v940
        %958 = vmatprep.subr.bf16.mxu0 0
        %959 = vmatpush1.bf16.msra.mxu0 %v942
        %960 = vmatprep.subr.bf16.mxu0 0
        %961 = vmatpush1.bf16.msra.mxu0 %v943
        %962 = vmatprep.subr.bf16.mxu0 0
        %963 = vmatpush1.bf16.msra.mxu0 %v944
        %964 = vmatprep.subr.bf16.mxu0 0
        %965 = vmatpush1.bf16.msra.mxu0 %v945
        %966 = vmatprep.subr.bf16.mxu0 0
        %967 = vmatpush1.bf16.msra.mxu0 %v946
        %968 = vmatprep.subr.bf16.mxu0 0
        %969 = vmatpush1.bf16.msra.mxu0 %v947
        %970 = vmatprep.subr.bf16.mxu0 0
        %971 = vmatpush1.bf16.msra.mxu0 %v948
        %972 = vmatprep.subr.bf16.mxu0 0
        %973 = vmatpush1.bf16.msra.mxu0 %v949
        %974 = vmatprep.subr.bf16.mxu0 0
        %975 = vmatpush1.bf16.msra.mxu0 0
        %976 = vmatprep.subr.bf16.mxu0 0
        %977 = vmatpush1.bf16.msra.mxu0 0
        %978 = vmatprep.subr.bf16.mxu0 0
        %979 = vmatpush1.bf16.msra.mxu0 0
        %980 = vmatprep.subr.bf16.mxu0 0
        %981 = vmatpush1.bf16.msra.mxu0 0
        %982 = vmatprep.subr.bf16.mxu0 0
        %983 = vmatpush1.bf16.msra.mxu0 0
        %984 = vmatprep.subr.bf16.mxu0 0
        %985 = vmatpush1.bf16.msra.mxu0 0
        %986 = vmatprep.subr.bf16.mxu0 0
        %987 = vmatpush1.bf16.msra.mxu0 0
        %988 = vmatprep.subr.bf16.mxu0 0
        %989 = vmatpush1.bf16.msra.mxu0 0
        %990 = vmatprep.mubr.bf16.mxu0 0
        %991 = vmatmul.mubr.bf16.gmra.mrb[0].mxu0 %v654
        %v992 = vpop.f32.mrb[0].mxu0
        %v993 = vadd.f32 %v888, %v992
        %v994 = vpop.f32.mrb[0].mxu0
        %v995 = vpop.f32.mrb[0].mxu0
        %v996 = vadd.f32 %v891, %v995
        %v997 = vpop.f32.mrb[0].mxu0
        %998 = vmatprep.mubr.bf16.mxu0 0
        %999 = vmatmul.mubr.bf16.gmra.mrb[0].mxu0 %v655
        %v1000 = vpop.f32.mrb[0].mxu0
        %v1001 = vadd.f32 %v896, %v1000
        %v1002 = vpop.f32.mrb[0].mxu0
        %v1003 = vpop.f32.mrb[0].mxu0
        %v1004 = vadd.f32 %v899, %v1003
        %v1005 = vpop.f32.mrb[0].mxu0
        %1006 = vmatprep.mubr.bf16.mxu0 0
        %1007 = vmatmul.mubr.bf16.gmra.mrb[0].mxu0 %v656
        %v1008 = vpop.f32.mrb[0].mxu0
        %v1009 = vadd.f32 %v904, %v1008
        %v1010 = vpop.f32.mrb[0].mxu0
        %v1011 = vpop.f32.mrb[0].mxu0
        %v1012 = vadd.f32 %v907, %v1011
        %v1013 = vpop.f32.mrb[0].mxu0
        %1014 = vdwg.mxu0
        %v1015 = vld [vmem:[#allocation7] sm:$0xf]
        %v1016 = vld [vmem:[#allocation7 + $0x4] sm:$0xf]
        %v1017 = vld [vmem:[#allocation7 + $0x8] sm:$0xf]
        %v1018 = vld [vmem:[#allocation7 + $0xc] sm:$0xf]
        %v1019 = vld [vmem:[#allocation7 + $0x10] sm:$0xf]
        %v1020 = vld [vmem:[#allocation7 + $0x14] sm:$0xf]
        %v1021 = vld [vmem:[#allocation7 + $0x18] sm:$0xf]
        %v1022 = vld [vmem:[#allocation7 + $0x1c] sm:$0xf]
        %v1023 = vld [vmem:[#allocation7 + $0x20] sm:$0xf]
        %v1024 = vld [vmem:[#allocation7 + $0x24] sm:$0xf]
        %v1025 = vld [vmem:[#allocation7 + $0x28] sm:$0xf]
        %v1026 = vld [vmem:[#allocation7 + $0x2c] sm:$0xf]
        %v1027 = vld [vmem:[#allocation7 + $0x30] sm:$0xf]
        %v1028 = vld [vmem:[#allocation7 + $0x34] sm:$0xf]
        %v1029 = vld [vmem:[#allocation7 + $0x38] sm:$0xf]
        %v1030 = vld [vmem:[#allocation7 + $0x3c] sm:$0xf]
        %s1031 = scalar_lea.vmem [#allocation7], 128
        %v1032 = vld [vmem:[%s1031] sm:$0xf]
        %v1033 = vld [vmem:[%s1031 + $0x4] sm:$0xf]
        %v1034 = vld [vmem:[%s1031 + $0x8] sm:$0xf]
        %v1035 = vld [vmem:[%s1031 + $0xc] sm:$0xf]
        %v1036 = vld [vmem:[%s1031 + $0x10] sm:$0xf]
        %v1037 = vld [vmem:[%s1031 + $0x14] sm:$0xf]
        %v1038 = vld [vmem:[%s1031 + $0x18] sm:$0xf]
        %v1039 = vld [vmem:[%s1031 + $0x1c] sm:$0xf]
        %v1040 = vld [vmem:[%s1031 + $0x20] sm:$0xf]
        %v1041 = vld [vmem:[%s1031 + $0x24] sm:$0xf]
        %v1042 = vld [vmem:[%s1031 + $0x28] sm:$0xf]
        %v1043 = vld [vmem:[%s1031 + $0x2c] sm:$0xf]
        %v1044 = vld [vmem:[%s1031 + $0x30] sm:$0xf]
        %v1045 = vld [vmem:[%s1031 + $0x34] sm:$0xf]
        %v1046 = vld [vmem:[%s1031 + $0x38] sm:$0xf]
        %v1047 = vld [vmem:[%s1031 + $0x3c] sm:$0xf]
        %v1064 = vunpack.c.l.b16 %v1032
        %v1065 = vunpack.c.l.b16 %v1033
        %v1066 = vunpack.c.l.b16 %v1034
        %v1067 = vunpack.c.l.b16 %v1035
        %v1068 = vunpack.c.l.b16 %v1036
        %v1069 = vunpack.c.l.b16 %v1037
        %v1070 = vunpack.c.l.b16 %v1038
        %v1071 = vunpack.c.l.b16 %v1039
        %v1072 = vunpack.c.l.b16 %v1040
        %v1073 = vunpack.c.l.b16 %v1041
        %v1074 = vunpack.c.l.b16 %v1042
        %v1075 = vunpack.c.l.b16 %v1043
        %v1076 = vunpack.c.l.b16 %v1044
        %v1077 = vunpack.c.l.b16 %v1045
        %v1078 = vunpack.c.l.b16 %v1046
        %v1079 = vunpack.c.l.b16 %v1047
        %v1080 = vpack.c.b16 %v1065, %v1064
        %v1081 = vpack.c.b16 %v1067, %v1066
        %v1082 = vpack.c.b16 %v1069, %v1068
        %v1083 = vpack.c.b16 %v1071, %v1070
        %v1084 = vpack.c.b16 %v1073, %v1072
        %v1085 = vpack.c.b16 %v1075, %v1074
        %v1086 = vpack.c.b16 %v1077, %v1076
        %v1087 = vpack.c.b16 %v1079, %v1078
        %1096 = vmatprep.subr.bf16.mxu0 0
        %1097 = vmatpush1.bf16.msra.mxu0 %v1080
        %1098 = vmatprep.subr.bf16.mxu0 0
        %1099 = vmatpush1.bf16.msra.mxu0 %v1081
        %1100 = vmatprep.subr.bf16.mxu0 0
        %1101 = vmatpush1.bf16.msra.mxu0 %v1082
        %1102 = vmatprep.subr.bf16.mxu0 0
        %1103 = vmatpush1.bf16.msra.mxu0 %v1083
        %1104 = vmatprep.subr.bf16.mxu0 0
        %1105 = vmatpush1.bf16.msra.mxu0 %v1084
        %1106 = vmatprep.subr.bf16.mxu0 0
        %1107 = vmatpush1.bf16.msra.mxu0 %v1085
        %1108 = vmatprep.subr.bf16.mxu0 0
        %1109 = vmatpush1.bf16.msra.mxu0 %v1086
        %1110 = vmatprep.subr.bf16.mxu0 0
        %1111 = vmatpush1.bf16.msra.mxu0 %v1087
        %1112 = vmatprep.subr.bf16.mxu0 0
        %1113 = vmatpush1.bf16.msra.mxu0 0
        %1114 = vmatprep.subr.bf16.mxu0 0
        %1115 = vmatpush1.bf16.msra.mxu0 0
        %1116 = vmatprep.subr.bf16.mxu0 0
        %1117 = vmatpush1.bf16.msra.mxu0 0
        %1118 = vmatprep.subr.bf16.mxu0 0
        %1119 = vmatpush1.bf16.msra.mxu0 0
        %1120 = vmatprep.subr.bf16.mxu0 0
        %1121 = vmatpush1.bf16.msra.mxu0 0
        %1122 = vmatprep.subr.bf16.mxu0 0
        %1123 = vmatpush1.bf16.msra.mxu0 0
        %1124 = vmatprep.subr.bf16.mxu0 0
        %1125 = vmatpush1.bf16.msra.mxu0 0
        %1126 = vmatprep.subr.bf16.mxu0 0
        %1127 = vmatpush1.bf16.msra.mxu0 0
        %1128 = vmatprep.mubr.bf16.mxu0 0
        %1129 = vmatmul.mubr.bf16.gmra.mrb[0].mxu0 %v543
        %v1130 = vpop.f32.mrb[0].mxu0
        %v1131 = vadd.f32 0.0, %v1130
        %v1132 = vpop.f32.mrb[0].mxu0
        %v1133 = vpop.f32.mrb[0].mxu0
        %v1134 = vadd.f32 0.0, %v1133
        %v1135 = vpop.f32.mrb[0].mxu0
        %1136 = vmatprep.mubr.bf16.mxu0 0
        %1137 = vmatmul.mubr.bf16.gmra.mrb[0].mxu0 %v544
        %v1138 = vpop.f32.mrb[0].mxu0
        %v1139 = vadd.f32 0.0, %v1138
        %v1140 = vpop.f32.mrb[0].mxu0
        %v1141 = vpop.f32.mrb[0].mxu0
        %v1142 = vadd.f32 0.0, %v1141
        %v1143 = vpop.f32.mrb[0].mxu0
        %1144 = vmatprep.mubr.bf16.mxu0 0
        %1145 = vmatmul.mubr.bf16.gmra.mrb[0].mxu0 %v545
        %v1146 = vpop.f32.mrb[0].mxu0
        %v1147 = vadd.f32 0.0, %v1146
        %v1148 = vpop.f32.mrb[0].mxu0
        %v1149 = vpop.f32.mrb[0].mxu0
        %v1150 = vadd.f32 0.0, %v1149
        %v1151 = vpop.f32.mrb[0].mxu0
        %1152 = vdwg.mxu0
        %v1169 = vunpack.c.l.b16 %v1015
        %v1170 = vunpack.c.l.b16 %v1016
        %v1171 = vunpack.c.l.b16 %v1017
        %v1172 = vunpack.c.l.b16 %v1018
        %v1173 = vunpack.c.l.b16 %v1019
        %v1174 = vunpack.c.l.b16 %v1020
        %v1175 = vunpack.c.l.b16 %v1021
        %v1176 = vunpack.c.l.b16 %v1022
        %v1177 = vunpack.c.l.b16 %v1023
        %v1178 = vunpack.c.l.b16 %v1024
        %v1179 = vunpack.c.l.b16 %v1025
        %v1180 = vunpack.c.l.b16 %v1026
        %v1181 = vunpack.c.l.b16 %v1027
        %v1182 = vunpack.c.l.b16 %v1028
        %v1183 = vunpack.c.l.b16 %v1029
        %v1184 = vunpack.c.l.b16 %v1030
        %v1185 = vpack.c.b16 %v1170, %v1169
        %v1186 = vpack.c.b16 %v1172, %v1171
        %v1187 = vpack.c.b16 %v1174, %v1173
        %v1188 = vpack.c.b16 %v1176, %v1175
        %v1189 = vpack.c.b16 %v1178, %v1177
        %v1190 = vpack.c.b16 %v1180, %v1179
        %v1191 = vpack.c.b16 %v1182, %v1181
        %v1192 = vpack.c.b16 %v1184, %v1183
        %1201 = vmatprep.subr.bf16.mxu0 0
        %1202 = vmatpush1.bf16.msra.mxu0 %v1185
        %1203 = vmatprep.subr.bf16.mxu0 0
        %1204 = vmatpush1.bf16.msra.mxu0 %v1186
        %1205 = vmatprep.subr.bf16.mxu0 0
        %1206 = vmatpush1.bf16.msra.mxu0 %v1187
        %1207 = vmatprep.subr.bf16.mxu0 0
        %1208 = vmatpush1.bf16.msra.mxu0 %v1188
        %1209 = vmatprep.subr.bf16.mxu0 0
        %1210 = vmatpush1.bf16.msra.mxu0 %v1189
        %1211 = vmatprep.subr.bf16.mxu0 0
        %1212 = vmatpush1.bf16.msra.mxu0 %v1190
        %1213 = vmatprep.subr.bf16.mxu0 0
        %1214 = vmatpush1.bf16.msra.mxu0 %v1191
        %1215 = vmatprep.subr.bf16.mxu0 0
        %1216 = vmatpush1.bf16.msra.mxu0 %v1192
        %1217 = vmatprep.subr.bf16.mxu0 0
        %1218 = vmatpush1.bf16.msra.mxu0 0
        %1219 = vmatprep.subr.bf16.mxu0 0
        %1220 = vmatpush1.bf16.msra.mxu0 0
        %1221 = vmatprep.subr.bf16.mxu0 0
        %1222 = vmatpush1.bf16.msra.mxu0 0
        %1223 = vmatprep.subr.bf16.mxu0 0
        %1224 = vmatpush1.bf16.msra.mxu0 0
        %1225 = vmatprep.subr.bf16.mxu0 0
        %1226 = vmatpush1.bf16.msra.mxu0 0
        %1227 = vmatprep.subr.bf16.mxu0 0
        %1228 = vmatpush1.bf16.msra.mxu0 0
        %1229 = vmatprep.subr.bf16.mxu0 0
        %1230 = vmatpush1.bf16.msra.mxu0 0
        %1231 = vmatprep.subr.bf16.mxu0 0
        %1232 = vmatpush1.bf16.msra.mxu0 0
        %1233 = vmatprep.mubr.bf16.mxu0 0
        %1234 = vmatmul.mubr.bf16.gmra.mrb[0].mxu0 %v654
        %v1235 = vpop.f32.mrb[0].mxu0
        %v1236 = vadd.f32 %v1131, %v1235
        %v1237 = vpop.f32.mrb[0].mxu0
        %v1238 = vpop.f32.mrb[0].mxu0
        %v1239 = vadd.f32 %v1134, %v1238
        %v1240 = vpop.f32.mrb[0].mxu0
        %1241 = vmatprep.mubr.bf16.mxu0 0
        %1242 = vmatmul.mubr.bf16.gmra.mrb[0].mxu0 %v655
        %v1243 = vpop.f32.mrb[0].mxu0
        %v1244 = vadd.f32 %v1139, %v1243
        %v1245 = vpop.f32.mrb[0].mxu0
        %v1246 = vpop.f32.mrb[0].mxu0
        %v1247 = vadd.f32 %v1142, %v1246
        %v1248 = vpop.f32.mrb[0].mxu0
        %1249 = vmatprep.mubr.bf16.mxu0 0
        %1250 = vmatmul.mubr.bf16.gmra.mrb[0].mxu0 %v656
        %v1251 = vpop.f32.mrb[0].mxu0
        %v1252 = vadd.f32 %v1147, %v1251
        %v1253 = vpop.f32.mrb[0].mxu0
        %v1254 = vpop.f32.mrb[0].mxu0
        %v1255 = vadd.f32 %v1150, %v1254
        %v1256 = vpop.f32.mrb[0].mxu0
        %1257 = vdwg.mxu0
        %s1258 = scalar_lea.vmem [#allocation7], 384
        %v1259 = vld [vmem:[%s1258] sm:$0xf]
        %v1260 = vld [vmem:[%s1258 + $0x4] sm:$0xf]
        %v1261 = vld [vmem:[%s1258 + $0x8] sm:$0xf]
        %v1262 = vld [vmem:[%s1258 + $0xc] sm:$0xf]
        %v1263 = vld [vmem:[%s1258 + $0x10] sm:$0xf]
        %v1264 = vld [vmem:[%s1258 + $0x14] sm:$0xf]
        %v1265 = vld [vmem:[%s1258 + $0x18] sm:$0xf]
        %v1266 = vld [vmem:[%s1258 + $0x1c] sm:$0xf]
        %v1267 = vld [vmem:[%s1258 + $0x20] sm:$0xf]
        %v1268 = vld [vmem:[%s1258 + $0x24] sm:$0xf]
        %v1269 = vld [vmem:[%s1258 + $0x28] sm:$0xf]
        %v1270 = vld [vmem:[%s1258 + $0x2c] sm:$0xf]
        %v1271 = vld [vmem:[%s1258 + $0x30] sm:$0xf]
        %v1272 = vld [vmem:[%s1258 + $0x34] sm:$0xf]
        %v1273 = vld [vmem:[%s1258 + $0x38] sm:$0xf]
        %v1274 = vld [vmem:[%s1258 + $0x3c] sm:$0xf]
        %v1291 = vunpack.c.l.b16 %v1259
        %v1292 = vunpack.c.l.b16 %v1260
        %v1293 = vunpack.c.l.b16 %v1261
        %v1294 = vunpack.c.l.b16 %v1262
        %v1295 = vunpack.c.l.b16 %v1263
        %v1296 = vunpack.c.l.b16 %v1264
        %v1297 = vunpack.c.l.b16 %v1265
        %v1298 = vunpack.c.l.b16 %v1266
        %v1299 = vunpack.c.l.b16 %v1267
        %v1300 = vunpack.c.l.b16 %v1268
        %v1301 = vunpack.c.l.b16 %v1269
        %v1302 = vunpack.c.l.b16 %v1270
        %v1303 = vunpack.c.l.b16 %v1271
        %v1304 = vunpack.c.l.b16 %v1272
        %v1305 = vunpack.c.l.b16 %v1273
        %v1306 = vunpack.c.l.b16 %v1274
        %v1307 = vpack.c.b16 %v1292, %v1291
        %v1308 = vpack.c.b16 %v1294, %v1293
        %v1309 = vpack.c.b16 %v1296, %v1295
        %v1310 = vpack.c.b16 %v1298, %v1297
        %v1311 = vpack.c.b16 %v1300, %v1299
        %v1312 = vpack.c.b16 %v1302, %v1301
        %v1313 = vpack.c.b16 %v1304, %v1303
        %v1314 = vpack.c.b16 %v1306, %v1305
        %1323 = vmatprep.subr.bf16.mxu0 0
        %1324 = vmatpush1.bf16.msra.mxu0 %v1307
        %1325 = vmatprep.subr.bf16.mxu0 0
        %1326 = vmatpush1.bf16.msra.mxu0 %v1308
        %1327 = vmatprep.subr.bf16.mxu0 0
        %1328 = vmatpush1.bf16.msra.mxu0 %v1309
        %1329 = vmatprep.subr.bf16.mxu0 0
        %1330 = vmatpush1.bf16.msra.mxu0 %v1310
        %1331 = vmatprep.subr.bf16.mxu0 0
        %1332 = vmatpush1.bf16.msra.mxu0 %v1311
        %1333 = vmatprep.subr.bf16.mxu0 0
        %1334 = vmatpush1.bf16.msra.mxu0 %v1312
        %1335 = vmatprep.subr.bf16.mxu0 0
        %1336 = vmatpush1.bf16.msra.mxu0 %v1313
        %1337 = vmatprep.subr.bf16.mxu0 0
        %1338 = vmatpush1.bf16.msra.mxu0 %v1314
        %1339 = vmatprep.subr.bf16.mxu0 0
        %1340 = vmatpush1.bf16.msra.mxu0 0
        %1341 = vmatprep.subr.bf16.mxu0 0
        %1342 = vmatpush1.bf16.msra.mxu0 0
        %1343 = vmatprep.subr.bf16.mxu0 0
        %1344 = vmatpush1.bf16.msra.mxu0 0
        %1345 = vmatprep.subr.bf16.mxu0 0
        %1346 = vmatpush1.bf16.msra.mxu0 0
        %1347 = vmatprep.subr.bf16.mxu0 0
        %1348 = vmatpush1.bf16.msra.mxu0 0
        %1349 = vmatprep.subr.bf16.mxu0 0
        %1350 = vmatpush1.bf16.msra.mxu0 0
        %1351 = vmatprep.subr.bf16.mxu0 0
        %1352 = vmatpush1.bf16.msra.mxu0 0
        %1353 = vmatprep.subr.bf16.mxu0 0
        %1354 = vmatpush1.bf16.msra.mxu0 0
        %1355 = vmatprep.mubr.bf16.mxu0 0
        %1356 = vmatmul.mubr.bf16.gmra.mrb[0].mxu0 %v799
        %v1357 = vpop.f32.mrb[0].mxu0
        %v1358 = vadd.f32 0.0, %v1357
        %v1359 = vpop.f32.mrb[0].mxu0
        %v1360 = vpop.f32.mrb[0].mxu0
        %v1361 = vadd.f32 0.0, %v1360
        %v1362 = vpop.f32.mrb[0].mxu0
        %1363 = vmatprep.mubr.bf16.mxu0 0
        %1364 = vmatmul.mubr.bf16.gmra.mrb[0].mxu0 %v800
        %v1365 = vpop.f32.mrb[0].mxu0
        %v1366 = vadd.f32 0.0, %v1365
        %v1367 = vpop.f32.mrb[0].mxu0
        %v1368 = vpop.f32.mrb[0].mxu0
        %v1369 = vadd.f32 0.0, %v1368
        %v1370 = vpop.f32.mrb[0].mxu0
        %1371 = vmatprep.mubr.bf16.mxu0 0
        %1372 = vmatmul.mubr.bf16.gmra.mrb[0].mxu0 %v801
        %v1373 = vpop.f32.mrb[0].mxu0
        %v1374 = vadd.f32 0.0, %v1373
        %v1375 = vpop.f32.mrb[0].mxu0
        %v1376 = vpop.f32.mrb[0].mxu0
        %v1377 = vadd.f32 0.0, %v1376
        %v1378 = vpop.f32.mrb[0].mxu0
        %1379 = vdwg.mxu0
        %v1380 = vadd.f32 %v1236, %v1358
        %v1381 = vadd.f32 %v1239, %v1361
        %v1382 = vadd.f32 %v1244, %v1366
        %v1383 = vadd.f32 %v1247, %v1369
        %v1384 = vadd.f32 %v1252, %v1374
        %v1385 = vadd.f32 %v1255, %v1377
        %s1386 = scalar_lea.vmem [#allocation7], 512
        %v1387 = vld [vmem:[%s1386] sm:$0xf]
        %v1388 = vld [vmem:[%s1386 + $0x4] sm:$0xf]
        %v1389 = vld [vmem:[%s1386 + $0x8] sm:$0xf]
        %v1390 = vld [vmem:[%s1386 + $0xc] sm:$0xf]
        %v1391 = vld [vmem:[%s1386 + $0x10] sm:$0xf]
        %v1392 = vld [vmem:[%s1386 + $0x14] sm:$0xf]
        %v1393 = vld [vmem:[%s1386 + $0x18] sm:$0xf]
        %v1394 = vld [vmem:[%s1386 + $0x1c] sm:$0xf]
        %v1395 = vld [vmem:[%s1386 + $0x20] sm:$0xf]
        %v1396 = vld [vmem:[%s1386 + $0x24] sm:$0xf]
        %v1397 = vld [vmem:[%s1386 + $0x28] sm:$0xf]
        %v1398 = vld [vmem:[%s1386 + $0x2c] sm:$0xf]
        %v1399 = vld [vmem:[%s1386 + $0x30] sm:$0xf]
        %v1400 = vld [vmem:[%s1386 + $0x34] sm:$0xf]
        %v1401 = vld [vmem:[%s1386 + $0x38] sm:$0xf]
        %v1402 = vld [vmem:[%s1386 + $0x3c] sm:$0xf]
        %v1404 = vunpack.c.l.b16 %v479
        %v1405 = vpack.c.b16 %v539, %v538
        %v1406 = vpack.c.b16 %v541, %v540
        %v1407 = vpack.c.b16 %v1404, %v542
        %v1427 = vunpack.c.l.b16 %v1387
        %v1428 = vunpack.c.l.b16 %v1388
        %v1429 = vunpack.c.l.b16 %v1389
        %v1430 = vunpack.c.l.b16 %v1390
        %v1431 = vunpack.c.l.b16 %v1391
        %v1432 = vunpack.c.l.b16 %v1392
        %v1433 = vunpack.c.l.b16 %v1393
        %v1434 = vunpack.c.l.b16 %v1394
        %v1435 = vunpack.c.l.b16 %v1395
        %v1436 = vunpack.c.l.b16 %v1396
        %v1437 = vunpack.c.l.b16 %v1397
        %v1438 = vunpack.c.l.b16 %v1398
        %v1439 = vunpack.c.l.b16 %v1399
        %v1440 = vunpack.c.l.b16 %v1400
        %v1441 = vunpack.c.l.b16 %v1401
        %v1442 = vunpack.c.l.b16 %v1402
        %v1443 = vpack.c.b16 %v1428, %v1427
        %v1444 = vpack.c.b16 %v1430, %v1429
        %v1445 = vpack.c.b16 %v1432, %v1431
        %v1446 = vpack.c.b16 %v1434, %v1433
        %v1447 = vpack.c.b16 %v1436, %v1435
        %v1448 = vpack.c.b16 %v1438, %v1437
        %v1449 = vpack.c.b16 %v1440, %v1439
        %v1450 = vpack.c.b16 %v1442, %v1441
        %1459 = vmatprep.subr.bf16.mxu0 0
        %1460 = vmatpush1.bf16.msra.mxu0 %v1443
        %1461 = vmatprep.subr.bf16.mxu0 0
        %1462 = vmatpush1.bf16.msra.mxu0 %v1444
        %1463 = vmatprep.subr.bf16.mxu0 0
        %1464 = vmatpush1.bf16.msra.mxu0 %v1445
        %1465 = vmatprep.subr.bf16.mxu0 0
        %1466 = vmatpush1.bf16.msra.mxu0 %v1446
        %1467 = vmatprep.subr.bf16.mxu0 0
        %1468 = vmatpush1.bf16.msra.mxu0 %v1447
        %1469 = vmatprep.subr.bf16.mxu0 0
        %1470 = vmatpush1.bf16.msra.mxu0 %v1448
        %1471 = vmatprep.subr.bf16.mxu0 0
        %1472 = vmatpush1.bf16.msra.mxu0 %v1449
        %1473 = vmatprep.subr.bf16.mxu0 0
        %1474 = vmatpush1.bf16.msra.mxu0 %v1450
        %1475 = vmatprep.subr.bf16.mxu0 0
        %1476 = vmatpush1.bf16.msra.mxu0 0
        %1477 = vmatprep.subr.bf16.mxu0 0
        %1478 = vmatpush1.bf16.msra.mxu0 0
        %1479 = vmatprep.subr.bf16.mxu0 0
        %1480 = vmatpush1.bf16.msra.mxu0 0
        %1481 = vmatprep.subr.bf16.mxu0 0
        %1482 = vmatpush1.bf16.msra.mxu0 0
        %1483 = vmatprep.subr.bf16.mxu0 0
        %1484 = vmatpush1.bf16.msra.mxu0 0
        %1485 = vmatprep.subr.bf16.mxu0 0
        %1486 = vmatpush1.bf16.msra.mxu0 0
        %1487 = vmatprep.subr.bf16.mxu0 0
        %1488 = vmatpush1.bf16.msra.mxu0 0
        %1489 = vmatprep.subr.bf16.mxu0 0
        %1490 = vmatpush1.bf16.msra.mxu0 0
        %1491 = vmatprep.mubr.bf16.mxu0 0
        %1492 = vmatmul.mubr.bf16.gmra.mrb[0].mxu0 %v1405
        %v1493 = vpop.f32.mrb[0].mxu0
        %v1494 = vadd.f32 0.0, %v1493
        %v1495 = vpop.f32.mrb[0].mxu0
        %v1496 = vpop.f32.mrb[0].mxu0
        %v1497 = vadd.f32 0.0, %v1496
        %v1498 = vpop.f32.mrb[0].mxu0
        %1499 = vmatprep.mubr.bf16.mxu0 0
        %1500 = vmatmul.mubr.bf16.gmra.mrb[0].mxu0 %v1406
        %v1501 = vpop.f32.mrb[0].mxu0
        %v1502 = vadd.f32 0.0, %v1501
        %v1503 = vpop.f32.mrb[0].mxu0
        %v1504 = vpop.f32.mrb[0].mxu0
        %v1505 = vadd.f32 0.0, %v1504
        %v1506 = vpop.f32.mrb[0].mxu0
        %1507 = vmatprep.mubr.bf16.mxu0 0
        %1508 = vmatmul.mubr.bf16.gmra.mrb[0].mxu0 %v1407
        %v1509 = vpop.f32.mrb[0].mxu0
        %v1510 = vadd.f32 0.0, %v1509
        %v1511 = vpop.f32.mrb[0].mxu0
        %v1512 = vpop.f32.mrb[0].mxu0
        %v1513 = vadd.f32 0.0, %v1512
        %v1514 = vpop.f32.mrb[0].mxu0
        %1515 = vdwg.mxu0
        %v1516 = vadd.f32 %v1380, %v1494
        %v1517 = vadd.f32 %v1381, %v1497
        %v1518 = vadd.f32 %v1382, %v1502
        %v1519 = vadd.f32 %v1383, %v1505
        %v1520 = vadd.f32 %v1384, %v1510
        %v1521 = vadd.f32 %v1385, %v1513
        %v1522 = vld [vmem:[%s5] sm:$0x1]
        %v1523 = vlaneseq
        %v1524 = vshrl.u32 %v1523, 7
        %v1525 = vsub.s32 0, %v1524
        %v1526 = vrot.slane %v1522, %v1525
        %v1543 = vunpack.c.l.b16 %v481
        %v1544 = vunpack.c.l.b16 %v482
        %v1545 = vunpack.c.l.b16 %v483
        %v1546 = vunpack.c.l.b16 %v484
        %v1547 = vunpack.c.l.b16 %v485
        %v1548 = vunpack.c.l.b16 %v486
        %v1549 = vunpack.c.l.b16 %v487
        %v1550 = vunpack.c.l.b16 %v488
        %v1551 = vunpack.c.l.b16 %v489
        %v1552 = vunpack.c.l.b16 %v490
        %v1553 = vunpack.c.l.b16 %v491
        %v1554 = vunpack.c.l.b16 %v492
        %v1555 = vunpack.c.l.b16 %v493
        %v1556 = vunpack.c.l.b16 %v494
        %v1557 = vunpack.c.l.b16 %v495
        %v1558 = vunpack.c.l.b16 %v496
        %v1559 = vpack.c.b16 %v1544, %v1543
        %v1560 = vpack.c.b16 %v1546, %v1545
        %v1561 = vpack.c.b16 %v1548, %v1547
        %v1562 = vpack.c.b16 %v1550, %v1549
        %v1563 = vpack.c.b16 %v1552, %v1551
        %v1564 = vpack.c.b16 %v1554, %v1553
        %v1565 = vpack.c.b16 %v1556, %v1555
        %v1566 = vpack.c.b16 %v1558, %v1557
        %1575 = vmatprep.subr.bf16.mxu0 0
        %1576 = vmatpush1.bf16.msra.mxu0 %v1559
        %1577 = vmatprep.subr.bf16.mxu0 0
        %1578 = vmatpush1.bf16.msra.mxu0 %v1560
        %1579 = vmatprep.subr.bf16.mxu0 0
        %1580 = vmatpush1.bf16.msra.mxu0 %v1561
        %1581 = vmatprep.subr.bf16.mxu0 0
        %1582 = vmatpush1.bf16.msra.mxu0 %v1562
        %1583 = vmatprep.subr.bf16.mxu0 0
        %1584 = vmatpush1.bf16.msra.mxu0 %v1563
        %1585 = vmatprep.subr.bf16.mxu0 0
        %1586 = vmatpush1.bf16.msra.mxu0 %v1564
        %1587 = vmatprep.subr.bf16.mxu0 0
        %1588 = vmatpush1.bf16.msra.mxu0 %v1565
        %1589 = vmatprep.subr.bf16.mxu0 0
        %1590 = vmatpush1.bf16.msra.mxu0 %v1566
        %1591 = vmatprep.subr.bf16.mxu0 0
        %1592 = vmatpush1.bf16.msra.mxu0 0
        %1593 = vmatprep.subr.bf16.mxu0 0
        %1594 = vmatpush1.bf16.msra.mxu0 0
        %1595 = vmatprep.subr.bf16.mxu0 0
        %1596 = vmatpush1.bf16.msra.mxu0 0
        %1597 = vmatprep.subr.bf16.mxu0 0
        %1598 = vmatpush1.bf16.msra.mxu0 0
        %1599 = vmatprep.subr.bf16.mxu0 0
        %1600 = vmatpush1.bf16.msra.mxu0 0
        %1601 = vmatprep.subr.bf16.mxu0 0
        %1602 = vmatpush1.bf16.msra.mxu0 0
        %1603 = vmatprep.subr.bf16.mxu0 0
        %1604 = vmatpush1.bf16.msra.mxu0 0
        %1605 = vmatprep.subr.bf16.mxu0 0
        %1606 = vmatpush1.bf16.msra.mxu0 0
        %1607 = vmatprep.mubr.bf16.mxu0 0
        %1608 = vmatmul.mubr.bf16.gmra.mrb[0].mxu0 %v654
        %v1609 = vpop.f32.mrb[0].mxu0
        %v1610 = vadd.f32 %v1526, %v1609
        %v1611 = vpop.f32.mrb[0].mxu0
        %v1612 = vpop.f32.mrb[0].mxu0
        %v1613 = vadd.f32 %v1526, %v1612
        %v1614 = vpop.f32.mrb[0].mxu0
        %1615 = vmatprep.mubr.bf16.mxu0 0
        %1616 = vmatmul.mubr.bf16.gmra.mrb[0].mxu0 %v655
        %v1617 = vpop.f32.mrb[0].mxu0
        %v1618 = vadd.f32 %v1526, %v1617
        %v1619 = vpop.f32.mrb[0].mxu0
        %v1620 = vpop.f32.mrb[0].mxu0
        %v1621 = vadd.f32 %v1526, %v1620
        %v1622 = vpop.f32.mrb[0].mxu0
        %1623 = vmatprep.mubr.bf16.mxu0 0
        %1624 = vmatmul.mubr.bf16.gmra.mrb[0].mxu0 %v656
        %v1625 = vpop.f32.mrb[0].mxu0
        %v1626 = vadd.f32 %v1526, %v1625
        %v1627 = vpop.f32.mrb[0].mxu0
        %v1628 = vpop.f32.mrb[0].mxu0
        %v1629 = vadd.f32 %v1526, %v1628
        %v1630 = vpop.f32.mrb[0].mxu0
        %1631 = vdwg.mxu0
        %v1632 = vmax.f32 %v1610, 0.0
        %v1633 = vmax.f32 %v1613, 0.0
        %v1634 = vmax.f32 %v1618, 0.0
        %v1635 = vmax.f32 %v1621, 0.0
        %v1636 = vmax.f32 %v1626, 0.0
        %v1637 = vmax.f32 %v1629, 0.0
        %v1638 = vadd.f32 %v743, %v1526
        %v1639 = vadd.f32 %v746, %v1526
        %v1640 = vadd.f32 %v751, %v1526
        %v1641 = vadd.f32 %v754, %v1526
        %v1642 = vadd.f32 %v759, %v1526
        %v1643 = vadd.f32 %v762, %v1526
        %v1644 = vmax.f32 %v1638, 0.0
        %v1645 = vmax.f32 %v1639, 0.0
        %v1646 = vmax.f32 %v1640, 0.0
        %v1647 = vmax.f32 %v1641, 0.0
        %v1648 = vmax.f32 %v1642, 0.0
        %v1649 = vmax.f32 %v1643, 0.0
        %v1650 = vadd.f32 %v993, %v1526
        %v1651 = vadd.f32 %v996, %v1526
        %v1652 = vadd.f32 %v1001, %v1526
        %v1653 = vadd.f32 %v1004, %v1526
        %v1654 = vadd.f32 %v1009, %v1526
        %v1655 = vadd.f32 %v1012, %v1526
        %v1656 = vmax.f32 %v1650, 0.0
        %v1657 = vmax.f32 %v1651, 0.0
        %v1658 = vmax.f32 %v1652, 0.0
        %v1659 = vmax.f32 %v1653, 0.0
        %v1660 = vmax.f32 %v1654, 0.0
        %v1661 = vmax.f32 %v1655, 0.0
        %v1662 = vadd.f32 %v1516, %v1526
        %v1663 = vadd.f32 %v1517, %v1526
        %v1664 = vadd.f32 %v1518, %v1526
        %v1665 = vadd.f32 %v1519, %v1526
        %v1666 = vadd.f32 %v1520, %v1526
        %v1667 = vadd.f32 %v1521, %v1526
        %v1668 = vmax.f32 %v1662, 0.0
        %v1669 = vmax.f32 %v1663, 0.0
        %v1670 = vmax.f32 %v1664, 0.0
        %v1671 = vmax.f32 %v1665, 0.0
        %v1672 = vmax.f32 %v1666, 0.0
        %v1673 = vmax.f32 %v1667, 0.0
        %v1680 = vcombine.high %v1632, %v1632
        %v1682 = vunpack.c.l.s4 1966171168
        %v1683 = vunpack.c.0.s8 %v1682
        %v1684 = vlaneseq
        %v1685 = vshrl.u32 %v1684, 7
        %v1686 = vsub.s32 %v1683, %v1685
        %v1687 = vrot.slane %v1632, %v1686
        %v1689 = vunpack.c.l.s4 1966171168
        %v1690 = vunpack.c.0.s8 %v1689
        %v1691 = vlaneseq
        %v1692 = vshrl.u32 %v1691, 7
        %v1693 = vsub.s32 %v1690, %v1692
        %v1694 = vrot.slane %v1680, %v1693
        %v1695 = vcombine.high %v1687, %v1687
        %v1696 = vcombine.high %v1694, %v1694
        %v1698 = vunpack.c.l.s4 1966171168
        %v1699 = vunpack.c.0.s8 %v1698
        %v1700 = vlaneseq
        %v1701 = vshrl.u32 %v1700, 7
        %v1702 = vsub.s32 %v1699, %v1701
        %v1703 = vrot.slane %v1687, %v1702
        %v1705 = vunpack.c.l.s4 1966171168
        %v1706 = vunpack.c.0.s8 %v1705
        %v1707 = vlaneseq
        %v1708 = vshrl.u32 %v1707, 7
        %v1709 = vsub.s32 %v1706, %v1708
        %v1710 = vrot.slane %v1694, %v1709
        %v1712 = vunpack.c.l.s4 1966171168
        %v1713 = vunpack.c.0.s8 %v1712
        %v1714 = vlaneseq
        %v1715 = vshrl.u32 %v1714, 7
        %v1716 = vsub.s32 %v1713, %v1715
        %v1717 = vrot.slane %v1695, %v1716
        %v1719 = vunpack.c.l.s4 1966171168
        %v1720 = vunpack.c.0.s8 %v1719
        %v1721 = vlaneseq
        %v1722 = vshrl.u32 %v1721, 7
        %v1723 = vsub.s32 %v1720, %v1722
        %v1724 = vrot.slane %v1696, %v1723
        %v1725 = vcombine.high %v1703, %v1703
        %v1726 = vcombine.high %v1710, %v1710
        %v1727 = vcombine.high %v1717, %v1717
        %v1728 = vcombine.high %v1724, %v1724
        %v1729 = vcombine.high %v1633, %v1633
        %v1731 = vunpack.c.l.s4 1966171168
        %v1732 = vunpack.c.0.s8 %v1731
        %v1733 = vlaneseq
        %v1734 = vshrl.u32 %v1733, 7
        %v1735 = vsub.s32 %v1732, %v1734
        %v1736 = vrot.slane %v1633, %v1735
        %v1738 = vunpack.c.l.s4 1966171168
        %v1739 = vunpack.c.0.s8 %v1738
        %v1740 = vlaneseq
        %v1741 = vshrl.u32 %v1740, 7
        %v1742 = vsub.s32 %v1739, %v1741
        %v1743 = vrot.slane %v1729, %v1742
        %v1744 = vcombine.high %v1736, %v1736
        %v1745 = vcombine.high %v1743, %v1743
        %v1747 = vunpack.c.l.s4 1966171168
        %v1748 = vunpack.c.0.s8 %v1747
        %v1749 = vlaneseq
        %v1750 = vshrl.u32 %v1749, 7
        %v1751 = vsub.s32 %v1748, %v1750
        %v1752 = vrot.slane %v1736, %v1751
        %v1754 = vunpack.c.l.s4 1966171168
        %v1755 = vunpack.c.0.s8 %v1754
        %v1756 = vlaneseq
        %v1757 = vshrl.u32 %v1756, 7
        %v1758 = vsub.s32 %v1755, %v1757
        %v1759 = vrot.slane %v1743, %v1758
        %v1761 = vunpack.c.l.s4 1966171168
        %v1762 = vunpack.c.0.s8 %v1761
        %v1763 = vlaneseq
        %v1764 = vshrl.u32 %v1763, 7
        %v1765 = vsub.s32 %v1762, %v1764
        %v1766 = vrot.slane %v1744, %v1765
        %v1768 = vunpack.c.l.s4 1966171168
        %v1769 = vunpack.c.0.s8 %v1768
        %v1770 = vlaneseq
        %v1771 = vshrl.u32 %v1770, 7
        %v1772 = vsub.s32 %v1769, %v1771
        %v1773 = vrot.slane %v1745, %v1772
        %v1774 = vcombine.high %v1752, %v1752
        %v1775 = vcombine.high %v1759, %v1759
        %v1776 = vcombine.high %v1766, %v1766
        %v1777 = vcombine.high %v1773, %v1773
        %v1778 = vcombine.high %v1634, %v1634
        %v1780 = vunpack.c.l.s4 1966171168
        %v1781 = vunpack.c.0.s8 %v1780
        %v1782 = vlaneseq
        %v1783 = vshrl.u32 %v1782, 7
        %v1784 = vsub.s32 %v1781, %v1783
        %v1785 = vrot.slane %v1634, %v1784
        %v1787 = vunpack.c.l.s4 1966171168
        %v1788 = vunpack.c.0.s8 %v1787
        %v1789 = vlaneseq
        %v1790 = vshrl.u32 %v1789, 7
        %v1791 = vsub.s32 %v1788, %v1790
        %v1792 = vrot.slane %v1778, %v1791
        %v1793 = vcombine.high %v1785, %v1785
        %v1794 = vcombine.high %v1792, %v1792
        %v1796 = vunpack.c.l.s4 1966171168
        %v1797 = vunpack.c.0.s8 %v1796
        %v1798 = vlaneseq
        %v1799 = vshrl.u32 %v1798, 7
        %v1800 = vsub.s32 %v1797, %v1799
        %v1801 = vrot.slane %v1785, %v1800
        %v1803 = vunpack.c.l.s4 1966171168
        %v1804 = vunpack.c.0.s8 %v1803
        %v1805 = vlaneseq
        %v1806 = vshrl.u32 %v1805, 7
        %v1807 = vsub.s32 %v1804, %v1806
        %v1808 = vrot.slane %v1792, %v1807
        %v1810 = vunpack.c.l.s4 1966171168
        %v1811 = vunpack.c.0.s8 %v1810
        %v1812 = vlaneseq
        %v1813 = vshrl.u32 %v1812, 7
        %v1814 = vsub.s32 %v1811, %v1813
        %v1815 = vrot.slane %v1793, %v1814
        %v1817 = vunpack.c.l.s4 1966171168
        %v1818 = vunpack.c.0.s8 %v1817
        %v1819 = vlaneseq
        %v1820 = vshrl.u32 %v1819, 7
        %v1821 = vsub.s32 %v1818, %v1820
        %v1822 = vrot.slane %v1794, %v1821
        %v1823 = vcombine.high %v1801, %v1801
        %v1824 = vcombine.high %v1808, %v1808
        %v1825 = vcombine.high %v1815, %v1815
        %v1826 = vcombine.high %v1822, %v1822
        %v1827 = vcombine.high %v1635, %v1635
        %v1829 = vunpack.c.l.s4 1966171168
        %v1830 = vunpack.c.0.s8 %v1829
        %v1831 = vlaneseq
        %v1832 = vshrl.u32 %v1831, 7
        %v1833 = vsub.s32 %v1830, %v1832
        %v1834 = vrot.slane %v1635, %v1833
        %v1836 = vunpack.c.l.s4 1966171168
        %v1837 = vunpack.c.0.s8 %v1836
        %v1838 = vlaneseq
        %v1839 = vshrl.u32 %v1838, 7
        %v1840 = vsub.s32 %v1837, %v1839
        %v1841 = vrot.slane %v1827, %v1840
        %v1842 = vcombine.high %v1834, %v1834
        %v1843 = vcombine.high %v1841, %v1841
        %v1845 = vunpack.c.l.s4 1966171168
        %v1846 = vunpack.c.0.s8 %v1845
        %v1847 = vlaneseq
        %v1848 = vshrl.u32 %v1847, 7
        %v1849 = vsub.s32 %v1846, %v1848
        %v1850 = vrot.slane %v1834, %v1849
        %v1852 = vunpack.c.l.s4 1966171168
        %v1853 = vunpack.c.0.s8 %v1852
        %v1854 = vlaneseq
        %v1855 = vshrl.u32 %v1854, 7
        %v1856 = vsub.s32 %v1853, %v1855
        %v1857 = vrot.slane %v1841, %v1856
        %v1859 = vunpack.c.l.s4 1966171168
        %v1860 = vunpack.c.0.s8 %v1859
        %v1861 = vlaneseq
        %v1862 = vshrl.u32 %v1861, 7
        %v1863 = vsub.s32 %v1860, %v1862
        %v1864 = vrot.slane %v1842, %v1863
        %v1866 = vunpack.c.l.s4 1966171168
        %v1867 = vunpack.c.0.s8 %v1866
        %v1868 = vlaneseq
        %v1869 = vshrl.u32 %v1868, 7
        %v1870 = vsub.s32 %v1867, %v1869
        %v1871 = vrot.slane %v1843, %v1870
        %v1872 = vcombine.high %v1850, %v1850
        %v1873 = vcombine.high %v1857, %v1857
        %v1874 = vcombine.high %v1864, %v1864
        %v1875 = vcombine.high %v1871, %v1871
        %v1876 = vcombine.high %v1636, %v1636
        %v1878 = vunpack.c.l.s4 1966171168
        %v1879 = vunpack.c.0.s8 %v1878
        %v1880 = vlaneseq
        %v1881 = vshrl.u32 %v1880, 7
        %v1882 = vsub.s32 %v1879, %v1881
        %v1883 = vrot.slane %v1636, %v1882
        %v1885 = vunpack.c.l.s4 1966171168
        %v1886 = vunpack.c.0.s8 %v1885
        %v1887 = vlaneseq
        %v1888 = vshrl.u32 %v1887, 7
        %v1889 = vsub.s32 %v1886, %v1888
        %v1890 = vrot.slane %v1876, %v1889
        %v1891 = vcombine.high %v1883, %v1883
        %v1892 = vcombine.high %v1890, %v1890
        %v1894 = vunpack.c.l.s4 1966171168
        %v1895 = vunpack.c.0.s8 %v1894
        %v1896 = vlaneseq
        %v1897 = vshrl.u32 %v1896, 7
        %v1898 = vsub.s32 %v1895, %v1897
        %v1899 = vrot.slane %v1883, %v1898
        %v1901 = vunpack.c.l.s4 1966171168
        %v1902 = vunpack.c.0.s8 %v1901
        %v1903 = vlaneseq
        %v1904 = vshrl.u32 %v1903, 7
        %v1905 = vsub.s32 %v1902, %v1904
        %v1906 = vrot.slane %v1890, %v1905
        %v1908 = vunpack.c.l.s4 1966171168
        %v1909 = vunpack.c.0.s8 %v1908
        %v1910 = vlaneseq
        %v1911 = vshrl.u32 %v1910, 7
        %v1912 = vsub.s32 %v1909, %v1911
        %v1913 = vrot.slane %v1891, %v1912
        %v1915 = vunpack.c.l.s4 1966171168
        %v1916 = vunpack.c.0.s8 %v1915
        %v1917 = vlaneseq
        %v1918 = vshrl.u32 %v1917, 7
        %v1919 = vsub.s32 %v1916, %v1918
        %v1920 = vrot.slane %v1892, %v1919
        %v1921 = vcombine.high %v1899, %v1899
        %v1922 = vcombine.high %v1906, %v1906
        %v1923 = vcombine.high %v1913, %v1913
        %v1924 = vcombine.high %v1920, %v1920
        %v1925 = vcombine.high %v1637, %v1637
        %v1927 = vunpack.c.l.s4 1966171168
        %v1928 = vunpack.c.0.s8 %v1927
        %v1929 = vlaneseq
        %v1930 = vshrl.u32 %v1929, 7
        %v1931 = vsub.s32 %v1928, %v1930
        %v1932 = vrot.slane %v1637, %v1931
        %v1934 = vunpack.c.l.s4 1966171168
        %v1935 = vunpack.c.0.s8 %v1934
        %v1936 = vlaneseq
        %v1937 = vshrl.u32 %v1936, 7
        %v1938 = vsub.s32 %v1935, %v1937
        %v1939 = vrot.slane %v1925, %v1938
        %v1940 = vcombine.high %v1932, %v1932
        %v1941 = vcombine.high %v1939, %v1939
        %v1943 = vunpack.c.l.s4 1966171168
        %v1944 = vunpack.c.0.s8 %v1943
        %v1945 = vlaneseq
        %v1946 = vshrl.u32 %v1945, 7
        %v1947 = vsub.s32 %v1944, %v1946
        %v1948 = vrot.slane %v1932, %v1947
        %v1950 = vunpack.c.l.s4 1966171168
        %v1951 = vunpack.c.0.s8 %v1950
        %v1952 = vlaneseq
        %v1953 = vshrl.u32 %v1952, 7
        %v1954 = vsub.s32 %v1951, %v1953
        %v1955 = vrot.slane %v1939, %v1954
        %v1957 = vunpack.c.l.s4 1966171168
        %v1958 = vunpack.c.0.s8 %v1957
        %v1959 = vlaneseq
        %v1960 = vshrl.u32 %v1959, 7
        %v1961 = vsub.s32 %v1958, %v1960
        %v1962 = vrot.slane %v1940, %v1961
        %v1964 = vunpack.c.l.s4 1966171168
        %v1965 = vunpack.c.0.s8 %v1964
        %v1966 = vlaneseq
        %v1967 = vshrl.u32 %v1966, 7
        %v1968 = vsub.s32 %v1965, %v1967
        %v1969 = vrot.slane %v1941, %v1968
        %v1970 = vcombine.high %v1948, %v1948
        %v1971 = vcombine.high %v1955, %v1955
        %v1972 = vcombine.high %v1962, %v1962
        %v1973 = vcombine.high %v1969, %v1969
        %v2028 = vcombine.high %v1644, %v1644
        %v2030 = vunpack.c.l.s4 1966171168
        %v2031 = vunpack.c.0.s8 %v2030
        %v2032 = vlaneseq
        %v2033 = vshrl.u32 %v2032, 7
        %v2034 = vsub.s32 %v2031, %v2033
        %v2035 = vrot.slane %v1644, %v2034
        %v2037 = vunpack.c.l.s4 1966171168
        %v2038 = vunpack.c.0.s8 %v2037
        %v2039 = vlaneseq
        %v2040 = vshrl.u32 %v2039, 7
        %v2041 = vsub.s32 %v2038, %v2040
        %v2042 = vrot.slane %v2028, %v2041
        %v2043 = vcombine.high %v2035, %v2035
        %v2044 = vcombine.high %v2042, %v2042
        %v2046 = vunpack.c.l.s4 1966171168
        %v2047 = vunpack.c.0.s8 %v2046
        %v2048 = vlaneseq
        %v2049 = vshrl.u32 %v2048, 7
        %v2050 = vsub.s32 %v2047, %v2049
        %v2051 = vrot.slane %v2035, %v2050
        %v2053 = vunpack.c.l.s4 1966171168
        %v2054 = vunpack.c.0.s8 %v2053
        %v2055 = vlaneseq
        %v2056 = vshrl.u32 %v2055, 7
        %v2057 = vsub.s32 %v2054, %v2056
        %v2058 = vrot.slane %v2042, %v2057
        %v2060 = vunpack.c.l.s4 1966171168
        %v2061 = vunpack.c.0.s8 %v2060
        %v2062 = vlaneseq
        %v2063 = vshrl.u32 %v2062, 7
        %v2064 = vsub.s32 %v2061, %v2063
        %v2065 = vrot.slane %v2043, %v2064
        %v2067 = vunpack.c.l.s4 1966171168
        %v2068 = vunpack.c.0.s8 %v2067
        %v2069 = vlaneseq
        %v2070 = vshrl.u32 %v2069, 7
        %v2071 = vsub.s32 %v2068, %v2070
        %v2072 = vrot.slane %v2044, %v2071
        %v2073 = vcombine.high %v2051, %v2051
        %v2074 = vcombine.high %v2058, %v2058
        %v2075 = vcombine.high %v2065, %v2065
        %v2076 = vcombine.high %v2072, %v2072
        %v2077 = vcombine.high %v1645, %v1645
        %v2079 = vunpack.c.l.s4 1966171168
        %v2080 = vunpack.c.0.s8 %v2079
        %v2081 = vlaneseq
        %v2082 = vshrl.u32 %v2081, 7
        %v2083 = vsub.s32 %v2080, %v2082
        %v2084 = vrot.slane %v1645, %v2083
        %v2086 = vunpack.c.l.s4 1966171168
        %v2087 = vunpack.c.0.s8 %v2086
        %v2088 = vlaneseq
        %v2089 = vshrl.u32 %v2088, 7
        %v2090 = vsub.s32 %v2087, %v2089
        %v2091 = vrot.slane %v2077, %v2090
        %v2092 = vcombine.high %v2084, %v2084
        %v2093 = vcombine.high %v2091, %v2091
        %v2095 = vunpack.c.l.s4 1966171168
        %v2096 = vunpack.c.0.s8 %v2095
        %v2097 = vlaneseq
        %v2098 = vshrl.u32 %v2097, 7
        %v2099 = vsub.s32 %v2096, %v2098
        %v2100 = vrot.slane %v2084, %v2099
        %v2102 = vunpack.c.l.s4 1966171168
        %v2103 = vunpack.c.0.s8 %v2102
        %v2104 = vlaneseq
        %v2105 = vshrl.u32 %v2104, 7
        %v2106 = vsub.s32 %v2103, %v2105
        %v2107 = vrot.slane %v2091, %v2106
        %v2109 = vunpack.c.l.s4 1966171168
        %v2110 = vunpack.c.0.s8 %v2109
        %v2111 = vlaneseq
        %v2112 = vshrl.u32 %v2111, 7
        %v2113 = vsub.s32 %v2110, %v2112
        %v2114 = vrot.slane %v2092, %v2113
        %v2116 = vunpack.c.l.s4 1966171168
        %v2117 = vunpack.c.0.s8 %v2116
        %v2118 = vlaneseq
        %v2119 = vshrl.u32 %v2118, 7
        %v2120 = vsub.s32 %v2117, %v2119
        %v2121 = vrot.slane %v2093, %v2120
        %v2122 = vcombine.high %v2100, %v2100
        %v2123 = vcombine.high %v2107, %v2107
        %v2124 = vcombine.high %v2114, %v2114
        %v2125 = vcombine.high %v2121, %v2121
        %v2126 = vcombine.high %v1646, %v1646
        %v2128 = vunpack.c.l.s4 1966171168
        %v2129 = vunpack.c.0.s8 %v2128
        %v2130 = vlaneseq
        %v2131 = vshrl.u32 %v2130, 7
        %v2132 = vsub.s32 %v2129, %v2131
        %v2133 = vrot.slane %v1646, %v2132
        %v2135 = vunpack.c.l.s4 1966171168
        %v2136 = vunpack.c.0.s8 %v2135
        %v2137 = vlaneseq
        %v2138 = vshrl.u32 %v2137, 7
        %v2139 = vsub.s32 %v2136, %v2138
        %v2140 = vrot.slane %v2126, %v2139
        %v2141 = vcombine.high %v2133, %v2133
        %v2142 = vcombine.high %v2140, %v2140
        %v2144 = vunpack.c.l.s4 1966171168
        %v2145 = vunpack.c.0.s8 %v2144
        %v2146 = vlaneseq
        %v2147 = vshrl.u32 %v2146, 7
        %v2148 = vsub.s32 %v2145, %v2147
        %v2149 = vrot.slane %v2133, %v2148
        %v2151 = vunpack.c.l.s4 1966171168
        %v2152 = vunpack.c.0.s8 %v2151
        %v2153 = vlaneseq
        %v2154 = vshrl.u32 %v2153, 7
        %v2155 = vsub.s32 %v2152, %v2154
        %v2156 = vrot.slane %v2140, %v2155
        %v2158 = vunpack.c.l.s4 1966171168
        %v2159 = vunpack.c.0.s8 %v2158
        %v2160 = vlaneseq
        %v2161 = vshrl.u32 %v2160, 7
        %v2162 = vsub.s32 %v2159, %v2161
        %v2163 = vrot.slane %v2141, %v2162
        %v2165 = vunpack.c.l.s4 1966171168
        %v2166 = vunpack.c.0.s8 %v2165
        %v2167 = vlaneseq
        %v2168 = vshrl.u32 %v2167, 7
        %v2169 = vsub.s32 %v2166, %v2168
        %v2170 = vrot.slane %v2142, %v2169
        %v2171 = vcombine.high %v2149, %v2149
        %v2172 = vcombine.high %v2156, %v2156
        %v2173 = vcombine.high %v2163, %v2163
        %v2174 = vcombine.high %v2170, %v2170
        %v2175 = vcombine.high %v1647, %v1647
        %v2177 = vunpack.c.l.s4 1966171168
        %v2178 = vunpack.c.0.s8 %v2177
        %v2179 = vlaneseq
        %v2180 = vshrl.u32 %v2179, 7
        %v2181 = vsub.s32 %v2178, %v2180
        %v2182 = vrot.slane %v1647, %v2181
        %v2184 = vunpack.c.l.s4 1966171168
        %v2185 = vunpack.c.0.s8 %v2184
        %v2186 = vlaneseq
        %v2187 = vshrl.u32 %v2186, 7
        %v2188 = vsub.s32 %v2185, %v2187
        %v2189 = vrot.slane %v2175, %v2188
        %v2190 = vcombine.high %v2182, %v2182
        %v2191 = vcombine.high %v2189, %v2189
        %v2193 = vunpack.c.l.s4 1966171168
        %v2194 = vunpack.c.0.s8 %v2193
        %v2195 = vlaneseq
        %v2196 = vshrl.u32 %v2195, 7
        %v2197 = vsub.s32 %v2194, %v2196
        %v2198 = vrot.slane %v2182, %v2197
        %v2200 = vunpack.c.l.s4 1966171168
        %v2201 = vunpack.c.0.s8 %v2200
        %v2202 = vlaneseq
        %v2203 = vshrl.u32 %v2202, 7
        %v2204 = vsub.s32 %v2201, %v2203
        %v2205 = vrot.slane %v2189, %v2204
        %v2207 = vunpack.c.l.s4 1966171168
        %v2208 = vunpack.c.0.s8 %v2207
        %v2209 = vlaneseq
        %v2210 = vshrl.u32 %v2209, 7
        %v2211 = vsub.s32 %v2208, %v2210
        %v2212 = vrot.slane %v2190, %v2211
        %v2214 = vunpack.c.l.s4 1966171168
        %v2215 = vunpack.c.0.s8 %v2214
        %v2216 = vlaneseq
        %v2217 = vshrl.u32 %v2216, 7
        %v2218 = vsub.s32 %v2215, %v2217
        %v2219 = vrot.slane %v2191, %v2218
        %v2220 = vcombine.high %v2198, %v2198
        %v2221 = vcombine.high %v2205, %v2205
        %v2222 = vcombine.high %v2212, %v2212
        %v2223 = vcombine.high %v2219, %v2219
        %v2224 = vcombine.high %v1648, %v1648
        %v2226 = vunpack.c.l.s4 1966171168
        %v2227 = vunpack.c.0.s8 %v2226
        %v2228 = vlaneseq
        %v2229 = vshrl.u32 %v2228, 7
        %v2230 = vsub.s32 %v2227, %v2229
        %v2231 = vrot.slane %v1648, %v2230
        %v2233 = vunpack.c.l.s4 1966171168
        %v2234 = vunpack.c.0.s8 %v2233
        %v2235 = vlaneseq
        %v2236 = vshrl.u32 %v2235, 7
        %v2237 = vsub.s32 %v2234, %v2236
        %v2238 = vrot.slane %v2224, %v2237
        %v2239 = vcombine.high %v2231, %v2231
        %v2240 = vcombine.high %v2238, %v2238
        %v2242 = vunpack.c.l.s4 1966171168
        %v2243 = vunpack.c.0.s8 %v2242
        %v2244 = vlaneseq
        %v2245 = vshrl.u32 %v2244, 7
        %v2246 = vsub.s32 %v2243, %v2245
        %v2247 = vrot.slane %v2231, %v2246
        %v2249 = vunpack.c.l.s4 1966171168
        %v2250 = vunpack.c.0.s8 %v2249
        %v2251 = vlaneseq
        %v2252 = vshrl.u32 %v2251, 7
        %v2253 = vsub.s32 %v2250, %v2252
        %v2254 = vrot.slane %v2238, %v2253
        %v2256 = vunpack.c.l.s4 1966171168
        %v2257 = vunpack.c.0.s8 %v2256
        %v2258 = vlaneseq
        %v2259 = vshrl.u32 %v2258, 7
        %v2260 = vsub.s32 %v2257, %v2259
        %v2261 = vrot.slane %v2239, %v2260
        %v2263 = vunpack.c.l.s4 1966171168
        %v2264 = vunpack.c.0.s8 %v2263
        %v2265 = vlaneseq
        %v2266 = vshrl.u32 %v2265, 7
        %v2267 = vsub.s32 %v2264, %v2266
        %v2268 = vrot.slane %v2240, %v2267
        %v2269 = vcombine.high %v2247, %v2247
        %v2270 = vcombine.high %v2254, %v2254
        %v2271 = vcombine.high %v2261, %v2261
        %v2272 = vcombine.high %v2268, %v2268
        %v2273 = vcombine.high %v1649, %v1649
        %v2275 = vunpack.c.l.s4 1966171168
        %v2276 = vunpack.c.0.s8 %v2275
        %v2277 = vlaneseq
        %v2278 = vshrl.u32 %v2277, 7
        %v2279 = vsub.s32 %v2276, %v2278
        %v2280 = vrot.slane %v1649, %v2279
        %v2282 = vunpack.c.l.s4 1966171168
        %v2283 = vunpack.c.0.s8 %v2282
        %v2284 = vlaneseq
        %v2285 = vshrl.u32 %v2284, 7
        %v2286 = vsub.s32 %v2283, %v2285
        %v2287 = vrot.slane %v2273, %v2286
        %v2288 = vcombine.high %v2280, %v2280
        %v2289 = vcombine.high %v2287, %v2287
        %v2291 = vunpack.c.l.s4 1966171168
        %v2292 = vunpack.c.0.s8 %v2291
        %v2293 = vlaneseq
        %v2294 = vshrl.u32 %v2293, 7
        %v2295 = vsub.s32 %v2292, %v2294
        %v2296 = vrot.slane %v2280, %v2295
        %v2298 = vunpack.c.l.s4 1966171168
        %v2299 = vunpack.c.0.s8 %v2298
        %v2300 = vlaneseq
        %v2301 = vshrl.u32 %v2300, 7
        %v2302 = vsub.s32 %v2299, %v2301
        %v2303 = vrot.slane %v2287, %v2302
        %v2305 = vunpack.c.l.s4 1966171168
        %v2306 = vunpack.c.0.s8 %v2305
        %v2307 = vlaneseq
        %v2308 = vshrl.u32 %v2307, 7
        %v2309 = vsub.s32 %v2306, %v2308
        %v2310 = vrot.slane %v2288, %v2309
        %v2312 = vunpack.c.l.s4 1966171168
        %v2313 = vunpack.c.0.s8 %v2312
        %v2314 = vlaneseq
        %v2315 = vshrl.u32 %v2314, 7
        %v2316 = vsub.s32 %v2313, %v2315
        %v2317 = vrot.slane %v2289, %v2316
        %v2318 = vcombine.high %v2296, %v2296
        %v2319 = vcombine.high %v2303, %v2303
        %v2320 = vcombine.high %v2310, %v2310
        %v2321 = vcombine.high %v2317, %v2317
        %v2322 = vlaneseq
        %v2323 = vshrl.u32 %v2322, 7
        %v2324 = vsub.s32 0, %v2323
        %v2325 = vrot.slane %v2051, %v2324
        %v2326 = vlaneseq
        %v2327 = vshrl.u32 %v2326, 7
        %v2328 = vsub.s32 0, %v2327
        %v2329 = vrot.slane %v2065, %v2328
        %v2330 = vlaneseq
        %v2331 = vshrl.u32 %v2330, 7
        %v2332 = vsub.s32 0, %v2331
        %v2333 = vrot.slane %v2073, %v2332
        %v2334 = vlaneseq
        %v2335 = vshrl.u32 %v2334, 7
        %v2336 = vsub.s32 0, %v2335
        %v2337 = vrot.slane %v2075, %v2336
        %v2338 = vlaneseq
        %v2339 = vshrl.u32 %v2338, 7
        %v2340 = vsub.s32 0, %v2339
        %v2341 = vrot.slane %v2058, %v2340
        %v2342 = vlaneseq
        %v2343 = vshrl.u32 %v2342, 7
        %v2344 = vsub.s32 0, %v2343
        %v2345 = vrot.slane %v2072, %v2344
        %v2346 = vlaneseq
        %v2347 = vshrl.u32 %v2346, 7
        %v2348 = vsub.s32 0, %v2347
        %v2349 = vrot.slane %v2074, %v2348
        %v2350 = vlaneseq
        %v2351 = vshrl.u32 %v2350, 7
        %v2352 = vsub.s32 0, %v2351
        %v2353 = vrot.slane %v2076, %v2352
        %v2354 = vlaneseq
        %v2355 = vshrl.u32 %v2354, 7
        %v2356 = vsub.s32 0, %v2355
        %v2357 = vrot.slane %v2100, %v2356
        %v2358 = vlaneseq
        %v2359 = vshrl.u32 %v2358, 7
        %v2360 = vsub.s32 0, %v2359
        %v2361 = vrot.slane %v2114, %v2360
        %v2362 = vlaneseq
        %v2363 = vshrl.u32 %v2362, 7
        %v2364 = vsub.s32 0, %v2363
        %v2365 = vrot.slane %v2122, %v2364
        %v2366 = vlaneseq
        %v2367 = vshrl.u32 %v2366, 7
        %v2368 = vsub.s32 0, %v2367
        %v2369 = vrot.slane %v2124, %v2368
        %v2370 = vlaneseq
        %v2371 = vshrl.u32 %v2370, 7
        %v2372 = vsub.s32 0, %v2371
        %v2373 = vrot.slane %v2107, %v2372
        %v2374 = vlaneseq
        %v2375 = vshrl.u32 %v2374, 7
        %v2376 = vsub.s32 0, %v2375
        %v2377 = vrot.slane %v2121, %v2376
        %v2378 = vlaneseq
        %v2379 = vshrl.u32 %v2378, 7
        %v2380 = vsub.s32 0, %v2379
        %v2381 = vrot.slane %v2123, %v2380
        %v2382 = vlaneseq
        %v2383 = vshrl.u32 %v2382, 7
        %v2384 = vsub.s32 0, %v2383
        %v2385 = vrot.slane %v2125, %v2384
        %v2386 = vlaneseq
        %v2387 = vshrl.u32 %v2386, 7
        %v2388 = vsub.s32 0, %v2387
        %v2389 = vrot.slane %v2149, %v2388
        %v2390 = vlaneseq
        %v2391 = vshrl.u32 %v2390, 7
        %v2392 = vsub.s32 0, %v2391
        %v2393 = vrot.slane %v2163, %v2392
        %v2394 = vlaneseq
        %v2395 = vshrl.u32 %v2394, 7
        %v2396 = vsub.s32 0, %v2395
        %v2397 = vrot.slane %v2171, %v2396
        %v2398 = vlaneseq
        %v2399 = vshrl.u32 %v2398, 7
        %v2400 = vsub.s32 0, %v2399
        %v2401 = vrot.slane %v2173, %v2400
        %v2402 = vlaneseq
        %v2403 = vshrl.u32 %v2402, 7
        %v2404 = vsub.s32 0, %v2403
        %v2405 = vrot.slane %v2156, %v2404
        %v2406 = vlaneseq
        %v2407 = vshrl.u32 %v2406, 7
        %v2408 = vsub.s32 0, %v2407
        %v2409 = vrot.slane %v2170, %v2408
        %v2410 = vlaneseq
        %v2411 = vshrl.u32 %v2410, 7
        %v2412 = vsub.s32 0, %v2411
        %v2413 = vrot.slane %v2172, %v2412
        %v2414 = vlaneseq
        %v2415 = vshrl.u32 %v2414, 7
        %v2416 = vsub.s32 0, %v2415
        %v2417 = vrot.slane %v2174, %v2416
        %v2418 = vlaneseq
        %v2419 = vshrl.u32 %v2418, 7
        %v2420 = vsub.s32 0, %v2419
        %v2421 = vrot.slane %v2198, %v2420
        %v2422 = vlaneseq
        %v2423 = vshrl.u32 %v2422, 7
        %v2424 = vsub.s32 0, %v2423
        %v2425 = vrot.slane %v2212, %v2424
        %v2426 = vlaneseq
        %v2427 = vshrl.u32 %v2426, 7
        %v2428 = vsub.s32 0, %v2427
        %v2429 = vrot.slane %v2220, %v2428
        %v2430 = vlaneseq
        %v2431 = vshrl.u32 %v2430, 7
        %v2432 = vsub.s32 0, %v2431
        %v2433 = vrot.slane %v2222, %v2432
        %v2434 = vlaneseq
        %v2435 = vshrl.u32 %v2434, 7
        %v2436 = vsub.s32 0, %v2435
        %v2437 = vrot.slane %v2205, %v2436
        %v2438 = vlaneseq
        %v2439 = vshrl.u32 %v2438, 7
        %v2440 = vsub.s32 0, %v2439
        %v2441 = vrot.slane %v2219, %v2440
        %v2442 = vlaneseq
        %v2443 = vshrl.u32 %v2442, 7
        %v2444 = vsub.s32 0, %v2443
        %v2445 = vrot.slane %v2221, %v2444
        %v2446 = vlaneseq
        %v2447 = vshrl.u32 %v2446, 7
        %v2448 = vsub.s32 0, %v2447
        %v2449 = vrot.slane %v2223, %v2448
        %v2450 = vlaneseq
        %v2451 = vshrl.u32 %v2450, 7
        %v2452 = vsub.s32 0, %v2451
        %v2453 = vrot.slane %v2247, %v2452
        %v2454 = vlaneseq
        %v2455 = vshrl.u32 %v2454, 7
        %v2456 = vsub.s32 0, %v2455
        %v2457 = vrot.slane %v2261, %v2456
        %v2458 = vlaneseq
        %v2459 = vshrl.u32 %v2458, 7
        %v2460 = vsub.s32 0, %v2459
        %v2461 = vrot.slane %v2269, %v2460
        %v2462 = vlaneseq
        %v2463 = vshrl.u32 %v2462, 7
        %v2464 = vsub.s32 0, %v2463
        %v2465 = vrot.slane %v2271, %v2464
        %v2466 = vlaneseq
        %v2467 = vshrl.u32 %v2466, 7
        %v2468 = vsub.s32 0, %v2467
        %v2469 = vrot.slane %v2254, %v2468
        %v2470 = vlaneseq
        %v2471 = vshrl.u32 %v2470, 7
        %v2472 = vsub.s32 0, %v2471
        %v2473 = vrot.slane %v2268, %v2472
        %v2474 = vlaneseq
        %v2475 = vshrl.u32 %v2474, 7
        %v2476 = vsub.s32 0, %v2475
        %v2477 = vrot.slane %v2270, %v2476
        %v2478 = vlaneseq
        %v2479 = vshrl.u32 %v2478, 7
        %v2480 = vsub.s32 0, %v2479
        %v2481 = vrot.slane %v2272, %v2480
        %v2482 = vlaneseq
        %v2483 = vshrl.u32 %v2482, 7
        %v2484 = vsub.s32 0, %v2483
        %v2485 = vrot.slane %v2296, %v2484
        %v2486 = vlaneseq
        %v2487 = vshrl.u32 %v2486, 7
        %v2488 = vsub.s32 0, %v2487
        %v2489 = vrot.slane %v2310, %v2488
        %v2490 = vlaneseq
        %v2491 = vshrl.u32 %v2490, 7
        %v2492 = vsub.s32 0, %v2491
        %v2493 = vrot.slane %v2318, %v2492
        %v2494 = vlaneseq
        %v2495 = vshrl.u32 %v2494, 7
        %v2496 = vsub.s32 0, %v2495
        %v2497 = vrot.slane %v2320, %v2496
        %v2498 = vlaneseq
        %v2499 = vshrl.u32 %v2498, 7
        %v2500 = vsub.s32 0, %v2499
        %v2501 = vrot.slane %v2303, %v2500
        %v2502 = vlaneseq
        %v2503 = vshrl.u32 %v2502, 7
        %v2504 = vsub.s32 0, %v2503
        %v2505 = vrot.slane %v2317, %v2504
        %v2506 = vlaneseq
        %v2507 = vshrl.u32 %v2506, 7
        %v2508 = vsub.s32 0, %v2507
        %v2509 = vrot.slane %v2319, %v2508
        %v2510 = vlaneseq
        %v2511 = vshrl.u32 %v2510, 7
        %v2512 = vsub.s32 0, %v2511
        %v2513 = vrot.slane %v2321, %v2512
        %vm2562 = vcmask 1040384
        %v2563 = vsel %vm2562, %v1703, %v2325
        %v2564 = vsel %vm2562, %v1717, %v2329
        %v2565 = vsel %vm2562, %v1725, %v2333
        %v2566 = vsel %vm2562, %v1727, %v2337
        %v2567 = vsel %vm2562, %v1710, %v2341
        %v2568 = vsel %vm2562, %v1724, %v2345
        %v2569 = vsel %vm2562, %v1726, %v2349
        %v2570 = vsel %vm2562, %v1728, %v2353
        %v2571 = vsel %vm2562, %v1752, %v2357
        %v2572 = vsel %vm2562, %v1766, %v2361
        %v2573 = vsel %vm2562, %v1774, %v2365
        %v2574 = vsel %vm2562, %v1776, %v2369
        %v2575 = vsel %vm2562, %v1759, %v2373
        %v2576 = vsel %vm2562, %v1773, %v2377
        %v2577 = vsel %vm2562, %v1775, %v2381
        %v2578 = vsel %vm2562, %v1777, %v2385
        %v2579 = vsel %vm2562, %v1801, %v2389
        %v2580 = vsel %vm2562, %v1815, %v2393
        %v2581 = vsel %vm2562, %v1823, %v2397
        %v2582 = vsel %vm2562, %v1825, %v2401
        %v2583 = vsel %vm2562, %v1808, %v2405
        %v2584 = vsel %vm2562, %v1822, %v2409
        %v2585 = vsel %vm2562, %v1824, %v2413
        %v2586 = vsel %vm2562, %v1826, %v2417
        %v2587 = vsel %vm2562, %v1850, %v2421
        %v2588 = vsel %vm2562, %v1864, %v2425
        %v2589 = vsel %vm2562, %v1872, %v2429
        %v2590 = vsel %vm2562, %v1874, %v2433
        %v2591 = vsel %vm2562, %v1857, %v2437
        %v2592 = vsel %vm2562, %v1871, %v2441
        %v2593 = vsel %vm2562, %v1873, %v2445
        %v2594 = vsel %vm2562, %v1875, %v2449
        %v2595 = vsel %vm2562, %v1899, %v2453
        %v2596 = vsel %vm2562, %v1913, %v2457
        %v2597 = vsel %vm2562, %v1921, %v2461
        %v2598 = vsel %vm2562, %v1923, %v2465
        %v2599 = vsel %vm2562, %v1906, %v2469
        %v2600 = vsel %vm2562, %v1920, %v2473
        %v2601 = vsel %vm2562, %v1922, %v2477
        %v2602 = vsel %vm2562, %v1924, %v2481
        %v2603 = vsel %vm2562, %v1948, %v2485
        %v2604 = vsel %vm2562, %v1962, %v2489
        %v2605 = vsel %vm2562, %v1970, %v2493
        %v2606 = vsel %vm2562, %v1972, %v2497
        %v2607 = vsel %vm2562, %v1955, %v2501
        %v2608 = vsel %vm2562, %v1969, %v2505
        %v2609 = vsel %vm2562, %v1971, %v2509
        %v2610 = vsel %vm2562, %v1973, %v2513
        %v2617 = vcombine.high %v1656, %v1656
        %v2619 = vunpack.c.l.s4 1966171168
        %v2620 = vunpack.c.0.s8 %v2619
        %v2621 = vlaneseq
        %v2622 = vshrl.u32 %v2621, 7
        %v2623 = vsub.s32 %v2620, %v2622
        %v2624 = vrot.slane %v1656, %v2623
        %v2626 = vunpack.c.l.s4 1966171168
        %v2627 = vunpack.c.0.s8 %v2626
        %v2628 = vlaneseq
        %v2629 = vshrl.u32 %v2628, 7
        %v2630 = vsub.s32 %v2627, %v2629
        %v2631 = vrot.slane %v2617, %v2630
        %v2632 = vcombine.high %v2624, %v2624
        %v2633 = vcombine.high %v2631, %v2631
        %v2635 = vunpack.c.l.s4 1966171168
        %v2636 = vunpack.c.0.s8 %v2635
        %v2637 = vlaneseq
        %v2638 = vshrl.u32 %v2637, 7
        %v2639 = vsub.s32 %v2636, %v2638
        %v2640 = vrot.slane %v2624, %v2639
        %v2642 = vunpack.c.l.s4 1966171168
        %v2643 = vunpack.c.0.s8 %v2642
        %v2644 = vlaneseq
        %v2645 = vshrl.u32 %v2644, 7
        %v2646 = vsub.s32 %v2643, %v2645
        %v2647 = vrot.slane %v2631, %v2646
        %v2649 = vunpack.c.l.s4 1966171168
        %v2650 = vunpack.c.0.s8 %v2649
        %v2651 = vlaneseq
        %v2652 = vshrl.u32 %v2651, 7
        %v2653 = vsub.s32 %v2650, %v2652
        %v2654 = vrot.slane %v2632, %v2653
        %v2656 = vunpack.c.l.s4 1966171168
        %v2657 = vunpack.c.0.s8 %v2656
        %v2658 = vlaneseq
        %v2659 = vshrl.u32 %v2658, 7
        %v2660 = vsub.s32 %v2657, %v2659
        %v2661 = vrot.slane %v2633, %v2660
        %v2662 = vcombine.high %v2640, %v2640
        %v2663 = vcombine.high %v2647, %v2647
        %v2664 = vcombine.high %v2654, %v2654
        %v2665 = vcombine.high %v2661, %v2661
        %v2666 = vcombine.high %v1657, %v1657
        %v2668 = vunpack.c.l.s4 1966171168
        %v2669 = vunpack.c.0.s8 %v2668
        %v2670 = vlaneseq
        %v2671 = vshrl.u32 %v2670, 7
        %v2672 = vsub.s32 %v2669, %v2671
        %v2673 = vrot.slane %v1657, %v2672
        %v2675 = vunpack.c.l.s4 1966171168
        %v2676 = vunpack.c.0.s8 %v2675
        %v2677 = vlaneseq
        %v2678 = vshrl.u32 %v2677, 7
        %v2679 = vsub.s32 %v2676, %v2678
        %v2680 = vrot.slane %v2666, %v2679
        %v2681 = vcombine.high %v2673, %v2673
        %v2682 = vcombine.high %v2680, %v2680
        %v2684 = vunpack.c.l.s4 1966171168
        %v2685 = vunpack.c.0.s8 %v2684
        %v2686 = vlaneseq
        %v2687 = vshrl.u32 %v2686, 7
        %v2688 = vsub.s32 %v2685, %v2687
        %v2689 = vrot.slane %v2673, %v2688
        %v2691 = vunpack.c.l.s4 1966171168
        %v2692 = vunpack.c.0.s8 %v2691
        %v2693 = vlaneseq
        %v2694 = vshrl.u32 %v2693, 7
        %v2695 = vsub.s32 %v2692, %v2694
        %v2696 = vrot.slane %v2680, %v2695
        %v2698 = vunpack.c.l.s4 1966171168
        %v2699 = vunpack.c.0.s8 %v2698
        %v2700 = vlaneseq
        %v2701 = vshrl.u32 %v2700, 7
        %v2702 = vsub.s32 %v2699, %v2701
        %v2703 = vrot.slane %v2681, %v2702
        %v2705 = vunpack.c.l.s4 1966171168
        %v2706 = vunpack.c.0.s8 %v2705
        %v2707 = vlaneseq
        %v2708 = vshrl.u32 %v2707, 7
        %v2709 = vsub.s32 %v2706, %v2708
        %v2710 = vrot.slane %v2682, %v2709
        %v2711 = vcombine.high %v2689, %v2689
        %v2712 = vcombine.high %v2696, %v2696
        %v2713 = vcombine.high %v2703, %v2703
        %v2714 = vcombine.high %v2710, %v2710
        %v2715 = vcombine.high %v1658, %v1658
        %v2717 = vunpack.c.l.s4 1966171168
        %v2718 = vunpack.c.0.s8 %v2717
        %v2719 = vlaneseq
        %v2720 = vshrl.u32 %v2719, 7
        %v2721 = vsub.s32 %v2718, %v2720
        %v2722 = vrot.slane %v1658, %v2721
        %v2724 = vunpack.c.l.s4 1966171168
        %v2725 = vunpack.c.0.s8 %v2724
        %v2726 = vlaneseq
        %v2727 = vshrl.u32 %v2726, 7
        %v2728 = vsub.s32 %v2725, %v2727
        %v2729 = vrot.slane %v2715, %v2728
        %v2730 = vcombine.high %v2722, %v2722
        %v2731 = vcombine.high %v2729, %v2729
        %v2733 = vunpack.c.l.s4 1966171168
        %v2734 = vunpack.c.0.s8 %v2733
        %v2735 = vlaneseq
        %v2736 = vshrl.u32 %v2735, 7
        %v2737 = vsub.s32 %v2734, %v2736
        %v2738 = vrot.slane %v2722, %v2737
        %v2740 = vunpack.c.l.s4 1966171168
        %v2741 = vunpack.c.0.s8 %v2740
        %v2742 = vlaneseq
        %v2743 = vshrl.u32 %v2742, 7
        %v2744 = vsub.s32 %v2741, %v2743
        %v2745 = vrot.slane %v2729, %v2744
        %v2747 = vunpack.c.l.s4 1966171168
        %v2748 = vunpack.c.0.s8 %v2747
        %v2749 = vlaneseq
        %v2750 = vshrl.u32 %v2749, 7
        %v2751 = vsub.s32 %v2748, %v2750
        %v2752 = vrot.slane %v2730, %v2751
        %v2754 = vunpack.c.l.s4 1966171168
        %v2755 = vunpack.c.0.s8 %v2754
        %v2756 = vlaneseq
        %v2757 = vshrl.u32 %v2756, 7
        %v2758 = vsub.s32 %v2755, %v2757
        %v2759 = vrot.slane %v2731, %v2758
        %v2760 = vcombine.high %v2738, %v2738
        %v2761 = vcombine.high %v2745, %v2745
        %v2762 = vcombine.high %v2752, %v2752
        %v2763 = vcombine.high %v2759, %v2759
        %v2764 = vcombine.high %v1659, %v1659
        %v2766 = vunpack.c.l.s4 1966171168
        %v2767 = vunpack.c.0.s8 %v2766
        %v2768 = vlaneseq
        %v2769 = vshrl.u32 %v2768, 7
        %v2770 = vsub.s32 %v2767, %v2769
        %v2771 = vrot.slane %v1659, %v2770
        %v2773 = vunpack.c.l.s4 1966171168
        %v2774 = vunpack.c.0.s8 %v2773
        %v2775 = vlaneseq
        %v2776 = vshrl.u32 %v2775, 7
        %v2777 = vsub.s32 %v2774, %v2776
        %v2778 = vrot.slane %v2764, %v2777
        %v2779 = vcombine.high %v2771, %v2771
        %v2780 = vcombine.high %v2778, %v2778
        %v2782 = vunpack.c.l.s4 1966171168
        %v2783 = vunpack.c.0.s8 %v2782
        %v2784 = vlaneseq
        %v2785 = vshrl.u32 %v2784, 7
        %v2786 = vsub.s32 %v2783, %v2785
        %v2787 = vrot.slane %v2771, %v2786
        %v2789 = vunpack.c.l.s4 1966171168
        %v2790 = vunpack.c.0.s8 %v2789
        %v2791 = vlaneseq
        %v2792 = vshrl.u32 %v2791, 7
        %v2793 = vsub.s32 %v2790, %v2792
        %v2794 = vrot.slane %v2778, %v2793
        %v2796 = vunpack.c.l.s4 1966171168
        %v2797 = vunpack.c.0.s8 %v2796
        %v2798 = vlaneseq
        %v2799 = vshrl.u32 %v2798, 7
        %v2800 = vsub.s32 %v2797, %v2799
        %v2801 = vrot.slane %v2779, %v2800
        %v2803 = vunpack.c.l.s4 1966171168
        %v2804 = vunpack.c.0.s8 %v2803
        %v2805 = vlaneseq
        %v2806 = vshrl.u32 %v2805, 7
        %v2807 = vsub.s32 %v2804, %v2806
        %v2808 = vrot.slane %v2780, %v2807
        %v2809 = vcombine.high %v2787, %v2787
        %v2810 = vcombine.high %v2794, %v2794
        %v2811 = vcombine.high %v2801, %v2801
        %v2812 = vcombine.high %v2808, %v2808
        %v2813 = vcombine.high %v1660, %v1660
        %v2815 = vunpack.c.l.s4 1966171168
        %v2816 = vunpack.c.0.s8 %v2815
        %v2817 = vlaneseq
        %v2818 = vshrl.u32 %v2817, 7
        %v2819 = vsub.s32 %v2816, %v2818
        %v2820 = vrot.slane %v1660, %v2819
        %v2822 = vunpack.c.l.s4 1966171168
        %v2823 = vunpack.c.0.s8 %v2822
        %v2824 = vlaneseq
        %v2825 = vshrl.u32 %v2824, 7
        %v2826 = vsub.s32 %v2823, %v2825
        %v2827 = vrot.slane %v2813, %v2826
        %v2828 = vcombine.high %v2820, %v2820
        %v2829 = vcombine.high %v2827, %v2827
        %v2831 = vunpack.c.l.s4 1966171168
        %v2832 = vunpack.c.0.s8 %v2831
        %v2833 = vlaneseq
        %v2834 = vshrl.u32 %v2833, 7
        %v2835 = vsub.s32 %v2832, %v2834
        %v2836 = vrot.slane %v2820, %v2835
        %v2838 = vunpack.c.l.s4 1966171168
        %v2839 = vunpack.c.0.s8 %v2838
        %v2840 = vlaneseq
        %v2841 = vshrl.u32 %v2840, 7
        %v2842 = vsub.s32 %v2839, %v2841
        %v2843 = vrot.slane %v2827, %v2842
        %v2845 = vunpack.c.l.s4 1966171168
        %v2846 = vunpack.c.0.s8 %v2845
        %v2847 = vlaneseq
        %v2848 = vshrl.u32 %v2847, 7
        %v2849 = vsub.s32 %v2846, %v2848
        %v2850 = vrot.slane %v2828, %v2849
        %v2852 = vunpack.c.l.s4 1966171168
        %v2853 = vunpack.c.0.s8 %v2852
        %v2854 = vlaneseq
        %v2855 = vshrl.u32 %v2854, 7
        %v2856 = vsub.s32 %v2853, %v2855
        %v2857 = vrot.slane %v2829, %v2856
        %v2858 = vcombine.high %v2836, %v2836
        %v2859 = vcombine.high %v2843, %v2843
        %v2860 = vcombine.high %v2850, %v2850
        %v2861 = vcombine.high %v2857, %v2857
        %v2862 = vcombine.high %v1661, %v1661
        %v2864 = vunpack.c.l.s4 1966171168
        %v2865 = vunpack.c.0.s8 %v2864
        %v2866 = vlaneseq
        %v2867 = vshrl.u32 %v2866, 7
        %v2868 = vsub.s32 %v2865, %v2867
        %v2869 = vrot.slane %v1661, %v2868
        %v2871 = vunpack.c.l.s4 1966171168
        %v2872 = vunpack.c.0.s8 %v2871
        %v2873 = vlaneseq
        %v2874 = vshrl.u32 %v2873, 7
        %v2875 = vsub.s32 %v2872, %v2874
        %v2876 = vrot.slane %v2862, %v2875
        %v2877 = vcombine.high %v2869, %v2869
        %v2878 = vcombine.high %v2876, %v2876
        %v2880 = vunpack.c.l.s4 1966171168
        %v2881 = vunpack.c.0.s8 %v2880
        %v2882 = vlaneseq
        %v2883 = vshrl.u32 %v2882, 7
        %v2884 = vsub.s32 %v2881, %v2883
        %v2885 = vrot.slane %v2869, %v2884
        %v2887 = vunpack.c.l.s4 1966171168
        %v2888 = vunpack.c.0.s8 %v2887
        %v2889 = vlaneseq
        %v2890 = vshrl.u32 %v2889, 7
        %v2891 = vsub.s32 %v2888, %v2890
        %v2892 = vrot.slane %v2876, %v2891
        %v2894 = vunpack.c.l.s4 1966171168
        %v2895 = vunpack.c.0.s8 %v2894
        %v2896 = vlaneseq
        %v2897 = vshrl.u32 %v2896, 7
        %v2898 = vsub.s32 %v2895, %v2897
        %v2899 = vrot.slane %v2877, %v2898
        %v2901 = vunpack.c.l.s4 1966171168
        %v2902 = vunpack.c.0.s8 %v2901
        %v2903 = vlaneseq
        %v2904 = vshrl.u32 %v2903, 7
        %v2905 = vsub.s32 %v2902, %v2904
        %v2906 = vrot.slane %v2878, %v2905
        %v2907 = vcombine.high %v2885, %v2885
        %v2908 = vcombine.high %v2892, %v2892
        %v2909 = vcombine.high %v2899, %v2899
        %v2910 = vcombine.high %v2906, %v2906
        %v2965 = vcombine.high %v1668, %v1668
        %v2967 = vunpack.c.l.s4 1966171168
        %v2968 = vunpack.c.0.s8 %v2967
        %v2969 = vlaneseq
        %v2970 = vshrl.u32 %v2969, 7
        %v2971 = vsub.s32 %v2968, %v2970
        %v2972 = vrot.slane %v1668, %v2971
        %v2974 = vunpack.c.l.s4 1966171168
        %v2975 = vunpack.c.0.s8 %v2974
        %v2976 = vlaneseq
        %v2977 = vshrl.u32 %v2976, 7
        %v2978 = vsub.s32 %v2975, %v2977
        %v2979 = vrot.slane %v2965, %v2978
        %v2980 = vcombine.high %v2972, %v2972
        %v2981 = vcombine.high %v2979, %v2979
        %v2983 = vunpack.c.l.s4 1966171168
        %v2984 = vunpack.c.0.s8 %v2983
        %v2985 = vlaneseq
        %v2986 = vshrl.u32 %v2985, 7
        %v2987 = vsub.s32 %v2984, %v2986
        %v2988 = vrot.slane %v2972, %v2987
        %v2990 = vunpack.c.l.s4 1966171168
        %v2991 = vunpack.c.0.s8 %v2990
        %v2992 = vlaneseq
        %v2993 = vshrl.u32 %v2992, 7
        %v2994 = vsub.s32 %v2991, %v2993
        %v2995 = vrot.slane %v2979, %v2994
        %v2997 = vunpack.c.l.s4 1966171168
        %v2998 = vunpack.c.0.s8 %v2997
        %v2999 = vlaneseq
        %v3000 = vshrl.u32 %v2999, 7
        %v3001 = vsub.s32 %v2998, %v3000
        %v3002 = vrot.slane %v2980, %v3001
        %v3004 = vunpack.c.l.s4 1966171168
        %v3005 = vunpack.c.0.s8 %v3004
        %v3006 = vlaneseq
        %v3007 = vshrl.u32 %v3006, 7
        %v3008 = vsub.s32 %v3005, %v3007
        %v3009 = vrot.slane %v2981, %v3008
        %v3010 = vcombine.high %v2988, %v2988
        %v3011 = vcombine.high %v2995, %v2995
        %v3012 = vcombine.high %v3002, %v3002
        %v3013 = vcombine.high %v3009, %v3009
        %v3014 = vcombine.high %v1669, %v1669
        %v3016 = vunpack.c.l.s4 1966171168
        %v3017 = vunpack.c.0.s8 %v3016
        %v3018 = vlaneseq
        %v3019 = vshrl.u32 %v3018, 7
        %v3020 = vsub.s32 %v3017, %v3019
        %v3021 = vrot.slane %v1669, %v3020
        %v3023 = vunpack.c.l.s4 1966171168
        %v3024 = vunpack.c.0.s8 %v3023
        %v3025 = vlaneseq
        %v3026 = vshrl.u32 %v3025, 7
        %v3027 = vsub.s32 %v3024, %v3026
        %v3028 = vrot.slane %v3014, %v3027
        %v3029 = vcombine.high %v3021, %v3021
        %v3030 = vcombine.high %v3028, %v3028
        %v3032 = vunpack.c.l.s4 1966171168
        %v3033 = vunpack.c.0.s8 %v3032
        %v3034 = vlaneseq
        %v3035 = vshrl.u32 %v3034, 7
        %v3036 = vsub.s32 %v3033, %v3035
        %v3037 = vrot.slane %v3021, %v3036
        %v3039 = vunpack.c.l.s4 1966171168
        %v3040 = vunpack.c.0.s8 %v3039
        %v3041 = vlaneseq
        %v3042 = vshrl.u32 %v3041, 7
        %v3043 = vsub.s32 %v3040, %v3042
        %v3044 = vrot.slane %v3028, %v3043
        %v3046 = vunpack.c.l.s4 1966171168
        %v3047 = vunpack.c.0.s8 %v3046
        %v3048 = vlaneseq
        %v3049 = vshrl.u32 %v3048, 7
        %v3050 = vsub.s32 %v3047, %v3049
        %v3051 = vrot.slane %v3029, %v3050
        %v3053 = vunpack.c.l.s4 1966171168
        %v3054 = vunpack.c.0.s8 %v3053
        %v3055 = vlaneseq
        %v3056 = vshrl.u32 %v3055, 7
        %v3057 = vsub.s32 %v3054, %v3056
        %v3058 = vrot.slane %v3030, %v3057
        %v3059 = vcombine.high %v3037, %v3037
        %v3060 = vcombine.high %v3044, %v3044
        %v3061 = vcombine.high %v3051, %v3051
        %v3062 = vcombine.high %v3058, %v3058
        %v3063 = vcombine.high %v1670, %v1670
        %v3065 = vunpack.c.l.s4 1966171168
        %v3066 = vunpack.c.0.s8 %v3065
        %v3067 = vlaneseq
        %v3068 = vshrl.u32 %v3067, 7
        %v3069 = vsub.s32 %v3066, %v3068
        %v3070 = vrot.slane %v1670, %v3069
        %v3072 = vunpack.c.l.s4 1966171168
        %v3073 = vunpack.c.0.s8 %v3072
        %v3074 = vlaneseq
        %v3075 = vshrl.u32 %v3074, 7
        %v3076 = vsub.s32 %v3073, %v3075
        %v3077 = vrot.slane %v3063, %v3076
        %v3078 = vcombine.high %v3070, %v3070
        %v3079 = vcombine.high %v3077, %v3077
        %v3081 = vunpack.c.l.s4 1966171168
        %v3082 = vunpack.c.0.s8 %v3081
        %v3083 = vlaneseq
        %v3084 = vshrl.u32 %v3083, 7
        %v3085 = vsub.s32 %v3082, %v3084
        %v3086 = vrot.slane %v3070, %v3085
        %v3088 = vunpack.c.l.s4 1966171168
        %v3089 = vunpack.c.0.s8 %v3088
        %v3090 = vlaneseq
        %v3091 = vshrl.u32 %v3090, 7
        %v3092 = vsub.s32 %v3089, %v3091
        %v3093 = vrot.slane %v3077, %v3092
        %v3095 = vunpack.c.l.s4 1966171168
        %v3096 = vunpack.c.0.s8 %v3095
        %v3097 = vlaneseq
        %v3098 = vshrl.u32 %v3097, 7
        %v3099 = vsub.s32 %v3096, %v3098
        %v3100 = vrot.slane %v3078, %v3099
        %v3102 = vunpack.c.l.s4 1966171168
        %v3103 = vunpack.c.0.s8 %v3102
        %v3104 = vlaneseq
        %v3105 = vshrl.u32 %v3104, 7
        %v3106 = vsub.s32 %v3103, %v3105
        %v3107 = vrot.slane %v3079, %v3106
        %v3108 = vcombine.high %v3086, %v3086
        %v3109 = vcombine.high %v3093, %v3093
        %v3110 = vcombine.high %v3100, %v3100
        %v3111 = vcombine.high %v3107, %v3107
        %v3112 = vcombine.high %v1671, %v1671
        %v3114 = vunpack.c.l.s4 1966171168
        %v3115 = vunpack.c.0.s8 %v3114
        %v3116 = vlaneseq
        %v3117 = vshrl.u32 %v3116, 7
        %v3118 = vsub.s32 %v3115, %v3117
        %v3119 = vrot.slane %v1671, %v3118
        %v3121 = vunpack.c.l.s4 1966171168
        %v3122 = vunpack.c.0.s8 %v3121
        %v3123 = vlaneseq
        %v3124 = vshrl.u32 %v3123, 7
        %v3125 = vsub.s32 %v3122, %v3124
        %v3126 = vrot.slane %v3112, %v3125
        %v3127 = vcombine.high %v3119, %v3119
        %v3128 = vcombine.high %v3126, %v3126
        %v3130 = vunpack.c.l.s4 1966171168
        %v3131 = vunpack.c.0.s8 %v3130
        %v3132 = vlaneseq
        %v3133 = vshrl.u32 %v3132, 7
        %v3134 = vsub.s32 %v3131, %v3133
        %v3135 = vrot.slane %v3119, %v3134
        %v3137 = vunpack.c.l.s4 1966171168
        %v3138 = vunpack.c.0.s8 %v3137
        %v3139 = vlaneseq
        %v3140 = vshrl.u32 %v3139, 7
        %v3141 = vsub.s32 %v3138, %v3140
        %v3142 = vrot.slane %v3126, %v3141
        %v3144 = vunpack.c.l.s4 1966171168
        %v3145 = vunpack.c.0.s8 %v3144
        %v3146 = vlaneseq
        %v3147 = vshrl.u32 %v3146, 7
        %v3148 = vsub.s32 %v3145, %v3147
        %v3149 = vrot.slane %v3127, %v3148
        %v3151 = vunpack.c.l.s4 1966171168
        %v3152 = vunpack.c.0.s8 %v3151
        %v3153 = vlaneseq
        %v3154 = vshrl.u32 %v3153, 7
        %v3155 = vsub.s32 %v3152, %v3154
        %v3156 = vrot.slane %v3128, %v3155
        %v3157 = vcombine.high %v3135, %v3135
        %v3158 = vcombine.high %v3142, %v3142
        %v3159 = vcombine.high %v3149, %v3149
        %v3160 = vcombine.high %v3156, %v3156
        %v3161 = vcombine.high %v1672, %v1672
        %v3163 = vunpack.c.l.s4 1966171168
        %v3164 = vunpack.c.0.s8 %v3163
        %v3165 = vlaneseq
        %v3166 = vshrl.u32 %v3165, 7
        %v3167 = vsub.s32 %v3164, %v3166
        %v3168 = vrot.slane %v1672, %v3167
        %v3170 = vunpack.c.l.s4 1966171168
        %v3171 = vunpack.c.0.s8 %v3170
        %v3172 = vlaneseq
        %v3173 = vshrl.u32 %v3172, 7
        %v3174 = vsub.s32 %v3171, %v3173
        %v3175 = vrot.slane %v3161, %v3174
        %v3176 = vcombine.high %v3168, %v3168
        %v3177 = vcombine.high %v3175, %v3175
        %v3179 = vunpack.c.l.s4 1966171168
        %v3180 = vunpack.c.0.s8 %v3179
        %v3181 = vlaneseq
        %v3182 = vshrl.u32 %v3181, 7
        %v3183 = vsub.s32 %v3180, %v3182
        %v3184 = vrot.slane %v3168, %v3183
        %v3186 = vunpack.c.l.s4 1966171168
        %v3187 = vunpack.c.0.s8 %v3186
        %v3188 = vlaneseq
        %v3189 = vshrl.u32 %v3188, 7
        %v3190 = vsub.s32 %v3187, %v3189
        %v3191 = vrot.slane %v3175, %v3190
        %v3193 = vunpack.c.l.s4 1966171168
        %v3194 = vunpack.c.0.s8 %v3193
        %v3195 = vlaneseq
        %v3196 = vshrl.u32 %v3195, 7
        %v3197 = vsub.s32 %v3194, %v3196
        %v3198 = vrot.slane %v3176, %v3197
        %v3200 = vunpack.c.l.s4 1966171168
        %v3201 = vunpack.c.0.s8 %v3200
        %v3202 = vlaneseq
        %v3203 = vshrl.u32 %v3202, 7
        %v3204 = vsub.s32 %v3201, %v3203
        %v3205 = vrot.slane %v3177, %v3204
        %v3206 = vcombine.high %v3184, %v3184
        %v3207 = vcombine.high %v3191, %v3191
        %v3208 = vcombine.high %v3198, %v3198
        %v3209 = vcombine.high %v3205, %v3205
        %v3210 = vcombine.high %v1673, %v1673
        %v3212 = vunpack.c.l.s4 1966171168
        %v3213 = vunpack.c.0.s8 %v3212
        %v3214 = vlaneseq
        %v3215 = vshrl.u32 %v3214, 7
        %v3216 = vsub.s32 %v3213, %v3215
        %v3217 = vrot.slane %v1673, %v3216
        %v3219 = vunpack.c.l.s4 1966171168
        %v3220 = vunpack.c.0.s8 %v3219
        %v3221 = vlaneseq
        %v3222 = vshrl.u32 %v3221, 7
        %v3223 = vsub.s32 %v3220, %v3222
        %v3224 = vrot.slane %v3210, %v3223
        %v3225 = vcombine.high %v3217, %v3217
        %v3226 = vcombine.high %v3224, %v3224
        %v3228 = vunpack.c.l.s4 1966171168
        %v3229 = vunpack.c.0.s8 %v3228
        %v3230 = vlaneseq
        %v3231 = vshrl.u32 %v3230, 7
        %v3232 = vsub.s32 %v3229, %v3231
        %v3233 = vrot.slane %v3217, %v3232
        %v3235 = vunpack.c.l.s4 1966171168
        %v3236 = vunpack.c.0.s8 %v3235
        %v3237 = vlaneseq
        %v3238 = vshrl.u32 %v3237, 7
        %v3239 = vsub.s32 %v3236, %v3238
        %v3240 = vrot.slane %v3224, %v3239
        %v3242 = vunpack.c.l.s4 1966171168
        %v3243 = vunpack.c.0.s8 %v3242
        %v3244 = vlaneseq
        %v3245 = vshrl.u32 %v3244, 7
        %v3246 = vsub.s32 %v3243, %v3245
        %v3247 = vrot.slane %v3225, %v3246
        %v3249 = vunpack.c.l.s4 1966171168
        %v3250 = vunpack.c.0.s8 %v3249
        %v3251 = vlaneseq
        %v3252 = vshrl.u32 %v3251, 7
        %v3253 = vsub.s32 %v3250, %v3252
        %v3254 = vrot.slane %v3226, %v3253
        %v3255 = vcombine.high %v3233, %v3233
        %v3256 = vcombine.high %v3240, %v3240
        %v3257 = vcombine.high %v3247, %v3247
        %v3258 = vcombine.high %v3254, %v3254
        %v3259 = vlaneseq
        %v3260 = vshrl.u32 %v3259, 7
        %v3261 = vsub.s32 0, %v3260
        %v3262 = vrot.slane %v2988, %v3261
        %v3263 = vlaneseq
        %v3264 = vshrl.u32 %v3263, 7
        %v3265 = vsub.s32 0, %v3264
        %v3266 = vrot.slane %v3002, %v3265
        %v3267 = vlaneseq
        %v3268 = vshrl.u32 %v3267, 7
        %v3269 = vsub.s32 0, %v3268
        %v3270 = vrot.slane %v3010, %v3269
        %v3271 = vlaneseq
        %v3272 = vshrl.u32 %v3271, 7
        %v3273 = vsub.s32 0, %v3272
        %v3274 = vrot.slane %v3012, %v3273
        %v3275 = vlaneseq
        %v3276 = vshrl.u32 %v3275, 7
        %v3277 = vsub.s32 0, %v3276
        %v3278 = vrot.slane %v2995, %v3277
        %v3279 = vlaneseq
        %v3280 = vshrl.u32 %v3279, 7
        %v3281 = vsub.s32 0, %v3280
        %v3282 = vrot.slane %v3009, %v3281
        %v3283 = vlaneseq
        %v3284 = vshrl.u32 %v3283, 7
        %v3285 = vsub.s32 0, %v3284
        %v3286 = vrot.slane %v3011, %v3285
        %v3287 = vlaneseq
        %v3288 = vshrl.u32 %v3287, 7
        %v3289 = vsub.s32 0, %v3288
        %v3290 = vrot.slane %v3013, %v3289
        %v3291 = vlaneseq
        %v3292 = vshrl.u32 %v3291, 7
        %v3293 = vsub.s32 0, %v3292
        %v3294 = vrot.slane %v3037, %v3293
        %v3295 = vlaneseq
        %v3296 = vshrl.u32 %v3295, 7
        %v3297 = vsub.s32 0, %v3296
        %v3298 = vrot.slane %v3051, %v3297
        %v3299 = vlaneseq
        %v3300 = vshrl.u32 %v3299, 7
        %v3301 = vsub.s32 0, %v3300
        %v3302 = vrot.slane %v3059, %v3301
        %v3303 = vlaneseq
        %v3304 = vshrl.u32 %v3303, 7
        %v3305 = vsub.s32 0, %v3304
        %v3306 = vrot.slane %v3061, %v3305
        %v3307 = vlaneseq
        %v3308 = vshrl.u32 %v3307, 7
        %v3309 = vsub.s32 0, %v3308
        %v3310 = vrot.slane %v3044, %v3309
        %v3311 = vlaneseq
        %v3312 = vshrl.u32 %v3311, 7
        %v3313 = vsub.s32 0, %v3312
        %v3314 = vrot.slane %v3058, %v3313
        %v3315 = vlaneseq
        %v3316 = vshrl.u32 %v3315, 7
        %v3317 = vsub.s32 0, %v3316
        %v3318 = vrot.slane %v3060, %v3317
        %v3319 = vlaneseq
        %v3320 = vshrl.u32 %v3319, 7
        %v3321 = vsub.s32 0, %v3320
        %v3322 = vrot.slane %v3062, %v3321
        %v3323 = vlaneseq
        %v3324 = vshrl.u32 %v3323, 7
        %v3325 = vsub.s32 0, %v3324
        %v3326 = vrot.slane %v3086, %v3325
        %v3327 = vlaneseq
        %v3328 = vshrl.u32 %v3327, 7
        %v3329 = vsub.s32 0, %v3328
        %v3330 = vrot.slane %v3100, %v3329
        %v3331 = vlaneseq
        %v3332 = vshrl.u32 %v3331, 7
        %v3333 = vsub.s32 0, %v3332
        %v3334 = vrot.slane %v3108, %v3333
        %v3335 = vlaneseq
        %v3336 = vshrl.u32 %v3335, 7
        %v3337 = vsub.s32 0, %v3336
        %v3338 = vrot.slane %v3110, %v3337
        %v3339 = vlaneseq
        %v3340 = vshrl.u32 %v3339, 7
        %v3341 = vsub.s32 0, %v3340
        %v3342 = vrot.slane %v3093, %v3341
        %v3343 = vlaneseq
        %v3344 = vshrl.u32 %v3343, 7
        %v3345 = vsub.s32 0, %v3344
        %v3346 = vrot.slane %v3107, %v3345
        %v3347 = vlaneseq
        %v3348 = vshrl.u32 %v3347, 7
        %v3349 = vsub.s32 0, %v3348
        %v3350 = vrot.slane %v3109, %v3349
        %v3351 = vlaneseq
        %v3352 = vshrl.u32 %v3351, 7
        %v3353 = vsub.s32 0, %v3352
        %v3354 = vrot.slane %v3111, %v3353
        %v3355 = vlaneseq
        %v3356 = vshrl.u32 %v3355, 7
        %v3357 = vsub.s32 0, %v3356
        %v3358 = vrot.slane %v3135, %v3357
        %v3359 = vlaneseq
        %v3360 = vshrl.u32 %v3359, 7
        %v3361 = vsub.s32 0, %v3360
        %v3362 = vrot.slane %v3149, %v3361
        %v3363 = vlaneseq
        %v3364 = vshrl.u32 %v3363, 7
        %v3365 = vsub.s32 0, %v3364
        %v3366 = vrot.slane %v3157, %v3365
        %v3367 = vlaneseq
        %v3368 = vshrl.u32 %v3367, 7
        %v3369 = vsub.s32 0, %v3368
        %v3370 = vrot.slane %v3159, %v3369
        %v3371 = vlaneseq
        %v3372 = vshrl.u32 %v3371, 7
        %v3373 = vsub.s32 0, %v3372
        %v3374 = vrot.slane %v3142, %v3373
        %v3375 = vlaneseq
        %v3376 = vshrl.u32 %v3375, 7
        %v3377 = vsub.s32 0, %v3376
        %v3378 = vrot.slane %v3156, %v3377
        %v3379 = vlaneseq
        %v3380 = vshrl.u32 %v3379, 7
        %v3381 = vsub.s32 0, %v3380
        %v3382 = vrot.slane %v3158, %v3381
        %v3383 = vlaneseq
        %v3384 = vshrl.u32 %v3383, 7
        %v3385 = vsub.s32 0, %v3384
        %v3386 = vrot.slane %v3160, %v3385
        %v3387 = vlaneseq
        %v3388 = vshrl.u32 %v3387, 7
        %v3389 = vsub.s32 0, %v3388
        %v3390 = vrot.slane %v3184, %v3389
        %v3391 = vlaneseq
        %v3392 = vshrl.u32 %v3391, 7
        %v3393 = vsub.s32 0, %v3392
        %v3394 = vrot.slane %v3198, %v3393
        %v3395 = vlaneseq
        %v3396 = vshrl.u32 %v3395, 7
        %v3397 = vsub.s32 0, %v3396
        %v3398 = vrot.slane %v3206, %v3397
        %v3399 = vlaneseq
        %v3400 = vshrl.u32 %v3399, 7
        %v3401 = vsub.s32 0, %v3400
        %v3402 = vrot.slane %v3208, %v3401
        %v3403 = vlaneseq
        %v3404 = vshrl.u32 %v3403, 7
        %v3405 = vsub.s32 0, %v3404
        %v3406 = vrot.slane %v3191, %v3405
        %v3407 = vlaneseq
        %v3408 = vshrl.u32 %v3407, 7
        %v3409 = vsub.s32 0, %v3408
        %v3410 = vrot.slane %v3205, %v3409
        %v3411 = vlaneseq
        %v3412 = vshrl.u32 %v3411, 7
        %v3413 = vsub.s32 0, %v3412
        %v3414 = vrot.slane %v3207, %v3413
        %v3415 = vlaneseq
        %v3416 = vshrl.u32 %v3415, 7
        %v3417 = vsub.s32 0, %v3416
        %v3418 = vrot.slane %v3209, %v3417
        %v3419 = vlaneseq
        %v3420 = vshrl.u32 %v3419, 7
        %v3421 = vsub.s32 0, %v3420
        %v3422 = vrot.slane %v3233, %v3421
        %v3423 = vlaneseq
        %v3424 = vshrl.u32 %v3423, 7
        %v3425 = vsub.s32 0, %v3424
        %v3426 = vrot.slane %v3247, %v3425
        %v3427 = vlaneseq
        %v3428 = vshrl.u32 %v3427, 7
        %v3429 = vsub.s32 0, %v3428
        %v3430 = vrot.slane %v3255, %v3429
        %v3431 = vlaneseq
        %v3432 = vshrl.u32 %v3431, 7
        %v3433 = vsub.s32 0, %v3432
        %v3434 = vrot.slane %v3257, %v3433
        %v3435 = vlaneseq
        %v3436 = vshrl.u32 %v3435, 7
        %v3437 = vsub.s32 0, %v3436
        %v3438 = vrot.slane %v3240, %v3437
        %v3439 = vlaneseq
        %v3440 = vshrl.u32 %v3439, 7
        %v3441 = vsub.s32 0, %v3440
        %v3442 = vrot.slane %v3254, %v3441
        %v3443 = vlaneseq
        %v3444 = vshrl.u32 %v3443, 7
        %v3445 = vsub.s32 0, %v3444
        %v3446 = vrot.slane %v3256, %v3445
        %v3447 = vlaneseq
        %v3448 = vshrl.u32 %v3447, 7
        %v3449 = vsub.s32 0, %v3448
        %v3450 = vrot.slane %v3258, %v3449
        %v3499 = vsel %vm2562, %v2640, %v3262
        %v3500 = vsel %vm2562, %v2654, %v3266
        %v3501 = vsel %vm2562, %v2662, %v3270
        %v3502 = vsel %vm2562, %v2664, %v3274
        %v3503 = vsel %vm2562, %v2647, %v3278
        %v3504 = vsel %vm2562, %v2661, %v3282
        %v3505 = vsel %vm2562, %v2663, %v3286
        %v3506 = vsel %vm2562, %v2665, %v3290
        %v3507 = vsel %vm2562, %v2689, %v3294
        %v3508 = vsel %vm2562, %v2703, %v3298
        %v3509 = vsel %vm2562, %v2711, %v3302
        %v3510 = vsel %vm2562, %v2713, %v3306
        %v3511 = vsel %vm2562, %v2696, %v3310
        %v3512 = vsel %vm2562, %v2710, %v3314
        %v3513 = vsel %vm2562, %v2712, %v3318
        %v3514 = vsel %vm2562, %v2714, %v3322
        %v3515 = vsel %vm2562, %v2738, %v3326
        %v3516 = vsel %vm2562, %v2752, %v3330
        %v3517 = vsel %vm2562, %v2760, %v3334
        %v3518 = vsel %vm2562, %v2762, %v3338
        %v3519 = vsel %vm2562, %v2745, %v3342
        %v3520 = vsel %vm2562, %v2759, %v3346
        %v3521 = vsel %vm2562, %v2761, %v3350
        %v3522 = vsel %vm2562, %v2763, %v3354
        %v3523 = vsel %vm2562, %v2787, %v3358
        %v3524 = vsel %vm2562, %v2801, %v3362
        %v3525 = vsel %vm2562, %v2809, %v3366
        %v3526 = vsel %vm2562, %v2811, %v3370
        %v3527 = vsel %vm2562, %v2794, %v3374
        %v3528 = vsel %vm2562, %v2808, %v3378
        %v3529 = vsel %vm2562, %v2810, %v3382
        %v3530 = vsel %vm2562, %v2812, %v3386
        %v3531 = vsel %vm2562, %v2836, %v3390
        %v3532 = vsel %vm2562, %v2850, %v3394
        %v3533 = vsel %vm2562, %v2858, %v3398
        %v3534 = vsel %vm2562, %v2860, %v3402
        %v3535 = vsel %vm2562, %v2843, %v3406
        %v3536 = vsel %vm2562, %v2857, %v3410
        %v3537 = vsel %vm2562, %v2859, %v3414
        %v3538 = vsel %vm2562, %v2861, %v3418
        %v3539 = vsel %vm2562, %v2885, %v3422
        %v3540 = vsel %vm2562, %v2899, %v3426
        %v3541 = vsel %vm2562, %v2907, %v3430
        %v3542 = vsel %vm2562, %v2909, %v3434
        %v3543 = vsel %vm2562, %v2892, %v3438
        %v3544 = vsel %vm2562, %v2906, %v3442
        %v3545 = vsel %vm2562, %v2908, %v3446
        %v3546 = vsel %vm2562, %v2910, %v3450
        %s3547 = ssub.s32 %s385, 2
        %v3548 = vstv %s3547
        %v3549 = vadd.s32 %v3548, 1
        %v3550 = vadd.s32 %v3548, 2
        %v3551 = vadd.s32 %v3548, 3
        %v3552 = vadd.s32 %v3548, 4
        %v3553 = vadd.s32 %v3548, 5
        %v3554 = vadd.s32 %v3548, 6
        %v3555 = vadd.s32 %v3548, 7
        %v3556 = vadd.s32 %v3548, 8
        %v3557 = vadd.s32 %v3548, 9
        %v3558 = vadd.s32 %v3548, 10
        %v3559 = vadd.s32 %v3548, 11
        %vm3560 = vcmp.ge.s32.totalorder %v3548, 0
        %vm3561 = vcmp.ge.s32.totalorder %v3549, 0
        %vm3562 = vcmp.ge.s32.totalorder %v3550, 0
        %vm3563 = vcmp.ge.s32.totalorder %v3551, 0
        %vm3564 = vcmp.ge.s32.totalorder %v3552, 0
        %vm3565 = vcmp.ge.s32.totalorder %v3553, 0
        %vm3566 = vcmp.ge.s32.totalorder %v3554, 0
        %vm3567 = vcmp.ge.s32.totalorder %v3555, 0
        %vm3568 = vcmp.ge.s32.totalorder %v3556, 0
        %vm3569 = vcmp.ge.s32.totalorder %v3557, 0
        %vm3570 = vcmp.ge.s32.totalorder %v3558, 0
        %vm3571 = vcmp.ge.s32.totalorder %v3559, 0
        %vm3572 = vcmp.lt.s32.totalorder %v3548, 16
        %vm3573 = vcmp.lt.s32.totalorder %v3549, 16
        %vm3574 = vcmp.lt.s32.totalorder %v3550, 16
        %vm3575 = vcmp.lt.s32.totalorder %v3551, 16
        %vm3576 = vcmp.lt.s32.totalorder %v3552, 16
        %vm3577 = vcmp.lt.s32.totalorder %v3553, 16
        %vm3578 = vcmp.lt.s32.totalorder %v3554, 16
        %vm3579 = vcmp.lt.s32.totalorder %v3555, 16
        %vm3580 = vcmp.lt.s32.totalorder %v3556, 16
        %vm3581 = vcmp.lt.s32.totalorder %v3557, 16
        %vm3582 = vcmp.lt.s32.totalorder %v3558, 16
        %vm3583 = vcmp.lt.s32.totalorder %v3559, 16
        %vm3584 = vmand %vm3560, %vm3572
        %vm3585 = vmand %vm3561, %vm3573
        %vm3586 = vmand %vm3562, %vm3574
        %vm3587 = vmand %vm3563, %vm3575
        %vm3588 = vmand %vm3564, %vm3576
        %vm3589 = vmand %vm3565, %vm3577
        %vm3590 = vmand %vm3566, %vm3578
        %vm3591 = vmand %vm3567, %vm3579
        %vm3592 = vmand %vm3568, %vm3580
        %vm3593 = vmand %vm3569, %vm3581
        %vm3594 = vmand %vm3570, %vm3582
        %vm3595 = vmand %vm3571, %vm3583
        %v3596 = vsel %vm3584, 1, 0
        %v3597 = vsel %vm3585, 1, 0
        %v3598 = vsel %vm3586, 1, 0
        %v3599 = vsel %vm3587, 1, 0
        %v3600 = vsel %vm3588, 1, 0
        %v3601 = vsel %vm3589, 1, 0
        %v3602 = vsel %vm3590, 1, 0
        %v3603 = vsel %vm3591, 1, 0
        %v3604 = vsel %vm3592, 1, 0
        %v3605 = vsel %vm3593, 1, 0
        %v3606 = vsel %vm3594, 1, 0
        %v3607 = vsel %vm3595, 1, 0
        %vm3608 = vcmp.eq.s32.totalorder %v3596, 1
        %vm3609 = vcmp.eq.s32.totalorder %v3597, 1
        %vm3610 = vcmp.eq.s32.totalorder %v3598, 1
        %vm3611 = vcmp.eq.s32.totalorder %v3599, 1
        %vm3612 = vcmp.eq.s32.totalorder %v3600, 1
        %vm3613 = vcmp.eq.s32.totalorder %v3601, 1
        %vm3614 = vcmp.eq.s32.totalorder %v3602, 1
        %vm3615 = vcmp.eq.s32.totalorder %v3603, 1
        %vm3616 = vcmp.eq.s32.totalorder %v3604, 1
        %vm3617 = vcmp.eq.s32.totalorder %v3605, 1
        %vm3618 = vcmp.eq.s32.totalorder %v3606, 1
        %vm3619 = vcmp.eq.s32.totalorder %v3607, 1
        %v3620 = vsel %vm3608, %v2563, 0.0
        %v3621 = vsel %vm3608, %v2564, 0.0
        %v3622 = vsel %vm3608, %v2565, 0.0
        %v3623 = vsel %vm3608, %v2566, 0.0
        %v3624 = vsel %vm3608, %v2567, 0.0
        %v3625 = vsel %vm3608, %v2568, 0.0
        %v3626 = vsel %vm3608, %v2569, 0.0
        %v3627 = vsel %vm3608, %v2570, 0.0
        %v3628 = vsel %vm3609, %v3499, 0.0
        %v3629 = vsel %vm3609, %v3500, 0.0
        %v3630 = vsel %vm3609, %v3501, 0.0
        %v3631 = vsel %vm3609, %v3502, 0.0
        %v3632 = vsel %vm3609, %v3503, 0.0
        %v3633 = vsel %vm3609, %v3504, 0.0
        %v3634 = vsel %vm3609, %v3505, 0.0
        %v3635 = vsel %vm3609, %v3506, 0.0
        %v3636 = vsel %vm3610, %v2571, 0.0
        %v3637 = vsel %vm3610, %v2572, 0.0
        %v3638 = vsel %vm3610, %v2573, 0.0
        %v3639 = vsel %vm3610, %v2574, 0.0
        %v3640 = vsel %vm3610, %v2575, 0.0
        %v3641 = vsel %vm3610, %v2576, 0.0
        %v3642 = vsel %vm3610, %v2577, 0.0
        %v3643 = vsel %vm3610, %v2578, 0.0
        %v3644 = vsel %vm3611, %v3507, 0.0
        %v3645 = vsel %vm3611, %v3508, 0.0
        %v3646 = vsel %vm3611, %v3509, 0.0
        %v3647 = vsel %vm3611, %v3510, 0.0
        %v3648 = vsel %vm3611, %v3511, 0.0
        %v3649 = vsel %vm3611, %v3512, 0.0
        %v3650 = vsel %vm3611, %v3513, 0.0
        %v3651 = vsel %vm3611, %v3514, 0.0
        %v3652 = vsel %vm3612, %v2579, 0.0
        %v3653 = vsel %vm3612, %v2580, 0.0
        %v3654 = vsel %vm3612, %v2581, 0.0
        %v3655 = vsel %vm3612, %v2582, 0.0
        %v3656 = vsel %vm3612, %v2583, 0.0
        %v3657 = vsel %vm3612, %v2584, 0.0
        %v3658 = vsel %vm3612, %v2585, 0.0
        %v3659 = vsel %vm3612, %v2586, 0.0
        %v3660 = vsel %vm3613, %v3515, 0.0
        %v3661 = vsel %vm3613, %v3516, 0.0
        %v3662 = vsel %vm3613, %v3517, 0.0
        %v3663 = vsel %vm3613, %v3518, 0.0
        %v3664 = vsel %vm3613, %v3519, 0.0
        %v3665 = vsel %vm3613, %v3520, 0.0
        %v3666 = vsel %vm3613, %v3521, 0.0
        %v3667 = vsel %vm3613, %v3522, 0.0
        %v3668 = vsel %vm3614, %v2587, 0.0
        %v3669 = vsel %vm3614, %v2588, 0.0
        %v3670 = vsel %vm3614, %v2589, 0.0
        %v3671 = vsel %vm3614, %v2590, 0.0
        %v3672 = vsel %vm3614, %v2591, 0.0
        %v3673 = vsel %vm3614, %v2592, 0.0
        %v3674 = vsel %vm3614, %v2593, 0.0
        %v3675 = vsel %vm3614, %v2594, 0.0
        %v3676 = vsel %vm3615, %v3523, 0.0
        %v3677 = vsel %vm3615, %v3524, 0.0
        %v3678 = vsel %vm3615, %v3525, 0.0
        %v3679 = vsel %vm3615, %v3526, 0.0
        %v3680 = vsel %vm3615, %v3527, 0.0
        %v3681 = vsel %vm3615, %v3528, 0.0
        %v3682 = vsel %vm3615, %v3529, 0.0
        %v3683 = vsel %vm3615, %v3530, 0.0
        %v3684 = vsel %vm3616, %v2595, 0.0
        %v3685 = vsel %vm3616, %v2596, 0.0
        %v3686 = vsel %vm3616, %v2597, 0.0
        %v3687 = vsel %vm3616, %v2598, 0.0
        %v3688 = vsel %vm3616, %v2599, 0.0
        %v3689 = vsel %vm3616, %v2600, 0.0
        %v3690 = vsel %vm3616, %v2601, 0.0
        %v3691 = vsel %vm3616, %v2602, 0.0
        %v3692 = vsel %vm3617, %v3531, 0.0
        %v3693 = vsel %vm3617, %v3532, 0.0
        %v3694 = vsel %vm3617, %v3533, 0.0
        %v3695 = vsel %vm3617, %v3534, 0.0
        %v3696 = vsel %vm3617, %v3535, 0.0
        %v3697 = vsel %vm3617, %v3536, 0.0
        %v3698 = vsel %vm3617, %v3537, 0.0
        %v3699 = vsel %vm3617, %v3538, 0.0
        %v3700 = vsel %vm3618, %v2603, 0.0
        %v3701 = vsel %vm3618, %v2604, 0.0
        %v3702 = vsel %vm3618, %v2605, 0.0
        %v3703 = vsel %vm3618, %v2606, 0.0
        %v3704 = vsel %vm3618, %v2607, 0.0
        %v3705 = vsel %vm3618, %v2608, 0.0
        %v3706 = vsel %vm3618, %v2609, 0.0
        %v3707 = vsel %vm3618, %v2610, 0.0
        %v3708 = vsel %vm3619, %v3539, 0.0
        %v3709 = vsel %vm3619, %v3540, 0.0
        %v3710 = vsel %vm3619, %v3541, 0.0
        %v3711 = vsel %vm3619, %v3542, 0.0
        %v3712 = vsel %vm3619, %v3543, 0.0
        %v3713 = vsel %vm3619, %v3544, 0.0
        %v3714 = vsel %vm3619, %v3545, 0.0
        %v3715 = vsel %vm3619, %v3546, 0.0
        %v3812 = vcombine.low %v3620, %v3621
        %v3813 = vcombine.low %v3622, %v3623
        %v3815 = vunpack.c.l.s4 1983009808
        %v3816 = vunpack.c.0.s8 %v3815
        %v3817 = vlaneseq
        %v3818 = vshrl.u32 %v3817, 7
        %v3819 = vsub.s32 %v3816, %v3818
        %v3820 = vrot.slane %v3812, %v3819
        %v3822 = vunpack.c.l.s4 1983009808
        %v3823 = vunpack.c.0.s8 %v3822
        %v3824 = vlaneseq
        %v3825 = vshrl.u32 %v3824, 7
        %v3826 = vsub.s32 %v3823, %v3825
        %v3827 = vrot.slane %v3813, %v3826
        %v3828 = vcombine.low %v3820, %v3827
        %v3829 = vcombine.low %v3624, %v3625
        %v3830 = vcombine.low %v3626, %v3627
        %v3832 = vunpack.c.l.s4 1983009808
        %v3833 = vunpack.c.0.s8 %v3832
        %v3834 = vlaneseq
        %v3835 = vshrl.u32 %v3834, 7
        %v3836 = vsub.s32 %v3833, %v3835
        %v3837 = vrot.slane %v3829, %v3836
        %v3839 = vunpack.c.l.s4 1983009808
        %v3840 = vunpack.c.0.s8 %v3839
        %v3841 = vlaneseq
        %v3842 = vshrl.u32 %v3841, 7
        %v3843 = vsub.s32 %v3840, %v3842
        %v3844 = vrot.slane %v3830, %v3843
        %v3845 = vcombine.low %v3837, %v3844
        %v3846 = vcombine.low %v3628, %v3629
        %v3847 = vcombine.low %v3630, %v3631
        %v3849 = vunpack.c.l.s4 1983009808
        %v3850 = vunpack.c.0.s8 %v3849
        %v3851 = vlaneseq
        %v3852 = vshrl.u32 %v3851, 7
        %v3853 = vsub.s32 %v3850, %v3852
        %v3854 = vrot.slane %v3846, %v3853
        %v3856 = vunpack.c.l.s4 1983009808
        %v3857 = vunpack.c.0.s8 %v3856
        %v3858 = vlaneseq
        %v3859 = vshrl.u32 %v3858, 7
        %v3860 = vsub.s32 %v3857, %v3859
        %v3861 = vrot.slane %v3847, %v3860
        %v3862 = vcombine.low %v3854, %v3861
        %v3863 = vcombine.low %v3632, %v3633
        %v3864 = vcombine.low %v3634, %v3635
        %v3866 = vunpack.c.l.s4 1983009808
        %v3867 = vunpack.c.0.s8 %v3866
        %v3868 = vlaneseq
        %v3869 = vshrl.u32 %v3868, 7
        %v3870 = vsub.s32 %v3867, %v3869
        %v3871 = vrot.slane %v3863, %v3870
        %v3873 = vunpack.c.l.s4 1983009808
        %v3874 = vunpack.c.0.s8 %v3873
        %v3875 = vlaneseq
        %v3876 = vshrl.u32 %v3875, 7
        %v3877 = vsub.s32 %v3874, %v3876
        %v3878 = vrot.slane %v3864, %v3877
        %v3879 = vcombine.low %v3871, %v3878
        %v3880 = vcombine.low %v3636, %v3637
        %v3881 = vcombine.low %v3638, %v3639
        %v3883 = vunpack.c.l.s4 1983009808
        %v3884 = vunpack.c.0.s8 %v3883
        %v3885 = vlaneseq
        %v3886 = vshrl.u32 %v3885, 7
        %v3887 = vsub.s32 %v3884, %v3886
        %v3888 = vrot.slane %v3880, %v3887
        %v3890 = vunpack.c.l.s4 1983009808
        %v3891 = vunpack.c.0.s8 %v3890
        %v3892 = vlaneseq
        %v3893 = vshrl.u32 %v3892, 7
        %v3894 = vsub.s32 %v3891, %v3893
        %v3895 = vrot.slane %v3881, %v3894
        %v3896 = vcombine.low %v3888, %v3895
        %v3897 = vcombine.low %v3640, %v3641
        %v3898 = vcombine.low %v3642, %v3643
        %v3900 = vunpack.c.l.s4 1983009808
        %v3901 = vunpack.c.0.s8 %v3900
        %v3902 = vlaneseq
        %v3903 = vshrl.u32 %v3902, 7
        %v3904 = vsub.s32 %v3901, %v3903
        %v3905 = vrot.slane %v3897, %v3904
        %v3907 = vunpack.c.l.s4 1983009808
        %v3908 = vunpack.c.0.s8 %v3907
        %v3909 = vlaneseq
        %v3910 = vshrl.u32 %v3909, 7
        %v3911 = vsub.s32 %v3908, %v3910
        %v3912 = vrot.slane %v3898, %v3911
        %v3913 = vcombine.low %v3905, %v3912
        %v3914 = vcombine.low %v3644, %v3645
        %v3915 = vcombine.low %v3646, %v3647
        %v3917 = vunpack.c.l.s4 1983009808
        %v3918 = vunpack.c.0.s8 %v3917
        %v3919 = vlaneseq
        %v3920 = vshrl.u32 %v3919, 7
        %v3921 = vsub.s32 %v3918, %v3920
        %v3922 = vrot.slane %v3914, %v3921
        %v3924 = vunpack.c.l.s4 1983009808
        %v3925 = vunpack.c.0.s8 %v3924
        %v3926 = vlaneseq
        %v3927 = vshrl.u32 %v3926, 7
        %v3928 = vsub.s32 %v3925, %v3927
        %v3929 = vrot.slane %v3915, %v3928
        %v3930 = vcombine.low %v3922, %v3929
        %v3931 = vcombine.low %v3648, %v3649
        %v3932 = vcombine.low %v3650, %v3651
        %v3934 = vunpack.c.l.s4 1983009808
        %v3935 = vunpack.c.0.s8 %v3934
        %v3936 = vlaneseq
        %v3937 = vshrl.u32 %v3936, 7
        %v3938 = vsub.s32 %v3935, %v3937
        %v3939 = vrot.slane %v3931, %v3938
        %v3941 = vunpack.c.l.s4 1983009808
        %v3942 = vunpack.c.0.s8 %v3941
        %v3943 = vlaneseq
        %v3944 = vshrl.u32 %v3943, 7
        %v3945 = vsub.s32 %v3942, %v3944
        %v3946 = vrot.slane %v3932, %v3945
        %v3947 = vcombine.low %v3939, %v3946
        %v3948 = vcombine.low %v3652, %v3653
        %v3949 = vcombine.low %v3654, %v3655
        %v3951 = vunpack.c.l.s4 1983009808
        %v3952 = vunpack.c.0.s8 %v3951
        %v3953 = vlaneseq
        %v3954 = vshrl.u32 %v3953, 7
        %v3955 = vsub.s32 %v3952, %v3954
        %v3956 = vrot.slane %v3948, %v3955
        %v3958 = vunpack.c.l.s4 1983009808
        %v3959 = vunpack.c.0.s8 %v3958
        %v3960 = vlaneseq
        %v3961 = vshrl.u32 %v3960, 7
        %v3962 = vsub.s32 %v3959, %v3961
        %v3963 = vrot.slane %v3949, %v3962
        %v3964 = vcombine.low %v3956, %v3963
        %v3965 = vcombine.low %v3656, %v3657
        %v3966 = vcombine.low %v3658, %v3659
        %v3968 = vunpack.c.l.s4 1983009808
        %v3969 = vunpack.c.0.s8 %v3968
        %v3970 = vlaneseq
        %v3971 = vshrl.u32 %v3970, 7
        %v3972 = vsub.s32 %v3969, %v3971
        %v3973 = vrot.slane %v3965, %v3972
        %v3975 = vunpack.c.l.s4 1983009808
        %v3976 = vunpack.c.0.s8 %v3975
        %v3977 = vlaneseq
        %v3978 = vshrl.u32 %v3977, 7
        %v3979 = vsub.s32 %v3976, %v3978
        %v3980 = vrot.slane %v3966, %v3979
        %v3981 = vcombine.low %v3973, %v3980
        %v3982 = vcombine.low %v3660, %v3661
        %v3983 = vcombine.low %v3662, %v3663
        %v3985 = vunpack.c.l.s4 1983009808
        %v3986 = vunpack.c.0.s8 %v3985
        %v3987 = vlaneseq
        %v3988 = vshrl.u32 %v3987, 7
        %v3989 = vsub.s32 %v3986, %v3988
        %v3990 = vrot.slane %v3982, %v3989
        %v3992 = vunpack.c.l.s4 1983009808
        %v3993 = vunpack.c.0.s8 %v3992
        %v3994 = vlaneseq
        %v3995 = vshrl.u32 %v3994, 7
        %v3996 = vsub.s32 %v3993, %v3995
        %v3997 = vrot.slane %v3983, %v3996
        %v3998 = vcombine.low %v3990, %v3997
        %v3999 = vcombine.low %v3664, %v3665
        %v4000 = vcombine.low %v3666, %v3667
        %v4002 = vunpack.c.l.s4 1983009808
        %v4003 = vunpack.c.0.s8 %v4002
        %v4004 = vlaneseq
        %v4005 = vshrl.u32 %v4004, 7
        %v4006 = vsub.s32 %v4003, %v4005
        %v4007 = vrot.slane %v3999, %v4006
        %v4009 = vunpack.c.l.s4 1983009808
        %v4010 = vunpack.c.0.s8 %v4009
        %v4011 = vlaneseq
        %v4012 = vshrl.u32 %v4011, 7
        %v4013 = vsub.s32 %v4010, %v4012
        %v4014 = vrot.slane %v4000, %v4013
        %v4015 = vcombine.low %v4007, %v4014
        %v4016 = vcombine.low %v3668, %v3669
        %v4017 = vcombine.low %v3670, %v3671
        %v4019 = vunpack.c.l.s4 1983009808
        %v4020 = vunpack.c.0.s8 %v4019
        %v4021 = vlaneseq
        %v4022 = vshrl.u32 %v4021, 7
        %v4023 = vsub.s32 %v4020, %v4022
        %v4024 = vrot.slane %v4016, %v4023
        %v4026 = vunpack.c.l.s4 1983009808
        %v4027 = vunpack.c.0.s8 %v4026
        %v4028 = vlaneseq
        %v4029 = vshrl.u32 %v4028, 7
        %v4030 = vsub.s32 %v4027, %v4029
        %v4031 = vrot.slane %v4017, %v4030
        %v4032 = vcombine.low %v4024, %v4031
        %v4033 = vcombine.low %v3672, %v3673
        %v4034 = vcombine.low %v3674, %v3675
        %v4036 = vunpack.c.l.s4 1983009808
        %v4037 = vunpack.c.0.s8 %v4036
        %v4038 = vlaneseq
        %v4039 = vshrl.u32 %v4038, 7
        %v4040 = vsub.s32 %v4037, %v4039
        %v4041 = vrot.slane %v4033, %v4040
        %v4043 = vunpack.c.l.s4 1983009808
        %v4044 = vunpack.c.0.s8 %v4043
        %v4045 = vlaneseq
        %v4046 = vshrl.u32 %v4045, 7
        %v4047 = vsub.s32 %v4044, %v4046
        %v4048 = vrot.slane %v4034, %v4047
        %v4049 = vcombine.low %v4041, %v4048
        %v4050 = vcombine.low %v3676, %v3677
        %v4051 = vcombine.low %v3678, %v3679
        %v4053 = vunpack.c.l.s4 1983009808
        %v4054 = vunpack.c.0.s8 %v4053
        %v4055 = vlaneseq
        %v4056 = vshrl.u32 %v4055, 7
        %v4057 = vsub.s32 %v4054, %v4056
        %v4058 = vrot.slane %v4050, %v4057
        %v4060 = vunpack.c.l.s4 1983009808
        %v4061 = vunpack.c.0.s8 %v4060
        %v4062 = vlaneseq
        %v4063 = vshrl.u32 %v4062, 7
        %v4064 = vsub.s32 %v4061, %v4063
        %v4065 = vrot.slane %v4051, %v4064
        %v4066 = vcombine.low %v4058, %v4065
        %v4067 = vcombine.low %v3680, %v3681
        %v4068 = vcombine.low %v3682, %v3683
        %v4070 = vunpack.c.l.s4 1983009808
        %v4071 = vunpack.c.0.s8 %v4070
        %v4072 = vlaneseq
        %v4073 = vshrl.u32 %v4072, 7
        %v4074 = vsub.s32 %v4071, %v4073
        %v4075 = vrot.slane %v4067, %v4074
        %v4077 = vunpack.c.l.s4 1983009808
        %v4078 = vunpack.c.0.s8 %v4077
        %v4079 = vlaneseq
        %v4080 = vshrl.u32 %v4079, 7
        %v4081 = vsub.s32 %v4078, %v4080
        %v4082 = vrot.slane %v4068, %v4081
        %v4083 = vcombine.low %v4075, %v4082
        %v4084 = vcombine.low %v3684, %v3685
        %v4085 = vcombine.low %v3686, %v3687
        %v4087 = vunpack.c.l.s4 1983009808
        %v4088 = vunpack.c.0.s8 %v4087
        %v4089 = vlaneseq
        %v4090 = vshrl.u32 %v4089, 7
        %v4091 = vsub.s32 %v4088, %v4090
        %v4092 = vrot.slane %v4084, %v4091
        %v4094 = vunpack.c.l.s4 1983009808
        %v4095 = vunpack.c.0.s8 %v4094
        %v4096 = vlaneseq
        %v4097 = vshrl.u32 %v4096, 7
        %v4098 = vsub.s32 %v4095, %v4097
        %v4099 = vrot.slane %v4085, %v4098
        %v4100 = vcombine.low %v4092, %v4099
        %v4101 = vcombine.low %v3688, %v3689
        %v4102 = vcombine.low %v3690, %v3691
        %v4104 = vunpack.c.l.s4 1983009808
        %v4105 = vunpack.c.0.s8 %v4104
        %v4106 = vlaneseq
        %v4107 = vshrl.u32 %v4106, 7
        %v4108 = vsub.s32 %v4105, %v4107
        %v4109 = vrot.slane %v4101, %v4108
        %v4111 = vunpack.c.l.s4 1983009808
        %v4112 = vunpack.c.0.s8 %v4111
        %v4113 = vlaneseq
        %v4114 = vshrl.u32 %v4113, 7
        %v4115 = vsub.s32 %v4112, %v4114
        %v4116 = vrot.slane %v4102, %v4115
        %v4117 = vcombine.low %v4109, %v4116
        %v4118 = vcombine.low %v3692, %v3693
        %v4119 = vcombine.low %v3694, %v3695
        %v4121 = vunpack.c.l.s4 1983009808
        %v4122 = vunpack.c.0.s8 %v4121
        %v4123 = vlaneseq
        %v4124 = vshrl.u32 %v4123, 7
        %v4125 = vsub.s32 %v4122, %v4124
        %v4126 = vrot.slane %v4118, %v4125
        %v4128 = vunpack.c.l.s4 1983009808
        %v4129 = vunpack.c.0.s8 %v4128
        %v4130 = vlaneseq
        %v4131 = vshrl.u32 %v4130, 7
        %v4132 = vsub.s32 %v4129, %v4131
        %v4133 = vrot.slane %v4119, %v4132
        %v4134 = vcombine.low %v4126, %v4133
        %v4135 = vcombine.low %v3696, %v3697
        %v4136 = vcombine.low %v3698, %v3699
        %v4138 = vunpack.c.l.s4 1983009808
        %v4139 = vunpack.c.0.s8 %v4138
        %v4140 = vlaneseq
        %v4141 = vshrl.u32 %v4140, 7
        %v4142 = vsub.s32 %v4139, %v4141
        %v4143 = vrot.slane %v4135, %v4142
        %v4145 = vunpack.c.l.s4 1983009808
        %v4146 = vunpack.c.0.s8 %v4145
        %v4147 = vlaneseq
        %v4148 = vshrl.u32 %v4147, 7
        %v4149 = vsub.s32 %v4146, %v4148
        %v4150 = vrot.slane %v4136, %v4149
        %v4151 = vcombine.low %v4143, %v4150
        %v4152 = vcombine.low %v3700, %v3701
        %v4153 = vcombine.low %v3702, %v3703
        %v4155 = vunpack.c.l.s4 1983009808
        %v4156 = vunpack.c.0.s8 %v4155
        %v4157 = vlaneseq
        %v4158 = vshrl.u32 %v4157, 7
        %v4159 = vsub.s32 %v4156, %v4158
        %v4160 = vrot.slane %v4152, %v4159
        %v4162 = vunpack.c.l.s4 1983009808
        %v4163 = vunpack.c.0.s8 %v4162
        %v4164 = vlaneseq
        %v4165 = vshrl.u32 %v4164, 7
        %v4166 = vsub.s32 %v4163, %v4165
        %v4167 = vrot.slane %v4153, %v4166
        %v4168 = vcombine.low %v4160, %v4167
        %v4169 = vcombine.low %v3704, %v3705
        %v4170 = vcombine.low %v3706, %v3707
        %v4172 = vunpack.c.l.s4 1983009808
        %v4173 = vunpack.c.0.s8 %v4172
        %v4174 = vlaneseq
        %v4175 = vshrl.u32 %v4174, 7
        %v4176 = vsub.s32 %v4173, %v4175
        %v4177 = vrot.slane %v4169, %v4176
        %v4179 = vunpack.c.l.s4 1983009808
        %v4180 = vunpack.c.0.s8 %v4179
        %v4181 = vlaneseq
        %v4182 = vshrl.u32 %v4181, 7
        %v4183 = vsub.s32 %v4180, %v4182
        %v4184 = vrot.slane %v4170, %v4183
        %v4185 = vcombine.low %v4177, %v4184
        %v4186 = vcombine.low %v3708, %v3709
        %v4187 = vcombine.low %v3710, %v3711
        %v4189 = vunpack.c.l.s4 1983009808
        %v4190 = vunpack.c.0.s8 %v4189
        %v4191 = vlaneseq
        %v4192 = vshrl.u32 %v4191, 7
        %v4193 = vsub.s32 %v4190, %v4192
        %v4194 = vrot.slane %v4186, %v4193
        %v4196 = vunpack.c.l.s4 1983009808
        %v4197 = vunpack.c.0.s8 %v4196
        %v4198 = vlaneseq
        %v4199 = vshrl.u32 %v4198, 7
        %v4200 = vsub.s32 %v4197, %v4199
        %v4201 = vrot.slane %v4187, %v4200
        %v4202 = vcombine.low %v4194, %v4201
        %v4203 = vcombine.low %v3712, %v3713
        %v4204 = vcombine.low %v3714, %v3715
        %v4206 = vunpack.c.l.s4 1983009808
        %v4207 = vunpack.c.0.s8 %v4206
        %v4208 = vlaneseq
        %v4209 = vshrl.u32 %v4208, 7
        %v4210 = vsub.s32 %v4207, %v4209
        %v4211 = vrot.slane %v4203, %v4210
        %v4213 = vunpack.c.l.s4 1983009808
        %v4214 = vunpack.c.0.s8 %v4213
        %v4215 = vlaneseq
        %v4216 = vshrl.u32 %v4215, 7
        %v4217 = vsub.s32 %v4214, %v4216
        %v4218 = vrot.slane %v4204, %v4217
        %v4219 = vcombine.low %v4211, %v4218
        %v4244 = vpack.c.bf16 %v3845, %v3828
        %v4245 = vpack.c.bf16 %v3879, %v3862
        %v4246 = vpack.c.bf16 %v3913, %v3896
        %v4247 = vpack.c.bf16 %v3947, %v3930
        %v4248 = vpack.c.bf16 %v3981, %v3964
        %v4249 = vpack.c.bf16 %v4015, %v3998
        %v4250 = vpack.c.bf16 %v4049, %v4032
        %v4251 = vpack.c.bf16 %v4083, %v4066
        %v4252 = vpack.c.bf16 %v4117, %v4100
        %v4253 = vpack.c.bf16 %v4151, %v4134
        %v4254 = vpack.c.bf16 %v4185, %v4168
        %v4255 = vpack.c.bf16 %v4219, %v4202
        %v4256 = vld [vmem:[%s333] sm:$0xf]
        %v4257 = vld [vmem:[%s333 + $0x4] sm:$0xf]
        %v4258 = vld [vmem:[%s333 + $0x8] sm:$0xf]
        %v4259 = vld [vmem:[%s333 + $0xc] sm:$0xf]
        %v4260 = vld [vmem:[%s333 + $0x10] sm:$0xf]
        %v4261 = vld [vmem:[%s333 + $0x14] sm:$0xf]
        %v4262 = vld [vmem:[%s333 + $0x18] sm:$0xf]
        %v4263 = vld [vmem:[%s333 + $0x1c] sm:$0xf]
        %v4264 = vld [vmem:[%s333 + $0x20] sm:$0xf]
        %v4265 = vld [vmem:[%s333 + $0x24] sm:$0xf]
        %v4266 = vld [vmem:[%s333 + $0x28] sm:$0xf]
        %v4267 = vld [vmem:[%s333 + $0x2c] sm:$0xf]
        %v4268 = vld [vmem:[%s333 + $0x30] sm:$0xf]
        %v4269 = vld [vmem:[%s333 + $0x34] sm:$0xf]
        %v4270 = vld [vmem:[%s333 + $0x38] sm:$0xf]
        %v4271 = vld [vmem:[%s333 + $0x3c] sm:$0xf]
        %v4272 = vld [vmem:[%s333 + $0x40] sm:$0xf]
        %v4273 = vld [vmem:[%s333 + $0x44] sm:$0xf]
        %v4274 = vld [vmem:[%s333 + $0x48] sm:$0xf]
        %v4275 = vld [vmem:[%s333 + $0x4c] sm:$0xf]
        %v4276 = vld [vmem:[%s333 + $0x50] sm:$0xf]
        %v4277 = vld [vmem:[%s333 + $0x54] sm:$0xf]
        %v4278 = vld [vmem:[%s333 + $0x58] sm:$0xf]
        %v4279 = vld [vmem:[%s333 + $0x5c] sm:$0xf]
        %v4304 = vunpack.c.l.b16 %v4256
        %v4305 = vunpack.c.l.b16 %v4257
        %v4306 = vunpack.c.l.b16 %v4258
        %v4307 = vunpack.c.l.b16 %v4259
        %v4308 = vunpack.c.l.b16 %v4260
        %v4309 = vunpack.c.l.b16 %v4261
        %v4310 = vunpack.c.l.b16 %v4262
        %v4311 = vunpack.c.l.b16 %v4263
        %v4312 = vunpack.c.l.b16 %v4264
        %v4313 = vunpack.c.l.b16 %v4265
        %v4314 = vunpack.c.l.b16 %v4266
        %v4315 = vunpack.c.l.b16 %v4267
        %v4316 = vunpack.c.l.b16 %v4268
        %v4317 = vunpack.c.l.b16 %v4269
        %v4318 = vunpack.c.l.b16 %v4270
        %v4319 = vunpack.c.l.b16 %v4271
        %v4320 = vunpack.c.l.b16 %v4272
        %v4321 = vunpack.c.l.b16 %v4273
        %v4322 = vunpack.c.l.b16 %v4274
        %v4323 = vunpack.c.l.b16 %v4275
        %v4324 = vunpack.c.l.b16 %v4276
        %v4325 = vunpack.c.l.b16 %v4277
        %v4326 = vunpack.c.l.b16 %v4278
        %v4327 = vunpack.c.l.b16 %v4279
        %v4328 = vpack.c.b16 %v4305, %v4304
        %v4329 = vpack.c.b16 %v4307, %v4306
        %v4330 = vpack.c.b16 %v4309, %v4308
        %v4331 = vpack.c.b16 %v4311, %v4310
        %v4332 = vpack.c.b16 %v4313, %v4312
        %v4333 = vpack.c.b16 %v4315, %v4314
        %v4334 = vpack.c.b16 %v4317, %v4316
        %v4335 = vpack.c.b16 %v4319, %v4318
        %v4336 = vpack.c.b16 %v4321, %v4320
        %v4337 = vpack.c.b16 %v4323, %v4322
        %v4338 = vpack.c.b16 %v4325, %v4324
        %v4339 = vpack.c.b16 %v4327, %v4326
        %v4341 = vshrl.u32 %v4244, 16
        %v4343 = vrot.slane %v4341, 7
        %v4344 = vshll.u32 %v4244, 16
        %v4346 = vor.u32 %v4343, %v4344
        %v4348 = vshrl.u32 %v4328, 16
        %v4350 = vrot.slane %v4348, 7
        %v4351 = vshll.u32 %v4328, 16
        %v4353 = vor.u32 %v4350, %v4351
        %v4355 = vshrl.u32 %v4245, 16
        %v4357 = vrot.slane %v4355, 7
        %v4358 = vshll.u32 %v4245, 16
        %v4360 = vor.u32 %v4357, %v4358
        %v4362 = vshrl.u32 %v4329, 16
        %v4364 = vrot.slane %v4362, 7
        %v4365 = vshll.u32 %v4329, 16
        %v4367 = vor.u32 %v4364, %v4365
        %v4369 = vshrl.u32 %v4246, 16
        %v4371 = vrot.slane %v4369, 7
        %v4372 = vshll.u32 %v4246, 16
        %v4374 = vor.u32 %v4371, %v4372
        %v4376 = vshrl.u32 %v4330, 16
        %v4378 = vrot.slane %v4376, 7
        %v4379 = vshll.u32 %v4330, 16
        %v4381 = vor.u32 %v4378, %v4379
        %v4383 = vshrl.u32 %v4247, 16
        %v4385 = vrot.slane %v4383, 7
        %v4386 = vshll.u32 %v4247, 16
        %v4388 = vor.u32 %v4385, %v4386
        %v4390 = vshrl.u32 %v4331, 16
        %v4392 = vrot.slane %v4390, 7
        %v4393 = vshll.u32 %v4331, 16
        %v4395 = vor.u32 %v4392, %v4393
        %v4397 = vshrl.u32 %v4248, 16
        %v4399 = vrot.slane %v4397, 7
        %v4400 = vshll.u32 %v4248, 16
        %v4402 = vor.u32 %v4399, %v4400
        %v4404 = vshrl.u32 %v4332, 16
        %v4406 = vrot.slane %v4404, 7
        %v4407 = vshll.u32 %v4332, 16
        %v4409 = vor.u32 %v4406, %v4407
        %v4411 = vshrl.u32 %v4249, 16
        %v4413 = vrot.slane %v4411, 7
        %v4414 = vshll.u32 %v4249, 16
        %v4416 = vor.u32 %v4413, %v4414
        %v4418 = vshrl.u32 %v4333, 16
        %v4420 = vrot.slane %v4418, 7
        %v4421 = vshll.u32 %v4333, 16
        %v4423 = vor.u32 %v4420, %v4421
        %v4425 = vshrl.u32 %v4250, 16
        %v4427 = vrot.slane %v4425, 7
        %v4428 = vshll.u32 %v4250, 16
        %v4430 = vor.u32 %v4427, %v4428
        %v4432 = vshrl.u32 %v4334, 16
        %v4434 = vrot.slane %v4432, 7
        %v4435 = vshll.u32 %v4334, 16
        %v4437 = vor.u32 %v4434, %v4435
        %v4439 = vshrl.u32 %v4251, 16
        %v4441 = vrot.slane %v4439, 7
        %v4442 = vshll.u32 %v4251, 16
        %v4444 = vor.u32 %v4441, %v4442
        %v4446 = vshrl.u32 %v4335, 16
        %v4448 = vrot.slane %v4446, 7
        %v4449 = vshll.u32 %v4335, 16
        %v4451 = vor.u32 %v4448, %v4449
        %v4453 = vshrl.u32 %v4252, 16
        %v4455 = vrot.slane %v4453, 7
        %v4456 = vshll.u32 %v4252, 16
        %v4458 = vor.u32 %v4455, %v4456
        %v4460 = vshrl.u32 %v4336, 16
        %v4462 = vrot.slane %v4460, 7
        %v4463 = vshll.u32 %v4336, 16
        %v4465 = vor.u32 %v4462, %v4463
        %v4467 = vshrl.u32 %v4253, 16
        %v4469 = vrot.slane %v4467, 7
        %v4470 = vshll.u32 %v4253, 16
        %v4472 = vor.u32 %v4469, %v4470
        %v4474 = vshrl.u32 %v4337, 16
        %v4476 = vrot.slane %v4474, 7
        %v4477 = vshll.u32 %v4337, 16
        %v4479 = vor.u32 %v4476, %v4477
        %v4481 = vshrl.u32 %v4254, 16
        %v4483 = vrot.slane %v4481, 7
        %v4484 = vshll.u32 %v4254, 16
        %v4486 = vor.u32 %v4483, %v4484
        %v4488 = vshrl.u32 %v4338, 16
        %v4490 = vrot.slane %v4488, 7
        %v4491 = vshll.u32 %v4338, 16
        %v4493 = vor.u32 %v4490, %v4491
        %v4495 = vshrl.u32 %v4255, 16
        %v4497 = vrot.slane %v4495, 7
        %v4498 = vshll.u32 %v4255, 16
        %v4500 = vor.u32 %v4497, %v4498
        %v4502 = vshrl.u32 %v4339, 16
        %v4504 = vrot.slane %v4502, 7
        %v4505 = vshll.u32 %v4339, 16
        %v4507 = vor.u32 %v4504, %v4505
        %vm4556 = vcmask 1040384
        %vm4557 = vsmask.f32 256
        %vm4558 = vmand %vm4556, %vm4557
        %v4559 = vsel %vm4558, 0, %v4346
        %v4560 = vsel %vm4558, 0, %v4353
        %v4561 = vsel %vm4558, 0, %v4360
        %v4562 = vsel %vm4558, 0, %v4367
        %v4563 = vsel %vm4558, 0, %v4374
        %v4564 = vsel %vm4558, 0, %v4381
        %v4565 = vsel %vm4558, 0, %v4388
        %v4566 = vsel %vm4558, 0, %v4395
        %v4567 = vsel %vm4558, 0, %v4402
        %v4568 = vsel %vm4558, 0, %v4409
        %v4569 = vsel %vm4558, 0, %v4416
        %v4570 = vsel %vm4558, 0, %v4423
        %v4571 = vsel %vm4558, 0, %v4430
        %v4572 = vsel %vm4558, 0, %v4437
        %v4573 = vsel %vm4558, 0, %v4444
        %v4574 = vsel %vm4558, 0, %v4451
        %v4575 = vsel %vm4558, 0, %v4458
        %v4576 = vsel %vm4558, 0, %v4465
        %v4577 = vsel %vm4558, 0, %v4472
        %v4578 = vsel %vm4558, 0, %v4479
        %v4579 = vsel %vm4558, 0, %v4486
        %v4580 = vsel %vm4558, 0, %v4493
        %v4581 = vsel %vm4558, 0, %v4500
        %v4582 = vsel %vm4558, 0, %v4507
        %v4583 = vsel %vm4558, %v4343, 0
        %v4584 = vsel %vm4558, %v4350, 0
        %v4585 = vsel %vm4558, %v4357, 0
        %v4586 = vsel %vm4558, %v4364, 0
        %v4587 = vsel %vm4558, %v4371, 0
        %v4588 = vsel %vm4558, %v4378, 0
        %v4589 = vsel %vm4558, %v4385, 0
        %v4590 = vsel %vm4558, %v4392, 0
        %v4591 = vsel %vm4558, %v4399, 0
        %v4592 = vsel %vm4558, %v4406, 0
        %v4593 = vsel %vm4558, %v4413, 0
        %v4594 = vsel %vm4558, %v4420, 0
        %v4595 = vsel %vm4558, %v4427, 0
        %v4596 = vsel %vm4558, %v4434, 0
        %v4597 = vsel %vm4558, %v4441, 0
        %v4598 = vsel %vm4558, %v4448, 0
        %v4599 = vsel %vm4558, %v4455, 0
        %v4600 = vsel %vm4558, %v4462, 0
        %v4601 = vsel %vm4558, %v4469, 0
        %v4602 = vsel %vm4558, %v4476, 0
        %v4603 = vsel %vm4558, %v4483, 0
        %v4604 = vsel %vm4558, %v4490, 0
        %v4605 = vsel %vm4558, %v4497, 0
        %v4606 = vsel %vm4558, %v4504, 0
        %vm4607 = vsmask.f32 7424
        %v4609 = vshrl.u32 %v4559, 16
        %v4611 = vshll.u32 %v4559, 16
        %v4613 = vrot.slane %v4611, 1
        %v4614 = vor.u32 %v4609, %v4613
        %v4616 = vshll.u32 %v4583, 16
        %v4618 = vrot.slane %v4616, 1
        %v4619 = vsel %vm4607, %v4614, %v4618
        %v4621 = vshrl.u32 %v4560, 16
        %v4623 = vshll.u32 %v4560, 16
        %v4625 = vrot.slane %v4623, 1
        %v4626 = vor.u32 %v4621, %v4625
        %v4628 = vshll.u32 %v4584, 16
        %v4630 = vrot.slane %v4628, 1
        %v4631 = vsel %vm4607, %v4626, %v4630
        %v4633 = vshrl.u32 %v4561, 16
        %v4635 = vshll.u32 %v4561, 16
        %v4637 = vrot.slane %v4635, 1
        %v4638 = vor.u32 %v4633, %v4637
        %v4640 = vshll.u32 %v4585, 16
        %v4642 = vrot.slane %v4640, 1
        %v4643 = vsel %vm4607, %v4638, %v4642
        %v4645 = vshrl.u32 %v4562, 16
        %v4647 = vshll.u32 %v4562, 16
        %v4649 = vrot.slane %v4647, 1
        %v4650 = vor.u32 %v4645, %v4649
        %v4652 = vshll.u32 %v4586, 16
        %v4654 = vrot.slane %v4652, 1
        %v4655 = vsel %vm4607, %v4650, %v4654
        %v4657 = vshrl.u32 %v4563, 16
        %v4659 = vshll.u32 %v4563, 16
        %v4661 = vrot.slane %v4659, 1
        %v4662 = vor.u32 %v4657, %v4661
        %v4664 = vshll.u32 %v4587, 16
        %v4666 = vrot.slane %v4664, 1
        %v4667 = vsel %vm4607, %v4662, %v4666
        %v4669 = vshrl.u32 %v4564, 16
        %v4671 = vshll.u32 %v4564, 16
        %v4673 = vrot.slane %v4671, 1
        %v4674 = vor.u32 %v4669, %v4673
        %v4676 = vshll.u32 %v4588, 16
        %v4678 = vrot.slane %v4676, 1
        %v4679 = vsel %vm4607, %v4674, %v4678
        %v4681 = vshrl.u32 %v4565, 16
        %v4683 = vshll.u32 %v4565, 16
        %v4685 = vrot.slane %v4683, 1
        %v4686 = vor.u32 %v4681, %v4685
        %v4688 = vshll.u32 %v4589, 16
        %v4690 = vrot.slane %v4688, 1
        %v4691 = vsel %vm4607, %v4686, %v4690
        %v4693 = vshrl.u32 %v4566, 16
        %v4695 = vshll.u32 %v4566, 16
        %v4697 = vrot.slane %v4695, 1
        %v4698 = vor.u32 %v4693, %v4697
        %v4700 = vshll.u32 %v4590, 16
        %v4702 = vrot.slane %v4700, 1
        %v4703 = vsel %vm4607, %v4698, %v4702
        %v4705 = vshrl.u32 %v4567, 16
        %v4707 = vshll.u32 %v4567, 16
        %v4709 = vrot.slane %v4707, 1
        %v4710 = vor.u32 %v4705, %v4709
        %v4712 = vshll.u32 %v4591, 16
        %v4714 = vrot.slane %v4712, 1
        %v4715 = vsel %vm4607, %v4710, %v4714
        %v4717 = vshrl.u32 %v4568, 16
        %v4719 = vshll.u32 %v4568, 16
        %v4721 = vrot.slane %v4719, 1
        %v4722 = vor.u32 %v4717, %v4721
        %v4724 = vshll.u32 %v4592, 16
        %v4726 = vrot.slane %v4724, 1
        %v4727 = vsel %vm4607, %v4722, %v4726
        %v4729 = vshrl.u32 %v4569, 16
        %v4731 = vshll.u32 %v4569, 16
        %v4733 = vrot.slane %v4731, 1
        %v4734 = vor.u32 %v4729, %v4733
        %v4736 = vshll.u32 %v4593, 16
        %v4738 = vrot.slane %v4736, 1
        %v4739 = vsel %vm4607, %v4734, %v4738
        %v4741 = vshrl.u32 %v4570, 16
        %v4743 = vshll.u32 %v4570, 16
        %v4745 = vrot.slane %v4743, 1
        %v4746 = vor.u32 %v4741, %v4745
        %v4748 = vshll.u32 %v4594, 16
        %v4750 = vrot.slane %v4748, 1
        %v4751 = vsel %vm4607, %v4746, %v4750
        %v4753 = vshrl.u32 %v4571, 16
        %v4755 = vshll.u32 %v4571, 16
        %v4757 = vrot.slane %v4755, 1
        %v4758 = vor.u32 %v4753, %v4757
        %v4760 = vshll.u32 %v4595, 16
        %v4762 = vrot.slane %v4760, 1
        %v4763 = vsel %vm4607, %v4758, %v4762
        %v4765 = vshrl.u32 %v4572, 16
        %v4767 = vshll.u32 %v4572, 16
        %v4769 = vrot.slane %v4767, 1
        %v4770 = vor.u32 %v4765, %v4769
        %v4772 = vshll.u32 %v4596, 16
        %v4774 = vrot.slane %v4772, 1
        %v4775 = vsel %vm4607, %v4770, %v4774
        %v4777 = vshrl.u32 %v4573, 16
        %v4779 = vshll.u32 %v4573, 16
        %v4781 = vrot.slane %v4779, 1
        %v4782 = vor.u32 %v4777, %v4781
        %v4784 = vshll.u32 %v4597, 16
        %v4786 = vrot.slane %v4784, 1
        %v4787 = vsel %vm4607, %v4782, %v4786
        %v4789 = vshrl.u32 %v4574, 16
        %v4791 = vshll.u32 %v4574, 16
        %v4793 = vrot.slane %v4791, 1
        %v4794 = vor.u32 %v4789, %v4793
        %v4796 = vshll.u32 %v4598, 16
        %v4798 = vrot.slane %v4796, 1
        %v4799 = vsel %vm4607, %v4794, %v4798
        %v4801 = vshrl.u32 %v4575, 16
        %v4803 = vshll.u32 %v4575, 16
        %v4805 = vrot.slane %v4803, 1
        %v4806 = vor.u32 %v4801, %v4805
        %v4808 = vshll.u32 %v4599, 16
        %v4810 = vrot.slane %v4808, 1
        %v4811 = vsel %vm4607, %v4806, %v4810
        %v4813 = vshrl.u32 %v4576, 16
        %v4815 = vshll.u32 %v4576, 16
        %v4817 = vrot.slane %v4815, 1
        %v4818 = vor.u32 %v4813, %v4817
        %v4820 = vshll.u32 %v4600, 16
        %v4822 = vrot.slane %v4820, 1
        %v4823 = vsel %vm4607, %v4818, %v4822
        %v4825 = vshrl.u32 %v4577, 16
        %v4827 = vshll.u32 %v4577, 16
        %v4829 = vrot.slane %v4827, 1
        %v4830 = vor.u32 %v4825, %v4829
        %v4832 = vshll.u32 %v4601, 16
        %v4834 = vrot.slane %v4832, 1
        %v4835 = vsel %vm4607, %v4830, %v4834
        %v4837 = vshrl.u32 %v4578, 16
        %v4839 = vshll.u32 %v4578, 16
        %v4841 = vrot.slane %v4839, 1
        %v4842 = vor.u32 %v4837, %v4841
        %v4844 = vshll.u32 %v4602, 16
        %v4846 = vrot.slane %v4844, 1
        %v4847 = vsel %vm4607, %v4842, %v4846
        %vm4908 = vcmask 1046528
        %v4909 = vrot.slane %v4559, 1
        %v4910 = vrot.slane %v4583, 1
        %v4911 = vsel %vm4908, %v4909, %v4910
        %v4912 = vrot.slane %v4560, 1
        %v4913 = vrot.slane %v4584, 1
        %v4914 = vsel %vm4908, %v4912, %v4913
        %v4915 = vrot.slane %v4561, 1
        %v4916 = vrot.slane %v4585, 1
        %v4917 = vsel %vm4908, %v4915, %v4916
        %v4918 = vrot.slane %v4562, 1
        %v4919 = vrot.slane %v4586, 1
        %v4920 = vsel %vm4908, %v4918, %v4919
        %v4921 = vrot.slane %v4563, 1
        %v4922 = vrot.slane %v4587, 1
        %v4923 = vsel %vm4908, %v4921, %v4922
        %v4924 = vrot.slane %v4564, 1
        %v4925 = vrot.slane %v4588, 1
        %v4926 = vsel %vm4908, %v4924, %v4925
        %v4927 = vrot.slane %v4565, 1
        %v4928 = vrot.slane %v4589, 1
        %v4929 = vsel %vm4908, %v4927, %v4928
        %v4930 = vrot.slane %v4566, 1
        %v4931 = vrot.slane %v4590, 1
        %v4932 = vsel %vm4908, %v4930, %v4931
        %v4933 = vrot.slane %v4567, 1
        %v4934 = vrot.slane %v4591, 1
        %v4935 = vsel %vm4908, %v4933, %v4934
        %v4936 = vrot.slane %v4568, 1
        %v4937 = vrot.slane %v4592, 1
        %v4938 = vsel %vm4908, %v4936, %v4937
        %v4939 = vrot.slane %v4569, 1
        %v4940 = vrot.slane %v4593, 1
        %v4941 = vsel %vm4908, %v4939, %v4940
        %v4942 = vrot.slane %v4570, 1
        %v4943 = vrot.slane %v4594, 1
        %v4944 = vsel %vm4908, %v4942, %v4943
        %v4945 = vrot.slane %v4571, 1
        %v4946 = vrot.slane %v4595, 1
        %v4947 = vsel %vm4908, %v4945, %v4946
        %v4948 = vrot.slane %v4572, 1
        %v4949 = vrot.slane %v4596, 1
        %v4950 = vsel %vm4908, %v4948, %v4949
        %v4951 = vrot.slane %v4573, 1
        %v4952 = vrot.slane %v4597, 1
        %v4953 = vsel %vm4908, %v4951, %v4952
        %v4954 = vrot.slane %v4574, 1
        %v4955 = vrot.slane %v4598, 1
        %v4956 = vsel %vm4908, %v4954, %v4955
        %v4957 = vrot.slane %v4575, 1
        %v4958 = vrot.slane %v4599, 1
        %v4959 = vsel %vm4908, %v4957, %v4958
        %v4960 = vrot.slane %v4576, 1
        %v4961 = vrot.slane %v4600, 1
        %v4962 = vsel %vm4908, %v4960, %v4961
        %v4963 = vrot.slane %v4577, 1
        %v4964 = vrot.slane %v4601, 1
        %v4965 = vsel %vm4908, %v4963, %v4964
        %v4966 = vrot.slane %v4578, 1
        %v4967 = vrot.slane %v4602, 1
        %v4968 = vsel %vm4908, %v4966, %v4967
        %v4989 = vld [vmem:[#allocation8] sm:$0xf]
        %v4990 = vld [vmem:[#allocation8 + $0x4] sm:$0xf]
        %v4991 = vld [vmem:[#allocation8 + $0x8] sm:$0xf]
        %v4992 = vld [vmem:[#allocation8 + $0xc] sm:$0xf]
        %v4993 = vld [vmem:[#allocation8 + $0x10] sm:$0xf]
        %v4994 = vld [vmem:[#allocation8 + $0x14] sm:$0xf]
        %v4995 = vld [vmem:[#allocation8 + $0x18] sm:$0xf]
        %v4996 = vld [vmem:[#allocation8 + $0x1c] sm:$0xf]
        %v4997 = vld [vmem:[#allocation8 + $0x20] sm:$0xf]
        %v4998 = vld [vmem:[#allocation8 + $0x24] sm:$0xf]
        %v4999 = vld [vmem:[#allocation8 + $0x28] sm:$0xf]
        %v5000 = vld [vmem:[#allocation8 + $0x2c] sm:$0xf]
        %v5001 = vld [vmem:[#allocation8 + $0x30] sm:$0xf]
        %v5002 = vld [vmem:[#allocation8 + $0x34] sm:$0xf]
        %v5003 = vld [vmem:[#allocation8 + $0x38] sm:$0xf]
        %v5004 = vld [vmem:[#allocation8 + $0x3c] sm:$0xf]
        %v5005 = vld [vmem:[#allocation8 + $0x40] sm:$0xf]
        %v5006 = vld [vmem:[#allocation8 + $0x44] sm:$0xf]
        %v5007 = vld [vmem:[#allocation8 + $0x48] sm:$0xf]
        %v5008 = vld [vmem:[#allocation8 + $0x4c] sm:$0xf]
        %v5009 = vld [vmem:[#allocation8 + $0x50] sm:$0xf]
        %v5010 = vld [vmem:[#allocation8 + $0x54] sm:$0xf]
        %v5011 = vld [vmem:[#allocation8 + $0x58] sm:$0xf]
        %v5012 = vld [vmem:[#allocation8 + $0x5c] sm:$0xf]
        %v5013 = vld [vmem:[#allocation8 + $0x60] sm:$0xf]
        %v5014 = vld [vmem:[#allocation8 + $0x64] sm:$0xf]
        %v5015 = vld [vmem:[#allocation8 + $0x68] sm:$0xf]
        %v5016 = vld [vmem:[#allocation8 + $0x6c] sm:$0xf]
        %v5017 = vld [vmem:[#allocation8 + $0x70] sm:$0xf]
        %v5018 = vld [vmem:[#allocation8 + $0x74] sm:$0xf]
        %v5019 = vld [vmem:[#allocation8 + $0x78] sm:$0xf]
        %v5020 = vld [vmem:[#allocation8 + $0x7c] sm:$0xf]
        %v5021 = vld [vmem:[#allocation8 + $0x80] sm:$0xf]
        %v5022 = vld [vmem:[#allocation8 + $0x84] sm:$0xf]
        %v5023 = vld [vmem:[#allocation8 + $0x88] sm:$0xf]
        %v5024 = vld [vmem:[#allocation8 + $0x8c] sm:$0xf]
        %v5025 = vld [vmem:[#allocation8 + $0x90] sm:$0xf]
        %v5026 = vld [vmem:[#allocation8 + $0x94] sm:$0xf]
        %v5027 = vld [vmem:[#allocation8 + $0x98] sm:$0xf]
        %v5028 = vld [vmem:[#allocation8 + $0x9c] sm:$0xf]
        %v5029 = vld [vmem:[#allocation8 + $0xa0] sm:$0xf]
        %v5030 = vld [vmem:[#allocation8 + $0xa4] sm:$0xf]
        %v5031 = vld [vmem:[#allocation8 + $0xa8] sm:$0xf]
        %v5032 = vld [vmem:[#allocation8 + $0xac] sm:$0xf]
        %v5033 = vld [vmem:[#allocation8 + $0xb0] sm:$0xf]
        %v5034 = vld [vmem:[#allocation8 + $0xb4] sm:$0xf]
        %v5035 = vld [vmem:[#allocation8 + $0xb8] sm:$0xf]
        %v5036 = vld [vmem:[#allocation8 + $0xbc] sm:$0xf]
        %v5037 = vld [vmem:[#allocation8 + $0xc0] sm:$0xf]
        %v5038 = vld [vmem:[#allocation8 + $0xc4] sm:$0xf]
        %v5039 = vld [vmem:[#allocation8 + $0xc8] sm:$0xf]
        %v5040 = vld [vmem:[#allocation8 + $0xcc] sm:$0xf]
        %v5041 = vld [vmem:[#allocation8 + $0xd0] sm:$0xf]
        %v5042 = vld [vmem:[#allocation8 + $0xd4] sm:$0xf]
        %v5043 = vld [vmem:[#allocation8 + $0xd8] sm:$0xf]
        %v5044 = vld [vmem:[#allocation8 + $0xdc] sm:$0xf]
        %v5045 = vld [vmem:[#allocation8 + $0xe0] sm:$0xf]
        %v5046 = vld [vmem:[#allocation8 + $0xe4] sm:$0xf]
        %v5047 = vld [vmem:[#allocation8 + $0xe8] sm:$0xf]
        %v5048 = vld [vmem:[#allocation8 + $0xec] sm:$0xf]
        %v5049 = vld [vmem:[#allocation8 + $0xf0] sm:$0xf]
        %v5050 = vld [vmem:[#allocation8 + $0xf4] sm:$0xf]
        %v5051 = vld [vmem:[#allocation8 + $0xf8] sm:$0xf]
        %v5052 = vld [vmem:[#allocation8 + $0xfc] sm:$0xf]
        %v5053 = vld [vmem:[#allocation8 + $0x100] sm:$0xf]
        %v5054 = vld [vmem:[#allocation8 + $0x104] sm:$0xf]
        %v5055 = vld [vmem:[#allocation8 + $0x108] sm:$0xf]
        %v5056 = vld [vmem:[#allocation8 + $0x10c] sm:$0xf]
        %v5057 = vld [vmem:[#allocation8 + $0x110] sm:$0xf]
        %v5058 = vld [vmem:[#allocation8 + $0x114] sm:$0xf]
        %v5059 = vld [vmem:[#allocation8 + $0x118] sm:$0xf]
        %v5060 = vld [vmem:[#allocation8 + $0x11c] sm:$0xf]
        %v5061 = vld [vmem:[#allocation8 + $0x120] sm:$0xf]
        %v5062 = vld [vmem:[#allocation8 + $0x124] sm:$0xf]
        %v5063 = vld [vmem:[#allocation8 + $0x128] sm:$0xf]
        %v5064 = vld [vmem:[#allocation8 + $0x12c] sm:$0xf]
        %v5065 = vld [vmem:[#allocation8 + $0x130] sm:$0xf]
        %v5066 = vld [vmem:[#allocation8 + $0x134] sm:$0xf]
        %v5067 = vld [vmem:[#allocation8 + $0x138] sm:$0xf]
        %v5068 = vld [vmem:[#allocation8 + $0x13c] sm:$0xf]
        %v5069 = vld [vmem:[#allocation8 + $0x140] sm:$0xf]
        %v5070 = vld [vmem:[#allocation8 + $0x144] sm:$0xf]
        %v5071 = vld [vmem:[#allocation8 + $0x148] sm:$0xf]
        %v5072 = vld [vmem:[#allocation8 + $0x14c] sm:$0xf]
        %v5073 = vld [vmem:[#allocation8 + $0x150] sm:$0xf]
        %v5074 = vld [vmem:[#allocation8 + $0x154] sm:$0xf]
        %v5075 = vld [vmem:[#allocation8 + $0x158] sm:$0xf]
        %v5076 = vld [vmem:[#allocation8 + $0x15c] sm:$0xf]
        %v5077 = vld [vmem:[#allocation8 + $0x160] sm:$0xf]
        %v5078 = vld [vmem:[#allocation8 + $0x164] sm:$0xf]
        %v5079 = vld [vmem:[#allocation8 + $0x168] sm:$0xf]
        %v5080 = vld [vmem:[#allocation8 + $0x16c] sm:$0xf]
        %v5081 = vld [vmem:[#allocation8 + $0x170] sm:$0xf]
        %v5082 = vld [vmem:[#allocation8 + $0x174] sm:$0xf]
        %v5083 = vld [vmem:[#allocation8 + $0x178] sm:$0xf]
        %v5084 = vld [vmem:[#allocation8 + $0x17c] sm:$0xf]
        %v5086 = vshrl.u32 %v4579, 16
        %v5088 = vshll.u32 %v4579, 16
        %v5090 = vrot.slane %v5088, 1
        %v5091 = vor.u32 %v5086, %v5090
        %v5093 = vshll.u32 %v4603, 16
        %v5095 = vrot.slane %v5093, 1
        %v5096 = vsel %vm4607, %v5091, %v5095
        %v5098 = vshrl.u32 %v4580, 16
        %v5100 = vshll.u32 %v4580, 16
        %v5102 = vrot.slane %v5100, 1
        %v5103 = vor.u32 %v5098, %v5102
        %v5105 = vshll.u32 %v4604, 16
        %v5107 = vrot.slane %v5105, 1
        %v5108 = vsel %vm4607, %v5103, %v5107
        %v5115 = vrot.slane %v4579, 1
        %v5116 = vrot.slane %v4603, 1
        %v5117 = vsel %vm4908, %v5115, %v5116
        %v5118 = vrot.slane %v4580, 1
        %v5119 = vrot.slane %v4604, 1
        %v5120 = vsel %vm4908, %v5118, %v5119
        %s5123 = scalar_lea.vmem [#allocation8], 384
        %v5124 = vld [vmem:[%s5123] sm:$0xf]
        %v5125 = vld [vmem:[%s5123 + $0x4] sm:$0xf]
        %v5126 = vld [vmem:[%s5123 + $0x8] sm:$0xf]
        %v5127 = vld [vmem:[%s5123 + $0xc] sm:$0xf]
        %v5128 = vld [vmem:[%s5123 + $0x10] sm:$0xf]
        %v5129 = vld [vmem:[%s5123 + $0x14] sm:$0xf]
        %v5130 = vld [vmem:[%s5123 + $0x18] sm:$0xf]
        %v5131 = vld [vmem:[%s5123 + $0x1c] sm:$0xf]
        %v5132 = vld [vmem:[%s5123 + $0x20] sm:$0xf]
        %v5133 = vld [vmem:[%s5123 + $0x24] sm:$0xf]
        %v5134 = vld [vmem:[%s5123 + $0x28] sm:$0xf]
        %v5135 = vld [vmem:[%s5123 + $0x2c] sm:$0xf]
        %v5136 = vld [vmem:[%s5123 + $0x30] sm:$0xf]
        %v5137 = vld [vmem:[%s5123 + $0x34] sm:$0xf]
        %v5138 = vld [vmem:[%s5123 + $0x38] sm:$0xf]
        %v5139 = vld [vmem:[%s5123 + $0x3c] sm:$0xf]
        %v5140 = vld [vmem:[%s5123 + $0x40] sm:$0xf]
        %v5141 = vld [vmem:[%s5123 + $0x44] sm:$0xf]
        %v5142 = vld [vmem:[%s5123 + $0x48] sm:$0xf]
        %v5143 = vld [vmem:[%s5123 + $0x4c] sm:$0xf]
        %v5144 = vld [vmem:[%s5123 + $0x50] sm:$0xf]
        %v5145 = vld [vmem:[%s5123 + $0x54] sm:$0xf]
        %v5146 = vld [vmem:[%s5123 + $0x58] sm:$0xf]
        %v5147 = vld [vmem:[%s5123 + $0x5c] sm:$0xf]
        %v5148 = vld [vmem:[%s5123 + $0x60] sm:$0xf]
        %v5149 = vld [vmem:[%s5123 + $0x64] sm:$0xf]
        %v5150 = vld [vmem:[%s5123 + $0x68] sm:$0xf]
        %v5151 = vld [vmem:[%s5123 + $0x6c] sm:$0xf]
        %v5152 = vld [vmem:[%s5123 + $0x70] sm:$0xf]
        %v5153 = vld [vmem:[%s5123 + $0x74] sm:$0xf]
        %v5154 = vld [vmem:[%s5123 + $0x78] sm:$0xf]
        %v5155 = vld [vmem:[%s5123 + $0x7c] sm:$0xf]
        %v5156 = vld [vmem:[%s5123 + $0x80] sm:$0xf]
        %v5157 = vld [vmem:[%s5123 + $0x84] sm:$0xf]
        %v5158 = vld [vmem:[%s5123 + $0x88] sm:$0xf]
        %v5159 = vld [vmem:[%s5123 + $0x8c] sm:$0xf]
        %v5160 = vld [vmem:[%s5123 + $0x90] sm:$0xf]
        %v5161 = vld [vmem:[%s5123 + $0x94] sm:$0xf]
        %v5162 = vld [vmem:[%s5123 + $0x98] sm:$0xf]
        %v5163 = vld [vmem:[%s5123 + $0x9c] sm:$0xf]
        %v5164 = vld [vmem:[%s5123 + $0xa0] sm:$0xf]
        %v5165 = vld [vmem:[%s5123 + $0xa4] sm:$0xf]
        %v5166 = vld [vmem:[%s5123 + $0xa8] sm:$0xf]
        %v5167 = vld [vmem:[%s5123 + $0xac] sm:$0xf]
        %v5168 = vld [vmem:[%s5123 + $0xb0] sm:$0xf]
        %v5169 = vld [vmem:[%s5123 + $0xb4] sm:$0xf]
        %v5170 = vld [vmem:[%s5123 + $0xb8] sm:$0xf]
        %v5171 = vld [vmem:[%s5123 + $0xbc] sm:$0xf]
        %v5172 = vld [vmem:[%s5123 + $0xc0] sm:$0xf]
        %v5173 = vld [vmem:[%s5123 + $0xc4] sm:$0xf]
        %v5174 = vld [vmem:[%s5123 + $0xc8] sm:$0xf]
        %v5175 = vld [vmem:[%s5123 + $0xcc] sm:$0xf]
        %v5176 = vld [vmem:[%s5123 + $0xd0] sm:$0xf]
        %v5177 = vld [vmem:[%s5123 + $0xd4] sm:$0xf]
        %v5178 = vld [vmem:[%s5123 + $0xd8] sm:$0xf]
        %v5179 = vld [vmem:[%s5123 + $0xdc] sm:$0xf]
        %v5180 = vld [vmem:[%s5123 + $0xe0] sm:$0xf]
        %v5181 = vld [vmem:[%s5123 + $0xe4] sm:$0xf]
        %v5182 = vld [vmem:[%s5123 + $0xe8] sm:$0xf]
        %v5183 = vld [vmem:[%s5123 + $0xec] sm:$0xf]
        %v5184 = vld [vmem:[%s5123 + $0xf0] sm:$0xf]
        %v5185 = vld [vmem:[%s5123 + $0xf4] sm:$0xf]
        %v5186 = vld [vmem:[%s5123 + $0xf8] sm:$0xf]
        %v5187 = vld [vmem:[%s5123 + $0xfc] sm:$0xf]
        %v5188 = vld [vmem:[%s5123 + $0x100] sm:$0xf]
        %v5189 = vld [vmem:[%s5123 + $0x104] sm:$0xf]
        %v5190 = vld [vmem:[%s5123 + $0x108] sm:$0xf]
        %v5191 = vld [vmem:[%s5123 + $0x10c] sm:$0xf]
        %v5192 = vld [vmem:[%s5123 + $0x110] sm:$0xf]
        %v5193 = vld [vmem:[%s5123 + $0x114] sm:$0xf]
        %v5194 = vld [vmem:[%s5123 + $0x118] sm:$0xf]
        %v5195 = vld [vmem:[%s5123 + $0x11c] sm:$0xf]
        %v5196 = vld [vmem:[%s5123 + $0x120] sm:$0xf]
        %v5197 = vld [vmem:[%s5123 + $0x124] sm:$0xf]
        %v5198 = vld [vmem:[%s5123 + $0x128] sm:$0xf]
        %v5199 = vld [vmem:[%s5123 + $0x12c] sm:$0xf]
        %v5200 = vld [vmem:[%s5123 + $0x130] sm:$0xf]
        %v5201 = vld [vmem:[%s5123 + $0x134] sm:$0xf]
        %v5202 = vld [vmem:[%s5123 + $0x138] sm:$0xf]
        %v5203 = vld [vmem:[%s5123 + $0x13c] sm:$0xf]
        %v5204 = vld [vmem:[%s5123 + $0x140] sm:$0xf]
        %v5205 = vld [vmem:[%s5123 + $0x144] sm:$0xf]
        %v5206 = vld [vmem:[%s5123 + $0x148] sm:$0xf]
        %v5207 = vld [vmem:[%s5123 + $0x14c] sm:$0xf]
        %v5208 = vld [vmem:[%s5123 + $0x150] sm:$0xf]
        %v5209 = vld [vmem:[%s5123 + $0x154] sm:$0xf]
        %v5210 = vld [vmem:[%s5123 + $0x158] sm:$0xf]
        %v5211 = vld [vmem:[%s5123 + $0x15c] sm:$0xf]
        %v5212 = vld [vmem:[%s5123 + $0x160] sm:$0xf]
        %v5213 = vld [vmem:[%s5123 + $0x164] sm:$0xf]
        %v5214 = vld [vmem:[%s5123 + $0x168] sm:$0xf]
        %v5215 = vld [vmem:[%s5123 + $0x16c] sm:$0xf]
        %v5216 = vld [vmem:[%s5123 + $0x170] sm:$0xf]
        %v5217 = vld [vmem:[%s5123 + $0x174] sm:$0xf]
        %v5218 = vld [vmem:[%s5123 + $0x178] sm:$0xf]
        %v5219 = vld [vmem:[%s5123 + $0x17c] sm:$0xf]
        %v5316 = vunpack.c.l.b16 %v5124
        %v5317 = vunpack.c.l.b16 %v5125
        %v5318 = vunpack.c.l.b16 %v5126
        %v5319 = vunpack.c.l.b16 %v5127
        %v5320 = vunpack.c.l.b16 %v5128
        %v5321 = vunpack.c.l.b16 %v5129
        %v5322 = vunpack.c.l.b16 %v5130
        %v5323 = vunpack.c.l.b16 %v5131
        %v5324 = vunpack.c.l.b16 %v5132
        %v5325 = vunpack.c.l.b16 %v5133
        %v5326 = vunpack.c.l.b16 %v5134
        %v5327 = vunpack.c.l.b16 %v5135
        %v5328 = vunpack.c.l.b16 %v5136
        %v5329 = vunpack.c.l.b16 %v5137
        %v5330 = vunpack.c.l.b16 %v5138
        %v5331 = vunpack.c.l.b16 %v5139
        %v5332 = vunpack.c.l.b16 %v5140
        %v5333 = vunpack.c.l.b16 %v5141
        %v5334 = vunpack.c.l.b16 %v5142
        %v5335 = vunpack.c.l.b16 %v5143
        %v5336 = vunpack.c.l.b16 %v5144
        %v5337 = vunpack.c.l.b16 %v5145
        %v5338 = vunpack.c.l.b16 %v5146
        %v5339 = vunpack.c.l.b16 %v5147
        %v5340 = vunpack.c.l.b16 %v5148
        %v5341 = vunpack.c.l.b16 %v5149
        %v5342 = vunpack.c.l.b16 %v5150
        %v5343 = vunpack.c.l.b16 %v5151
        %v5344 = vunpack.c.l.b16 %v5152
        %v5345 = vunpack.c.l.b16 %v5153
        %v5346 = vunpack.c.l.b16 %v5154
        %v5347 = vunpack.c.l.b16 %v5155
        %v5348 = vunpack.c.l.b16 %v5156
        %v5349 = vunpack.c.l.b16 %v5157
        %v5350 = vunpack.c.l.b16 %v5158
        %v5351 = vunpack.c.l.b16 %v5159
        %v5352 = vunpack.c.l.b16 %v5160
        %v5353 = vunpack.c.l.b16 %v5161
        %v5354 = vunpack.c.l.b16 %v5162
        %v5355 = vunpack.c.l.b16 %v5163
        %v5356 = vunpack.c.l.b16 %v5164
        %v5357 = vunpack.c.l.b16 %v5165
        %v5358 = vunpack.c.l.b16 %v5166
        %v5359 = vunpack.c.l.b16 %v5167
        %v5360 = vunpack.c.l.b16 %v5168
        %v5361 = vunpack.c.l.b16 %v5169
        %v5362 = vunpack.c.l.b16 %v5170
        %v5363 = vunpack.c.l.b16 %v5171
        %v5364 = vunpack.c.l.b16 %v5172
        %v5365 = vunpack.c.l.b16 %v5173
        %v5366 = vunpack.c.l.b16 %v5174
        %v5367 = vunpack.c.l.b16 %v5175
        %v5368 = vunpack.c.l.b16 %v5176
        %v5369 = vunpack.c.l.b16 %v5177
        %v5370 = vunpack.c.l.b16 %v5178
        %v5371 = vunpack.c.l.b16 %v5179
        %v5372 = vunpack.c.l.b16 %v5180
        %v5373 = vunpack.c.l.b16 %v5181
        %v5374 = vunpack.c.l.b16 %v5182
        %v5375 = vunpack.c.l.b16 %v5183
        %v5376 = vunpack.c.l.b16 %v5184
        %v5377 = vunpack.c.l.b16 %v5185
        %v5378 = vunpack.c.l.b16 %v5186
        %v5379 = vunpack.c.l.b16 %v5187
        %v5380 = vunpack.c.l.b16 %v5188
        %v5381 = vunpack.c.l.b16 %v5189
        %v5382 = vunpack.c.l.b16 %v5190
        %v5383 = vunpack.c.l.b16 %v5191
        %v5384 = vunpack.c.l.b16 %v5192
        %v5385 = vunpack.c.l.b16 %v5193
        %v5386 = vunpack.c.l.b16 %v5194
        %v5387 = vunpack.c.l.b16 %v5195
        %v5388 = vunpack.c.l.b16 %v5196
        %v5389 = vunpack.c.l.b16 %v5197
        %v5390 = vunpack.c.l.b16 %v5198
        %v5391 = vunpack.c.l.b16 %v5199
        %v5392 = vunpack.c.l.b16 %v5200
        %v5393 = vunpack.c.l.b16 %v5201
        %v5394 = vunpack.c.l.b16 %v5202
        %v5395 = vunpack.c.l.b16 %v5203
        %v5396 = vunpack.c.l.b16 %v5204
        %v5397 = vunpack.c.l.b16 %v5205
        %v5398 = vunpack.c.l.b16 %v5206
        %v5399 = vunpack.c.l.b16 %v5207
        %v5400 = vunpack.c.l.b16 %v5208
        %v5401 = vunpack.c.l.b16 %v5209
        %v5402 = vunpack.c.l.b16 %v5210
        %v5403 = vunpack.c.l.b16 %v5211
        %v5404 = vunpack.c.l.b16 %v5212
        %v5405 = vunpack.c.l.b16 %v5213
        %v5406 = vunpack.c.l.b16 %v5214
        %v5407 = vunpack.c.l.b16 %v5215
        %v5408 = vunpack.c.l.b16 %v5216
        %v5409 = vunpack.c.l.b16 %v5217
        %v5410 = vunpack.c.l.b16 %v5218
        %v5411 = vunpack.c.l.b16 %v5219
        %v5412 = vpack.c.b16 %v5317, %v5316
        %v5413 = vpack.c.b16 %v5319, %v5318
        %v5414 = vpack.c.b16 %v5321, %v5320
        %v5415 = vpack.c.b16 %v5323, %v5322
        %v5416 = vpack.c.b16 %v5325, %v5324
        %v5417 = vpack.c.b16 %v5327, %v5326
        %v5418 = vpack.c.b16 %v5329, %v5328
        %v5419 = vpack.c.b16 %v5331, %v5330
        %v5420 = vpack.c.b16 %v5333, %v5332
        %v5421 = vpack.c.b16 %v5335, %v5334
        %v5422 = vpack.c.b16 %v5337, %v5336
        %v5423 = vpack.c.b16 %v5339, %v5338
        %v5424 = vpack.c.b16 %v5341, %v5340
        %v5425 = vpack.c.b16 %v5343, %v5342
        %v5426 = vpack.c.b16 %v5345, %v5344
        %v5427 = vpack.c.b16 %v5347, %v5346
        %v5428 = vpack.c.b16 %v5349, %v5348
        %v5429 = vpack.c.b16 %v5351, %v5350
        %v5430 = vpack.c.b16 %v5353, %v5352
        %v5431 = vpack.c.b16 %v5355, %v5354
        %v5432 = vpack.c.b16 %v5357, %v5356
        %v5433 = vpack.c.b16 %v5359, %v5358
        %v5434 = vpack.c.b16 %v5361, %v5360
        %v5435 = vpack.c.b16 %v5363, %v5362
        %v5436 = vpack.c.b16 %v5365, %v5364
        %v5437 = vpack.c.b16 %v5367, %v5366
        %v5438 = vpack.c.b16 %v5369, %v5368
        %v5439 = vpack.c.b16 %v5371, %v5370
        %v5440 = vpack.c.b16 %v5373, %v5372
        %v5441 = vpack.c.b16 %v5375, %v5374
        %v5442 = vpack.c.b16 %v5377, %v5376
        %v5443 = vpack.c.b16 %v5379, %v5378
        %v5444 = vpack.c.b16 %v5381, %v5380
        %v5445 = vpack.c.b16 %v5383, %v5382
        %v5446 = vpack.c.b16 %v5385, %v5384
        %v5447 = vpack.c.b16 %v5387, %v5386
        %v5448 = vpack.c.b16 %v5389, %v5388
        %v5449 = vpack.c.b16 %v5391, %v5390
        %v5450 = vpack.c.b16 %v5393, %v5392
        %v5451 = vpack.c.b16 %v5395, %v5394
        %v5452 = vpack.c.b16 %v5397, %v5396
        %v5453 = vpack.c.b16 %v5399, %v5398
        %v5454 = vpack.c.b16 %v5401, %v5400
        %v5455 = vpack.c.b16 %v5403, %v5402
        %v5456 = vpack.c.b16 %v5405, %v5404
        %v5457 = vpack.c.b16 %v5407, %v5406
        %v5458 = vpack.c.b16 %v5409, %v5408
        %v5459 = vpack.c.b16 %v5411, %v5410
        %5508 = vmatprep.subr.bf16.mxu0 0
        %5509 = vmatpush1.bf16.msra.mxu0 %v5412
        %5510 = vmatprep.subr.bf16.mxu0 0
        %5511 = vmatpush1.bf16.msra.mxu0 %v5413
        %5512 = vmatprep.subr.bf16.mxu0 0
        %5513 = vmatpush1.bf16.msra.mxu0 %v5414
        %5514 = vmatprep.subr.bf16.mxu0 0
        %5515 = vmatpush1.bf16.msra.mxu0 %v5415
        %5516 = vmatprep.subr.bf16.mxu0 0
        %5517 = vmatpush1.bf16.msra.mxu0 %v5416
        %5518 = vmatprep.subr.bf16.mxu0 0
        %5519 = vmatpush1.bf16.msra.mxu0 %v5417
        %5520 = vmatprep.subr.bf16.mxu0 0
        %5521 = vmatpush1.bf16.msra.mxu0 %v5418
        %5522 = vmatprep.subr.bf16.mxu0 0
        %5523 = vmatpush1.bf16.msra.mxu0 %v5419
        %5524 = vmatprep.subr.bf16.mxu0 0
        %5525 = vmatpush1.bf16.msra.mxu0 %v5420
        %5526 = vmatprep.subr.bf16.mxu0 0
        %5527 = vmatpush1.bf16.msra.mxu0 %v5421
        %5528 = vmatprep.subr.bf16.mxu0 0
        %5529 = vmatpush1.bf16.msra.mxu0 %v5422
        %5530 = vmatprep.subr.bf16.mxu0 0
        %5531 = vmatpush1.bf16.msra.mxu0 %v5423
        %5532 = vmatprep.subr.bf16.mxu0 0
        %5533 = vmatpush1.bf16.msra.mxu0 %v5424
        %5534 = vmatprep.subr.bf16.mxu0 0
        %5535 = vmatpush1.bf16.msra.mxu0 %v5425
        %5536 = vmatprep.subr.bf16.mxu0 0
        %5537 = vmatpush1.bf16.msra.mxu0 %v5426
        %5538 = vmatprep.subr.bf16.mxu0 0
        %5539 = vmatpush1.bf16.msra.mxu0 %v5427
        %5540 = vmatprep.mubr.bf16.mxu0 %v4562
        %5541 = vmatmul.mubr.bf16.gmra.mrb[0].mxu0 %v4561
        %v5542 = vpop.f32.mrb[0].mxu0
        %v5543 = vadd.f32 0.0, %v5542
        %v5544 = vpop.f32.mrb[0].mxu0
        %v5545 = vpop.f32.mrb[0].mxu0
        %v5546 = vadd.f32 0.0, %v5545
        %v5547 = vpop.f32.mrb[0].mxu0
        %5548 = vmatprep.mubr.bf16.mxu0 %v4564
        %5549 = vmatmul.mubr.bf16.gmra.mrb[0].mxu0 %v4563
        %v5550 = vpop.f32.mrb[0].mxu0
        %v5551 = vadd.f32 0.0, %v5550
        %v5552 = vpop.f32.mrb[0].mxu0
        %v5553 = vpop.f32.mrb[0].mxu0
        %v5554 = vadd.f32 0.0, %v5553
        %v5555 = vpop.f32.mrb[0].mxu0
        %5556 = vmatprep.mubr.bf16.mxu0 %v4566
        %5557 = vmatmul.mubr.bf16.gmra.mrb[0].mxu0 %v4565
        %v5558 = vpop.f32.mrb[0].mxu0
        %v5559 = vadd.f32 0.0, %v5558
        %v5560 = vpop.f32.mrb[0].mxu0
        %v5561 = vpop.f32.mrb[0].mxu0
        %v5562 = vadd.f32 0.0, %v5561
        %v5563 = vpop.f32.mrb[0].mxu0
        %5564 = vmatprep.mubr.bf16.mxu0 %v4568
        %5565 = vmatmul.mubr.bf16.gmra.mrb[0].mxu0 %v4567
        %v5566 = vpop.f32.mrb[0].mxu0
        %v5567 = vadd.f32 0.0, %v5566
        %v5568 = vpop.f32.mrb[0].mxu0
        %v5569 = vpop.f32.mrb[0].mxu0
        %v5570 = vadd.f32 0.0, %v5569
        %v5571 = vpop.f32.mrb[0].mxu0
        %5572 = vmatprep.mubr.bf16.mxu0 %v4570
        %5573 = vmatmul.mubr.bf16.gmra.mrb[0].mxu0 %v4569
        %v5574 = vpop.f32.mrb[0].mxu0
        %v5575 = vadd.f32 0.0, %v5574
        %v5576 = vpop.f32.mrb[0].mxu0
        %v5577 = vpop.f32.mrb[0].mxu0
        %v5578 = vadd.f32 0.0, %v5577
        %v5579 = vpop.f32.mrb[0].mxu0
        %5580 = vmatprep.mubr.bf16.mxu0 %v4572
        %5581 = vmatmul.mubr.bf16.gmra.mrb[0].mxu0 %v4571
        %v5582 = vpop.f32.mrb[0].mxu0
        %v5583 = vadd.f32 0.0, %v5582
        %v5584 = vpop.f32.mrb[0].mxu0
        %v5585 = vpop.f32.mrb[0].mxu0
        %v5586 = vadd.f32 0.0, %v5585
        %v5587 = vpop.f32.mrb[0].mxu0
        %5588 = vmatprep.mubr.bf16.mxu0 %v4574
        %5589 = vmatmul.mubr.bf16.gmra.mrb[0].mxu0 %v4573
        %v5590 = vpop.f32.mrb[0].mxu0
        %v5591 = vadd.f32 0.0, %v5590
        %v5592 = vpop.f32.mrb[0].mxu0
        %v5593 = vpop.f32.mrb[0].mxu0
        %v5594 = vadd.f32 0.0, %v5593
        %v5595 = vpop.f32.mrb[0].mxu0
        %5596 = vmatprep.mubr.bf16.mxu0 %v4576
        %5597 = vmatmul.mubr.bf16.gmra.mrb[0].mxu0 %v4575
        %v5598 = vpop.f32.mrb[0].mxu0
        %v5599 = vadd.f32 0.0, %v5598
        %v5600 = vpop.f32.mrb[0].mxu0
        %v5601 = vpop.f32.mrb[0].mxu0
        %v5602 = vadd.f32 0.0, %v5601
        %v5603 = vpop.f32.mrb[0].mxu0
        %5604 = vmatprep.mubr.bf16.mxu0 %v4578
        %5605 = vmatmul.mubr.bf16.gmra.mrb[0].mxu0 %v4577
        %v5606 = vpop.f32.mrb[0].mxu0
        %v5607 = vadd.f32 0.0, %v5606
        %v5608 = vpop.f32.mrb[0].mxu0
        %v5609 = vpop.f32.mrb[0].mxu0
        %v5610 = vadd.f32 0.0, %v5609
        %v5611 = vpop.f32.mrb[0].mxu0
        %5612 = vmatprep.mubr.bf16.mxu0 %v4580
        %5613 = vmatmul.mubr.bf16.gmra.mrb[0].mxu0 %v4579
        %v5614 = vpop.f32.mrb[0].mxu0
        %v5615 = vadd.f32 0.0, %v5614
        %v5616 = vpop.f32.mrb[0].mxu0
        %v5617 = vpop.f32.mrb[0].mxu0
        %v5618 = vadd.f32 0.0, %v5617
        %v5619 = vpop.f32.mrb[0].mxu0
        %5620 = vdwg.mxu0
        %5621 = vmatprep.subr.bf16.mxu0 0
        %5622 = vmatpush1.bf16.msra.mxu0 %v5428
        %5623 = vmatprep.subr.bf16.mxu0 0
        %5624 = vmatpush1.bf16.msra.mxu0 %v5429
        %5625 = vmatprep.subr.bf16.mxu0 0
        %5626 = vmatpush1.bf16.msra.mxu0 %v5430
        %5627 = vmatprep.subr.bf16.mxu0 0
        %5628 = vmatpush1.bf16.msra.mxu0 %v5431
        %5629 = vmatprep.subr.bf16.mxu0 0
        %5630 = vmatpush1.bf16.msra.mxu0 %v5432
        %5631 = vmatprep.subr.bf16.mxu0 0
        %5632 = vmatpush1.bf16.msra.mxu0 %v5433
        %5633 = vmatprep.subr.bf16.mxu0 0
        %5634 = vmatpush1.bf16.msra.mxu0 %v5434
        %5635 = vmatprep.subr.bf16.mxu0 0
        %5636 = vmatpush1.bf16.msra.mxu0 %v5435
        %5637 = vmatprep.subr.bf16.mxu0 0
        %5638 = vmatpush1.bf16.msra.mxu0 %v5436
        %5639 = vmatprep.subr.bf16.mxu0 0
        %5640 = vmatpush1.bf16.msra.mxu0 %v5437
        %5641 = vmatprep.subr.bf16.mxu0 0
        %5642 = vmatpush1.bf16.msra.mxu0 %v5438
        %5643 = vmatprep.subr.bf16.mxu0 0
        %5644 = vmatpush1.bf16.msra.mxu0 %v5439
        %5645 = vmatprep.subr.bf16.mxu0 0
        %5646 = vmatpush1.bf16.msra.mxu0 %v5440
        %5647 = vmatprep.subr.bf16.mxu0 0
        %5648 = vmatpush1.bf16.msra.mxu0 %v5441
        %5649 = vmatprep.subr.bf16.mxu0 0
        %5650 = vmatpush1.bf16.msra.mxu0 %v5442
        %5651 = vmatprep.subr.bf16.mxu0 0
        %5652 = vmatpush1.bf16.msra.mxu0 %v5443
        %5653 = vmatprep.mubr.bf16.mxu0 %v4655
        %5654 = vmatmul.mubr.bf16.gmra.mrb[0].mxu0 %v4643
        %v5655 = vpop.f32.mrb[0].mxu0
        %v5656 = vadd.f32 %v5543, %v5655
        %v5657 = vpop.f32.mrb[0].mxu0
        %v5658 = vpop.f32.mrb[0].mxu0
        %v5659 = vadd.f32 %v5546, %v5658
        %v5660 = vpop.f32.mrb[0].mxu0
        %5661 = vmatprep.mubr.bf16.mxu0 %v4679
        %5662 = vmatmul.mubr.bf16.gmra.mrb[0].mxu0 %v4667
        %v5663 = vpop.f32.mrb[0].mxu0
        %v5664 = vadd.f32 %v5551, %v5663
        %v5665 = vpop.f32.mrb[0].mxu0
        %v5666 = vpop.f32.mrb[0].mxu0
        %v5667 = vadd.f32 %v5554, %v5666
        %v5668 = vpop.f32.mrb[0].mxu0
        %5669 = vmatprep.mubr.bf16.mxu0 %v4703
        %5670 = vmatmul.mubr.bf16.gmra.mrb[0].mxu0 %v4691
        %v5671 = vpop.f32.mrb[0].mxu0
        %v5672 = vadd.f32 %v5559, %v5671
        %v5673 = vpop.f32.mrb[0].mxu0
        %v5674 = vpop.f32.mrb[0].mxu0
        %v5675 = vadd.f32 %v5562, %v5674
        %v5676 = vpop.f32.mrb[0].mxu0
        %5677 = vmatprep.mubr.bf16.mxu0 %v4727
        %5678 = vmatmul.mubr.bf16.gmra.mrb[0].mxu0 %v4715
        %v5679 = vpop.f32.mrb[0].mxu0
        %v5680 = vadd.f32 %v5567, %v5679
        %v5681 = vpop.f32.mrb[0].mxu0
        %v5682 = vpop.f32.mrb[0].mxu0
        %v5683 = vadd.f32 %v5570, %v5682
        %v5684 = vpop.f32.mrb[0].mxu0
        %5685 = vmatprep.mubr.bf16.mxu0 %v4751
        %5686 = vmatmul.mubr.bf16.gmra.mrb[0].mxu0 %v4739
        %v5687 = vpop.f32.mrb[0].mxu0
        %v5688 = vadd.f32 %v5575, %v5687
        %v5689 = vpop.f32.mrb[0].mxu0
        %v5690 = vpop.f32.mrb[0].mxu0
        %v5691 = vadd.f32 %v5578, %v5690
        %v5692 = vpop.f32.mrb[0].mxu0
        %5693 = vmatprep.mubr.bf16.mxu0 %v4775
        %5694 = vmatmul.mubr.bf16.gmra.mrb[0].mxu0 %v4763
        %v5695 = vpop.f32.mrb[0].mxu0
        %v5696 = vadd.f32 %v5583, %v5695
        %v5697 = vpop.f32.mrb[0].mxu0
        %v5698 = vpop.f32.mrb[0].mxu0
        %v5699 = vadd.f32 %v5586, %v5698
        %v5700 = vpop.f32.mrb[0].mxu0
        %5701 = vmatprep.mubr.bf16.mxu0 %v4799
        %5702 = vmatmul.mubr.bf16.gmra.mrb[0].mxu0 %v4787
        %v5703 = vpop.f32.mrb[0].mxu0
        %v5704 = vadd.f32 %v5591, %v5703
        %v5705 = vpop.f32.mrb[0].mxu0
        %v5706 = vpop.f32.mrb[0].mxu0
        %v5707 = vadd.f32 %v5594, %v5706
        %v5708 = vpop.f32.mrb[0].mxu0
        %5709 = vmatprep.mubr.bf16.mxu0 %v4823
        %5710 = vmatmul.mubr.bf16.gmra.mrb[0].mxu0 %v4811
        %v5711 = vpop.f32.mrb[0].mxu0
        %v5712 = vadd.f32 %v5599, %v5711
        %v5713 = vpop.f32.mrb[0].mxu0
        %v5714 = vpop.f32.mrb[0].mxu0
        %v5715 = vadd.f32 %v5602, %v5714
        %v5716 = vpop.f32.mrb[0].mxu0
        %5717 = vmatprep.mubr.bf16.mxu0 %v4847
        %5718 = vmatmul.mubr.bf16.gmra.mrb[0].mxu0 %v4835
        %v5719 = vpop.f32.mrb[0].mxu0
        %v5720 = vadd.f32 %v5607, %v5719
        %v5721 = vpop.f32.mrb[0].mxu0
        %v5722 = vpop.f32.mrb[0].mxu0
        %v5723 = vadd.f32 %v5610, %v5722
        %v5724 = vpop.f32.mrb[0].mxu0
        %5725 = vmatprep.mubr.bf16.mxu0 %v5108
        %5726 = vmatmul.mubr.bf16.gmra.mrb[0].mxu0 %v5096
        %v5727 = vpop.f32.mrb[0].mxu0
        %v5728 = vadd.f32 %v5615, %v5727
        %v5729 = vpop.f32.mrb[0].mxu0
        %v5730 = vpop.f32.mrb[0].mxu0
        %v5731 = vadd.f32 %v5618, %v5730
        %v5732 = vpop.f32.mrb[0].mxu0
        %5733 = vdwg.mxu0
        %5734 = vmatprep.subr.bf16.mxu0 0
        %5735 = vmatpush1.bf16.msra.mxu0 %v5444
        %5736 = vmatprep.subr.bf16.mxu0 0
        %5737 = vmatpush1.bf16.msra.mxu0 %v5445
        %5738 = vmatprep.subr.bf16.mxu0 0
        %5739 = vmatpush1.bf16.msra.mxu0 %v5446
        %5740 = vmatprep.subr.bf16.mxu0 0
        %5741 = vmatpush1.bf16.msra.mxu0 %v5447
        %5742 = vmatprep.subr.bf16.mxu0 0
        %5743 = vmatpush1.bf16.msra.mxu0 %v5448
        %5744 = vmatprep.subr.bf16.mxu0 0
        %5745 = vmatpush1.bf16.msra.mxu0 %v5449
        %5746 = vmatprep.subr.bf16.mxu0 0
        %5747 = vmatpush1.bf16.msra.mxu0 %v5450
        %5748 = vmatprep.subr.bf16.mxu0 0
        %5749 = vmatpush1.bf16.msra.mxu0 %v5451
        %5750 = vmatprep.subr.bf16.mxu0 0
        %5751 = vmatpush1.bf16.msra.mxu0 %v5452
        %5752 = vmatprep.subr.bf16.mxu0 0
        %5753 = vmatpush1.bf16.msra.mxu0 %v5453
        %5754 = vmatprep.subr.bf16.mxu0 0
        %5755 = vmatpush1.bf16.msra.mxu0 %v5454
        %5756 = vmatprep.subr.bf16.mxu0 0
        %5757 = vmatpush1.bf16.msra.mxu0 %v5455
        %5758 = vmatprep.subr.bf16.mxu0 0
        %5759 = vmatpush1.bf16.msra.mxu0 %v5456
        %5760 = vmatprep.subr.bf16.mxu0 0
        %5761 = vmatpush1.bf16.msra.mxu0 %v5457
        %5762 = vmatprep.subr.bf16.mxu0 0
        %5763 = vmatpush1.bf16.msra.mxu0 %v5458
        %5764 = vmatprep.subr.bf16.mxu0 0
        %5765 = vmatpush1.bf16.msra.mxu0 %v5459
        %5766 = vmatprep.mubr.bf16.mxu0 %v4920
        %5767 = vmatmul.mubr.bf16.gmra.mrb[0].mxu0 %v4917
        %v5768 = vpop.f32.mrb[0].mxu0
        %v5769 = vadd.f32 %v5656, %v5768
        %v5770 = vpop.f32.mrb[0].mxu0
        %v5771 = vpop.f32.mrb[0].mxu0
        %v5772 = vadd.f32 %v5659, %v5771
        %v5773 = vpop.f32.mrb[0].mxu0
        %5774 = vmatprep.mubr.bf16.mxu0 %v4926
        %5775 = vmatmul.mubr.bf16.gmra.mrb[0].mxu0 %v4923
        %v5776 = vpop.f32.mrb[0].mxu0
        %v5777 = vadd.f32 %v5664, %v5776
        %v5778 = vpop.f32.mrb[0].mxu0
        %v5779 = vpop.f32.mrb[0].mxu0
        %v5780 = vadd.f32 %v5667, %v5779
        %v5781 = vpop.f32.mrb[0].mxu0
        %5782 = vmatprep.mubr.bf16.mxu0 %v4932
        %5783 = vmatmul.mubr.bf16.gmra.mrb[0].mxu0 %v4929
        %v5784 = vpop.f32.mrb[0].mxu0
        %v5785 = vadd.f32 %v5672, %v5784
        %v5786 = vpop.f32.mrb[0].mxu0
        %v5787 = vpop.f32.mrb[0].mxu0
        %v5788 = vadd.f32 %v5675, %v5787
        %v5789 = vpop.f32.mrb[0].mxu0
        %5790 = vmatprep.mubr.bf16.mxu0 %v4938
        %5791 = vmatmul.mubr.bf16.gmra.mrb[0].mxu0 %v4935
        %v5792 = vpop.f32.mrb[0].mxu0
        %v5793 = vadd.f32 %v5680, %v5792
        %v5794 = vpop.f32.mrb[0].mxu0
        %v5795 = vpop.f32.mrb[0].mxu0
        %v5796 = vadd.f32 %v5683, %v5795
        %v5797 = vpop.f32.mrb[0].mxu0
        %5798 = vmatprep.mubr.bf16.mxu0 %v4944
        %5799 = vmatmul.mubr.bf16.gmra.mrb[0].mxu0 %v4941
        %v5800 = vpop.f32.mrb[0].mxu0
        %v5801 = vadd.f32 %v5688, %v5800
        %v5802 = vpop.f32.mrb[0].mxu0
        %v5803 = vpop.f32.mrb[0].mxu0
        %v5804 = vadd.f32 %v5691, %v5803
        %v5805 = vpop.f32.mrb[0].mxu0
        %5806 = vmatprep.mubr.bf16.mxu0 %v4950
        %5807 = vmatmul.mubr.bf16.gmra.mrb[0].mxu0 %v4947
        %v5808 = vpop.f32.mrb[0].mxu0
        %v5809 = vadd.f32 %v5696, %v5808
        %v5810 = vpop.f32.mrb[0].mxu0
        %v5811 = vpop.f32.mrb[0].mxu0
        %v5812 = vadd.f32 %v5699, %v5811
        %v5813 = vpop.f32.mrb[0].mxu0
        %5814 = vmatprep.mubr.bf16.mxu0 %v4956
        %5815 = vmatmul.mubr.bf16.gmra.mrb[0].mxu0 %v4953
        %v5816 = vpop.f32.mrb[0].mxu0
        %v5817 = vadd.f32 %v5704, %v5816
        %v5818 = vpop.f32.mrb[0].mxu0
        %v5819 = vpop.f32.mrb[0].mxu0
        %v5820 = vadd.f32 %v5707, %v5819
        %v5821 = vpop.f32.mrb[0].mxu0
        %5822 = vmatprep.mubr.bf16.mxu0 %v4962
        %5823 = vmatmul.mubr.bf16.gmra.mrb[0].mxu0 %v4959
        %v5824 = vpop.f32.mrb[0].mxu0
        %v5825 = vadd.f32 %v5712, %v5824
        %v5826 = vpop.f32.mrb[0].mxu0
        %v5827 = vpop.f32.mrb[0].mxu0
        %v5828 = vadd.f32 %v5715, %v5827
        %v5829 = vpop.f32.mrb[0].mxu0
        %5830 = vmatprep.mubr.bf16.mxu0 %v4968
        %5831 = vmatmul.mubr.bf16.gmra.mrb[0].mxu0 %v4965
        %v5832 = vpop.f32.mrb[0].mxu0
        %v5833 = vadd.f32 %v5720, %v5832
        %v5834 = vpop.f32.mrb[0].mxu0
        %v5835 = vpop.f32.mrb[0].mxu0
        %v5836 = vadd.f32 %v5723, %v5835
        %v5837 = vpop.f32.mrb[0].mxu0
        %5838 = vmatprep.mubr.bf16.mxu0 %v5120
        %5839 = vmatmul.mubr.bf16.gmra.mrb[0].mxu0 %v5117
        %v5840 = vpop.f32.mrb[0].mxu0
        %v5841 = vadd.f32 %v5728, %v5840
        %v5842 = vpop.f32.mrb[0].mxu0
        %v5843 = vpop.f32.mrb[0].mxu0
        %v5844 = vadd.f32 %v5731, %v5843
        %v5845 = vpop.f32.mrb[0].mxu0
        %5846 = vdwg.mxu0
        %v5943 = vunpack.c.l.b16 %v4989
        %v5944 = vunpack.c.l.b16 %v4990
        %v5945 = vunpack.c.l.b16 %v4991
        %v5946 = vunpack.c.l.b16 %v4992
        %v5947 = vunpack.c.l.b16 %v4993
        %v5948 = vunpack.c.l.b16 %v4994
        %v5949 = vunpack.c.l.b16 %v4995
        %v5950 = vunpack.c.l.b16 %v4996
        %v5951 = vunpack.c.l.b16 %v4997
        %v5952 = vunpack.c.l.b16 %v4998
        %v5953 = vunpack.c.l.b16 %v4999
        %v5954 = vunpack.c.l.b16 %v5000
        %v5955 = vunpack.c.l.b16 %v5001
        %v5956 = vunpack.c.l.b16 %v5002
        %v5957 = vunpack.c.l.b16 %v5003
        %v5958 = vunpack.c.l.b16 %v5004
        %v5959 = vunpack.c.l.b16 %v5005
        %v5960 = vunpack.c.l.b16 %v5006
        %v5961 = vunpack.c.l.b16 %v5007
        %v5962 = vunpack.c.l.b16 %v5008
        %v5963 = vunpack.c.l.b16 %v5009
        %v5964 = vunpack.c.l.b16 %v5010
        %v5965 = vunpack.c.l.b16 %v5011
        %v5966 = vunpack.c.l.b16 %v5012
        %v5967 = vunpack.c.l.b16 %v5013
        %v5968 = vunpack.c.l.b16 %v5014
        %v5969 = vunpack.c.l.b16 %v5015
        %v5970 = vunpack.c.l.b16 %v5016
        %v5971 = vunpack.c.l.b16 %v5017
        %v5972 = vunpack.c.l.b16 %v5018
        %v5973 = vunpack.c.l.b16 %v5019
        %v5974 = vunpack.c.l.b16 %v5020
        %v5975 = vunpack.c.l.b16 %v5021
        %v5976 = vunpack.c.l.b16 %v5022
        %v5977 = vunpack.c.l.b16 %v5023
        %v5978 = vunpack.c.l.b16 %v5024
        %v5979 = vunpack.c.l.b16 %v5025
        %v5980 = vunpack.c.l.b16 %v5026
        %v5981 = vunpack.c.l.b16 %v5027
        %v5982 = vunpack.c.l.b16 %v5028
        %v5983 = vunpack.c.l.b16 %v5029
        %v5984 = vunpack.c.l.b16 %v5030
        %v5985 = vunpack.c.l.b16 %v5031
        %v5986 = vunpack.c.l.b16 %v5032
        %v5987 = vunpack.c.l.b16 %v5033
        %v5988 = vunpack.c.l.b16 %v5034
        %v5989 = vunpack.c.l.b16 %v5035
        %v5990 = vunpack.c.l.b16 %v5036
        %v5991 = vunpack.c.l.b16 %v5037
        %v5992 = vunpack.c.l.b16 %v5038
        %v5993 = vunpack.c.l.b16 %v5039
        %v5994 = vunpack.c.l.b16 %v5040
        %v5995 = vunpack.c.l.b16 %v5041
        %v5996 = vunpack.c.l.b16 %v5042
        %v5997 = vunpack.c.l.b16 %v5043
        %v5998 = vunpack.c.l.b16 %v5044
        %v5999 = vunpack.c.l.b16 %v5045
        %v6000 = vunpack.c.l.b16 %v5046
        %v6001 = vunpack.c.l.b16 %v5047
        %v6002 = vunpack.c.l.b16 %v5048
        %v6003 = vunpack.c.l.b16 %v5049
        %v6004 = vunpack.c.l.b16 %v5050
        %v6005 = vunpack.c.l.b16 %v5051
        %v6006 = vunpack.c.l.b16 %v5052
        %v6007 = vunpack.c.l.b16 %v5053
        %v6008 = vunpack.c.l.b16 %v5054
        %v6009 = vunpack.c.l.b16 %v5055
        %v6010 = vunpack.c.l.b16 %v5056
        %v6011 = vunpack.c.l.b16 %v5057
        %v6012 = vunpack.c.l.b16 %v5058
        %v6013 = vunpack.c.l.b16 %v5059
        %v6014 = vunpack.c.l.b16 %v5060
        %v6015 = vunpack.c.l.b16 %v5061
        %v6016 = vunpack.c.l.b16 %v5062
        %v6017 = vunpack.c.l.b16 %v5063
        %v6018 = vunpack.c.l.b16 %v5064
        %v6019 = vunpack.c.l.b16 %v5065
        %v6020 = vunpack.c.l.b16 %v5066
        %v6021 = vunpack.c.l.b16 %v5067
        %v6022 = vunpack.c.l.b16 %v5068
        %v6023 = vunpack.c.l.b16 %v5069
        %v6024 = vunpack.c.l.b16 %v5070
        %v6025 = vunpack.c.l.b16 %v5071
        %v6026 = vunpack.c.l.b16 %v5072
        %v6027 = vunpack.c.l.b16 %v5073
        %v6028 = vunpack.c.l.b16 %v5074
        %v6029 = vunpack.c.l.b16 %v5075
        %v6030 = vunpack.c.l.b16 %v5076
        %v6031 = vunpack.c.l.b16 %v5077
        %v6032 = vunpack.c.l.b16 %v5078
        %v6033 = vunpack.c.l.b16 %v5079
        %v6034 = vunpack.c.l.b16 %v5080
        %v6035 = vunpack.c.l.b16 %v5081
        %v6036 = vunpack.c.l.b16 %v5082
        %v6037 = vunpack.c.l.b16 %v5083
        %v6038 = vunpack.c.l.b16 %v5084
        %v6039 = vpack.c.b16 %v5944, %v5943
        %v6040 = vpack.c.b16 %v5946, %v5945
        %v6041 = vpack.c.b16 %v5948, %v5947
        %v6042 = vpack.c.b16 %v5950, %v5949
        %v6043 = vpack.c.b16 %v5952, %v5951
        %v6044 = vpack.c.b16 %v5954, %v5953
        %v6045 = vpack.c.b16 %v5956, %v5955
        %v6046 = vpack.c.b16 %v5958, %v5957
        %v6047 = vpack.c.b16 %v5960, %v5959
        %v6048 = vpack.c.b16 %v5962, %v5961
        %v6049 = vpack.c.b16 %v5964, %v5963
        %v6050 = vpack.c.b16 %v5966, %v5965
        %v6051 = vpack.c.b16 %v5968, %v5967
        %v6052 = vpack.c.b16 %v5970, %v5969
        %v6053 = vpack.c.b16 %v5972, %v5971
        %v6054 = vpack.c.b16 %v5974, %v5973
        %v6055 = vpack.c.b16 %v5976, %v5975
        %v6056 = vpack.c.b16 %v5978, %v5977
        %v6057 = vpack.c.b16 %v5980, %v5979
        %v6058 = vpack.c.b16 %v5982, %v5981
        %v6059 = vpack.c.b16 %v5984, %v5983
        %v6060 = vpack.c.b16 %v5986, %v5985
        %v6061 = vpack.c.b16 %v5988, %v5987
        %v6062 = vpack.c.b16 %v5990, %v5989
        %v6063 = vpack.c.b16 %v5992, %v5991
        %v6064 = vpack.c.b16 %v5994, %v5993
        %v6065 = vpack.c.b16 %v5996, %v5995
        %v6066 = vpack.c.b16 %v5998, %v5997
        %v6067 = vpack.c.b16 %v6000, %v5999
        %v6068 = vpack.c.b16 %v6002, %v6001
        %v6069 = vpack.c.b16 %v6004, %v6003
        %v6070 = vpack.c.b16 %v6006, %v6005
        %v6071 = vpack.c.b16 %v6008, %v6007
        %v6072 = vpack.c.b16 %v6010, %v6009
        %v6073 = vpack.c.b16 %v6012, %v6011
        %v6074 = vpack.c.b16 %v6014, %v6013
        %v6075 = vpack.c.b16 %v6016, %v6015
        %v6076 = vpack.c.b16 %v6018, %v6017
        %v6077 = vpack.c.b16 %v6020, %v6019
        %v6078 = vpack.c.b16 %v6022, %v6021
        %v6079 = vpack.c.b16 %v6024, %v6023
        %v6080 = vpack.c.b16 %v6026, %v6025
        %v6081 = vpack.c.b16 %v6028, %v6027
        %v6082 = vpack.c.b16 %v6030, %v6029
        %v6083 = vpack.c.b16 %v6032, %v6031
        %v6084 = vpack.c.b16 %v6034, %v6033
        %v6085 = vpack.c.b16 %v6036, %v6035
        %v6086 = vpack.c.b16 %v6038, %v6037
        %6135 = vmatprep.subr.bf16.mxu0 0
        %6136 = vmatpush1.bf16.msra.mxu0 %v6039
        %6137 = vmatprep.subr.bf16.mxu0 0
        %6138 = vmatpush1.bf16.msra.mxu0 %v6040
        %6139 = vmatprep.subr.bf16.mxu0 0
        %6140 = vmatpush1.bf16.msra.mxu0 %v6041
        %6141 = vmatprep.subr.bf16.mxu0 0
        %6142 = vmatpush1.bf16.msra.mxu0 %v6042
        %6143 = vmatprep.subr.bf16.mxu0 0
        %6144 = vmatpush1.bf16.msra.mxu0 %v6043
        %6145 = vmatprep.subr.bf16.mxu0 0
        %6146 = vmatpush1.bf16.msra.mxu0 %v6044
        %6147 = vmatprep.subr.bf16.mxu0 0
        %6148 = vmatpush1.bf16.msra.mxu0 %v6045
        %6149 = vmatprep.subr.bf16.mxu0 0
        %6150 = vmatpush1.bf16.msra.mxu0 %v6046
        %6151 = vmatprep.subr.bf16.mxu0 0
        %6152 = vmatpush1.bf16.msra.mxu0 %v6047
        %6153 = vmatprep.subr.bf16.mxu0 0
        %6154 = vmatpush1.bf16.msra.mxu0 %v6048
        %6155 = vmatprep.subr.bf16.mxu0 0
        %6156 = vmatpush1.bf16.msra.mxu0 %v6049
        %6157 = vmatprep.subr.bf16.mxu0 0
        %6158 = vmatpush1.bf16.msra.mxu0 %v6050
        %6159 = vmatprep.subr.bf16.mxu0 0
        %6160 = vmatpush1.bf16.msra.mxu0 %v6051
        %6161 = vmatprep.subr.bf16.mxu0 0
        %6162 = vmatpush1.bf16.msra.mxu0 %v6052
        %6163 = vmatprep.subr.bf16.mxu0 0
        %6164 = vmatpush1.bf16.msra.mxu0 %v6053
        %6165 = vmatprep.subr.bf16.mxu0 0
        %6166 = vmatpush1.bf16.msra.mxu0 %v6054
        %6167 = vmatprep.mubr.bf16.mxu0 %v4560
        %6168 = vmatmul.mubr.bf16.gmra.mrb[0].mxu0 %v4559
        %v6169 = vpop.f32.mrb[0].mxu0
        %v6170 = vadd.f32 %v5769, %v6169
        %v6171 = vpop.f32.mrb[0].mxu0
        %v6172 = vpop.f32.mrb[0].mxu0
        %v6173 = vadd.f32 %v5772, %v6172
        %v6174 = vpop.f32.mrb[0].mxu0
        %6175 = vmatprep.mubr.bf16.mxu0 %v4562
        %6176 = vmatmul.mubr.bf16.gmra.mrb[0].mxu0 %v4561
        %v6177 = vpop.f32.mrb[0].mxu0
        %v6178 = vadd.f32 %v5777, %v6177
        %v6179 = vpop.f32.mrb[0].mxu0
        %v6180 = vpop.f32.mrb[0].mxu0
        %v6181 = vadd.f32 %v5780, %v6180
        %v6182 = vpop.f32.mrb[0].mxu0
        %6183 = vmatprep.mubr.bf16.mxu0 %v4564
        %6184 = vmatmul.mubr.bf16.gmra.mrb[0].mxu0 %v4563
        %v6185 = vpop.f32.mrb[0].mxu0
        %v6186 = vadd.f32 %v5785, %v6185
        %v6187 = vpop.f32.mrb[0].mxu0
        %v6188 = vpop.f32.mrb[0].mxu0
        %v6189 = vadd.f32 %v5788, %v6188
        %v6190 = vpop.f32.mrb[0].mxu0
        %6191 = vmatprep.mubr.bf16.mxu0 %v4566
        %6192 = vmatmul.mubr.bf16.gmra.mrb[0].mxu0 %v4565
        %v6193 = vpop.f32.mrb[0].mxu0
        %v6194 = vadd.f32 %v5793, %v6193
        %v6195 = vpop.f32.mrb[0].mxu0
        %v6196 = vpop.f32.mrb[0].mxu0
        %v6197 = vadd.f32 %v5796, %v6196
        %v6198 = vpop.f32.mrb[0].mxu0
        %6199 = vmatprep.mubr.bf16.mxu0 %v4568
        %6200 = vmatmul.mubr.bf16.gmra.mrb[0].mxu0 %v4567
        %v6201 = vpop.f32.mrb[0].mxu0
        %v6202 = vadd.f32 %v5801, %v6201
        %v6203 = vpop.f32.mrb[0].mxu0
        %v6204 = vpop.f32.mrb[0].mxu0
        %v6205 = vadd.f32 %v5804, %v6204
        %v6206 = vpop.f32.mrb[0].mxu0
        %6207 = vmatprep.mubr.bf16.mxu0 %v4570
        %6208 = vmatmul.mubr.bf16.gmra.mrb[0].mxu0 %v4569
        %v6209 = vpop.f32.mrb[0].mxu0
        %v6210 = vadd.f32 %v5809, %v6209
        %v6211 = vpop.f32.mrb[0].mxu0
        %v6212 = vpop.f32.mrb[0].mxu0
        %v6213 = vadd.f32 %v5812, %v6212
        %v6214 = vpop.f32.mrb[0].mxu0
        %6215 = vmatprep.mubr.bf16.mxu0 %v4572
        %6216 = vmatmul.mubr.bf16.gmra.mrb[0].mxu0 %v4571
        %v6217 = vpop.f32.mrb[0].mxu0
        %v6218 = vadd.f32 %v5817, %v6217
        %v6219 = vpop.f32.mrb[0].mxu0
        %v6220 = vpop.f32.mrb[0].mxu0
        %v6221 = vadd.f32 %v5820, %v6220
        %v6222 = vpop.f32.mrb[0].mxu0
        %6223 = vmatprep.mubr.bf16.mxu0 %v4574
        %6224 = vmatmul.mubr.bf16.gmra.mrb[0].mxu0 %v4573
        %v6225 = vpop.f32.mrb[0].mxu0
        %v6226 = vadd.f32 %v5825, %v6225
        %v6227 = vpop.f32.mrb[0].mxu0
        %v6228 = vpop.f32.mrb[0].mxu0
        %v6229 = vadd.f32 %v5828, %v6228
        %v6230 = vpop.f32.mrb[0].mxu0
        %6231 = vmatprep.mubr.bf16.mxu0 %v4576
        %6232 = vmatmul.mubr.bf16.gmra.mrb[0].mxu0 %v4575
        %v6233 = vpop.f32.mrb[0].mxu0
        %v6234 = vadd.f32 %v5833, %v6233
        %v6235 = vpop.f32.mrb[0].mxu0
        %v6236 = vpop.f32.mrb[0].mxu0
        %v6237 = vadd.f32 %v5836, %v6236
        %v6238 = vpop.f32.mrb[0].mxu0
        %6239 = vmatprep.mubr.bf16.mxu0 %v4578
        %6240 = vmatmul.mubr.bf16.gmra.mrb[0].mxu0 %v4577
        %v6241 = vpop.f32.mrb[0].mxu0
        %v6242 = vadd.f32 %v5841, %v6241
        %v6243 = vpop.f32.mrb[0].mxu0
        %v6244 = vpop.f32.mrb[0].mxu0
        %v6245 = vadd.f32 %v5844, %v6244
        %v6246 = vpop.f32.mrb[0].mxu0
        %6247 = vdwg.mxu0
        %6248 = vmatprep.subr.bf16.mxu0 0
        %6249 = vmatpush1.bf16.msra.mxu0 %v6055
        %6250 = vmatprep.subr.bf16.mxu0 0
        %6251 = vmatpush1.bf16.msra.mxu0 %v6056
        %6252 = vmatprep.subr.bf16.mxu0 0
        %6253 = vmatpush1.bf16.msra.mxu0 %v6057
        %6254 = vmatprep.subr.bf16.mxu0 0
        %6255 = vmatpush1.bf16.msra.mxu0 %v6058
        %6256 = vmatprep.subr.bf16.mxu0 0
        %6257 = vmatpush1.bf16.msra.mxu0 %v6059
        %6258 = vmatprep.subr.bf16.mxu0 0
        %6259 = vmatpush1.bf16.msra.mxu0 %v6060
        %6260 = vmatprep.subr.bf16.mxu0 0
        %6261 = vmatpush1.bf16.msra.mxu0 %v6061
        %6262 = vmatprep.subr.bf16.mxu0 0
        %6263 = vmatpush1.bf16.msra.mxu0 %v6062
        %6264 = vmatprep.subr.bf16.mxu0 0
        %6265 = vmatpush1.bf16.msra.mxu0 %v6063
        %6266 = vmatprep.subr.bf16.mxu0 0
        %6267 = vmatpush1.bf16.msra.mxu0 %v6064
        %6268 = vmatprep.subr.bf16.mxu0 0
        %6269 = vmatpush1.bf16.msra.mxu0 %v6065
        %6270 = vmatprep.subr.bf16.mxu0 0
        %6271 = vmatpush1.bf16.msra.mxu0 %v6066
        %6272 = vmatprep.subr.bf16.mxu0 0
        %6273 = vmatpush1.bf16.msra.mxu0 %v6067
        %6274 = vmatprep.subr.bf16.mxu0 0
        %6275 = vmatpush1.bf16.msra.mxu0 %v6068
        %6276 = vmatprep.subr.bf16.mxu0 0
        %6277 = vmatpush1.bf16.msra.mxu0 %v6069
        %6278 = vmatprep.subr.bf16.mxu0 0
        %6279 = vmatpush1.bf16.msra.mxu0 %v6070
        %6280 = vmatprep.mubr.bf16.mxu0 %v4631
        %6281 = vmatmul.mubr.bf16.gmra.mrb[0].mxu0 %v4619
        %v6282 = vpop.f32.mrb[0].mxu0
        %v6283 = vadd.f32 %v6170, %v6282
        %v6284 = vpop.f32.mrb[0].mxu0
        %v6285 = vpop.f32.mrb[0].mxu0
        %v6286 = vadd.f32 %v6173, %v6285
        %v6287 = vpop.f32.mrb[0].mxu0
        %6288 = vmatprep.mubr.bf16.mxu0 %v4655
        %6289 = vmatmul.mubr.bf16.gmra.mrb[0].mxu0 %v4643
        %v6290 = vpop.f32.mrb[0].mxu0
        %v6291 = vadd.f32 %v6178, %v6290
        %v6292 = vpop.f32.mrb[0].mxu0
        %v6293 = vpop.f32.mrb[0].mxu0
        %v6294 = vadd.f32 %v6181, %v6293
        %v6295 = vpop.f32.mrb[0].mxu0
        %6296 = vmatprep.mubr.bf16.mxu0 %v4679
        %6297 = vmatmul.mubr.bf16.gmra.mrb[0].mxu0 %v4667
        %v6298 = vpop.f32.mrb[0].mxu0
        %v6299 = vadd.f32 %v6186, %v6298
        %v6300 = vpop.f32.mrb[0].mxu0
        %v6301 = vpop.f32.mrb[0].mxu0
        %v6302 = vadd.f32 %v6189, %v6301
        %v6303 = vpop.f32.mrb[0].mxu0
        %6304 = vmatprep.mubr.bf16.mxu0 %v4703
        %6305 = vmatmul.mubr.bf16.gmra.mrb[0].mxu0 %v4691
        %v6306 = vpop.f32.mrb[0].mxu0
        %v6307 = vadd.f32 %v6194, %v6306
        %v6308 = vpop.f32.mrb[0].mxu0
        %v6309 = vpop.f32.mrb[0].mxu0
        %v6310 = vadd.f32 %v6197, %v6309
        %v6311 = vpop.f32.mrb[0].mxu0
        %6312 = vmatprep.mubr.bf16.mxu0 %v4727
        %6313 = vmatmul.mubr.bf16.gmra.mrb[0].mxu0 %v4715
        %v6314 = vpop.f32.mrb[0].mxu0
        %v6315 = vadd.f32 %v6202, %v6314
        %v6316 = vpop.f32.mrb[0].mxu0
        %v6317 = vpop.f32.mrb[0].mxu0
        %v6318 = vadd.f32 %v6205, %v6317
        %v6319 = vpop.f32.mrb[0].mxu0
        %6320 = vmatprep.mubr.bf16.mxu0 %v4751
        %6321 = vmatmul.mubr.bf16.gmra.mrb[0].mxu0 %v4739
        %v6322 = vpop.f32.mrb[0].mxu0
        %v6323 = vadd.f32 %v6210, %v6322
        %v6324 = vpop.f32.mrb[0].mxu0
        %v6325 = vpop.f32.mrb[0].mxu0
        %v6326 = vadd.f32 %v6213, %v6325
        %v6327 = vpop.f32.mrb[0].mxu0
        %6328 = vmatprep.mubr.bf16.mxu0 %v4775
        %6329 = vmatmul.mubr.bf16.gmra.mrb[0].mxu0 %v4763
        %v6330 = vpop.f32.mrb[0].mxu0
        %v6331 = vadd.f32 %v6218, %v6330
        %v6332 = vpop.f32.mrb[0].mxu0
        %v6333 = vpop.f32.mrb[0].mxu0
        %v6334 = vadd.f32 %v6221, %v6333
        %v6335 = vpop.f32.mrb[0].mxu0
        %6336 = vmatprep.mubr.bf16.mxu0 %v4799
        %6337 = vmatmul.mubr.bf16.gmra.mrb[0].mxu0 %v4787
        %v6338 = vpop.f32.mrb[0].mxu0
        %v6339 = vadd.f32 %v6226, %v6338
        %v6340 = vpop.f32.mrb[0].mxu0
        %v6341 = vpop.f32.mrb[0].mxu0
        %v6342 = vadd.f32 %v6229, %v6341
        %v6343 = vpop.f32.mrb[0].mxu0
        %6344 = vmatprep.mubr.bf16.mxu0 %v4823
        %6345 = vmatmul.mubr.bf16.gmra.mrb[0].mxu0 %v4811
        %v6346 = vpop.f32.mrb[0].mxu0
        %v6347 = vadd.f32 %v6234, %v6346
        %v6348 = vpop.f32.mrb[0].mxu0
        %v6349 = vpop.f32.mrb[0].mxu0
        %v6350 = vadd.f32 %v6237, %v6349
        %v6351 = vpop.f32.mrb[0].mxu0
        %6352 = vmatprep.mubr.bf16.mxu0 %v4847
        %6353 = vmatmul.mubr.bf16.gmra.mrb[0].mxu0 %v4835
        %v6354 = vpop.f32.mrb[0].mxu0
        %v6355 = vadd.f32 %v6242, %v6354
        %v6356 = vpop.f32.mrb[0].mxu0
        %v6357 = vpop.f32.mrb[0].mxu0
        %v6358 = vadd.f32 %v6245, %v6357
        %v6359 = vpop.f32.mrb[0].mxu0
        %6360 = vdwg.mxu0
        %6361 = vmatprep.subr.bf16.mxu0 0
        %6362 = vmatpush1.bf16.msra.mxu0 %v6071
        %6363 = vmatprep.subr.bf16.mxu0 0
        %6364 = vmatpush1.bf16.msra.mxu0 %v6072
        %6365 = vmatprep.subr.bf16.mxu0 0
        %6366 = vmatpush1.bf16.msra.mxu0 %v6073
        %6367 = vmatprep.subr.bf16.mxu0 0
        %6368 = vmatpush1.bf16.msra.mxu0 %v6074
        %6369 = vmatprep.subr.bf16.mxu0 0
        %6370 = vmatpush1.bf16.msra.mxu0 %v6075
        %6371 = vmatprep.subr.bf16.mxu0 0
        %6372 = vmatpush1.bf16.msra.mxu0 %v6076
        %6373 = vmatprep.subr.bf16.mxu0 0
        %6374 = vmatpush1.bf16.msra.mxu0 %v6077
        %6375 = vmatprep.subr.bf16.mxu0 0
        %6376 = vmatpush1.bf16.msra.mxu0 %v6078
        %6377 = vmatprep.subr.bf16.mxu0 0
        %6378 = vmatpush1.bf16.msra.mxu0 %v6079
        %6379 = vmatprep.subr.bf16.mxu0 0
        %6380 = vmatpush1.bf16.msra.mxu0 %v6080
        %6381 = vmatprep.subr.bf16.mxu0 0
        %6382 = vmatpush1.bf16.msra.mxu0 %v6081
        %6383 = vmatprep.subr.bf16.mxu0 0
        %6384 = vmatpush1.bf16.msra.mxu0 %v6082
        %6385 = vmatprep.subr.bf16.mxu0 0
        %6386 = vmatpush1.bf16.msra.mxu0 %v6083
        %6387 = vmatprep.subr.bf16.mxu0 0
        %6388 = vmatpush1.bf16.msra.mxu0 %v6084
        %6389 = vmatprep.subr.bf16.mxu0 0
        %6390 = vmatpush1.bf16.msra.mxu0 %v6085
        %6391 = vmatprep.subr.bf16.mxu0 0
        %6392 = vmatpush1.bf16.msra.mxu0 %v6086
        %6393 = vmatprep.mubr.bf16.mxu0 %v4914
        %6394 = vmatmul.mubr.bf16.gmra.mrb[0].mxu0 %v4911
        %v6395 = vpop.f32.mrb[0].mxu0
        %v6396 = vadd.f32 %v6283, %v6395
        %v6397 = vpop.f32.mrb[0].mxu0
        %v6398 = vpop.f32.mrb[0].mxu0
        %v6399 = vadd.f32 %v6286, %v6398
        %v6400 = vpop.f32.mrb[0].mxu0
        %6401 = vmatprep.mubr.bf16.mxu0 %v4920
        %6402 = vmatmul.mubr.bf16.gmra.mrb[0].mxu0 %v4917
        %v6403 = vpop.f32.mrb[0].mxu0
        %v6404 = vadd.f32 %v6291, %v6403
        %v6405 = vpop.f32.mrb[0].mxu0
        %v6406 = vpop.f32.mrb[0].mxu0
        %v6407 = vadd.f32 %v6294, %v6406
        %v6408 = vpop.f32.mrb[0].mxu0
        %6409 = vmatprep.mubr.bf16.mxu0 %v4926
        %6410 = vmatmul.mubr.bf16.gmra.mrb[0].mxu0 %v4923
        %v6411 = vpop.f32.mrb[0].mxu0
        %v6412 = vadd.f32 %v6299, %v6411
        %v6413 = vpop.f32.mrb[0].mxu0
        %v6414 = vpop.f32.mrb[0].mxu0
        %v6415 = vadd.f32 %v6302, %v6414
        %v6416 = vpop.f32.mrb[0].mxu0
        %6417 = vmatprep.mubr.bf16.mxu0 %v4932
        %6418 = vmatmul.mubr.bf16.gmra.mrb[0].mxu0 %v4929
        %v6419 = vpop.f32.mrb[0].mxu0
        %v6420 = vadd.f32 %v6307, %v6419
        %v6421 = vpop.f32.mrb[0].mxu0
        %v6422 = vpop.f32.mrb[0].mxu0
        %v6423 = vadd.f32 %v6310, %v6422
        %v6424 = vpop.f32.mrb[0].mxu0
        %6425 = vmatprep.mubr.bf16.mxu0 %v4938
        %6426 = vmatmul.mubr.bf16.gmra.mrb[0].mxu0 %v4935
        %v6427 = vpop.f32.mrb[0].mxu0
        %v6428 = vadd.f32 %v6315, %v6427
        %v6429 = vpop.f32.mrb[0].mxu0
        %v6430 = vpop.f32.mrb[0].mxu0
        %v6431 = vadd.f32 %v6318, %v6430
        %v6432 = vpop.f32.mrb[0].mxu0
        %6433 = vmatprep.mubr.bf16.mxu0 %v4944
        %6434 = vmatmul.mubr.bf16.gmra.mrb[0].mxu0 %v4941
        %v6435 = vpop.f32.mrb[0].mxu0
        %v6436 = vadd.f32 %v6323, %v6435
        %v6437 = vpop.f32.mrb[0].mxu0
        %v6438 = vpop.f32.mrb[0].mxu0
        %v6439 = vadd.f32 %v6326, %v6438
        %v6440 = vpop.f32.mrb[0].mxu0
        %6441 = vmatprep.mubr.bf16.mxu0 %v4950
        %6442 = vmatmul.mubr.bf16.gmra.mrb[0].mxu0 %v4947
        %v6443 = vpop.f32.mrb[0].mxu0
        %v6444 = vadd.f32 %v6331, %v6443
        %v6445 = vpop.f32.mrb[0].mxu0
        %v6446 = vpop.f32.mrb[0].mxu0
        %v6447 = vadd.f32 %v6334, %v6446
        %v6448 = vpop.f32.mrb[0].mxu0
        %6449 = vmatprep.mubr.bf16.mxu0 %v4956
        %6450 = vmatmul.mubr.bf16.gmra.mrb[0].mxu0 %v4953
        %v6451 = vpop.f32.mrb[0].mxu0
        %v6452 = vadd.f32 %v6339, %v6451
        %v6453 = vpop.f32.mrb[0].mxu0
        %v6454 = vpop.f32.mrb[0].mxu0
        %v6455 = vadd.f32 %v6342, %v6454
        %v6456 = vpop.f32.mrb[0].mxu0
        %6457 = vmatprep.mubr.bf16.mxu0 %v4962
        %6458 = vmatmul.mubr.bf16.gmra.mrb[0].mxu0 %v4959
        %v6459 = vpop.f32.mrb[0].mxu0
        %v6460 = vadd.f32 %v6347, %v6459
        %v6461 = vpop.f32.mrb[0].mxu0
        %v6462 = vpop.f32.mrb[0].mxu0
        %v6463 = vadd.f32 %v6350, %v6462
        %v6464 = vpop.f32.mrb[0].mxu0
        %6465 = vmatprep.mubr.bf16.mxu0 %v4968
        %6466 = vmatmul.mubr.bf16.gmra.mrb[0].mxu0 %v4965
        %v6467 = vpop.f32.mrb[0].mxu0
        %v6468 = vadd.f32 %v6355, %v6467
        %v6469 = vpop.f32.mrb[0].mxu0
        %v6470 = vpop.f32.mrb[0].mxu0
        %v6471 = vadd.f32 %v6358, %v6470
        %v6472 = vpop.f32.mrb[0].mxu0
        %6473 = vdwg.mxu0
        %v6475 = vshrl.u32 %v4581, 16
        %v6477 = vshll.u32 %v4581, 16
        %v6479 = vrot.slane %v6477, 1
        %v6480 = vor.u32 %v6475, %v6479
        %v6482 = vshll.u32 %v4605, 16
        %v6484 = vrot.slane %v6482, 1
        %v6485 = vsel %vm4607, %v6480, %v6484
        %v6487 = vshrl.u32 %v4582, 16
        %v6489 = vshll.u32 %v4582, 16
        %v6491 = vrot.slane %v6489, 1
        %v6492 = vor.u32 %v6487, %v6491
        %v6494 = vshll.u32 %v4606, 16
        %v6496 = vrot.slane %v6494, 1
        %v6497 = vsel %vm4607, %v6492, %v6496
        %v6504 = vrot.slane %v4581, 1
        %v6505 = vrot.slane %v4605, 1
        %v6506 = vsel %vm4908, %v6504, %v6505
        %v6507 = vrot.slane %v4582, 1
        %v6508 = vrot.slane %v4606, 1
        %v6509 = vsel %vm4908, %v6507, %v6508
        %s6512 = scalar_lea.vmem [#allocation8], 768
        %v6513 = vld [vmem:[%s6512] sm:$0xf]
        %v6514 = vld [vmem:[%s6512 + $0x4] sm:$0xf]
        %v6515 = vld [vmem:[%s6512 + $0x8] sm:$0xf]
        %v6516 = vld [vmem:[%s6512 + $0xc] sm:$0xf]
        %v6517 = vld [vmem:[%s6512 + $0x10] sm:$0xf]
        %v6518 = vld [vmem:[%s6512 + $0x14] sm:$0xf]
        %v6519 = vld [vmem:[%s6512 + $0x18] sm:$0xf]
        %v6520 = vld [vmem:[%s6512 + $0x1c] sm:$0xf]
        %v6521 = vld [vmem:[%s6512 + $0x20] sm:$0xf]
        %v6522 = vld [vmem:[%s6512 + $0x24] sm:$0xf]
        %v6523 = vld [vmem:[%s6512 + $0x28] sm:$0xf]
        %v6524 = vld [vmem:[%s6512 + $0x2c] sm:$0xf]
        %v6525 = vld [vmem:[%s6512 + $0x30] sm:$0xf]
        %v6526 = vld [vmem:[%s6512 + $0x34] sm:$0xf]
        %v6527 = vld [vmem:[%s6512 + $0x38] sm:$0xf]
        %v6528 = vld [vmem:[%s6512 + $0x3c] sm:$0xf]
        %v6529 = vld [vmem:[%s6512 + $0x40] sm:$0xf]
        %v6530 = vld [vmem:[%s6512 + $0x44] sm:$0xf]
        %v6531 = vld [vmem:[%s6512 + $0x48] sm:$0xf]
        %v6532 = vld [vmem:[%s6512 + $0x4c] sm:$0xf]
        %v6533 = vld [vmem:[%s6512 + $0x50] sm:$0xf]
        %v6534 = vld [vmem:[%s6512 + $0x54] sm:$0xf]
        %v6535 = vld [vmem:[%s6512 + $0x58] sm:$0xf]
        %v6536 = vld [vmem:[%s6512 + $0x5c] sm:$0xf]
        %v6537 = vld [vmem:[%s6512 + $0x60] sm:$0xf]
        %v6538 = vld [vmem:[%s6512 + $0x64] sm:$0xf]
        %v6539 = vld [vmem:[%s6512 + $0x68] sm:$0xf]
        %v6540 = vld [vmem:[%s6512 + $0x6c] sm:$0xf]
        %v6541 = vld [vmem:[%s6512 + $0x70] sm:$0xf]
        %v6542 = vld [vmem:[%s6512 + $0x74] sm:$0xf]
        %v6543 = vld [vmem:[%s6512 + $0x78] sm:$0xf]
        %v6544 = vld [vmem:[%s6512 + $0x7c] sm:$0xf]
        %v6545 = vld [vmem:[%s6512 + $0x80] sm:$0xf]
        %v6546 = vld [vmem:[%s6512 + $0x84] sm:$0xf]
        %v6547 = vld [vmem:[%s6512 + $0x88] sm:$0xf]
        %v6548 = vld [vmem:[%s6512 + $0x8c] sm:$0xf]
        %v6549 = vld [vmem:[%s6512 + $0x90] sm:$0xf]
        %v6550 = vld [vmem:[%s6512 + $0x94] sm:$0xf]
        %v6551 = vld [vmem:[%s6512 + $0x98] sm:$0xf]
        %v6552 = vld [vmem:[%s6512 + $0x9c] sm:$0xf]
        %v6553 = vld [vmem:[%s6512 + $0xa0] sm:$0xf]
        %v6554 = vld [vmem:[%s6512 + $0xa4] sm:$0xf]
        %v6555 = vld [vmem:[%s6512 + $0xa8] sm:$0xf]
        %v6556 = vld [vmem:[%s6512 + $0xac] sm:$0xf]
        %v6557 = vld [vmem:[%s6512 + $0xb0] sm:$0xf]
        %v6558 = vld [vmem:[%s6512 + $0xb4] sm:$0xf]
        %v6559 = vld [vmem:[%s6512 + $0xb8] sm:$0xf]
        %v6560 = vld [vmem:[%s6512 + $0xbc] sm:$0xf]
        %v6561 = vld [vmem:[%s6512 + $0xc0] sm:$0xf]
        %v6562 = vld [vmem:[%s6512 + $0xc4] sm:$0xf]
        %v6563 = vld [vmem:[%s6512 + $0xc8] sm:$0xf]
        %v6564 = vld [vmem:[%s6512 + $0xcc] sm:$0xf]
        %v6565 = vld [vmem:[%s6512 + $0xd0] sm:$0xf]
        %v6566 = vld [vmem:[%s6512 + $0xd4] sm:$0xf]
        %v6567 = vld [vmem:[%s6512 + $0xd8] sm:$0xf]
        %v6568 = vld [vmem:[%s6512 + $0xdc] sm:$0xf]
        %v6569 = vld [vmem:[%s6512 + $0xe0] sm:$0xf]
        %v6570 = vld [vmem:[%s6512 + $0xe4] sm:$0xf]
        %v6571 = vld [vmem:[%s6512 + $0xe8] sm:$0xf]
        %v6572 = vld [vmem:[%s6512 + $0xec] sm:$0xf]
        %v6573 = vld [vmem:[%s6512 + $0xf0] sm:$0xf]
        %v6574 = vld [vmem:[%s6512 + $0xf4] sm:$0xf]
        %v6575 = vld [vmem:[%s6512 + $0xf8] sm:$0xf]
        %v6576 = vld [vmem:[%s6512 + $0xfc] sm:$0xf]
        %v6577 = vld [vmem:[%s6512 + $0x100] sm:$0xf]
        %v6578 = vld [vmem:[%s6512 + $0x104] sm:$0xf]
        %v6579 = vld [vmem:[%s6512 + $0x108] sm:$0xf]
        %v6580 = vld [vmem:[%s6512 + $0x10c] sm:$0xf]
        %v6581 = vld [vmem:[%s6512 + $0x110] sm:$0xf]
        %v6582 = vld [vmem:[%s6512 + $0x114] sm:$0xf]
        %v6583 = vld [vmem:[%s6512 + $0x118] sm:$0xf]
        %v6584 = vld [vmem:[%s6512 + $0x11c] sm:$0xf]
        %v6585 = vld [vmem:[%s6512 + $0x120] sm:$0xf]
        %v6586 = vld [vmem:[%s6512 + $0x124] sm:$0xf]
        %v6587 = vld [vmem:[%s6512 + $0x128] sm:$0xf]
        %v6588 = vld [vmem:[%s6512 + $0x12c] sm:$0xf]
        %v6589 = vld [vmem:[%s6512 + $0x130] sm:$0xf]
        %v6590 = vld [vmem:[%s6512 + $0x134] sm:$0xf]
        %v6591 = vld [vmem:[%s6512 + $0x138] sm:$0xf]
        %v6592 = vld [vmem:[%s6512 + $0x13c] sm:$0xf]
        %v6593 = vld [vmem:[%s6512 + $0x140] sm:$0xf]
        %v6594 = vld [vmem:[%s6512 + $0x144] sm:$0xf]
        %v6595 = vld [vmem:[%s6512 + $0x148] sm:$0xf]
        %v6596 = vld [vmem:[%s6512 + $0x14c] sm:$0xf]
        %v6597 = vld [vmem:[%s6512 + $0x150] sm:$0xf]
        %v6598 = vld [vmem:[%s6512 + $0x154] sm:$0xf]
        %v6599 = vld [vmem:[%s6512 + $0x158] sm:$0xf]
        %v6600 = vld [vmem:[%s6512 + $0x15c] sm:$0xf]
        %v6601 = vld [vmem:[%s6512 + $0x160] sm:$0xf]
        %v6602 = vld [vmem:[%s6512 + $0x164] sm:$0xf]
        %v6603 = vld [vmem:[%s6512 + $0x168] sm:$0xf]
        %v6604 = vld [vmem:[%s6512 + $0x16c] sm:$0xf]
        %v6605 = vld [vmem:[%s6512 + $0x170] sm:$0xf]
        %v6606 = vld [vmem:[%s6512 + $0x174] sm:$0xf]
        %v6607 = vld [vmem:[%s6512 + $0x178] sm:$0xf]
        %v6608 = vld [vmem:[%s6512 + $0x17c] sm:$0xf]
        %v6705 = vunpack.c.l.b16 %v6513
        %v6706 = vunpack.c.l.b16 %v6514
        %v6707 = vunpack.c.l.b16 %v6515
        %v6708 = vunpack.c.l.b16 %v6516
        %v6709 = vunpack.c.l.b16 %v6517
        %v6710 = vunpack.c.l.b16 %v6518
        %v6711 = vunpack.c.l.b16 %v6519
        %v6712 = vunpack.c.l.b16 %v6520
        %v6713 = vunpack.c.l.b16 %v6521
        %v6714 = vunpack.c.l.b16 %v6522
        %v6715 = vunpack.c.l.b16 %v6523
        %v6716 = vunpack.c.l.b16 %v6524
        %v6717 = vunpack.c.l.b16 %v6525
        %v6718 = vunpack.c.l.b16 %v6526
        %v6719 = vunpack.c.l.b16 %v6527
        %v6720 = vunpack.c.l.b16 %v6528
        %v6721 = vunpack.c.l.b16 %v6529
        %v6722 = vunpack.c.l.b16 %v6530
        %v6723 = vunpack.c.l.b16 %v6531
        %v6724 = vunpack.c.l.b16 %v6532
        %v6725 = vunpack.c.l.b16 %v6533
        %v6726 = vunpack.c.l.b16 %v6534
        %v6727 = vunpack.c.l.b16 %v6535
        %v6728 = vunpack.c.l.b16 %v6536
        %v6729 = vunpack.c.l.b16 %v6537
        %v6730 = vunpack.c.l.b16 %v6538
        %v6731 = vunpack.c.l.b16 %v6539
        %v6732 = vunpack.c.l.b16 %v6540
        %v6733 = vunpack.c.l.b16 %v6541
        %v6734 = vunpack.c.l.b16 %v6542
        %v6735 = vunpack.c.l.b16 %v6543
        %v6736 = vunpack.c.l.b16 %v6544
        %v6737 = vunpack.c.l.b16 %v6545
        %v6738 = vunpack.c.l.b16 %v6546
        %v6739 = vunpack.c.l.b16 %v6547
        %v6740 = vunpack.c.l.b16 %v6548
        %v6741 = vunpack.c.l.b16 %v6549
        %v6742 = vunpack.c.l.b16 %v6550
        %v6743 = vunpack.c.l.b16 %v6551
        %v6744 = vunpack.c.l.b16 %v6552
        %v6745 = vunpack.c.l.b16 %v6553
        %v6746 = vunpack.c.l.b16 %v6554
        %v6747 = vunpack.c.l.b16 %v6555
        %v6748 = vunpack.c.l.b16 %v6556
        %v6749 = vunpack.c.l.b16 %v6557
        %v6750 = vunpack.c.l.b16 %v6558
        %v6751 = vunpack.c.l.b16 %v6559
        %v6752 = vunpack.c.l.b16 %v6560
        %v6753 = vunpack.c.l.b16 %v6561
        %v6754 = vunpack.c.l.b16 %v6562
        %v6755 = vunpack.c.l.b16 %v6563
        %v6756 = vunpack.c.l.b16 %v6564
        %v6757 = vunpack.c.l.b16 %v6565
        %v6758 = vunpack.c.l.b16 %v6566
        %v6759 = vunpack.c.l.b16 %v6567
        %v6760 = vunpack.c.l.b16 %v6568
        %v6761 = vunpack.c.l.b16 %v6569
        %v6762 = vunpack.c.l.b16 %v6570
        %v6763 = vunpack.c.l.b16 %v6571
        %v6764 = vunpack.c.l.b16 %v6572
        %v6765 = vunpack.c.l.b16 %v6573
        %v6766 = vunpack.c.l.b16 %v6574
        %v6767 = vunpack.c.l.b16 %v6575
        %v6768 = vunpack.c.l.b16 %v6576
        %v6769 = vunpack.c.l.b16 %v6577
        %v6770 = vunpack.c.l.b16 %v6578
        %v6771 = vunpack.c.l.b16 %v6579
        %v6772 = vunpack.c.l.b16 %v6580
        %v6773 = vunpack.c.l.b16 %v6581
        %v6774 = vunpack.c.l.b16 %v6582
        %v6775 = vunpack.c.l.b16 %v6583
        %v6776 = vunpack.c.l.b16 %v6584
        %v6777 = vunpack.c.l.b16 %v6585
        %v6778 = vunpack.c.l.b16 %v6586
        %v6779 = vunpack.c.l.b16 %v6587
        %v6780 = vunpack.c.l.b16 %v6588
        %v6781 = vunpack.c.l.b16 %v6589
        %v6782 = vunpack.c.l.b16 %v6590
        %v6783 = vunpack.c.l.b16 %v6591
        %v6784 = vunpack.c.l.b16 %v6592
        %v6785 = vunpack.c.l.b16 %v6593
        %v6786 = vunpack.c.l.b16 %v6594
        %v6787 = vunpack.c.l.b16 %v6595
        %v6788 = vunpack.c.l.b16 %v6596
        %v6789 = vunpack.c.l.b16 %v6597
        %v6790 = vunpack.c.l.b16 %v6598
        %v6791 = vunpack.c.l.b16 %v6599
        %v6792 = vunpack.c.l.b16 %v6600
        %v6793 = vunpack.c.l.b16 %v6601
        %v6794 = vunpack.c.l.b16 %v6602
        %v6795 = vunpack.c.l.b16 %v6603
        %v6796 = vunpack.c.l.b16 %v6604
        %v6797 = vunpack.c.l.b16 %v6605
        %v6798 = vunpack.c.l.b16 %v6606
        %v6799 = vunpack.c.l.b16 %v6607
        %v6800 = vunpack.c.l.b16 %v6608
        %v6801 = vpack.c.b16 %v6706, %v6705
        %v6802 = vpack.c.b16 %v6708, %v6707
        %v6803 = vpack.c.b16 %v6710, %v6709
        %v6804 = vpack.c.b16 %v6712, %v6711
        %v6805 = vpack.c.b16 %v6714, %v6713
        %v6806 = vpack.c.b16 %v6716, %v6715
        %v6807 = vpack.c.b16 %v6718, %v6717
        %v6808 = vpack.c.b16 %v6720, %v6719
        %v6809 = vpack.c.b16 %v6722, %v6721
        %v6810 = vpack.c.b16 %v6724, %v6723
        %v6811 = vpack.c.b16 %v6726, %v6725
        %v6812 = vpack.c.b16 %v6728, %v6727
        %v6813 = vpack.c.b16 %v6730, %v6729
        %v6814 = vpack.c.b16 %v6732, %v6731
        %v6815 = vpack.c.b16 %v6734, %v6733
        %v6816 = vpack.c.b16 %v6736, %v6735
        %v6817 = vpack.c.b16 %v6738, %v6737
        %v6818 = vpack.c.b16 %v6740, %v6739
        %v6819 = vpack.c.b16 %v6742, %v6741
        %v6820 = vpack.c.b16 %v6744, %v6743
        %v6821 = vpack.c.b16 %v6746, %v6745
        %v6822 = vpack.c.b16 %v6748, %v6747
        %v6823 = vpack.c.b16 %v6750, %v6749
        %v6824 = vpack.c.b16 %v6752, %v6751
        %v6825 = vpack.c.b16 %v6754, %v6753
        %v6826 = vpack.c.b16 %v6756, %v6755
        %v6827 = vpack.c.b16 %v6758, %v6757
        %v6828 = vpack.c.b16 %v6760, %v6759
        %v6829 = vpack.c.b16 %v6762, %v6761
        %v6830 = vpack.c.b16 %v6764, %v6763
        %v6831 = vpack.c.b16 %v6766, %v6765
        %v6832 = vpack.c.b16 %v6768, %v6767
        %v6833 = vpack.c.b16 %v6770, %v6769
        %v6834 = vpack.c.b16 %v6772, %v6771
        %v6835 = vpack.c.b16 %v6774, %v6773
        %v6836 = vpack.c.b16 %v6776, %v6775
        %v6837 = vpack.c.b16 %v6778, %v6777
        %v6838 = vpack.c.b16 %v6780, %v6779
        %v6839 = vpack.c.b16 %v6782, %v6781
        %v6840 = vpack.c.b16 %v6784, %v6783
        %v6841 = vpack.c.b16 %v6786, %v6785
        %v6842 = vpack.c.b16 %v6788, %v6787
        %v6843 = vpack.c.b16 %v6790, %v6789
        %v6844 = vpack.c.b16 %v6792, %v6791
        %v6845 = vpack.c.b16 %v6794, %v6793
        %v6846 = vpack.c.b16 %v6796, %v6795
        %v6847 = vpack.c.b16 %v6798, %v6797
        %v6848 = vpack.c.b16 %v6800, %v6799
        %6897 = vmatprep.subr.bf16.mxu0 0
        %6898 = vmatpush1.bf16.msra.mxu0 %v6801
        %6899 = vmatprep.subr.bf16.mxu0 0
        %6900 = vmatpush1.bf16.msra.mxu0 %v6802
        %6901 = vmatprep.subr.bf16.mxu0 0
        %6902 = vmatpush1.bf16.msra.mxu0 %v6803
        %6903 = vmatprep.subr.bf16.mxu0 0
        %6904 = vmatpush1.bf16.msra.mxu0 %v6804
        %6905 = vmatprep.subr.bf16.mxu0 0
        %6906 = vmatpush1.bf16.msra.mxu0 %v6805
        %6907 = vmatprep.subr.bf16.mxu0 0
        %6908 = vmatpush1.bf16.msra.mxu0 %v6806
        %6909 = vmatprep.subr.bf16.mxu0 0
        %6910 = vmatpush1.bf16.msra.mxu0 %v6807
        %6911 = vmatprep.subr.bf16.mxu0 0
        %6912 = vmatpush1.bf16.msra.mxu0 %v6808
        %6913 = vmatprep.subr.bf16.mxu0 0
        %6914 = vmatpush1.bf16.msra.mxu0 %v6809
        %6915 = vmatprep.subr.bf16.mxu0 0
        %6916 = vmatpush1.bf16.msra.mxu0 %v6810
        %6917 = vmatprep.subr.bf16.mxu0 0
        %6918 = vmatpush1.bf16.msra.mxu0 %v6811
        %6919 = vmatprep.subr.bf16.mxu0 0
        %6920 = vmatpush1.bf16.msra.mxu0 %v6812
        %6921 = vmatprep.subr.bf16.mxu0 0
        %6922 = vmatpush1.bf16.msra.mxu0 %v6813
        %6923 = vmatprep.subr.bf16.mxu0 0
        %6924 = vmatpush1.bf16.msra.mxu0 %v6814
        %6925 = vmatprep.subr.bf16.mxu0 0
        %6926 = vmatpush1.bf16.msra.mxu0 %v6815
        %6927 = vmatprep.subr.bf16.mxu0 0
        %6928 = vmatpush1.bf16.msra.mxu0 %v6816
        %6929 = vmatprep.mubr.bf16.mxu0 %v4564
        %6930 = vmatmul.mubr.bf16.gmra.mrb[0].mxu0 %v4563
        %v6931 = vpop.f32.mrb[0].mxu0
        %v6932 = vadd.f32 0.0, %v6931
        %v6933 = vpop.f32.mrb[0].mxu0
        %v6934 = vpop.f32.mrb[0].mxu0
        %v6935 = vadd.f32 0.0, %v6934
        %v6936 = vpop.f32.mrb[0].mxu0
        %6937 = vmatprep.mubr.bf16.mxu0 %v4566
        %6938 = vmatmul.mubr.bf16.gmra.mrb[0].mxu0 %v4565
        %v6939 = vpop.f32.mrb[0].mxu0
        %v6940 = vadd.f32 0.0, %v6939
        %v6941 = vpop.f32.mrb[0].mxu0
        %v6942 = vpop.f32.mrb[0].mxu0
        %v6943 = vadd.f32 0.0, %v6942
        %v6944 = vpop.f32.mrb[0].mxu0
        %6945 = vmatprep.mubr.bf16.mxu0 %v4568
        %6946 = vmatmul.mubr.bf16.gmra.mrb[0].mxu0 %v4567
        %v6947 = vpop.f32.mrb[0].mxu0
        %v6948 = vadd.f32 0.0, %v6947
        %v6949 = vpop.f32.mrb[0].mxu0
        %v6950 = vpop.f32.mrb[0].mxu0
        %v6951 = vadd.f32 0.0, %v6950
        %v6952 = vpop.f32.mrb[0].mxu0
        %6953 = vmatprep.mubr.bf16.mxu0 %v4570
        %6954 = vmatmul.mubr.bf16.gmra.mrb[0].mxu0 %v4569
        %v6955 = vpop.f32.mrb[0].mxu0
        %v6956 = vadd.f32 0.0, %v6955
        %v6957 = vpop.f32.mrb[0].mxu0
        %v6958 = vpop.f32.mrb[0].mxu0
        %v6959 = vadd.f32 0.0, %v6958
        %v6960 = vpop.f32.mrb[0].mxu0
        %6961 = vmatprep.mubr.bf16.mxu0 %v4572
        %6962 = vmatmul.mubr.bf16.gmra.mrb[0].mxu0 %v4571
        %v6963 = vpop.f32.mrb[0].mxu0
        %v6964 = vadd.f32 0.0, %v6963
        %v6965 = vpop.f32.mrb[0].mxu0
        %v6966 = vpop.f32.mrb[0].mxu0
        %v6967 = vadd.f32 0.0, %v6966
        %v6968 = vpop.f32.mrb[0].mxu0
        %6969 = vmatprep.mubr.bf16.mxu0 %v4574
        %6970 = vmatmul.mubr.bf16.gmra.mrb[0].mxu0 %v4573
        %v6971 = vpop.f32.mrb[0].mxu0
        %v6972 = vadd.f32 0.0, %v6971
        %v6973 = vpop.f32.mrb[0].mxu0
        %v6974 = vpop.f32.mrb[0].mxu0
        %v6975 = vadd.f32 0.0, %v6974
        %v6976 = vpop.f32.mrb[0].mxu0
        %6977 = vmatprep.mubr.bf16.mxu0 %v4576
        %6978 = vmatmul.mubr.bf16.gmra.mrb[0].mxu0 %v4575
        %v6979 = vpop.f32.mrb[0].mxu0
        %v6980 = vadd.f32 0.0, %v6979
        %v6981 = vpop.f32.mrb[0].mxu0
        %v6982 = vpop.f32.mrb[0].mxu0
        %v6983 = vadd.f32 0.0, %v6982
        %v6984 = vpop.f32.mrb[0].mxu0
        %6985 = vmatprep.mubr.bf16.mxu0 %v4578
        %6986 = vmatmul.mubr.bf16.gmra.mrb[0].mxu0 %v4577
        %v6987 = vpop.f32.mrb[0].mxu0
        %v6988 = vadd.f32 0.0, %v6987
        %v6989 = vpop.f32.mrb[0].mxu0
        %v6990 = vpop.f32.mrb[0].mxu0
        %v6991 = vadd.f32 0.0, %v6990
        %v6992 = vpop.f32.mrb[0].mxu0
        %6993 = vmatprep.mubr.bf16.mxu0 %v4580
        %6994 = vmatmul.mubr.bf16.gmra.mrb[0].mxu0 %v4579
        %v6995 = vpop.f32.mrb[0].mxu0
        %v6996 = vadd.f32 0.0, %v6995
        %v6997 = vpop.f32.mrb[0].mxu0
        %v6998 = vpop.f32.mrb[0].mxu0
        %v6999 = vadd.f32 0.0, %v6998
        %v7000 = vpop.f32.mrb[0].mxu0
        %7001 = vmatprep.mubr.bf16.mxu0 %v4582
        %7002 = vmatmul.mubr.bf16.gmra.mrb[0].mxu0 %v4581
        %v7003 = vpop.f32.mrb[0].mxu0
        %v7004 = vadd.f32 0.0, %v7003
        %v7005 = vpop.f32.mrb[0].mxu0
        %v7006 = vpop.f32.mrb[0].mxu0
        %v7007 = vadd.f32 0.0, %v7006
        %v7008 = vpop.f32.mrb[0].mxu0
        %7009 = vdwg.mxu0
        %7010 = vmatprep.subr.bf16.mxu0 0
        %7011 = vmatpush1.bf16.msra.mxu0 %v6817
        %7012 = vmatprep.subr.bf16.mxu0 0
        %7013 = vmatpush1.bf16.msra.mxu0 %v6818
        %7014 = vmatprep.subr.bf16.mxu0 0
        %7015 = vmatpush1.bf16.msra.mxu0 %v6819
        %7016 = vmatprep.subr.bf16.mxu0 0
        %7017 = vmatpush1.bf16.msra.mxu0 %v6820
        %7018 = vmatprep.subr.bf16.mxu0 0
        %7019 = vmatpush1.bf16.msra.mxu0 %v6821
        %7020 = vmatprep.subr.bf16.mxu0 0
        %7021 = vmatpush1.bf16.msra.mxu0 %v6822
        %7022 = vmatprep.subr.bf16.mxu0 0
        %7023 = vmatpush1.bf16.msra.mxu0 %v6823
        %7024 = vmatprep.subr.bf16.mxu0 0
        %7025 = vmatpush1.bf16.msra.mxu0 %v6824
        %7026 = vmatprep.subr.bf16.mxu0 0
        %7027 = vmatpush1.bf16.msra.mxu0 %v6825
        %7028 = vmatprep.subr.bf16.mxu0 0
        %7029 = vmatpush1.bf16.msra.mxu0 %v6826
        %7030 = vmatprep.subr.bf16.mxu0 0
        %7031 = vmatpush1.bf16.msra.mxu0 %v6827
        %7032 = vmatprep.subr.bf16.mxu0 0
        %7033 = vmatpush1.bf16.msra.mxu0 %v6828
        %7034 = vmatprep.subr.bf16.mxu0 0
        %7035 = vmatpush1.bf16.msra.mxu0 %v6829
        %7036 = vmatprep.subr.bf16.mxu0 0
        %7037 = vmatpush1.bf16.msra.mxu0 %v6830
        %7038 = vmatprep.subr.bf16.mxu0 0
        %7039 = vmatpush1.bf16.msra.mxu0 %v6831
        %7040 = vmatprep.subr.bf16.mxu0 0
        %7041 = vmatpush1.bf16.msra.mxu0 %v6832
        %7042 = vmatprep.mubr.bf16.mxu0 %v4679
        %7043 = vmatmul.mubr.bf16.gmra.mrb[0].mxu0 %v4667
        %v7044 = vpop.f32.mrb[0].mxu0
        %v7045 = vadd.f32 %v6932, %v7044
        %v7046 = vpop.f32.mrb[0].mxu0
        %v7047 = vpop.f32.mrb[0].mxu0
        %v7048 = vadd.f32 %v6935, %v7047
        %v7049 = vpop.f32.mrb[0].mxu0
        %7050 = vmatprep.mubr.bf16.mxu0 %v4703
        %7051 = vmatmul.mubr.bf16.gmra.mrb[0].mxu0 %v4691
        %v7052 = vpop.f32.mrb[0].mxu0
        %v7053 = vadd.f32 %v6940, %v7052
        %v7054 = vpop.f32.mrb[0].mxu0
        %v7055 = vpop.f32.mrb[0].mxu0
        %v7056 = vadd.f32 %v6943, %v7055
        %v7057 = vpop.f32.mrb[0].mxu0
        %7058 = vmatprep.mubr.bf16.mxu0 %v4727
        %7059 = vmatmul.mubr.bf16.gmra.mrb[0].mxu0 %v4715
        %v7060 = vpop.f32.mrb[0].mxu0
        %v7061 = vadd.f32 %v6948, %v7060
        %v7062 = vpop.f32.mrb[0].mxu0
        %v7063 = vpop.f32.mrb[0].mxu0
        %v7064 = vadd.f32 %v6951, %v7063
        %v7065 = vpop.f32.mrb[0].mxu0
        %7066 = vmatprep.mubr.bf16.mxu0 %v4751
        %7067 = vmatmul.mubr.bf16.gmra.mrb[0].mxu0 %v4739
        %v7068 = vpop.f32.mrb[0].mxu0
        %v7069 = vadd.f32 %v6956, %v7068
        %v7070 = vpop.f32.mrb[0].mxu0
        %v7071 = vpop.f32.mrb[0].mxu0
        %v7072 = vadd.f32 %v6959, %v7071
        %v7073 = vpop.f32.mrb[0].mxu0
        %7074 = vmatprep.mubr.bf16.mxu0 %v4775
        %7075 = vmatmul.mubr.bf16.gmra.mrb[0].mxu0 %v4763
        %v7076 = vpop.f32.mrb[0].mxu0
        %v7077 = vadd.f32 %v6964, %v7076
        %v7078 = vpop.f32.mrb[0].mxu0
        %v7079 = vpop.f32.mrb[0].mxu0
        %v7080 = vadd.f32 %v6967, %v7079
        %v7081 = vpop.f32.mrb[0].mxu0
        %7082 = vmatprep.mubr.bf16.mxu0 %v4799
        %7083 = vmatmul.mubr.bf16.gmra.mrb[0].mxu0 %v4787
        %v7084 = vpop.f32.mrb[0].mxu0
        %v7085 = vadd.f32 %v6972, %v7084
        %v7086 = vpop.f32.mrb[0].mxu0
        %v7087 = vpop.f32.mrb[0].mxu0
        %v7088 = vadd.f32 %v6975, %v7087
        %v7089 = vpop.f32.mrb[0].mxu0
        %7090 = vmatprep.mubr.bf16.mxu0 %v4823
        %7091 = vmatmul.mubr.bf16.gmra.mrb[0].mxu0 %v4811
        %v7092 = vpop.f32.mrb[0].mxu0
        %v7093 = vadd.f32 %v6980, %v7092
        %v7094 = vpop.f32.mrb[0].mxu0
        %v7095 = vpop.f32.mrb[0].mxu0
        %v7096 = vadd.f32 %v6983, %v7095
        %v7097 = vpop.f32.mrb[0].mxu0
        %7098 = vmatprep.mubr.bf16.mxu0 %v4847
        %7099 = vmatmul.mubr.bf16.gmra.mrb[0].mxu0 %v4835
        %v7100 = vpop.f32.mrb[0].mxu0
        %v7101 = vadd.f32 %v6988, %v7100
        %v7102 = vpop.f32.mrb[0].mxu0
        %v7103 = vpop.f32.mrb[0].mxu0
        %v7104 = vadd.f32 %v6991, %v7103
        %v7105 = vpop.f32.mrb[0].mxu0
        %7106 = vmatprep.mubr.bf16.mxu0 %v5108
        %7107 = vmatmul.mubr.bf16.gmra.mrb[0].mxu0 %v5096
        %v7108 = vpop.f32.mrb[0].mxu0
        %v7109 = vadd.f32 %v6996, %v7108
        %v7110 = vpop.f32.mrb[0].mxu0
        %v7111 = vpop.f32.mrb[0].mxu0
        %v7112 = vadd.f32 %v6999, %v7111
        %v7113 = vpop.f32.mrb[0].mxu0
        %7114 = vmatprep.mubr.bf16.mxu0 %v6497
        %7115 = vmatmul.mubr.bf16.gmra.mrb[0].mxu0 %v6485
        %v7116 = vpop.f32.mrb[0].mxu0
        %v7117 = vadd.f32 %v7004, %v7116
        %v7118 = vpop.f32.mrb[0].mxu0
        %v7119 = vpop.f32.mrb[0].mxu0
        %v7120 = vadd.f32 %v7007, %v7119
        %v7121 = vpop.f32.mrb[0].mxu0
        %7122 = vdwg.mxu0
        %7123 = vmatprep.subr.bf16.mxu0 0
        %7124 = vmatpush1.bf16.msra.mxu0 %v6833
        %7125 = vmatprep.subr.bf16.mxu0 0
        %7126 = vmatpush1.bf16.msra.mxu0 %v6834
        %7127 = vmatprep.subr.bf16.mxu0 0
        %7128 = vmatpush1.bf16.msra.mxu0 %v6835
        %7129 = vmatprep.subr.bf16.mxu0 0
        %7130 = vmatpush1.bf16.msra.mxu0 %v6836
        %7131 = vmatprep.subr.bf16.mxu0 0
        %7132 = vmatpush1.bf16.msra.mxu0 %v6837
        %7133 = vmatprep.subr.bf16.mxu0 0
        %7134 = vmatpush1.bf16.msra.mxu0 %v6838
        %7135 = vmatprep.subr.bf16.mxu0 0
        %7136 = vmatpush1.bf16.msra.mxu0 %v6839
        %7137 = vmatprep.subr.bf16.mxu0 0
        %7138 = vmatpush1.bf16.msra.mxu0 %v6840
        %7139 = vmatprep.subr.bf16.mxu0 0
        %7140 = vmatpush1.bf16.msra.mxu0 %v6841
        %7141 = vmatprep.subr.bf16.mxu0 0
        %7142 = vmatpush1.bf16.msra.mxu0 %v6842
        %7143 = vmatprep.subr.bf16.mxu0 0
        %7144 = vmatpush1.bf16.msra.mxu0 %v6843
        %7145 = vmatprep.subr.bf16.mxu0 0
        %7146 = vmatpush1.bf16.msra.mxu0 %v6844
        %7147 = vmatprep.subr.bf16.mxu0 0
        %7148 = vmatpush1.bf16.msra.mxu0 %v6845
        %7149 = vmatprep.subr.bf16.mxu0 0
        %7150 = vmatpush1.bf16.msra.mxu0 %v6846
        %7151 = vmatprep.subr.bf16.mxu0 0
        %7152 = vmatpush1.bf16.msra.mxu0 %v6847
        %7153 = vmatprep.subr.bf16.mxu0 0
        %7154 = vmatpush1.bf16.msra.mxu0 %v6848
        %7155 = vmatprep.mubr.bf16.mxu0 %v4926
        %7156 = vmatmul.mubr.bf16.gmra.mrb[0].mxu0 %v4923
        %v7157 = vpop.f32.mrb[0].mxu0
        %v7158 = vadd.f32 %v7045, %v7157
        %v7159 = vpop.f32.mrb[0].mxu0
        %v7160 = vpop.f32.mrb[0].mxu0
        %v7161 = vadd.f32 %v7048, %v7160
        %v7162 = vpop.f32.mrb[0].mxu0
        %7163 = vmatprep.mubr.bf16.mxu0 %v4932
        %7164 = vmatmul.mubr.bf16.gmra.mrb[0].mxu0 %v4929
        %v7165 = vpop.f32.mrb[0].mxu0
        %v7166 = vadd.f32 %v7053, %v7165
        %v7167 = vpop.f32.mrb[0].mxu0
        %v7168 = vpop.f32.mrb[0].mxu0
        %v7169 = vadd.f32 %v7056, %v7168
        %v7170 = vpop.f32.mrb[0].mxu0
        %7171 = vmatprep.mubr.bf16.mxu0 %v4938
        %7172 = vmatmul.mubr.bf16.gmra.mrb[0].mxu0 %v4935
        %v7173 = vpop.f32.mrb[0].mxu0
        %v7174 = vadd.f32 %v7061, %v7173
        %v7175 = vpop.f32.mrb[0].mxu0
        %v7176 = vpop.f32.mrb[0].mxu0
        %v7177 = vadd.f32 %v7064, %v7176
        %v7178 = vpop.f32.mrb[0].mxu0
        %7179 = vmatprep.mubr.bf16.mxu0 %v4944
        %7180 = vmatmul.mubr.bf16.gmra.mrb[0].mxu0 %v4941
        %v7181 = vpop.f32.mrb[0].mxu0
        %v7182 = vadd.f32 %v7069, %v7181
        %v7183 = vpop.f32.mrb[0].mxu0
        %v7184 = vpop.f32.mrb[0].mxu0
        %v7185 = vadd.f32 %v7072, %v7184
        %v7186 = vpop.f32.mrb[0].mxu0
        %7187 = vmatprep.mubr.bf16.mxu0 %v4950
        %7188 = vmatmul.mubr.bf16.gmra.mrb[0].mxu0 %v4947
        %v7189 = vpop.f32.mrb[0].mxu0
        %v7190 = vadd.f32 %v7077, %v7189
        %v7191 = vpop.f32.mrb[0].mxu0
        %v7192 = vpop.f32.mrb[0].mxu0
        %v7193 = vadd.f32 %v7080, %v7192
        %v7194 = vpop.f32.mrb[0].mxu0
        %7195 = vmatprep.mubr.bf16.mxu0 %v4956
        %7196 = vmatmul.mubr.bf16.gmra.mrb[0].mxu0 %v4953
        %v7197 = vpop.f32.mrb[0].mxu0
        %v7198 = vadd.f32 %v7085, %v7197
        %v7199 = vpop.f32.mrb[0].mxu0
        %v7200 = vpop.f32.mrb[0].mxu0
        %v7201 = vadd.f32 %v7088, %v7200
        %v7202 = vpop.f32.mrb[0].mxu0
        %7203 = vmatprep.mubr.bf16.mxu0 %v4962
        %7204 = vmatmul.mubr.bf16.gmra.mrb[0].mxu0 %v4959
        %v7205 = vpop.f32.mrb[0].mxu0
        %v7206 = vadd.f32 %v7093, %v7205
        %v7207 = vpop.f32.mrb[0].mxu0
        %v7208 = vpop.f32.mrb[0].mxu0
        %v7209 = vadd.f32 %v7096, %v7208
        %v7210 = vpop.f32.mrb[0].mxu0
        %7211 = vmatprep.mubr.bf16.mxu0 %v4968
        %7212 = vmatmul.mubr.bf16.gmra.mrb[0].mxu0 %v4965
        %v7213 = vpop.f32.mrb[0].mxu0
        %v7214 = vadd.f32 %v7101, %v7213
        %v7215 = vpop.f32.mrb[0].mxu0
        %v7216 = vpop.f32.mrb[0].mxu0
        %v7217 = vadd.f32 %v7104, %v7216
        %v7218 = vpop.f32.mrb[0].mxu0
        %7219 = vmatprep.mubr.bf16.mxu0 %v5120
        %7220 = vmatmul.mubr.bf16.gmra.mrb[0].mxu0 %v5117
        %v7221 = vpop.f32.mrb[0].mxu0
        %v7222 = vadd.f32 %v7109, %v7221
        %v7223 = vpop.f32.mrb[0].mxu0
        %v7224 = vpop.f32.mrb[0].mxu0
        %v7225 = vadd.f32 %v7112, %v7224
        %v7226 = vpop.f32.mrb[0].mxu0
        %7227 = vmatprep.mubr.bf16.mxu0 %v6509
        %7228 = vmatmul.mubr.bf16.gmra.mrb[0].mxu0 %v6506
        %v7229 = vpop.f32.mrb[0].mxu0
        %v7230 = vadd.f32 %v7117, %v7229
        %v7231 = vpop.f32.mrb[0].mxu0
        %v7232 = vpop.f32.mrb[0].mxu0
        %v7233 = vadd.f32 %v7120, %v7232
        %v7234 = vpop.f32.mrb[0].mxu0
        %7235 = vdwg.mxu0
        %v7236 = vadd.f32 %v6396, %v7158
        %v7237 = vadd.f32 %v6399, %v7161
        %v7238 = vadd.f32 %v6404, %v7166
        %v7239 = vadd.f32 %v6407, %v7169
        %v7240 = vadd.f32 %v6412, %v7174
        %v7241 = vadd.f32 %v6415, %v7177
        %v7242 = vadd.f32 %v6420, %v7182
        %v7243 = vadd.f32 %v6423, %v7185
        %v7244 = vadd.f32 %v6428, %v7190
        %v7245 = vadd.f32 %v6431, %v7193
        %v7246 = vadd.f32 %v6436, %v7198
        %v7247 = vadd.f32 %v6439, %v7201
        %v7248 = vadd.f32 %v6444, %v7206
        %v7249 = vadd.f32 %v6447, %v7209
        %v7250 = vadd.f32 %v6452, %v7214
        %v7251 = vadd.f32 %v6455, %v7217
        %v7252 = vadd.f32 %v6460, %v7222
        %v7253 = vadd.f32 %v6463, %v7225
        %v7254 = vadd.f32 %v6468, %v7230
        %v7255 = vadd.f32 %v6471, %v7233
        %v7256 = vld [vmem:[%s5 + $0x1] sm:$0x1]
        %v7257 = vlaneseq
        %v7258 = vshrl.u32 %v7257, 7
        %v7259 = vsub.s32 0, %v7258
        %v7260 = vrot.slane %v7256, %v7259
        %v7261 = vadd.f32 %v7236, %v7260
        %v7262 = vadd.f32 %v7237, %v7260
        %v7263 = vadd.f32 %v7238, %v7260
        %v7264 = vadd.f32 %v7239, %v7260
        %v7265 = vadd.f32 %v7240, %v7260
        %v7266 = vadd.f32 %v7241, %v7260
        %v7267 = vadd.f32 %v7242, %v7260
        %v7268 = vadd.f32 %v7243, %v7260
        %v7269 = vadd.f32 %v7244, %v7260
        %v7270 = vadd.f32 %v7245, %v7260
        %v7271 = vadd.f32 %v7246, %v7260
        %v7272 = vadd.f32 %v7247, %v7260
        %v7273 = vadd.f32 %v7248, %v7260
        %v7274 = vadd.f32 %v7249, %v7260
        %v7275 = vadd.f32 %v7250, %v7260
        %v7276 = vadd.f32 %v7251, %v7260
        %v7277 = vadd.f32 %v7252, %v7260
        %v7278 = vadd.f32 %v7253, %v7260
        %v7279 = vadd.f32 %v7254, %v7260
        %v7280 = vadd.f32 %v7255, %v7260
        %v7281 = vmax.f32 %v7261, 0.0
        %v7282 = vmax.f32 %v7262, 0.0
        %v7283 = vmax.f32 %v7263, 0.0
        %v7284 = vmax.f32 %v7264, 0.0
        %v7285 = vmax.f32 %v7265, 0.0
        %v7286 = vmax.f32 %v7266, 0.0
        %v7287 = vmax.f32 %v7267, 0.0
        %v7288 = vmax.f32 %v7268, 0.0
        %v7289 = vmax.f32 %v7269, 0.0
        %v7290 = vmax.f32 %v7270, 0.0
        %v7291 = vmax.f32 %v7271, 0.0
        %v7292 = vmax.f32 %v7272, 0.0
        %v7293 = vmax.f32 %v7273, 0.0
        %v7294 = vmax.f32 %v7274, 0.0
        %v7295 = vmax.f32 %v7275, 0.0
        %v7296 = vmax.f32 %v7276, 0.0
        %v7297 = vmax.f32 %v7277, 0.0
        %v7298 = vmax.f32 %v7278, 0.0
        %v7299 = vmax.f32 %v7279, 0.0
        %v7300 = vmax.f32 %v7280, 0.0
        %s7301 = ssub.s32 %s385, 1
        %v7302 = vstv %s7301
        %v7303 = vadd.s32 %v7302, 1
        %v7304 = vadd.s32 %v7302, 2
        %v7305 = vadd.s32 %v7302, 3
        %v7306 = vadd.s32 %v7302, 4
        %v7307 = vadd.s32 %v7302, 5
        %v7308 = vadd.s32 %v7302, 6
        %v7309 = vadd.s32 %v7302, 7
        %v7310 = vadd.s32 %v7302, 8
        %v7311 = vadd.s32 %v7302, 9
        %vm7312 = vcmp.ge.s32.totalorder %v7302, 0
        %vm7313 = vcmp.ge.s32.totalorder %v7303, 0
        %vm7314 = vcmp.ge.s32.totalorder %v7304, 0
        %vm7315 = vcmp.ge.s32.totalorder %v7305, 0
        %vm7316 = vcmp.ge.s32.totalorder %v7306, 0
        %vm7317 = vcmp.ge.s32.totalorder %v7307, 0
        %vm7318 = vcmp.ge.s32.totalorder %v7308, 0
        %vm7319 = vcmp.ge.s32.totalorder %v7309, 0
        %vm7320 = vcmp.ge.s32.totalorder %v7310, 0
        %vm7321 = vcmp.ge.s32.totalorder %v7311, 0
        %vm7322 = vcmp.lt.s32.totalorder %v7302, 16
        %vm7323 = vcmp.lt.s32.totalorder %v7303, 16
        %vm7324 = vcmp.lt.s32.totalorder %v7304, 16
        %vm7325 = vcmp.lt.s32.totalorder %v7305, 16
        %vm7326 = vcmp.lt.s32.totalorder %v7306, 16
        %vm7327 = vcmp.lt.s32.totalorder %v7307, 16
        %vm7328 = vcmp.lt.s32.totalorder %v7308, 16
        %vm7329 = vcmp.lt.s32.totalorder %v7309, 16
        %vm7330 = vcmp.lt.s32.totalorder %v7310, 16
        %vm7331 = vcmp.lt.s32.totalorder %v7311, 16
        %vm7332 = vmand %vm7312, %vm7322
        %vm7333 = vmand %vm7313, %vm7323
        %vm7334 = vmand %vm7314, %vm7324
        %vm7335 = vmand %vm7315, %vm7325
        %vm7336 = vmand %vm7316, %vm7326
        %vm7337 = vmand %vm7317, %vm7327
        %vm7338 = vmand %vm7318, %vm7328
        %vm7339 = vmand %vm7319, %vm7329
        %vm7340 = vmand %vm7320, %vm7330
        %vm7341 = vmand %vm7321, %vm7331
        %v7342 = vsel %vm7332, 1, 0
        %v7343 = vsel %vm7333, 1, 0
        %v7344 = vsel %vm7334, 1, 0
        %v7345 = vsel %vm7335, 1, 0
        %v7346 = vsel %vm7336, 1, 0
        %v7347 = vsel %vm7337, 1, 0
        %v7348 = vsel %vm7338, 1, 0
        %v7349 = vsel %vm7339, 1, 0
        %v7350 = vsel %vm7340, 1, 0
        %v7351 = vsel %vm7341, 1, 0
        %vm7352 = vcmp.eq.s32.totalorder %v7342, 1
        %vm7353 = vcmp.eq.s32.totalorder %v7343, 1
        %vm7354 = vcmp.eq.s32.totalorder %v7344, 1
        %vm7355 = vcmp.eq.s32.totalorder %v7345, 1
        %vm7356 = vcmp.eq.s32.totalorder %v7346, 1
        %vm7357 = vcmp.eq.s32.totalorder %v7347, 1
        %vm7358 = vcmp.eq.s32.totalorder %v7348, 1
        %vm7359 = vcmp.eq.s32.totalorder %v7349, 1
        %vm7360 = vcmp.eq.s32.totalorder %v7350, 1
        %vm7361 = vcmp.eq.s32.totalorder %v7351, 1
        %v7362 = vsel %vm7352, %v7281, 0.0
        %v7363 = vsel %vm7352, %v7282, 0.0
        %v7364 = vsel %vm7353, %v7283, 0.0
        %v7365 = vsel %vm7353, %v7284, 0.0
        %v7366 = vsel %vm7354, %v7285, 0.0
        %v7367 = vsel %vm7354, %v7286, 0.0
        %v7368 = vsel %vm7355, %v7287, 0.0
        %v7369 = vsel %vm7355, %v7288, 0.0
        %v7370 = vsel %vm7356, %v7289, 0.0
        %v7371 = vsel %vm7356, %v7290, 0.0
        %v7372 = vsel %vm7357, %v7291, 0.0
        %v7373 = vsel %vm7357, %v7292, 0.0
        %v7374 = vsel %vm7358, %v7293, 0.0
        %v7375 = vsel %vm7358, %v7294, 0.0
        %v7376 = vsel %vm7359, %v7295, 0.0
        %v7377 = vsel %vm7359, %v7296, 0.0
        %v7378 = vsel %vm7360, %v7297, 0.0
        %v7379 = vsel %vm7360, %v7298, 0.0
        %v7380 = vsel %vm7361, %v7299, 0.0
        %v7381 = vsel %vm7361, %v7300, 0.0
        %v7382 = vpack.c.bf16 %v7363, %v7362
        %v7383 = vpack.c.bf16 %v7365, %v7364
        %v7384 = vpack.c.bf16 %v7367, %v7366
        %v7385 = vpack.c.bf16 %v7369, %v7368
        %v7386 = vpack.c.bf16 %v7371, %v7370
        %v7387 = vpack.c.bf16 %v7373, %v7372
        %v7388 = vpack.c.bf16 %v7375, %v7374
        %v7389 = vpack.c.bf16 %v7377, %v7376
        %v7390 = vpack.c.bf16 %v7379, %v7378
        %v7391 = vpack.c.bf16 %v7381, %v7380
        %v7393 = vshrl.u32 %v7382, 16
        %v7395 = vrot.slane %v7393, 7
        %v7396 = vshll.u32 %v7382, 16
        %v7398 = vor.u32 %v7395, %v7396
        %v7400 = vshrl.u32 %v7383, 16
        %v7402 = vrot.slane %v7400, 7
        %v7403 = vshll.u32 %v7383, 16
        %v7405 = vor.u32 %v7402, %v7403
        %v7407 = vshrl.u32 %v7384, 16
        %v7409 = vrot.slane %v7407, 7
        %v7410 = vshll.u32 %v7384, 16
        %v7412 = vor.u32 %v7409, %v7410
        %v7414 = vshrl.u32 %v7385, 16
        %v7416 = vrot.slane %v7414, 7
        %v7417 = vshll.u32 %v7385, 16
        %v7419 = vor.u32 %v7416, %v7417
        %v7421 = vshrl.u32 %v7386, 16
        %v7423 = vrot.slane %v7421, 7
        %v7424 = vshll.u32 %v7386, 16
        %v7426 = vor.u32 %v7423, %v7424
        %v7428 = vshrl.u32 %v7387, 16
        %v7430 = vrot.slane %v7428, 7
        %v7431 = vshll.u32 %v7387, 16
        %v7433 = vor.u32 %v7430, %v7431
        %v7435 = vshrl.u32 %v7388, 16
        %v7437 = vrot.slane %v7435, 7
        %v7438 = vshll.u32 %v7388, 16
        %v7440 = vor.u32 %v7437, %v7438
        %v7442 = vshrl.u32 %v7389, 16
        %v7444 = vrot.slane %v7442, 7
        %v7445 = vshll.u32 %v7389, 16
        %v7447 = vor.u32 %v7444, %v7445
        %v7449 = vshrl.u32 %v7390, 16
        %v7451 = vrot.slane %v7449, 7
        %v7452 = vshll.u32 %v7390, 16
        %v7454 = vor.u32 %v7451, %v7452
        %v7456 = vshrl.u32 %v7391, 16
        %v7458 = vrot.slane %v7456, 7
        %v7459 = vshll.u32 %v7391, 16
        %v7461 = vor.u32 %v7458, %v7459
        %v7482 = vsel %vm4558, 0, %v7398
        %v7483 = vsel %vm4558, 0, %v7405
        %v7484 = vsel %vm4558, 0, %v7412
        %v7485 = vsel %vm4558, 0, %v7419
        %v7486 = vsel %vm4558, 0, %v7426
        %v7487 = vsel %vm4558, 0, %v7433
        %v7488 = vsel %vm4558, 0, %v7440
        %v7489 = vsel %vm4558, 0, %v7447
        %v7490 = vsel %vm4558, 0, %v7454
        %v7491 = vsel %vm4558, 0, %v7461
        %v7492 = vsel %vm4558, %v7395, 0
        %v7493 = vsel %vm4558, %v7402, 0
        %v7494 = vsel %vm4558, %v7409, 0
        %v7495 = vsel %vm4558, %v7416, 0
        %v7496 = vsel %vm4558, %v7423, 0
        %v7497 = vsel %vm4558, %v7430, 0
        %v7498 = vsel %vm4558, %v7437, 0
        %v7499 = vsel %vm4558, %v7444, 0
        %v7500 = vsel %vm4558, %v7451, 0
        %v7501 = vsel %vm4558, %v7458, 0
        %v7503 = vshrl.u32 %v7482, 16
        %v7505 = vshll.u32 %v7482, 16
        %v7507 = vrot.slane %v7505, 1
        %v7508 = vor.u32 %v7503, %v7507
        %v7510 = vshll.u32 %v7492, 16
        %v7512 = vrot.slane %v7510, 1
        %v7513 = vsel %vm4607, %v7508, %v7512
        %v7515 = vshrl.u32 %v7483, 16
        %v7517 = vshll.u32 %v7483, 16
        %v7519 = vrot.slane %v7517, 1
        %v7520 = vor.u32 %v7515, %v7519
        %v7522 = vshll.u32 %v7493, 16
        %v7524 = vrot.slane %v7522, 1
        %v7525 = vsel %vm4607, %v7520, %v7524
        %v7527 = vshrl.u32 %v7484, 16
        %v7529 = vshll.u32 %v7484, 16
        %v7531 = vrot.slane %v7529, 1
        %v7532 = vor.u32 %v7527, %v7531
        %v7534 = vshll.u32 %v7494, 16
        %v7536 = vrot.slane %v7534, 1
        %v7537 = vsel %vm4607, %v7532, %v7536
        %v7539 = vshrl.u32 %v7485, 16
        %v7541 = vshll.u32 %v7485, 16
        %v7543 = vrot.slane %v7541, 1
        %v7544 = vor.u32 %v7539, %v7543
        %v7546 = vshll.u32 %v7495, 16
        %v7548 = vrot.slane %v7546, 1
        %v7549 = vsel %vm4607, %v7544, %v7548
        %v7551 = vshrl.u32 %v7486, 16
        %v7553 = vshll.u32 %v7486, 16
        %v7555 = vrot.slane %v7553, 1
        %v7556 = vor.u32 %v7551, %v7555
        %v7558 = vshll.u32 %v7496, 16
        %v7560 = vrot.slane %v7558, 1
        %v7561 = vsel %vm4607, %v7556, %v7560
        %v7563 = vshrl.u32 %v7487, 16
        %v7565 = vshll.u32 %v7487, 16
        %v7567 = vrot.slane %v7565, 1
        %v7568 = vor.u32 %v7563, %v7567
        %v7570 = vshll.u32 %v7497, 16
        %v7572 = vrot.slane %v7570, 1
        %v7573 = vsel %vm4607, %v7568, %v7572
        %v7575 = vshrl.u32 %v7488, 16
        %v7577 = vshll.u32 %v7488, 16
        %v7579 = vrot.slane %v7577, 1
        %v7580 = vor.u32 %v7575, %v7579
        %v7582 = vshll.u32 %v7498, 16
        %v7584 = vrot.slane %v7582, 1
        %v7585 = vsel %vm4607, %v7580, %v7584
        %v7587 = vshrl.u32 %v7489, 16
        %v7589 = vshll.u32 %v7489, 16
        %v7591 = vrot.slane %v7589, 1
        %v7592 = vor.u32 %v7587, %v7591
        %v7594 = vshll.u32 %v7499, 16
        %v7596 = vrot.slane %v7594, 1
        %v7597 = vsel %vm4607, %v7592, %v7596
        %v7622 = vrot.slane %v7482, 1
        %v7623 = vrot.slane %v7492, 1
        %v7624 = vsel %vm4908, %v7622, %v7623
        %v7625 = vrot.slane %v7483, 1
        %v7626 = vrot.slane %v7493, 1
        %v7627 = vsel %vm4908, %v7625, %v7626
        %v7628 = vrot.slane %v7484, 1
        %v7629 = vrot.slane %v7494, 1
        %v7630 = vsel %vm4908, %v7628, %v7629
        %v7631 = vrot.slane %v7485, 1
        %v7632 = vrot.slane %v7495, 1
        %v7633 = vsel %vm4908, %v7631, %v7632
        %v7634 = vrot.slane %v7486, 1
        %v7635 = vrot.slane %v7496, 1
        %v7636 = vsel %vm4908, %v7634, %v7635
        %v7637 = vrot.slane %v7487, 1
        %v7638 = vrot.slane %v7497, 1
        %v7639 = vsel %vm4908, %v7637, %v7638
        %v7640 = vrot.slane %v7488, 1
        %v7641 = vrot.slane %v7498, 1
        %v7642 = vsel %vm4908, %v7640, %v7641
        %v7643 = vrot.slane %v7489, 1
        %v7644 = vrot.slane %v7499, 1
        %v7645 = vsel %vm4908, %v7643, %v7644
        %v7654 = vld [vmem:[#allocation10] sm:$0xf]
        %v7655 = vld [vmem:[#allocation10 + $0x4] sm:$0xf]
        %v7656 = vld [vmem:[#allocation10 + $0x8] sm:$0xf]
        %v7657 = vld [vmem:[#allocation10 + $0xc] sm:$0xf]
        %v7658 = vld [vmem:[#allocation10 + $0x10] sm:$0xf]
        %v7659 = vld [vmem:[#allocation10 + $0x14] sm:$0xf]
        %v7660 = vld [vmem:[#allocation10 + $0x18] sm:$0xf]
        %v7661 = vld [vmem:[#allocation10 + $0x1c] sm:$0xf]
        %v7662 = vld [vmem:[#allocation10 + $0x20] sm:$0xf]
        %v7663 = vld [vmem:[#allocation10 + $0x24] sm:$0xf]
        %v7664 = vld [vmem:[#allocation10 + $0x28] sm:$0xf]
        %v7665 = vld [vmem:[#allocation10 + $0x2c] sm:$0xf]
        %v7666 = vld [vmem:[#allocation10 + $0x30] sm:$0xf]
        %v7667 = vld [vmem:[#allocation10 + $0x34] sm:$0xf]
        %v7668 = vld [vmem:[#allocation10 + $0x38] sm:$0xf]
        %v7669 = vld [vmem:[#allocation10 + $0x3c] sm:$0xf]
        %v7670 = vld [vmem:[#allocation10 + $0x40] sm:$0xf]
        %v7671 = vld [vmem:[#allocation10 + $0x44] sm:$0xf]
        %v7672 = vld [vmem:[#allocation10 + $0x48] sm:$0xf]
        %v7673 = vld [vmem:[#allocation10 + $0x4c] sm:$0xf]
        %v7674 = vld [vmem:[#allocation10 + $0x50] sm:$0xf]
        %v7675 = vld [vmem:[#allocation10 + $0x54] sm:$0xf]
        %v7676 = vld [vmem:[#allocation10 + $0x58] sm:$0xf]
        %v7677 = vld [vmem:[#allocation10 + $0x5c] sm:$0xf]
        %v7678 = vld [vmem:[#allocation10 + $0x60] sm:$0xf]
        %v7679 = vld [vmem:[#allocation10 + $0x64] sm:$0xf]
        %v7680 = vld [vmem:[#allocation10 + $0x68] sm:$0xf]
        %v7681 = vld [vmem:[#allocation10 + $0x6c] sm:$0xf]
        %v7682 = vld [vmem:[#allocation10 + $0x70] sm:$0xf]
        %v7683 = vld [vmem:[#allocation10 + $0x74] sm:$0xf]
        %v7684 = vld [vmem:[#allocation10 + $0x78] sm:$0xf]
        %v7685 = vld [vmem:[#allocation10 + $0x7c] sm:$0xf]
        %v7686 = vld [vmem:[#allocation10 + $0x80] sm:$0xf]
        %v7687 = vld [vmem:[#allocation10 + $0x84] sm:$0xf]
        %v7688 = vld [vmem:[#allocation10 + $0x88] sm:$0xf]
        %v7689 = vld [vmem:[#allocation10 + $0x8c] sm:$0xf]
        %v7690 = vld [vmem:[#allocation10 + $0x90] sm:$0xf]
        %v7691 = vld [vmem:[#allocation10 + $0x94] sm:$0xf]
        %v7692 = vld [vmem:[#allocation10 + $0x98] sm:$0xf]
        %v7693 = vld [vmem:[#allocation10 + $0x9c] sm:$0xf]
        %v7694 = vld [vmem:[#allocation10 + $0xa0] sm:$0xf]
        %v7695 = vld [vmem:[#allocation10 + $0xa4] sm:$0xf]
        %v7696 = vld [vmem:[#allocation10 + $0xa8] sm:$0xf]
        %v7697 = vld [vmem:[#allocation10 + $0xac] sm:$0xf]
        %v7698 = vld [vmem:[#allocation10 + $0xb0] sm:$0xf]
        %v7699 = vld [vmem:[#allocation10 + $0xb4] sm:$0xf]
        %v7700 = vld [vmem:[#allocation10 + $0xb8] sm:$0xf]
        %v7701 = vld [vmem:[#allocation10 + $0xbc] sm:$0xf]
        %v7703 = vshrl.u32 %v7490, 16
        %v7705 = vshll.u32 %v7490, 16
        %v7707 = vrot.slane %v7705, 1
        %v7708 = vor.u32 %v7703, %v7707
        %v7710 = vshll.u32 %v7500, 16
        %v7712 = vrot.slane %v7710, 1
        %v7713 = vsel %vm4607, %v7708, %v7712
        %v7717 = vrot.slane %v7490, 1
        %v7718 = vrot.slane %v7500, 1
        %v7719 = vsel %vm4908, %v7717, %v7718
        %s7721 = scalar_lea.vmem [#allocation10], 192
        %v7722 = vld [vmem:[%s7721] sm:$0xf]
        %v7723 = vld [vmem:[%s7721 + $0x4] sm:$0xf]
        %v7724 = vld [vmem:[%s7721 + $0x8] sm:$0xf]
        %v7725 = vld [vmem:[%s7721 + $0xc] sm:$0xf]
        %v7726 = vld [vmem:[%s7721 + $0x10] sm:$0xf]
        %v7727 = vld [vmem:[%s7721 + $0x14] sm:$0xf]
        %v7728 = vld [vmem:[%s7721 + $0x18] sm:$0xf]
        %v7729 = vld [vmem:[%s7721 + $0x1c] sm:$0xf]
        %v7730 = vld [vmem:[%s7721 + $0x20] sm:$0xf]
        %v7731 = vld [vmem:[%s7721 + $0x24] sm:$0xf]
        %v7732 = vld [vmem:[%s7721 + $0x28] sm:$0xf]
        %v7733 = vld [vmem:[%s7721 + $0x2c] sm:$0xf]
        %v7734 = vld [vmem:[%s7721 + $0x30] sm:$0xf]
        %v7735 = vld [vmem:[%s7721 + $0x34] sm:$0xf]
        %v7736 = vld [vmem:[%s7721 + $0x38] sm:$0xf]
        %v7737 = vld [vmem:[%s7721 + $0x3c] sm:$0xf]
        %v7738 = vld [vmem:[%s7721 + $0x40] sm:$0xf]
        %v7739 = vld [vmem:[%s7721 + $0x44] sm:$0xf]
        %v7740 = vld [vmem:[%s7721 + $0x48] sm:$0xf]
        %v7741 = vld [vmem:[%s7721 + $0x4c] sm:$0xf]
        %v7742 = vld [vmem:[%s7721 + $0x50] sm:$0xf]
        %v7743 = vld [vmem:[%s7721 + $0x54] sm:$0xf]
        %v7744 = vld [vmem:[%s7721 + $0x58] sm:$0xf]
        %v7745 = vld [vmem:[%s7721 + $0x5c] sm:$0xf]
        %v7746 = vld [vmem:[%s7721 + $0x60] sm:$0xf]
        %v7747 = vld [vmem:[%s7721 + $0x64] sm:$0xf]
        %v7748 = vld [vmem:[%s7721 + $0x68] sm:$0xf]
        %v7749 = vld [vmem:[%s7721 + $0x6c] sm:$0xf]
        %v7750 = vld [vmem:[%s7721 + $0x70] sm:$0xf]
        %v7751 = vld [vmem:[%s7721 + $0x74] sm:$0xf]
        %v7752 = vld [vmem:[%s7721 + $0x78] sm:$0xf]
        %v7753 = vld [vmem:[%s7721 + $0x7c] sm:$0xf]
        %v7754 = vld [vmem:[%s7721 + $0x80] sm:$0xf]
        %v7755 = vld [vmem:[%s7721 + $0x84] sm:$0xf]
        %v7756 = vld [vmem:[%s7721 + $0x88] sm:$0xf]
        %v7757 = vld [vmem:[%s7721 + $0x8c] sm:$0xf]
        %v7758 = vld [vmem:[%s7721 + $0x90] sm:$0xf]
        %v7759 = vld [vmem:[%s7721 + $0x94] sm:$0xf]
        %v7760 = vld [vmem:[%s7721 + $0x98] sm:$0xf]
        %v7761 = vld [vmem:[%s7721 + $0x9c] sm:$0xf]
        %v7762 = vld [vmem:[%s7721 + $0xa0] sm:$0xf]
        %v7763 = vld [vmem:[%s7721 + $0xa4] sm:$0xf]
        %v7764 = vld [vmem:[%s7721 + $0xa8] sm:$0xf]
        %v7765 = vld [vmem:[%s7721 + $0xac] sm:$0xf]
        %v7766 = vld [vmem:[%s7721 + $0xb0] sm:$0xf]
        %v7767 = vld [vmem:[%s7721 + $0xb4] sm:$0xf]
        %v7768 = vld [vmem:[%s7721 + $0xb8] sm:$0xf]
        %v7769 = vld [vmem:[%s7721 + $0xbc] sm:$0xf]
        %v7818 = vunpack.c.l.b16 %v7722
        %v7819 = vunpack.c.l.b16 %v7723
        %v7820 = vunpack.c.l.b16 %v7724
        %v7821 = vunpack.c.l.b16 %v7725
        %v7822 = vunpack.c.l.b16 %v7726
        %v7823 = vunpack.c.l.b16 %v7727
        %v7824 = vunpack.c.l.b16 %v7728
        %v7825 = vunpack.c.l.b16 %v7729
        %v7826 = vunpack.c.l.b16 %v7730
        %v7827 = vunpack.c.l.b16 %v7731
        %v7828 = vunpack.c.l.b16 %v7732
        %v7829 = vunpack.c.l.b16 %v7733
        %v7830 = vunpack.c.l.b16 %v7734
        %v7831 = vunpack.c.l.b16 %v7735
        %v7832 = vunpack.c.l.b16 %v7736
        %v7833 = vunpack.c.l.b16 %v7737
        %v7834 = vunpack.c.l.b16 %v7738
        %v7835 = vunpack.c.l.b16 %v7739
        %v7836 = vunpack.c.l.b16 %v7740
        %v7837 = vunpack.c.l.b16 %v7741
        %v7838 = vunpack.c.l.b16 %v7742
        %v7839 = vunpack.c.l.b16 %v7743
        %v7840 = vunpack.c.l.b16 %v7744
        %v7841 = vunpack.c.l.b16 %v7745
        %v7842 = vunpack.c.l.b16 %v7746
        %v7843 = vunpack.c.l.b16 %v7747
        %v7844 = vunpack.c.l.b16 %v7748
        %v7845 = vunpack.c.l.b16 %v7749
        %v7846 = vunpack.c.l.b16 %v7750
        %v7847 = vunpack.c.l.b16 %v7751
        %v7848 = vunpack.c.l.b16 %v7752
        %v7849 = vunpack.c.l.b16 %v7753
        %v7850 = vunpack.c.l.b16 %v7754
        %v7851 = vunpack.c.l.b16 %v7755
        %v7852 = vunpack.c.l.b16 %v7756
        %v7853 = vunpack.c.l.b16 %v7757
        %v7854 = vunpack.c.l.b16 %v7758
        %v7855 = vunpack.c.l.b16 %v7759
        %v7856 = vunpack.c.l.b16 %v7760
        %v7857 = vunpack.c.l.b16 %v7761
        %v7858 = vunpack.c.l.b16 %v7762
        %v7859 = vunpack.c.l.b16 %v7763
        %v7860 = vunpack.c.l.b16 %v7764
        %v7861 = vunpack.c.l.b16 %v7765
        %v7862 = vunpack.c.l.b16 %v7766
        %v7863 = vunpack.c.l.b16 %v7767
        %v7864 = vunpack.c.l.b16 %v7768
        %v7865 = vunpack.c.l.b16 %v7769
        %v7866 = vpack.c.b16 %v7819, %v7818
        %v7867 = vpack.c.b16 %v7821, %v7820
        %v7868 = vpack.c.b16 %v7823, %v7822
        %v7869 = vpack.c.b16 %v7825, %v7824
        %v7870 = vpack.c.b16 %v7827, %v7826
        %v7871 = vpack.c.b16 %v7829, %v7828
        %v7872 = vpack.c.b16 %v7831, %v7830
        %v7873 = vpack.c.b16 %v7833, %v7832
        %v7874 = vpack.c.b16 %v7835, %v7834
        %v7875 = vpack.c.b16 %v7837, %v7836
        %v7876 = vpack.c.b16 %v7839, %v7838
        %v7877 = vpack.c.b16 %v7841, %v7840
        %v7878 = vpack.c.b16 %v7843, %v7842
        %v7879 = vpack.c.b16 %v7845, %v7844
        %v7880 = vpack.c.b16 %v7847, %v7846
        %v7881 = vpack.c.b16 %v7849, %v7848
        %v7882 = vpack.c.b16 %v7851, %v7850
        %v7883 = vpack.c.b16 %v7853, %v7852
        %v7884 = vpack.c.b16 %v7855, %v7854
        %v7885 = vpack.c.b16 %v7857, %v7856
        %v7886 = vpack.c.b16 %v7859, %v7858
        %v7887 = vpack.c.b16 %v7861, %v7860
        %v7888 = vpack.c.b16 %v7863, %v7862
        %v7889 = vpack.c.b16 %v7865, %v7864
        %7914 = vmatprep.subr.bf16.mxu0 0
        %7915 = vmatpush1.bf16.msra.mxu0 %v7866
        %7916 = vmatprep.subr.bf16.mxu0 0
        %7917 = vmatpush1.bf16.msra.mxu0 %v7867
        %7918 = vmatprep.subr.bf16.mxu0 0
        %7919 = vmatpush1.bf16.msra.mxu0 %v7868
        %7920 = vmatprep.subr.bf16.mxu0 0
        %7921 = vmatpush1.bf16.msra.mxu0 %v7869
        %7922 = vmatprep.subr.bf16.mxu0 0
        %7923 = vmatpush1.bf16.msra.mxu0 %v7870
        %7924 = vmatprep.subr.bf16.mxu0 0
        %7925 = vmatpush1.bf16.msra.mxu0 %v7871
        %7926 = vmatprep.subr.bf16.mxu0 0
        %7927 = vmatpush1.bf16.msra.mxu0 %v7872
        %7928 = vmatprep.subr.bf16.mxu0 0
        %7929 = vmatpush1.bf16.msra.mxu0 %v7873
        %7930 = vmatprep.subr.bf16.mxu0 0
        %7931 = vmatpush1.bf16.msra.mxu0 %v7874
        %7932 = vmatprep.subr.bf16.mxu0 0
        %7933 = vmatpush1.bf16.msra.mxu0 %v7875
        %7934 = vmatprep.subr.bf16.mxu0 0
        %7935 = vmatpush1.bf16.msra.mxu0 %v7876
        %7936 = vmatprep.subr.bf16.mxu0 0
        %7937 = vmatpush1.bf16.msra.mxu0 %v7877
        %7938 = vmatprep.subr.bf16.mxu0 0
        %7939 = vmatpush1.bf16.msra.mxu0 %v7878
        %7940 = vmatprep.subr.bf16.mxu0 0
        %7941 = vmatpush1.bf16.msra.mxu0 %v7879
        %7942 = vmatprep.subr.bf16.mxu0 0
        %7943 = vmatpush1.bf16.msra.mxu0 %v7880
        %7944 = vmatprep.subr.bf16.mxu0 0
        %7945 = vmatpush1.bf16.msra.mxu0 %v7881
        %7946 = vmatprep.mubr.bf16.mxu0 %v7525
        %7947 = vmatmul.mubr.bf16.gmra.mrb[0].mxu0 %v7483
        %v7948 = vpop.f32.mrb[0].mxu0
        %v7949 = vadd.f32 0.0, %v7948
        %v7950 = vpop.f32.mrb[0].mxu0
        %v7951 = vpop.f32.mrb[0].mxu0
        %v7952 = vadd.f32 0.0, %v7951
        %v7953 = vpop.f32.mrb[0].mxu0
        %7954 = vmatprep.mubr.bf16.mxu0 %v7537
        %7955 = vmatmul.mubr.bf16.gmra.mrb[0].mxu0 %v7484
        %v7956 = vpop.f32.mrb[0].mxu0
        %v7957 = vadd.f32 0.0, %v7956
        %v7958 = vpop.f32.mrb[0].mxu0
        %v7959 = vpop.f32.mrb[0].mxu0
        %v7960 = vadd.f32 0.0, %v7959
        %v7961 = vpop.f32.mrb[0].mxu0
        %7962 = vmatprep.mubr.bf16.mxu0 %v7549
        %7963 = vmatmul.mubr.bf16.gmra.mrb[0].mxu0 %v7485
        %v7964 = vpop.f32.mrb[0].mxu0
        %v7965 = vadd.f32 0.0, %v7964
        %v7966 = vpop.f32.mrb[0].mxu0
        %v7967 = vpop.f32.mrb[0].mxu0
        %v7968 = vadd.f32 0.0, %v7967
        %v7969 = vpop.f32.mrb[0].mxu0
        %7970 = vmatprep.mubr.bf16.mxu0 %v7561
        %7971 = vmatmul.mubr.bf16.gmra.mrb[0].mxu0 %v7486
        %v7972 = vpop.f32.mrb[0].mxu0
        %v7973 = vadd.f32 0.0, %v7972
        %v7974 = vpop.f32.mrb[0].mxu0
        %v7975 = vpop.f32.mrb[0].mxu0
        %v7976 = vadd.f32 0.0, %v7975
        %v7977 = vpop.f32.mrb[0].mxu0
        %7978 = vmatprep.mubr.bf16.mxu0 %v7573
        %7979 = vmatmul.mubr.bf16.gmra.mrb[0].mxu0 %v7487
        %v7980 = vpop.f32.mrb[0].mxu0
        %v7981 = vadd.f32 0.0, %v7980
        %v7982 = vpop.f32.mrb[0].mxu0
        %v7983 = vpop.f32.mrb[0].mxu0
        %v7984 = vadd.f32 0.0, %v7983
        %v7985 = vpop.f32.mrb[0].mxu0
        %7986 = vmatprep.mubr.bf16.mxu0 %v7585
        %7987 = vmatmul.mubr.bf16.gmra.mrb[0].mxu0 %v7488
        %v7988 = vpop.f32.mrb[0].mxu0
        %v7989 = vadd.f32 0.0, %v7988
        %v7990 = vpop.f32.mrb[0].mxu0
        %v7991 = vpop.f32.mrb[0].mxu0
        %v7992 = vadd.f32 0.0, %v7991
        %v7993 = vpop.f32.mrb[0].mxu0
        %7994 = vmatprep.mubr.bf16.mxu0 %v7597
        %7995 = vmatmul.mubr.bf16.gmra.mrb[0].mxu0 %v7489
        %v7996 = vpop.f32.mrb[0].mxu0
        %v7997 = vadd.f32 0.0, %v7996
        %v7998 = vpop.f32.mrb[0].mxu0
        %v7999 = vpop.f32.mrb[0].mxu0
        %v8000 = vadd.f32 0.0, %v7999
        %v8001 = vpop.f32.mrb[0].mxu0
        %8002 = vmatprep.mubr.bf16.mxu0 %v7713
        %8003 = vmatmul.mubr.bf16.gmra.mrb[0].mxu0 %v7490
        %v8004 = vpop.f32.mrb[0].mxu0
        %v8005 = vadd.f32 0.0, %v8004
        %v8006 = vpop.f32.mrb[0].mxu0
        %v8007 = vpop.f32.mrb[0].mxu0
        %v8008 = vadd.f32 0.0, %v8007
        %v8009 = vpop.f32.mrb[0].mxu0
        %8010 = vdwg.mxu0
        %8011 = vmatprep.subr.bf16.mxu0 0
        %8012 = vmatpush1.bf16.msra.mxu0 %v7882
        %8013 = vmatprep.subr.bf16.mxu0 0
        %8014 = vmatpush1.bf16.msra.mxu0 %v7883
        %8015 = vmatprep.subr.bf16.mxu0 0
        %8016 = vmatpush1.bf16.msra.mxu0 %v7884
        %8017 = vmatprep.subr.bf16.mxu0 0
        %8018 = vmatpush1.bf16.msra.mxu0 %v7885
        %8019 = vmatprep.subr.bf16.mxu0 0
        %8020 = vmatpush1.bf16.msra.mxu0 %v7886
        %8021 = vmatprep.subr.bf16.mxu0 0
        %8022 = vmatpush1.bf16.msra.mxu0 %v7887
        %8023 = vmatprep.subr.bf16.mxu0 0
        %8024 = vmatpush1.bf16.msra.mxu0 %v7888
        %8025 = vmatprep.subr.bf16.mxu0 0
        %8026 = vmatpush1.bf16.msra.mxu0 %v7889
        %8027 = vmatprep.subr.bf16.mxu0 0
        %8028 = vmatpush1.bf16.msra.mxu0 0
        %8029 = vmatprep.subr.bf16.mxu0 0
        %8030 = vmatpush1.bf16.msra.mxu0 0
        %8031 = vmatprep.subr.bf16.mxu0 0
        %8032 = vmatpush1.bf16.msra.mxu0 0
        %8033 = vmatprep.subr.bf16.mxu0 0
        %8034 = vmatpush1.bf16.msra.mxu0 0
        %8035 = vmatprep.subr.bf16.mxu0 0
        %8036 = vmatpush1.bf16.msra.mxu0 0
        %8037 = vmatprep.subr.bf16.mxu0 0
        %8038 = vmatpush1.bf16.msra.mxu0 0
        %8039 = vmatprep.subr.bf16.mxu0 0
        %8040 = vmatpush1.bf16.msra.mxu0 0
        %8041 = vmatprep.subr.bf16.mxu0 0
        %8042 = vmatpush1.bf16.msra.mxu0 0
        %8043 = vmatprep.mubr.bf16.mxu0 0
        %8044 = vmatmul.mubr.bf16.gmra.mrb[0].mxu0 %v7627
        %v8045 = vpop.f32.mrb[0].mxu0
        %v8046 = vadd.f32 %v7949, %v8045
        %v8047 = vpop.f32.mrb[0].mxu0
        %v8048 = vpop.f32.mrb[0].mxu0
        %v8049 = vadd.f32 %v7952, %v8048
        %v8050 = vpop.f32.mrb[0].mxu0
        %8051 = vmatprep.mubr.bf16.mxu0 0
        %8052 = vmatmul.mubr.bf16.gmra.mrb[0].mxu0 %v7630
        %v8053 = vpop.f32.mrb[0].mxu0
        %v8054 = vadd.f32 %v7957, %v8053
        %v8055 = vpop.f32.mrb[0].mxu0
        %v8056 = vpop.f32.mrb[0].mxu0
        %v8057 = vadd.f32 %v7960, %v8056
        %v8058 = vpop.f32.mrb[0].mxu0
        %8059 = vmatprep.mubr.bf16.mxu0 0
        %8060 = vmatmul.mubr.bf16.gmra.mrb[0].mxu0 %v7633
        %v8061 = vpop.f32.mrb[0].mxu0
        %v8062 = vadd.f32 %v7965, %v8061
        %v8063 = vpop.f32.mrb[0].mxu0
        %v8064 = vpop.f32.mrb[0].mxu0
        %v8065 = vadd.f32 %v7968, %v8064
        %v8066 = vpop.f32.mrb[0].mxu0
        %8067 = vmatprep.mubr.bf16.mxu0 0
        %8068 = vmatmul.mubr.bf16.gmra.mrb[0].mxu0 %v7636
        %v8069 = vpop.f32.mrb[0].mxu0
        %v8070 = vadd.f32 %v7973, %v8069
        %v8071 = vpop.f32.mrb[0].mxu0
        %v8072 = vpop.f32.mrb[0].mxu0
        %v8073 = vadd.f32 %v7976, %v8072
        %v8074 = vpop.f32.mrb[0].mxu0
        %8075 = vmatprep.mubr.bf16.mxu0 0
        %8076 = vmatmul.mubr.bf16.gmra.mrb[0].mxu0 %v7639
        %v8077 = vpop.f32.mrb[0].mxu0
        %v8078 = vadd.f32 %v7981, %v8077
        %v8079 = vpop.f32.mrb[0].mxu0
        %v8080 = vpop.f32.mrb[0].mxu0
        %v8081 = vadd.f32 %v7984, %v8080
        %v8082 = vpop.f32.mrb[0].mxu0
        %8083 = vmatprep.mubr.bf16.mxu0 0
        %8084 = vmatmul.mubr.bf16.gmra.mrb[0].mxu0 %v7642
        %v8085 = vpop.f32.mrb[0].mxu0
        %v8086 = vadd.f32 %v7989, %v8085
        %v8087 = vpop.f32.mrb[0].mxu0
        %v8088 = vpop.f32.mrb[0].mxu0
        %v8089 = vadd.f32 %v7992, %v8088
        %v8090 = vpop.f32.mrb[0].mxu0
        %8091 = vmatprep.mubr.bf16.mxu0 0
        %8092 = vmatmul.mubr.bf16.gmra.mrb[0].mxu0 %v7645
        %v8093 = vpop.f32.mrb[0].mxu0
        %v8094 = vadd.f32 %v7997, %v8093
        %v8095 = vpop.f32.mrb[0].mxu0
        %v8096 = vpop.f32.mrb[0].mxu0
        %v8097 = vadd.f32 %v8000, %v8096
        %v8098 = vpop.f32.mrb[0].mxu0
        %8099 = vmatprep.mubr.bf16.mxu0 0
        %8100 = vmatmul.mubr.bf16.gmra.mrb[0].mxu0 %v7719
        %v8101 = vpop.f32.mrb[0].mxu0
        %v8102 = vadd.f32 %v8005, %v8101
        %v8103 = vpop.f32.mrb[0].mxu0
        %v8104 = vpop.f32.mrb[0].mxu0
        %v8105 = vadd.f32 %v8008, %v8104
        %v8106 = vpop.f32.mrb[0].mxu0
        %8107 = vdwg.mxu0
        %v8156 = vunpack.c.l.b16 %v7654
        %v8157 = vunpack.c.l.b16 %v7655
        %v8158 = vunpack.c.l.b16 %v7656
        %v8159 = vunpack.c.l.b16 %v7657
        %v8160 = vunpack.c.l.b16 %v7658
        %v8161 = vunpack.c.l.b16 %v7659
        %v8162 = vunpack.c.l.b16 %v7660
        %v8163 = vunpack.c.l.b16 %v7661
        %v8164 = vunpack.c.l.b16 %v7662
        %v8165 = vunpack.c.l.b16 %v7663
        %v8166 = vunpack.c.l.b16 %v7664
        %v8167 = vunpack.c.l.b16 %v7665
        %v8168 = vunpack.c.l.b16 %v7666
        %v8169 = vunpack.c.l.b16 %v7667
        %v8170 = vunpack.c.l.b16 %v7668
        %v8171 = vunpack.c.l.b16 %v7669
        %v8172 = vunpack.c.l.b16 %v7670
        %v8173 = vunpack.c.l.b16 %v7671
        %v8174 = vunpack.c.l.b16 %v7672
        %v8175 = vunpack.c.l.b16 %v7673
        %v8176 = vunpack.c.l.b16 %v7674
        %v8177 = vunpack.c.l.b16 %v7675
        %v8178 = vunpack.c.l.b16 %v7676
        %v8179 = vunpack.c.l.b16 %v7677
        %v8180 = vunpack.c.l.b16 %v7678
        %v8181 = vunpack.c.l.b16 %v7679
        %v8182 = vunpack.c.l.b16 %v7680
        %v8183 = vunpack.c.l.b16 %v7681
        %v8184 = vunpack.c.l.b16 %v7682
        %v8185 = vunpack.c.l.b16 %v7683
        %v8186 = vunpack.c.l.b16 %v7684
        %v8187 = vunpack.c.l.b16 %v7685
        %v8188 = vunpack.c.l.b16 %v7686
        %v8189 = vunpack.c.l.b16 %v7687
        %v8190 = vunpack.c.l.b16 %v7688
        %v8191 = vunpack.c.l.b16 %v7689
        %v8192 = vunpack.c.l.b16 %v7690
        %v8193 = vunpack.c.l.b16 %v7691
        %v8194 = vunpack.c.l.b16 %v7692
        %v8195 = vunpack.c.l.b16 %v7693
        %v8196 = vunpack.c.l.b16 %v7694
        %v8197 = vunpack.c.l.b16 %v7695
        %v8198 = vunpack.c.l.b16 %v7696
        %v8199 = vunpack.c.l.b16 %v7697
        %v8200 = vunpack.c.l.b16 %v7698
        %v8201 = vunpack.c.l.b16 %v7699
        %v8202 = vunpack.c.l.b16 %v7700
        %v8203 = vunpack.c.l.b16 %v7701
        %v8204 = vpack.c.b16 %v8157, %v8156
        %v8205 = vpack.c.b16 %v8159, %v8158
        %v8206 = vpack.c.b16 %v8161, %v8160
        %v8207 = vpack.c.b16 %v8163, %v8162
        %v8208 = vpack.c.b16 %v8165, %v8164
        %v8209 = vpack.c.b16 %v8167, %v8166
        %v8210 = vpack.c.b16 %v8169, %v8168
        %v8211 = vpack.c.b16 %v8171, %v8170
        %v8212 = vpack.c.b16 %v8173, %v8172
        %v8213 = vpack.c.b16 %v8175, %v8174
        %v8214 = vpack.c.b16 %v8177, %v8176
        %v8215 = vpack.c.b16 %v8179, %v8178
        %v8216 = vpack.c.b16 %v8181, %v8180
        %v8217 = vpack.c.b16 %v8183, %v8182
        %v8218 = vpack.c.b16 %v8185, %v8184
        %v8219 = vpack.c.b16 %v8187, %v8186
        %v8220 = vpack.c.b16 %v8189, %v8188
        %v8221 = vpack.c.b16 %v8191, %v8190
        %v8222 = vpack.c.b16 %v8193, %v8192
        %v8223 = vpack.c.b16 %v8195, %v8194
        %v8224 = vpack.c.b16 %v8197, %v8196
        %v8225 = vpack.c.b16 %v8199, %v8198
        %v8226 = vpack.c.b16 %v8201, %v8200
        %v8227 = vpack.c.b16 %v8203, %v8202
        %8252 = vmatprep.subr.bf16.mxu0 0
        %8253 = vmatpush1.bf16.msra.mxu0 %v8204
        %8254 = vmatprep.subr.bf16.mxu0 0
        %8255 = vmatpush1.bf16.msra.mxu0 %v8205
        %8256 = vmatprep.subr.bf16.mxu0 0
        %8257 = vmatpush1.bf16.msra.mxu0 %v8206
        %8258 = vmatprep.subr.bf16.mxu0 0
        %8259 = vmatpush1.bf16.msra.mxu0 %v8207
        %8260 = vmatprep.subr.bf16.mxu0 0
        %8261 = vmatpush1.bf16.msra.mxu0 %v8208
        %8262 = vmatprep.subr.bf16.mxu0 0
        %8263 = vmatpush1.bf16.msra.mxu0 %v8209
        %8264 = vmatprep.subr.bf16.mxu0 0
        %8265 = vmatpush1.bf16.msra.mxu0 %v8210
        %8266 = vmatprep.subr.bf16.mxu0 0
        %8267 = vmatpush1.bf16.msra.mxu0 %v8211
        %8268 = vmatprep.subr.bf16.mxu0 0
        %8269 = vmatpush1.bf16.msra.mxu0 %v8212
        %8270 = vmatprep.subr.bf16.mxu0 0
        %8271 = vmatpush1.bf16.msra.mxu0 %v8213
        %8272 = vmatprep.subr.bf16.mxu0 0
        %8273 = vmatpush1.bf16.msra.mxu0 %v8214
        %8274 = vmatprep.subr.bf16.mxu0 0
        %8275 = vmatpush1.bf16.msra.mxu0 %v8215
        %8276 = vmatprep.subr.bf16.mxu0 0
        %8277 = vmatpush1.bf16.msra.mxu0 %v8216
        %8278 = vmatprep.subr.bf16.mxu0 0
        %8279 = vmatpush1.bf16.msra.mxu0 %v8217
        %8280 = vmatprep.subr.bf16.mxu0 0
        %8281 = vmatpush1.bf16.msra.mxu0 %v8218
        %8282 = vmatprep.subr.bf16.mxu0 0
        %8283 = vmatpush1.bf16.msra.mxu0 %v8219
        %8284 = vmatprep.mubr.bf16.mxu0 %v7513
        %8285 = vmatmul.mubr.bf16.gmra.mrb[0].mxu0 %v7482
        %v8286 = vpop.f32.mrb[0].mxu0
        %v8287 = vadd.f32 %v8046, %v8286
        %v8288 = vpop.f32.mrb[0].mxu0
        %v8289 = vpop.f32.mrb[0].mxu0
        %v8290 = vadd.f32 %v8049, %v8289
        %v8291 = vpop.f32.mrb[0].mxu0
        %8292 = vmatprep.mubr.bf16.mxu0 %v7525
        %8293 = vmatmul.mubr.bf16.gmra.mrb[0].mxu0 %v7483
        %v8294 = vpop.f32.mrb[0].mxu0
        %v8295 = vadd.f32 %v8054, %v8294
        %v8296 = vpop.f32.mrb[0].mxu0
        %v8297 = vpop.f32.mrb[0].mxu0
        %v8298 = vadd.f32 %v8057, %v8297
        %v8299 = vpop.f32.mrb[0].mxu0
        %8300 = vmatprep.mubr.bf16.mxu0 %v7537
        %8301 = vmatmul.mubr.bf16.gmra.mrb[0].mxu0 %v7484
        %v8302 = vpop.f32.mrb[0].mxu0
        %v8303 = vadd.f32 %v8062, %v8302
        %v8304 = vpop.f32.mrb[0].mxu0
        %v8305 = vpop.f32.mrb[0].mxu0
        %v8306 = vadd.f32 %v8065, %v8305
        %v8307 = vpop.f32.mrb[0].mxu0
        %8308 = vmatprep.mubr.bf16.mxu0 %v7549
        %8309 = vmatmul.mubr.bf16.gmra.mrb[0].mxu0 %v7485
        %v8310 = vpop.f32.mrb[0].mxu0
        %v8311 = vadd.f32 %v8070, %v8310
        %v8312 = vpop.f32.mrb[0].mxu0
        %v8313 = vpop.f32.mrb[0].mxu0
        %v8314 = vadd.f32 %v8073, %v8313
        %v8315 = vpop.f32.mrb[0].mxu0
        %8316 = vmatprep.mubr.bf16.mxu0 %v7561
        %8317 = vmatmul.mubr.bf16.gmra.mrb[0].mxu0 %v7486
        %v8318 = vpop.f32.mrb[0].mxu0
        %v8319 = vadd.f32 %v8078, %v8318
        %v8320 = vpop.f32.mrb[0].mxu0
        %v8321 = vpop.f32.mrb[0].mxu0
        %v8322 = vadd.f32 %v8081, %v8321
        %v8323 = vpop.f32.mrb[0].mxu0
        %8324 = vmatprep.mubr.bf16.mxu0 %v7573
        %8325 = vmatmul.mubr.bf16.gmra.mrb[0].mxu0 %v7487
        %v8326 = vpop.f32.mrb[0].mxu0
        %v8327 = vadd.f32 %v8086, %v8326
        %v8328 = vpop.f32.mrb[0].mxu0
        %v8329 = vpop.f32.mrb[0].mxu0
        %v8330 = vadd.f32 %v8089, %v8329
        %v8331 = vpop.f32.mrb[0].mxu0
        %8332 = vmatprep.mubr.bf16.mxu0 %v7585
        %8333 = vmatmul.mubr.bf16.gmra.mrb[0].mxu0 %v7488
        %v8334 = vpop.f32.mrb[0].mxu0
        %v8335 = vadd.f32 %v8094, %v8334
        %v8336 = vpop.f32.mrb[0].mxu0
        %v8337 = vpop.f32.mrb[0].mxu0
        %v8338 = vadd.f32 %v8097, %v8337
        %v8339 = vpop.f32.mrb[0].mxu0
        %8340 = vmatprep.mubr.bf16.mxu0 %v7597
        %8341 = vmatmul.mubr.bf16.gmra.mrb[0].mxu0 %v7489
        %v8342 = vpop.f32.mrb[0].mxu0
        %v8343 = vadd.f32 %v8102, %v8342
        %v8344 = vpop.f32.mrb[0].mxu0
        %v8345 = vpop.f32.mrb[0].mxu0
        %v8346 = vadd.f32 %v8105, %v8345
        %v8347 = vpop.f32.mrb[0].mxu0
        %8348 = vdwg.mxu0
        %8349 = vmatprep.subr.bf16.mxu0 0
        %8350 = vmatpush1.bf16.msra.mxu0 %v8220
        %8351 = vmatprep.subr.bf16.mxu0 0
        %8352 = vmatpush1.bf16.msra.mxu0 %v8221
        %8353 = vmatprep.subr.bf16.mxu0 0
        %8354 = vmatpush1.bf16.msra.mxu0 %v8222
        %8355 = vmatprep.subr.bf16.mxu0 0
        %8356 = vmatpush1.bf16.msra.mxu0 %v8223
        %8357 = vmatprep.subr.bf16.mxu0 0
        %8358 = vmatpush1.bf16.msra.mxu0 %v8224
        %8359 = vmatprep.subr.bf16.mxu0 0
        %8360 = vmatpush1.bf16.msra.mxu0 %v8225
        %8361 = vmatprep.subr.bf16.mxu0 0
        %8362 = vmatpush1.bf16.msra.mxu0 %v8226
        %8363 = vmatprep.subr.bf16.mxu0 0
        %8364 = vmatpush1.bf16.msra.mxu0 %v8227
        %8365 = vmatprep.subr.bf16.mxu0 0
        %8366 = vmatpush1.bf16.msra.mxu0 0
        %8367 = vmatprep.subr.bf16.mxu0 0
        %8368 = vmatpush1.bf16.msra.mxu0 0
        %8369 = vmatprep.subr.bf16.mxu0 0
        %8370 = vmatpush1.bf16.msra.mxu0 0
        %8371 = vmatprep.subr.bf16.mxu0 0
        %8372 = vmatpush1.bf16.msra.mxu0 0
        %8373 = vmatprep.subr.bf16.mxu0 0
        %8374 = vmatpush1.bf16.msra.mxu0 0
        %8375 = vmatprep.subr.bf16.mxu0 0
        %8376 = vmatpush1.bf16.msra.mxu0 0
        %8377 = vmatprep.subr.bf16.mxu0 0
        %8378 = vmatpush1.bf16.msra.mxu0 0
        %8379 = vmatprep.subr.bf16.mxu0 0
        %8380 = vmatpush1.bf16.msra.mxu0 0
        %8381 = vmatprep.mubr.bf16.mxu0 0
        %8382 = vmatmul.mubr.bf16.gmra.mrb[0].mxu0 %v7624
        %v8383 = vpop.f32.mrb[0].mxu0
        %v8384 = vadd.f32 %v8287, %v8383
        %v8385 = vpop.f32.mrb[0].mxu0
        %v8386 = vpop.f32.mrb[0].mxu0
        %v8387 = vadd.f32 %v8290, %v8386
        %v8388 = vpop.f32.mrb[0].mxu0
        %8389 = vmatprep.mubr.bf16.mxu0 0
        %8390 = vmatmul.mubr.bf16.gmra.mrb[0].mxu0 %v7627
        %v8391 = vpop.f32.mrb[0].mxu0
        %v8392 = vadd.f32 %v8295, %v8391
        %v8393 = vpop.f32.mrb[0].mxu0
        %v8394 = vpop.f32.mrb[0].mxu0
        %v8395 = vadd.f32 %v8298, %v8394
        %v8396 = vpop.f32.mrb[0].mxu0
        %8397 = vmatprep.mubr.bf16.mxu0 0
        %8398 = vmatmul.mubr.bf16.gmra.mrb[0].mxu0 %v7630
        %v8399 = vpop.f32.mrb[0].mxu0
        %v8400 = vadd.f32 %v8303, %v8399
        %v8401 = vpop.f32.mrb[0].mxu0
        %v8402 = vpop.f32.mrb[0].mxu0
        %v8403 = vadd.f32 %v8306, %v8402
        %v8404 = vpop.f32.mrb[0].mxu0
        %8405 = vmatprep.mubr.bf16.mxu0 0
        %8406 = vmatmul.mubr.bf16.gmra.mrb[0].mxu0 %v7633
        %v8407 = vpop.f32.mrb[0].mxu0
        %v8408 = vadd.f32 %v8311, %v8407
        %v8409 = vpop.f32.mrb[0].mxu0
        %v8410 = vpop.f32.mrb[0].mxu0
        %v8411 = vadd.f32 %v8314, %v8410
        %v8412 = vpop.f32.mrb[0].mxu0
        %8413 = vmatprep.mubr.bf16.mxu0 0
        %8414 = vmatmul.mubr.bf16.gmra.mrb[0].mxu0 %v7636
        %v8415 = vpop.f32.mrb[0].mxu0
        %v8416 = vadd.f32 %v8319, %v8415
        %v8417 = vpop.f32.mrb[0].mxu0
        %v8418 = vpop.f32.mrb[0].mxu0
        %v8419 = vadd.f32 %v8322, %v8418
        %v8420 = vpop.f32.mrb[0].mxu0
        %8421 = vmatprep.mubr.bf16.mxu0 0
        %8422 = vmatmul.mubr.bf16.gmra.mrb[0].mxu0 %v7639
        %v8423 = vpop.f32.mrb[0].mxu0
        %v8424 = vadd.f32 %v8327, %v8423
        %v8425 = vpop.f32.mrb[0].mxu0
        %v8426 = vpop.f32.mrb[0].mxu0
        %v8427 = vadd.f32 %v8330, %v8426
        %v8428 = vpop.f32.mrb[0].mxu0
        %8429 = vmatprep.mubr.bf16.mxu0 0
        %8430 = vmatmul.mubr.bf16.gmra.mrb[0].mxu0 %v7642
        %v8431 = vpop.f32.mrb[0].mxu0
        %v8432 = vadd.f32 %v8335, %v8431
        %v8433 = vpop.f32.mrb[0].mxu0
        %v8434 = vpop.f32.mrb[0].mxu0
        %v8435 = vadd.f32 %v8338, %v8434
        %v8436 = vpop.f32.mrb[0].mxu0
        %8437 = vmatprep.mubr.bf16.mxu0 0
        %8438 = vmatmul.mubr.bf16.gmra.mrb[0].mxu0 %v7645
        %v8439 = vpop.f32.mrb[0].mxu0
        %v8440 = vadd.f32 %v8343, %v8439
        %v8441 = vpop.f32.mrb[0].mxu0
        %v8442 = vpop.f32.mrb[0].mxu0
        %v8443 = vadd.f32 %v8346, %v8442
        %v8444 = vpop.f32.mrb[0].mxu0
        %8445 = vdwg.mxu0
        %v8447 = vshrl.u32 %v7491, 16
        %v8449 = vshll.u32 %v7491, 16
        %v8451 = vrot.slane %v8449, 1
        %v8452 = vor.u32 %v8447, %v8451
        %v8454 = vshll.u32 %v7501, 16
        %v8456 = vrot.slane %v8454, 1
        %v8457 = vsel %vm4607, %v8452, %v8456
        %v8461 = vrot.slane %v7491, 1
        %v8462 = vrot.slane %v7501, 1
        %v8463 = vsel %vm4908, %v8461, %v8462
        %s8465 = scalar_lea.vmem [#allocation10], 384
        %v8466 = vld [vmem:[%s8465] sm:$0xf]
        %v8467 = vld [vmem:[%s8465 + $0x4] sm:$0xf]
        %v8468 = vld [vmem:[%s8465 + $0x8] sm:$0xf]
        %v8469 = vld [vmem:[%s8465 + $0xc] sm:$0xf]
        %v8470 = vld [vmem:[%s8465 + $0x10] sm:$0xf]
        %v8471 = vld [vmem:[%s8465 + $0x14] sm:$0xf]
        %v8472 = vld [vmem:[%s8465 + $0x18] sm:$0xf]
        %v8473 = vld [vmem:[%s8465 + $0x1c] sm:$0xf]
        %v8474 = vld [vmem:[%s8465 + $0x20] sm:$0xf]
        %v8475 = vld [vmem:[%s8465 + $0x24] sm:$0xf]
        %v8476 = vld [vmem:[%s8465 + $0x28] sm:$0xf]
        %v8477 = vld [vmem:[%s8465 + $0x2c] sm:$0xf]
        %v8478 = vld [vmem:[%s8465 + $0x30] sm:$0xf]
        %v8479 = vld [vmem:[%s8465 + $0x34] sm:$0xf]
        %v8480 = vld [vmem:[%s8465 + $0x38] sm:$0xf]
        %v8481 = vld [vmem:[%s8465 + $0x3c] sm:$0xf]
        %v8482 = vld [vmem:[%s8465 + $0x40] sm:$0xf]
        %v8483 = vld [vmem:[%s8465 + $0x44] sm:$0xf]
        %v8484 = vld [vmem:[%s8465 + $0x48] sm:$0xf]
        %v8485 = vld [vmem:[%s8465 + $0x4c] sm:$0xf]
        %v8486 = vld [vmem:[%s8465 + $0x50] sm:$0xf]
        %v8487 = vld [vmem:[%s8465 + $0x54] sm:$0xf]
        %v8488 = vld [vmem:[%s8465 + $0x58] sm:$0xf]
        %v8489 = vld [vmem:[%s8465 + $0x5c] sm:$0xf]
        %v8490 = vld [vmem:[%s8465 + $0x60] sm:$0xf]
        %v8491 = vld [vmem:[%s8465 + $0x64] sm:$0xf]
        %v8492 = vld [vmem:[%s8465 + $0x68] sm:$0xf]
        %v8493 = vld [vmem:[%s8465 + $0x6c] sm:$0xf]
        %v8494 = vld [vmem:[%s8465 + $0x70] sm:$0xf]
        %v8495 = vld [vmem:[%s8465 + $0x74] sm:$0xf]
        %v8496 = vld [vmem:[%s8465 + $0x78] sm:$0xf]
        %v8497 = vld [vmem:[%s8465 + $0x7c] sm:$0xf]
        %v8498 = vld [vmem:[%s8465 + $0x80] sm:$0xf]
        %v8499 = vld [vmem:[%s8465 + $0x84] sm:$0xf]
        %v8500 = vld [vmem:[%s8465 + $0x88] sm:$0xf]
        %v8501 = vld [vmem:[%s8465 + $0x8c] sm:$0xf]
        %v8502 = vld [vmem:[%s8465 + $0x90] sm:$0xf]
        %v8503 = vld [vmem:[%s8465 + $0x94] sm:$0xf]
        %v8504 = vld [vmem:[%s8465 + $0x98] sm:$0xf]
        %v8505 = vld [vmem:[%s8465 + $0x9c] sm:$0xf]
        %v8506 = vld [vmem:[%s8465 + $0xa0] sm:$0xf]
        %v8507 = vld [vmem:[%s8465 + $0xa4] sm:$0xf]
        %v8508 = vld [vmem:[%s8465 + $0xa8] sm:$0xf]
        %v8509 = vld [vmem:[%s8465 + $0xac] sm:$0xf]
        %v8510 = vld [vmem:[%s8465 + $0xb0] sm:$0xf]
        %v8511 = vld [vmem:[%s8465 + $0xb4] sm:$0xf]
        %v8512 = vld [vmem:[%s8465 + $0xb8] sm:$0xf]
        %v8513 = vld [vmem:[%s8465 + $0xbc] sm:$0xf]
        %v8562 = vunpack.c.l.b16 %v8466
        %v8563 = vunpack.c.l.b16 %v8467
        %v8564 = vunpack.c.l.b16 %v8468
        %v8565 = vunpack.c.l.b16 %v8469
        %v8566 = vunpack.c.l.b16 %v8470
        %v8567 = vunpack.c.l.b16 %v8471
        %v8568 = vunpack.c.l.b16 %v8472
        %v8569 = vunpack.c.l.b16 %v8473
        %v8570 = vunpack.c.l.b16 %v8474
        %v8571 = vunpack.c.l.b16 %v8475
        %v8572 = vunpack.c.l.b16 %v8476
        %v8573 = vunpack.c.l.b16 %v8477
        %v8574 = vunpack.c.l.b16 %v8478
        %v8575 = vunpack.c.l.b16 %v8479
        %v8576 = vunpack.c.l.b16 %v8480
        %v8577 = vunpack.c.l.b16 %v8481
        %v8578 = vunpack.c.l.b16 %v8482
        %v8579 = vunpack.c.l.b16 %v8483
        %v8580 = vunpack.c.l.b16 %v8484
        %v8581 = vunpack.c.l.b16 %v8485
        %v8582 = vunpack.c.l.b16 %v8486
        %v8583 = vunpack.c.l.b16 %v8487
        %v8584 = vunpack.c.l.b16 %v8488
        %v8585 = vunpack.c.l.b16 %v8489
        %v8586 = vunpack.c.l.b16 %v8490
        %v8587 = vunpack.c.l.b16 %v8491
        %v8588 = vunpack.c.l.b16 %v8492
        %v8589 = vunpack.c.l.b16 %v8493
        %v8590 = vunpack.c.l.b16 %v8494
        %v8591 = vunpack.c.l.b16 %v8495
        %v8592 = vunpack.c.l.b16 %v8496
        %v8593 = vunpack.c.l.b16 %v8497
        %v8594 = vunpack.c.l.b16 %v8498
        %v8595 = vunpack.c.l.b16 %v8499
        %v8596 = vunpack.c.l.b16 %v8500
        %v8597 = vunpack.c.l.b16 %v8501
        %v8598 = vunpack.c.l.b16 %v8502
        %v8599 = vunpack.c.l.b16 %v8503
        %v8600 = vunpack.c.l.b16 %v8504
        %v8601 = vunpack.c.l.b16 %v8505
        %v8602 = vunpack.c.l.b16 %v8506
        %v8603 = vunpack.c.l.b16 %v8507
        %v8604 = vunpack.c.l.b16 %v8508
        %v8605 = vunpack.c.l.b16 %v8509
        %v8606 = vunpack.c.l.b16 %v8510
        %v8607 = vunpack.c.l.b16 %v8511
        %v8608 = vunpack.c.l.b16 %v8512
        %v8609 = vunpack.c.l.b16 %v8513
        %v8610 = vpack.c.b16 %v8563, %v8562
        %v8611 = vpack.c.b16 %v8565, %v8564
        %v8612 = vpack.c.b16 %v8567, %v8566
        %v8613 = vpack.c.b16 %v8569, %v8568
        %v8614 = vpack.c.b16 %v8571, %v8570
        %v8615 = vpack.c.b16 %v8573, %v8572
        %v8616 = vpack.c.b16 %v8575, %v8574
        %v8617 = vpack.c.b16 %v8577, %v8576
        %v8618 = vpack.c.b16 %v8579, %v8578
        %v8619 = vpack.c.b16 %v8581, %v8580
        %v8620 = vpack.c.b16 %v8583, %v8582
        %v8621 = vpack.c.b16 %v8585, %v8584
        %v8622 = vpack.c.b16 %v8587, %v8586
        %v8623 = vpack.c.b16 %v8589, %v8588
        %v8624 = vpack.c.b16 %v8591, %v8590
        %v8625 = vpack.c.b16 %v8593, %v8592
        %v8626 = vpack.c.b16 %v8595, %v8594
        %v8627 = vpack.c.b16 %v8597, %v8596
        %v8628 = vpack.c.b16 %v8599, %v8598
        %v8629 = vpack.c.b16 %v8601, %v8600
        %v8630 = vpack.c.b16 %v8603, %v8602
        %v8631 = vpack.c.b16 %v8605, %v8604
        %v8632 = vpack.c.b16 %v8607, %v8606
        %v8633 = vpack.c.b16 %v8609, %v8608
        %8658 = vmatprep.subr.bf16.mxu0 0
        %8659 = vmatpush1.bf16.msra.mxu0 %v8610
        %8660 = vmatprep.subr.bf16.mxu0 0
        %8661 = vmatpush1.bf16.msra.mxu0 %v8611
        %8662 = vmatprep.subr.bf16.mxu0 0
        %8663 = vmatpush1.bf16.msra.mxu0 %v8612
        %8664 = vmatprep.subr.bf16.mxu0 0
        %8665 = vmatpush1.bf16.msra.mxu0 %v8613
        %8666 = vmatprep.subr.bf16.mxu0 0
        %8667 = vmatpush1.bf16.msra.mxu0 %v8614
        %8668 = vmatprep.subr.bf16.mxu0 0
        %8669 = vmatpush1.bf16.msra.mxu0 %v8615
        %8670 = vmatprep.subr.bf16.mxu0 0
        %8671 = vmatpush1.bf16.msra.mxu0 %v8616
        %8672 = vmatprep.subr.bf16.mxu0 0
        %8673 = vmatpush1.bf16.msra.mxu0 %v8617
        %8674 = vmatprep.subr.bf16.mxu0 0
        %8675 = vmatpush1.bf16.msra.mxu0 %v8618
        %8676 = vmatprep.subr.bf16.mxu0 0
        %8677 = vmatpush1.bf16.msra.mxu0 %v8619
        %8678 = vmatprep.subr.bf16.mxu0 0
        %8679 = vmatpush1.bf16.msra.mxu0 %v8620
        %8680 = vmatprep.subr.bf16.mxu0 0
        %8681 = vmatpush1.bf16.msra.mxu0 %v8621
        %8682 = vmatprep.subr.bf16.mxu0 0
        %8683 = vmatpush1.bf16.msra.mxu0 %v8622
        %8684 = vmatprep.subr.bf16.mxu0 0
        %8685 = vmatpush1.bf16.msra.mxu0 %v8623
        %8686 = vmatprep.subr.bf16.mxu0 0
        %8687 = vmatpush1.bf16.msra.mxu0 %v8624
        %8688 = vmatprep.subr.bf16.mxu0 0
        %8689 = vmatpush1.bf16.msra.mxu0 %v8625
        %8690 = vmatprep.mubr.bf16.mxu0 %v7537
        %8691 = vmatmul.mubr.bf16.gmra.mrb[0].mxu0 %v7484
        %v8692 = vpop.f32.mrb[0].mxu0
        %v8693 = vadd.f32 0.0, %v8692
        %v8694 = vpop.f32.mrb[0].mxu0
        %v8695 = vpop.f32.mrb[0].mxu0
        %v8696 = vadd.f32 0.0, %v8695
        %v8697 = vpop.f32.mrb[0].mxu0
        %8698 = vmatprep.mubr.bf16.mxu0 %v7549
        %8699 = vmatmul.mubr.bf16.gmra.mrb[0].mxu0 %v7485
        %v8700 = vpop.f32.mrb[0].mxu0
        %v8701 = vadd.f32 0.0, %v8700
        %v8702 = vpop.f32.mrb[0].mxu0
        %v8703 = vpop.f32.mrb[0].mxu0
        %v8704 = vadd.f32 0.0, %v8703
        %v8705 = vpop.f32.mrb[0].mxu0
        %8706 = vmatprep.mubr.bf16.mxu0 %v7561
        %8707 = vmatmul.mubr.bf16.gmra.mrb[0].mxu0 %v7486
        %v8708 = vpop.f32.mrb[0].mxu0
        %v8709 = vadd.f32 0.0, %v8708
        %v8710 = vpop.f32.mrb[0].mxu0
        %v8711 = vpop.f32.mrb[0].mxu0
        %v8712 = vadd.f32 0.0, %v8711
        %v8713 = vpop.f32.mrb[0].mxu0
        %8714 = vmatprep.mubr.bf16.mxu0 %v7573
        %8715 = vmatmul.mubr.bf16.gmra.mrb[0].mxu0 %v7487
        %v8716 = vpop.f32.mrb[0].mxu0
        %v8717 = vadd.f32 0.0, %v8716
        %v8718 = vpop.f32.mrb[0].mxu0
        %v8719 = vpop.f32.mrb[0].mxu0
        %v8720 = vadd.f32 0.0, %v8719
        %v8721 = vpop.f32.mrb[0].mxu0
        %8722 = vmatprep.mubr.bf16.mxu0 %v7585
        %8723 = vmatmul.mubr.bf16.gmra.mrb[0].mxu0 %v7488
        %v8724 = vpop.f32.mrb[0].mxu0
        %v8725 = vadd.f32 0.0, %v8724
        %v8726 = vpop.f32.mrb[0].mxu0
        %v8727 = vpop.f32.mrb[0].mxu0
        %v8728 = vadd.f32 0.0, %v8727
        %v8729 = vpop.f32.mrb[0].mxu0
        %8730 = vmatprep.mubr.bf16.mxu0 %v7597
        %8731 = vmatmul.mubr.bf16.gmra.mrb[0].mxu0 %v7489
        %v8732 = vpop.f32.mrb[0].mxu0
        %v8733 = vadd.f32 0.0, %v8732
        %v8734 = vpop.f32.mrb[0].mxu0
        %v8735 = vpop.f32.mrb[0].mxu0
        %v8736 = vadd.f32 0.0, %v8735
        %v8737 = vpop.f32.mrb[0].mxu0
        %8738 = vmatprep.mubr.bf16.mxu0 %v7713
        %8739 = vmatmul.mubr.bf16.gmra.mrb[0].mxu0 %v7490
        %v8740 = vpop.f32.mrb[0].mxu0
        %v8741 = vadd.f32 0.0, %v8740
        %v8742 = vpop.f32.mrb[0].mxu0
        %v8743 = vpop.f32.mrb[0].mxu0
        %v8744 = vadd.f32 0.0, %v8743
        %v8745 = vpop.f32.mrb[0].mxu0
        %8746 = vmatprep.mubr.bf16.mxu0 %v8457
        %8747 = vmatmul.mubr.bf16.gmra.mrb[0].mxu0 %v7491
        %v8748 = vpop.f32.mrb[0].mxu0
        %v8749 = vadd.f32 0.0, %v8748
        %v8750 = vpop.f32.mrb[0].mxu0
        %v8751 = vpop.f32.mrb[0].mxu0
        %v8752 = vadd.f32 0.0, %v8751
        %v8753 = vpop.f32.mrb[0].mxu0
        %8754 = vdwg.mxu0
        %8755 = vmatprep.subr.bf16.mxu0 0
        %8756 = vmatpush1.bf16.msra.mxu0 %v8626
        %8757 = vmatprep.subr.bf16.mxu0 0
        %8758 = vmatpush1.bf16.msra.mxu0 %v8627
        %8759 = vmatprep.subr.bf16.mxu0 0
        %8760 = vmatpush1.bf16.msra.mxu0 %v8628
        %8761 = vmatprep.subr.bf16.mxu0 0
        %8762 = vmatpush1.bf16.msra.mxu0 %v8629
        %8763 = vmatprep.subr.bf16.mxu0 0
        %8764 = vmatpush1.bf16.msra.mxu0 %v8630
        %8765 = vmatprep.subr.bf16.mxu0 0
        %8766 = vmatpush1.bf16.msra.mxu0 %v8631
        %8767 = vmatprep.subr.bf16.mxu0 0
        %8768 = vmatpush1.bf16.msra.mxu0 %v8632
        %8769 = vmatprep.subr.bf16.mxu0 0
        %8770 = vmatpush1.bf16.msra.mxu0 %v8633
        %8771 = vmatprep.subr.bf16.mxu0 0
        %8772 = vmatpush1.bf16.msra.mxu0 0
        %8773 = vmatprep.subr.bf16.mxu0 0
        %8774 = vmatpush1.bf16.msra.mxu0 0
        %8775 = vmatprep.subr.bf16.mxu0 0
        %8776 = vmatpush1.bf16.msra.mxu0 0
        %8777 = vmatprep.subr.bf16.mxu0 0
        %8778 = vmatpush1.bf16.msra.mxu0 0
        %8779 = vmatprep.subr.bf16.mxu0 0
        %8780 = vmatpush1.bf16.msra.mxu0 0
        %8781 = vmatprep.subr.bf16.mxu0 0
        %8782 = vmatpush1.bf16.msra.mxu0 0
        %8783 = vmatprep.subr.bf16.mxu0 0
        %8784 = vmatpush1.bf16.msra.mxu0 0
        %8785 = vmatprep.subr.bf16.mxu0 0
        %8786 = vmatpush1.bf16.msra.mxu0 0
        %8787 = vmatprep.mubr.bf16.mxu0 0
        %8788 = vmatmul.mubr.bf16.gmra.mrb[0].mxu0 %v7630
        %v8789 = vpop.f32.mrb[0].mxu0
        %v8790 = vadd.f32 %v8693, %v8789
        %v8791 = vpop.f32.mrb[0].mxu0
        %v8792 = vpop.f32.mrb[0].mxu0
        %v8793 = vadd.f32 %v8696, %v8792
        %v8794 = vpop.f32.mrb[0].mxu0
        %8795 = vmatprep.mubr.bf16.mxu0 0
        %8796 = vmatmul.mubr.bf16.gmra.mrb[0].mxu0 %v7633
        %v8797 = vpop.f32.mrb[0].mxu0
        %v8798 = vadd.f32 %v8701, %v8797
        %v8799 = vpop.f32.mrb[0].mxu0
        %v8800 = vpop.f32.mrb[0].mxu0
        %v8801 = vadd.f32 %v8704, %v8800
        %v8802 = vpop.f32.mrb[0].mxu0
        %8803 = vmatprep.mubr.bf16.mxu0 0
        %8804 = vmatmul.mubr.bf16.gmra.mrb[0].mxu0 %v7636
        %v8805 = vpop.f32.mrb[0].mxu0
        %v8806 = vadd.f32 %v8709, %v8805
        %v8807 = vpop.f32.mrb[0].mxu0
        %v8808 = vpop.f32.mrb[0].mxu0
        %v8809 = vadd.f32 %v8712, %v8808
        %v8810 = vpop.f32.mrb[0].mxu0
        %8811 = vmatprep.mubr.bf16.mxu0 0
        %8812 = vmatmul.mubr.bf16.gmra.mrb[0].mxu0 %v7639
        %v8813 = vpop.f32.mrb[0].mxu0
        %v8814 = vadd.f32 %v8717, %v8813
        %v8815 = vpop.f32.mrb[0].mxu0
        %v8816 = vpop.f32.mrb[0].mxu0
        %v8817 = vadd.f32 %v8720, %v8816
        %v8818 = vpop.f32.mrb[0].mxu0
        %8819 = vmatprep.mubr.bf16.mxu0 0
        %8820 = vmatmul.mubr.bf16.gmra.mrb[0].mxu0 %v7642
        %v8821 = vpop.f32.mrb[0].mxu0
        %v8822 = vadd.f32 %v8725, %v8821
        %v8823 = vpop.f32.mrb[0].mxu0
        %v8824 = vpop.f32.mrb[0].mxu0
        %v8825 = vadd.f32 %v8728, %v8824
        %v8826 = vpop.f32.mrb[0].mxu0
        %8827 = vmatprep.mubr.bf16.mxu0 0
        %8828 = vmatmul.mubr.bf16.gmra.mrb[0].mxu0 %v7645
        %v8829 = vpop.f32.mrb[0].mxu0
        %v8830 = vadd.f32 %v8733, %v8829
        %v8831 = vpop.f32.mrb[0].mxu0
        %v8832 = vpop.f32.mrb[0].mxu0
        %v8833 = vadd.f32 %v8736, %v8832
        %v8834 = vpop.f32.mrb[0].mxu0
        %8835 = vmatprep.mubr.bf16.mxu0 0
        %8836 = vmatmul.mubr.bf16.gmra.mrb[0].mxu0 %v7719
        %v8837 = vpop.f32.mrb[0].mxu0
        %v8838 = vadd.f32 %v8741, %v8837
        %v8839 = vpop.f32.mrb[0].mxu0
        %v8840 = vpop.f32.mrb[0].mxu0
        %v8841 = vadd.f32 %v8744, %v8840
        %v8842 = vpop.f32.mrb[0].mxu0
        %8843 = vmatprep.mubr.bf16.mxu0 0
        %8844 = vmatmul.mubr.bf16.gmra.mrb[0].mxu0 %v8463
        %v8845 = vpop.f32.mrb[0].mxu0
        %v8846 = vadd.f32 %v8749, %v8845
        %v8847 = vpop.f32.mrb[0].mxu0
        %v8848 = vpop.f32.mrb[0].mxu0
        %v8849 = vadd.f32 %v8752, %v8848
        %v8850 = vpop.f32.mrb[0].mxu0
        %8851 = vdwg.mxu0
        %v8852 = vadd.f32 %v8384, %v8790
        %v8853 = vadd.f32 %v8387, %v8793
        %v8854 = vadd.f32 %v8392, %v8798
        %v8855 = vadd.f32 %v8395, %v8801
        %v8856 = vadd.f32 %v8400, %v8806
        %v8857 = vadd.f32 %v8403, %v8809
        %v8858 = vadd.f32 %v8408, %v8814
        %v8859 = vadd.f32 %v8411, %v8817
        %v8860 = vadd.f32 %v8416, %v8822
        %v8861 = vadd.f32 %v8419, %v8825
        %v8862 = vadd.f32 %v8424, %v8830
        %v8863 = vadd.f32 %v8427, %v8833
        %v8864 = vadd.f32 %v8432, %v8838
        %v8865 = vadd.f32 %v8435, %v8841
        %v8866 = vadd.f32 %v8440, %v8846
        %v8867 = vadd.f32 %v8443, %v8849
        %v8868 = vld [vmem:[%s5 + $0x2] sm:$0x1]
        %v8869 = vlaneseq
        %v8870 = vshrl.u32 %v8869, 7
        %v8871 = vsub.s32 0, %v8870
        %v8872 = vrot.slane %v8868, %v8871
        %v8873 = vadd.f32 %v8852, %v8872
        %v8874 = vadd.f32 %v8853, %v8872
        %v8875 = vadd.f32 %v8854, %v8872
        %v8876 = vadd.f32 %v8855, %v8872
        %v8877 = vadd.f32 %v8856, %v8872
        %v8878 = vadd.f32 %v8857, %v8872
        %v8879 = vadd.f32 %v8858, %v8872
        %v8880 = vadd.f32 %v8859, %v8872
        %v8881 = vadd.f32 %v8860, %v8872
        %v8882 = vadd.f32 %v8861, %v8872
        %v8883 = vadd.f32 %v8862, %v8872
        %v8884 = vadd.f32 %v8863, %v8872
        %v8885 = vadd.f32 %v8864, %v8872
        %v8886 = vadd.f32 %v8865, %v8872
        %v8887 = vadd.f32 %v8866, %v8872
        %v8888 = vadd.f32 %v8867, %v8872
        %v8889 = vmax.f32 %v8873, 0.0
        %v8890 = vmax.f32 %v8874, 0.0
        %v8891 = vmax.f32 %v8875, 0.0
        %v8892 = vmax.f32 %v8876, 0.0
        %v8893 = vmax.f32 %v8877, 0.0
        %v8894 = vmax.f32 %v8878, 0.0
        %v8895 = vmax.f32 %v8879, 0.0
        %v8896 = vmax.f32 %v8880, 0.0
        %v8897 = vmax.f32 %v8881, 0.0
        %v8898 = vmax.f32 %v8882, 0.0
        %v8899 = vmax.f32 %v8883, 0.0
        %v8900 = vmax.f32 %v8884, 0.0
        %v8901 = vmax.f32 %v8885, 0.0
        %v8902 = vmax.f32 %v8886, 0.0
        %v8903 = vmax.f32 %v8887, 0.0
        %v8904 = vmax.f32 %v8888, 0.0
        %8905 = vst [vmem:[%s378] sm:$0xff] %v8889
        %8906 = vst [vmem:[%s378 + $0x8] sm:$0xff] %v8890
        %8907 = vst [vmem:[%s378 + $0x10] sm:$0xff] %v8891
        %8908 = vst [vmem:[%s378 + $0x18] sm:$0xff] %v8892
        %8909 = vst [vmem:[%s378 + $0x20] sm:$0xff] %v8893
        %8910 = vst [vmem:[%s378 + $0x28] sm:$0xff] %v8894
        %8911 = vst [vmem:[%s378 + $0x30] sm:$0xff] %v8895
        %8912 = vst [vmem:[%s378 + $0x38] sm:$0xff] %v8896
        %8913 = vst [vmem:[%s378 + $0x40] sm:$0xff] %v8897
        %8914 = vst [vmem:[%s378 + $0x48] sm:$0xff] %v8898
        %8915 = vst [vmem:[%s378 + $0x50] sm:$0xff] %v8899
        %8916 = vst [vmem:[%s378 + $0x58] sm:$0xff] %v8900
        %8917 = vst [vmem:[%s378 + $0x60] sm:$0xff] %v8901
        %8918 = vst [vmem:[%s378 + $0x68] sm:$0xff] %v8902
        %8919 = vst [vmem:[%s378 + $0x70] sm:$0xff] %v8903
        %8920 = vst [vmem:[%s378 + $0x78] sm:$0xff] %v8904
        %s8921 = sand.u32 %s193, 1
        %s8922 = scalar_lea.sflag [#allocation4], %s8921
        %s8923 = sand.u32 %s193, 1
        %s8924 = smul.addr %s8923, 128
        %s8925 = scalar_lea.vmem [#allocation11], %s8924
        // Predicated region
        $region65: #{tpu_custom_call.1} parent=43 // pred_check
          %p8926 = pneg %p203
        $region66: #{tpu_custom_call.1} parent=43 // pred_check_branch
          %8928 = sbr.rel (%p8926) target = $region68
        $region67: #{tpu_custom_call.1} parent=43 // pred_region
          %s8929 = smul.u32 8, %s32
          %s8931 = ssub.s32 2048, 2048
          %8932 = vsyncadd %s8922, %s8931
          %s8933 = smul.addr %s8929, 2
          %s8934 = smul.addr %s31, 32
          %s8935 = sadd.s32 %s8933, %s8934
          %s8936 = smul.addr %s8935, 128
          %s8937 = scalar_lea.hbm %s6, %s8936
          %s8938 = sshll.u32 %s8925, 4
          %s8939 = int_to_ptr.vmem [resolvable:$true] %s8938
          %8944 = dma.vmem_to_hbm [thread:$0]  %s8939, 2048, %s8937, %s8922, 128, 128, 8
        $region68: #{tpu_custom_call.1} parent=43 // pred_fallthru
          _
      $region44: #{tpu_custom_call.1} parent=5 // pred_fallthru
        _
      %p8945 = scmp.le.s32.totalorder 2, %s22
      // Predicated region
      $region69: #{tpu_custom_call.1} parent=5 // pred_check
        %p8946 = pneg %p8945
      $region70: #{tpu_custom_call.1} parent=5 // pred_check_branch
        %8948 = sbr.rel (%p8946) target = $region72
      $region71: #{tpu_custom_call.1} parent=5 // pred_region
        %s8949 = ssub.s32 %s22, 2
        // Predicated region
        $region73: #{tpu_custom_call.1} parent=71 // pred_check
          %p8950 = pneg %p209
        $region74: #{tpu_custom_call.1} parent=71 // pred_check_branch
          %8952 = sbr.rel (%p8950) target = $region76
        $region75: #{tpu_custom_call.1} parent=71 // pred_region
          %s8953 = sand.u32 %s194, 1
          %s8954 = scalar_lea.sflag [#allocation4], %s8953
          %s8955 = sand.u32 %s194, 1
          %s8956 = smul.addr %s8955, 128
          %s8957 = scalar_lea.vmem [#allocation11], %s8956
          %8958 = dma.done %s8954, 2048
        $region76: #{tpu_custom_call.1} parent=71 // pred_fallthru
          _
      $region72: #{tpu_custom_call.1} parent=5 // pred_fallthru
        _
    $region6: #{tpu_custom_call.1} parent=1 // loop_footer
      %s26 = sadd.s32 1, %s22
    $region7: #{tpu_custom_call.1} parent=1 // loop_footer_branch
      %21 = sbr.rel target = $region3
    $region8: #{tpu_custom_call.1} parent=1 // loop_exit
      _
    %8959 = vsyncpa [#allocation3], 1
    %s8960 = scalar_lea.sflag [#allocation3], 1
    %8961 = vsyncpa %s8960, 1
    %8962 = vsyncpa [#allocation6], 1
    %s8963 = scalar_lea.sflag [#allocation6], 1
    %8964 = vsyncpa %s8963, 1
    %8965 = vsyncpa [#allocation9], 1
    %8966 = vsyncpa [#allocation4], 1
    %s8967 = scalar_lea.sflag [#allocation4], 1
    %8968 = vsyncpa %s8967, 1

</llo_original>
